<compile_context>
chip_gen: v7x
topology: tpu7x:2x2x1
jax: 0.10.0
libtpu: 0.0.40
codegen_flags: <defaults>
</compile_context>

<pallas_src>
import functools

import jax
import jax.numpy as jnp
import numpy as np
from jax.experimental import pallas as pl
from jax.experimental.pallas import tpu as pltpu

EPS = 1e-5
SLOPE = 0.2
BF16 = jnp.bfloat16
F32 = jnp.float32


def _lrelu(y):
    return jnp.where(y >= 0.0, y, SLOPE * y)


# ---------------------------------------------------------------------------
# Static configuration (plain python ints, resolved once at build time)
# ---------------------------------------------------------------------------
def _make_cfg(ngf, batch, image_hw):
    specs = [
        dict(k=5, s=3, p=1, cin=3, cout=ngf),
        dict(k=4, s=2, p=1, cin=ngf, cout=2 * ngf),
        dict(k=4, s=2, p=1, cin=2 * ngf, cout=4 * ngf),
        dict(k=4, s=2, p=1, cin=4 * ngf, cout=8 * ngf),
        dict(k=4, s=1, p=0, cin=8 * ngf, cout=1),
    ]
    layers, h = [], image_hw
    for sp in specs:
        hin = h
        hc = hin + 2 * sp["p"]                      # H rows incl. zero padding
        ho = (hin + 2 * sp["p"] - sp["k"]) // sp["s"] + 1
        layers.append(dict(sp, hin=hin, hc=hc, ho=ho,
                           rtot=batch * hc - (sp["k"] - 1),   # stride-1 row pos.
                           kin=hin * sp["cin"], kout=ho * sp["cout"]))
        h = ho
    assert layers[-1]["ho"] == 1, "discriminator expects a 96x96-style input"
    return layers


# ---------------------------------------------------------------------------
# Parameter-only preprocessing (hoisted out of the per-call path)
# ---------------------------------------------------------------------------
def _row_weights(w_pt, win, stride, pad, out_cols=None):
    """Expand OIHW conv weights into per-kernel-row matmul matrices.

    Wrow[dh][w*cin + ci, wo*cout + co] = w_pt[co, ci, dh, w - (stride*wo - pad)]
    (zero outside the kernel window / image), i.e. kw window, W-pad and
    W-stride are all folded into the weight."""
    cout, cin, kh, kw = w_pt.shape
    wo = (win + 2 * pad - kw) // stride + 1
    wt = jnp.transpose(w_pt, (2, 3, 1, 0)).astype(F32)        # (kh, kw, cin, cout)
    mats = []
    for dh in range(kh):
        m = jnp.zeros((win * cin, wo * cout), F32)
        for dw in range(kw):
            placement = np.zeros((win, wo), np.float32)
            for o in range(wo):
                w = stride * o - pad + dw
                if 0 <= w < win:
                    placement[w, o] = 1.0
            m = m + jnp.kron(jnp.asarray(placement), wt[dh, dw])
        mats.append(m)
    out = jnp.stack(mats)
    if out_cols is not None and out_cols > wo * cout:
        out = jnp.pad(out, ((0, 0), (0, 0), (0, out_cols - wo * cout)))
    return out.astype(BF16)


def _selection(batch, lay_in, hc_out, pad_out):
    """0/1 matrix mapping the stride-1 row-conv outputs of `lay_in` onto the
    (zero H-padded) row canvas of the next layer: handles H-stride,
    batch-straddling garbage rows and H zero-padding in one matmul."""
    sel = np.zeros((batch * hc_out, lay_in["rtot"]), np.float32)
    for b in range(batch):
        for o in range(lay_in["ho"]):
            sel[b * hc_out + pad_out + o,
                b * lay_in["hc"] + lay_in["s"] * o] = 1.0
    return sel


def _valid_mask(batch, lay):
    m = np.zeros((lay["rtot"],), np.float32)
    for b in range(batch):
        for o in range(lay["ho"]):
            m[b * lay["hc"] + lay["s"] * o] = 1.0
    return m


def _group_matrix(wo, c):
    """(wo*c, c) 0/1 matrix summing the wo lane-groups per channel."""
    g = np.zeros((wo * c, c), np.float32)
    for w in range(wo):
        g[w * c:(w + 1) * c, :] = np.eye(c, dtype=np.float32)
    return g


# ---------------------------------------------------------------------------
# Build the fused forward
# ---------------------------------------------------------------------------
def build_discriminator(params, batch, image_hw):
    ngf = params["w1"].shape[0]
    L1, L2, L3, L4, L5 = _make_cfg(ngf, batch, image_hw)
    kout = L2["kout"]                       # lane width of every hidden canvas
    assert L1["kout"] == L3["kout"] == L4["kout"] == L5["kin"] == kout

    # Row-conv weights (bf16) and selection / BN helper constants.
    w1 = _row_weights(params["w1"], L1["hin"], L1["s"], L1["p"])
    w2 = _row_weights(params["w2"], L2["hin"], L2["s"], L2["p"])
    w3 = _row_weights(params["w3"], L3["hin"], L3["s"], L3["p"])
    w4 = _row_weights(params["w4"], L4["hin"], L4["s"], L4["p"])
    w5 = _row_weights(params["w5"], L5["hin"], L5["s"], L5["p"], out_cols=8)

    sel1 = jnp.asarray(_selection(batch, L1, L2["hc"], L2["p"]), BF16)
    sel2 = jnp.asarray(_selection(batch, L2, L3["hc"], L3["p"]), BF16)
    sel3 = jnp.asarray(_selection(batch, L3, L4["hc"], L4["p"]), BF16)
    sel4 = jnp.asarray(_selection(batch, L4, L5["hc"], L5["p"]), BF16)
    sel5 = jnp.asarray(_selection(batch, L5, 1, 0), F32)   # picks logit rows

    assert max(L2["rtot"], L3["rtot"], L4["rtot"]) <= 128
    maskp = np.zeros((4, 128), np.float32)
    for i, lay in enumerate((L2, L3, L4)):
        maskp[i, :lay["rtot"]] = _valid_mask(batch, lay)
    maskp = jnp.asarray(maskp)

    gb = jnp.stack([
        jnp.tile(params["g2"].astype(F32), L2["ho"]),
        jnp.tile(params["b2"].astype(F32), L2["ho"]),
        jnp.tile(params["g3"].astype(F32), L3["ho"]),
        jnp.tile(params["b3"].astype(F32), L3["ho"]),
        jnp.tile(params["g4"].astype(F32), L4["ho"]),
        jnp.tile(params["b4"].astype(F32), L4["ho"]),
        jnp.zeros((kout,), F32), jnp.zeros((kout,), F32)])

    g2 = jnp.asarray(_group_matrix(L2["ho"], L2["cout"]))
    g3 = jnp.asarray(_group_matrix(L3["ho"], L3["cout"]))
    g4 = jnp.asarray(_group_matrix(L4["ho"], L4["cout"]))
    gt2, gt3, gt4 = g2.T, g3.T, g4.T

    prep = (w1, w2, w3, w4, w5, sel1, sel2, sel3, sel4, sel5,
            maskp, gb, g2, g3, g4, gt2, gt3, gt4)

    cnt2 = float(batch * L2["ho"] * L2["ho"])
    cnt3 = float(batch * L3["ho"] * L3["ho"])
    cnt4 = float(batch * L4["ho"] * L4["ho"])

    # ------------------------------------------------------------------ kernel
    def kernel(c1_ref, w1_ref, w2_ref, w3_ref, w4_ref, w5_ref,
               s1_ref, s2_ref, s3_ref, s4_ref, s5_ref,
               mask_ref, gb_ref, g2_ref, g3_ref, g4_ref,
               gt2_ref, gt3_ref, gt4_ref,
               o_ref, c2_ref, c3_ref, c4_ref, c5_ref):

        def conv_rows(src_ref, w_ref, k, rtot):
            # stride-1 row conv: sum_dh  src[dh:dh+rtot, :] @ Wrow[dh]
            acc = jnp.dot(src_ref[0:rtot, :], w_ref[0],
                          preferred_element_type=F32)
            for dh in range(1, k):
                acc = acc + jnp.dot(src_ref[dh:dh + rtot, :], w_ref[dh],
                                    preferred_element_type=F32)
            return acc

        def bn_lrelu(y, mask_row, count, g, gt, gamma_row, beta_row):
            # Training-mode BatchNorm (biased var, two-pass) over the `count`
            # valid rows; mask_row zeroes batch-straddling garbage rows.
            inv = 1.0 / count
            colsum = jnp.dot(mask_row, y, preferred_element_type=F32)
            mean_c = jnp.dot(colsum, g, preferred_element_type=F32) * inv
            mean_f = jnp.dot(mean_c, gt, preferred_element_type=F32)
            d = y - mean_f
            var_c = jnp.dot(
                jnp.dot(mask_row, d * d, preferred_element_type=F32),
                g, preferred_element_type=F32) * inv
            rstd_f = jnp.dot(jax.lax.rsqrt(var_c + EPS), gt,
                             preferred_element_type=F32)
            return _lrelu(d * (gamma_row * rstd_f) + beta_row)

        def to_canvas(sel_ref, act, dst_ref):
            # Subsample/drop/zero-pad rows for the next layer's canvas.
            dst_ref[...] = jnp.dot(sel_ref[...], act.astype(BF16),
                                   preferred_element_type=F32).astype(BF16)

        # conv1 + LeakyReLU
        out1 = conv_rows(c1_ref, w1_ref, L1["k"], L1["rtot"])
        to_canvas(s1_ref, _lrelu(out1), c2_ref)

        # conv2 + BatchNorm + LeakyReLU
        out2 = conv_rows(c2_ref, w2_ref, L2["k"], L2["rtot"])
        a2 = bn_lrelu(out2, mask_ref[0:1, 0:L2["rtot"]], cnt2,
                      g2_ref[...], gt2_ref[...], gb_ref[0:1, :], gb_ref[1:2, :])
        to_canvas(s2_ref, a2, c3_ref)

        # conv3 + BatchNorm + LeakyReLU
        out3 = conv_rows(c3_ref, w3_ref, L3["k"], L3["rtot"])
        a3 = bn_lrelu(out3, mask_ref[1:2, 0:L3["rtot"]], cnt3,
                      g3_ref[...], gt3_ref[...], gb_ref[2:3, :], gb_ref[3:4, :])
        to_canvas(s3_ref, a3, c4_ref)

        # conv4 + BatchNorm + LeakyReLU
        out4 = conv_rows(c4_ref, w4_ref, L4["k"], L4["rtot"])
        a4 = bn_lrelu(out4, mask_ref[2:3, 0:L4["rtot"]], cnt4,
                      g4_ref[...], gt4_ref[...], gb_ref[4:5, :], gb_ref[5:6, :])
        to_canvas(s4_ref, a4, c5_ref)

        # conv5 (4x4 -> 1x1) + exact sigmoid
        out5 = conv_rows(c5_ref, w5_ref, L5["k"], L5["rtot"])      # (rtot5, 8)
        logits = jnp.dot(s5_ref[...], out5, preferred_element_type=F32)
        o_ref[...] = 1.0 / (1.0 + jnp.exp(-logits[:, 0:1]))

    # --------------------------------------------------------------- wrapping
    c1_shape = (batch * L1["hc"], L1["kin"])

    def _full_spec(shape):
        nd = len(shape)
        return pl.BlockSpec(shape, lambda i, _nd=nd: (0,) * _nd)

    in_specs = [_full_spec(c1_shape)] + [_full_spec(a.shape) for a in prep]

    scratch_shapes = [
        pltpu.VMEM((batch * L2["hc"], kout), BF16),
        pltpu.VMEM((batch * L3["hc"], kout), BF16),
        pltpu.VMEM((batch * L4["hc"], kout), BF16),
        pltpu.VMEM((batch * L5["hc"], kout), BF16),
    ]

    flops = 0
    for lay, w in zip((L1, L2, L3, L4, L5), (w1, w2, w3, w4, w5)):
        flops += 2 * lay["k"] * lay["rtot"] * int(w.shape[1]) * int(w.shape[2])
    for s in (sel1, sel2, sel3, sel4):
        flops += 2 * int(s.shape[0]) * int(s.shape[1]) * kout
    bytes_accessed = (2 * c1_shape[0] * c1_shape[1] + 4 * batch
                      + sum(int(a.size) * a.dtype.itemsize for a in prep))

    pallas_fn = pl.pallas_call(
        kernel,
        out_shape=jax.ShapeDtypeStruct((batch, 1), F32),
        grid_spec=pltpu.PrefetchScalarGridSpec(
            num_scalar_prefetch=0,
            grid=(1,),
            in_specs=in_specs,
            out_specs=pl.BlockSpec((batch, 1), lambda i: (0, 0)),
            scratch_shapes=scratch_shapes),
        compiler_params=pltpu.CompilerParams(
            dimension_semantics=("arbitrary",),
            vmem_limit_bytes=32 * 1024 * 1024),
        cost_estimate=pl.CostEstimate(flops=flops, transcendentals=512,
                                      bytes_accessed=bytes_accessed),
    )

    @jax.jit
    def forward(x_nchw, prep_arrays):
        n, cin, hin, win = x_nchw.shape
        assert (n, cin, hin, win) == (batch, L1["cin"], L1["hin"], L1["hin"])
        # NCHW -> row canvas (batch*(H+2p), W*Cin), zero H-padded, bf16.
        xh = jnp.transpose(x_nchw, (0, 2, 3, 1)).astype(F32)
        xh = jnp.pad(xh, ((0, 0), (L1["p"], L1["p"]), (0, 0), (0, 0)))
        c1 = xh.reshape(batch * L1["hc"], L1["kin"]).astype(BF16)
        return pallas_fn(c1, *prep_arrays).reshape(-1)

    return functools.partial(forward, prep_arrays=prep)


# ---------------------------------------------------------------------------
# Pure-JAX reference (correctness check)
# ---------------------------------------------------------------------------
def reference_forward(x_nchw, params):
    x = jnp.transpose(x_nchw, (0, 2, 3, 1)).astype(jnp.float32)

    def conv(h, w_pt, s, p):
        w = jnp.transpose(w_pt, (2, 3, 1, 0))
        return jax.lax.conv_general_dilated(
            h, w, (s, s), ((p, p), (p, p)),
            dimension_numbers=("NHWC", "HWIO", "NHWC"),
            precision=jax.lax.Precision.HIGHEST)

    def lrelu(h):
        return jnp.where(h >= 0.0, h, SLOPE * h)

    def bn(h, g, b):
        mean = jnp.mean(h, axis=(0, 1, 2))
        var = jnp.mean((h - mean) ** 2, axis=(0, 1, 2))
        return (h - mean) / jnp.sqrt(var + EPS) * g + b

    x = lrelu(conv(x, params["w1"], 3, 1))
    x = lrelu(bn(conv(x, params["w2"], 2, 1), params["g2"], params["b2"]))
    x = lrelu(bn(conv(x, params["w3"], 2, 1), params["g3"], params["b3"]))
    x = lrelu(bn(conv(x, params["w4"], 2, 1), params["g4"], params["b4"]))
    x = jax.nn.sigmoid(conv(x, params["w5"], 1, 0))
    return x.reshape(-1)


# ---------------------------------------------------------------------------
if __name__ == "__main__":
    ngf = 8
    batch = 2
    image = 96          # DCGAN-96 discriminator: 96 -> 32 -> 16 -> 8 -> 4 -> 1
    key = jax.random.PRNGKey(0)
    ks = jax.random.split(key, 12)

    params = {
        "w1": 0.05 * jax.random.normal(ks[0], (ngf, 3, 5, 5), jnp.float32),
        "w2": 0.05 * jax.random.normal(ks[1], (ngf * 2, ngf, 4, 4), jnp.float32),
        "g2": 1.0 + 0.1 * jax.random.normal(ks[2], (ngf * 2,), jnp.float32),
        "b2": 0.05 * jax.random.normal(ks[3], (ngf * 2,), jnp.float32),
        "w3": 0.05 * jax.random.normal(ks[4], (ngf * 4, ngf * 2, 4, 4), jnp.float32),
        "g3": 1.0 + 0.1 * jax.random.normal(ks[5], (ngf * 4,), jnp.float32),
        "b3": 0.05 * jax.random.normal(ks[6], (ngf * 4,), jnp.float32),
        "w4": 0.05 * jax.random.normal(ks[7], (ngf * 8, ngf * 4, 4, 4), jnp.float32),
        "g4": 1.0 + 0.1 * jax.random.normal(ks[8], (ngf * 8,), jnp.float32),
        "b4": 0.05 * jax.random.normal(ks[9], (ngf * 8,), jnp.float32),
        "w5": 0.05 * jax.random.normal(ks[10], (1, ngf * 8, 4, 4), jnp.float32),
    }

    x = jax.random.normal(ks[11], (batch, 3, image, image), jnp.float32)

    forward = build_discriminator(params, batch=batch, image_hw=image)
    out = jax.block_until_ready(forward(x))
    ref = jax.block_until_ready(reference_forward(x, params))

    assert out.shape == (batch,), out.shape
    # Tolerance covers bf16 MXU operands (f32 accumulation / f32 epilogues).
    np.testing.assert_allclose(np.asarray(out), np.asarray(ref),
                               rtol=2e-2, atol=2e-2)
    print("KERNEL_OK")
</pallas_src>

<mosaic_0001>
module attributes {stable_mosaic.version = 11 : i64} {
  func.func @kernel(%arg0: i32, %arg1: memref<196x288xbf16, #tpu.memory_space<vmem>>, %arg2: memref<5x288x256xbf16, #tpu.memory_space<vmem>>, %arg3: memref<4x256x256xbf16, #tpu.memory_space<vmem>>, %arg4: memref<4x256x256xbf16, #tpu.memory_space<vmem>>, %arg5: memref<4x256x256xbf16, #tpu.memory_space<vmem>>, %arg6: memref<4x256x8xbf16, #tpu.memory_space<vmem>>, %arg7: memref<68x192xbf16, #tpu.memory_space<vmem>>, %arg8: memref<36x65xbf16, #tpu.memory_space<vmem>>, %arg9: memref<20x33xbf16, #tpu.memory_space<vmem>>, %arg10: memref<8x17xbf16, #tpu.memory_space<vmem>>, %arg11: memref<2x5xf32, #tpu.memory_space<vmem>>, %arg12: memref<4x128xf32, #tpu.memory_space<vmem>>, %arg13: memref<8x256xf32, #tpu.memory_space<vmem>>, %arg14: memref<256x16xf32, #tpu.memory_space<vmem>>, %arg15: memref<256x32xf32, #tpu.memory_space<vmem>>, %arg16: memref<256x64xf32, #tpu.memory_space<vmem>>, %arg17: memref<16x256xf32, #tpu.memory_space<vmem>>, %arg18: memref<32x256xf32, #tpu.memory_space<vmem>>, %arg19: memref<64x256xf32, #tpu.memory_space<vmem>>, %arg20: memref<2x1xf32, #tpu.memory_space<vmem>>, %arg21: memref<68x256xbf16, #tpu.memory_space<vmem>>, %arg22: memref<36x256xbf16, #tpu.memory_space<vmem>>, %arg23: memref<20x256xbf16, #tpu.memory_space<vmem>>, %arg24: memref<8x256xbf16, #tpu.memory_space<vmem>>) attributes {dimension_semantics = [#tpu.dimension_semantics<arbitrary>], iteration_bounds = array<i64: 1>, scalar_prefetch = 0 : i64, scratch_operands = 4 : i64, tpu.core_type = #tpu.core_type<tc>, window_params = [{pipeline_mode = #tpu.pipeline_mode<synchronous>, transform_indices = @transform_0, window_bounds = array<i64: 196, 288>}, {pipeline_mode = #tpu.pipeline_mode<synchronous>, transform_indices = @transform_1, window_bounds = array<i64: 5, 288, 256>}, {pipeline_mode = #tpu.pipeline_mode<synchronous>, transform_indices = @transform_2, window_bounds = array<i64: 4, 256, 256>}, {pipeline_mode = #tpu.pipeline_mode<synchronous>, transform_indices = @transform_3, window_bounds = array<i64: 4, 256, 256>}, {pipeline_mode = #tpu.pipeline_mode<synchronous>, transform_indices = @transform_4, window_bounds = array<i64: 4, 256, 256>}, {pipeline_mode = #tpu.pipeline_mode<synchronous>, transform_indices = @transform_5, window_bounds = array<i64: 4, 256, 8>}, {pipeline_mode = #tpu.pipeline_mode<synchronous>, transform_indices = @transform_6, window_bounds = array<i64: 68, 192>}, {pipeline_mode = #tpu.pipeline_mode<synchronous>, transform_indices = @transform_7, window_bounds = array<i64: 36, 65>}, {pipeline_mode = #tpu.pipeline_mode<synchronous>, transform_indices = @transform_8, window_bounds = array<i64: 20, 33>}, {pipeline_mode = #tpu.pipeline_mode<synchronous>, transform_indices = @transform_9, window_bounds = array<i64: 8, 17>}, {pipeline_mode = #tpu.pipeline_mode<synchronous>, transform_indices = @transform_10, window_bounds = array<i64: 2, 5>}, {pipeline_mode = #tpu.pipeline_mode<synchronous>, transform_indices = @transform_11, window_bounds = array<i64: 4, 128>}, {pipeline_mode = #tpu.pipeline_mode<synchronous>, transform_indices = @transform_12, window_bounds = array<i64: 8, 256>}, {pipeline_mode = #tpu.pipeline_mode<synchronous>, transform_indices = @transform_13, window_bounds = array<i64: 256, 16>}, {pipeline_mode = #tpu.pipeline_mode<synchronous>, transform_indices = @transform_14, window_bounds = array<i64: 256, 32>}, {pipeline_mode = #tpu.pipeline_mode<synchronous>, transform_indices = @transform_15, window_bounds = array<i64: 256, 64>}, {pipeline_mode = #tpu.pipeline_mode<synchronous>, transform_indices = @transform_16, window_bounds = array<i64: 16, 256>}, {pipeline_mode = #tpu.pipeline_mode<synchronous>, transform_indices = @transform_17, window_bounds = array<i64: 32, 256>}, {pipeline_mode = #tpu.pipeline_mode<synchronous>, transform_indices = @transform_18, window_bounds = array<i64: 64, 256>}, {pipeline_mode = #tpu.pipeline_mode<synchronous>, transform_indices = @transform_19, window_bounds = array<i64: 2, 1>}]} {
    %c0 = arith.constant 0 : index
    %c0_0 = arith.constant 0 : index
    %0 = vector.load %arg1[%c0, %c0_0] : memref<196x288xbf16, #tpu.memory_space<vmem>>, vector<192x288xbf16>
    %c0_1 = arith.constant 0 : index
    %c0_2 = arith.constant 0 : index
    %c0_3 = arith.constant 0 : index
    %1 = vector.load %arg2[%c0_1, %c0_2, %c0_3] : memref<5x288x256xbf16, #tpu.memory_space<vmem>>, vector<1x288x256xbf16>
    %2 = vector.shape_cast %1 : vector<1x288x256xbf16> to vector<288x256xbf16>
    %cst = arith.constant dense<0.000000e+00> : vector<192x256xf32>
    %3 = tpu.matmul %0, %2, %cst {dimension_numbers = #tpu.dot_dimension_numbers<[1], [0], [0], [1], [0, 0, 1, 1], [], []>} : vector<192x288xbf16>, vector<288x256xbf16>, vector<192x256xf32> -> vector<192x256xf32>
    %c1 = arith.constant 1 : index
    %c0_4 = arith.constant 0 : index
    %4 = vector.load %arg1[%c1, %c0_4] : memref<196x288xbf16, #tpu.memory_space<vmem>>, vector<192x288xbf16>
    %c1_5 = arith.constant 1 : index
    %c0_6 = arith.constant 0 : index
    %c0_7 = arith.constant 0 : index
    %5 = vector.load %arg2[%c1_5, %c0_6, %c0_7] : memref<5x288x256xbf16, #tpu.memory_space<vmem>>, vector<1x288x256xbf16>
    %6 = vector.shape_cast %5 : vector<1x288x256xbf16> to vector<288x256xbf16>
    %cst_8 = arith.constant dense<0.000000e+00> : vector<192x256xf32>
    %7 = tpu.matmul %4, %6, %cst_8 {dimension_numbers = #tpu.dot_dimension_numbers<[1], [0], [0], [1], [0, 0, 1, 1], [], []>} : vector<192x288xbf16>, vector<288x256xbf16>, vector<192x256xf32> -> vector<192x256xf32>
    %8 = arith.addf %3, %7 : vector<192x256xf32>
    %c2 = arith.constant 2 : index
    %c0_9 = arith.constant 0 : index
    %9 = vector.load %arg1[%c2, %c0_9] : memref<196x288xbf16, #tpu.memory_space<vmem>>, vector<192x288xbf16>
    %c2_10 = arith.constant 2 : index
    %c0_11 = arith.constant 0 : index
    %c0_12 = arith.constant 0 : index
    %10 = vector.load %arg2[%c2_10, %c0_11, %c0_12] : memref<5x288x256xbf16, #tpu.memory_space<vmem>>, vector<1x288x256xbf16>
    %11 = vector.shape_cast %10 : vector<1x288x256xbf16> to vector<288x256xbf16>
    %cst_13 = arith.constant dense<0.000000e+00> : vector<192x256xf32>
    %12 = tpu.matmul %9, %11, %cst_13 {dimension_numbers = #tpu.dot_dimension_numbers<[1], [0], [0], [1], [0, 0, 1, 1], [], []>} : vector<192x288xbf16>, vector<288x256xbf16>, vector<192x256xf32> -> vector<192x256xf32>
    %13 = arith.addf %8, %12 : vector<192x256xf32>
    %c3 = arith.constant 3 : index
    %c0_14 = arith.constant 0 : index
    %14 = vector.load %arg1[%c3, %c0_14] : memref<196x288xbf16, #tpu.memory_space<vmem>>, vector<192x288xbf16>
    %c3_15 = arith.constant 3 : index
    %c0_16 = arith.constant 0 : index
    %c0_17 = arith.constant 0 : index
    %15 = vector.load %arg2[%c3_15, %c0_16, %c0_17] : memref<5x288x256xbf16, #tpu.memory_space<vmem>>, vector<1x288x256xbf16>
    %16 = vector.shape_cast %15 : vector<1x288x256xbf16> to vector<288x256xbf16>
    %cst_18 = arith.constant dense<0.000000e+00> : vector<192x256xf32>
    %17 = tpu.matmul %14, %16, %cst_18 {dimension_numbers = #tpu.dot_dimension_numbers<[1], [0], [0], [1], [0, 0, 1, 1], [], []>} : vector<192x288xbf16>, vector<288x256xbf16>, vector<192x256xf32> -> vector<192x256xf32>
    %18 = arith.addf %13, %17 : vector<192x256xf32>
    %c4 = arith.constant 4 : index
    %c0_19 = arith.constant 0 : index
    %19 = vector.load %arg1[%c4, %c0_19] : memref<196x288xbf16, #tpu.memory_space<vmem>>, vector<192x288xbf16>
    %c4_20 = arith.constant 4 : index
    %c0_21 = arith.constant 0 : index
    %c0_22 = arith.constant 0 : index
    %20 = vector.load %arg2[%c4_20, %c0_21, %c0_22] : memref<5x288x256xbf16, #tpu.memory_space<vmem>>, vector<1x288x256xbf16>
    %21 = vector.shape_cast %20 : vector<1x288x256xbf16> to vector<288x256xbf16>
    %cst_23 = arith.constant dense<0.000000e+00> : vector<192x256xf32>
    %22 = tpu.matmul %19, %21, %cst_23 {dimension_numbers = #tpu.dot_dimension_numbers<[1], [0], [0], [1], [0, 0, 1, 1], [], []>} : vector<192x288xbf16>, vector<288x256xbf16>, vector<192x256xf32> -> vector<192x256xf32>
    %23 = arith.addf %18, %22 : vector<192x256xf32>
    %cst_24 = arith.constant 0.000000e+00 : f32
    %24 = vector.broadcast %cst_24 : f32 to vector<192x256xf32>
    %25 = arith.cmpf oge, %23, %24 : vector<192x256xf32>
    %cst_25 = arith.constant 2.000000e-01 : f32
    %26 = vector.broadcast %cst_25 : f32 to vector<192x256xf32>
    %27 = arith.mulf %26, %23 : vector<192x256xf32>
    %28 = arith.select %25, %23, %27 : vector<192x256xi1>, vector<192x256xf32>
    %c0_26 = arith.constant 0 : index
    %c0_27 = arith.constant 0 : index
    %29 = vector.load %arg7[%c0_26, %c0_27] : memref<68x192xbf16, #tpu.memory_space<vmem>>, vector<68x192xbf16>
    %30 = arith.truncf %28 : vector<192x256xf32> to vector<192x256xbf16>
    %cst_28 = arith.constant dense<0.000000e+00> : vector<68x256xf32>
    %31 = tpu.matmul %29, %30, %cst_28 {dimension_numbers = #tpu.dot_dimension_numbers<[1], [0], [0], [1], [0, 0, 1, 1], [], []>} : vector<68x192xbf16>, vector<192x256xbf16>, vector<68x256xf32> -> vector<68x256xf32>
    %32 = arith.truncf %31 : vector<68x256xf32> to vector<68x256xbf16>
    %c0_29 = arith.constant 0 : index
    %c0_30 = arith.constant 0 : index
    %33 = vector.load %arg21[%c0_29, %c0_30] : memref<68x256xbf16, #tpu.memory_space<vmem>>, vector<68x256xbf16>
    tpu.vector_store %arg21[%c0_29, %c0_30], %32 {strides = array<i32>} : memref<68x256xbf16, #tpu.memory_space<vmem>>, vector<68x256xbf16>,
    %c0_31 = arith.constant 0 : index
    %c0_32 = arith.constant 0 : index
    %34 = vector.load %arg21[%c0_31, %c0_32] : memref<68x256xbf16, #tpu.memory_space<vmem>>, vector<65x256xbf16>
    %c0_33 = arith.constant 0 : index
    %c0_34 = arith.constant 0 : index
    %c0_35 = arith.constant 0 : index
    %35 = vector.load %arg3[%c0_33, %c0_34, %c0_35] : memref<4x256x256xbf16, #tpu.memory_space<vmem>>, vector<1x256x256xbf16>
    %36 = vector.shape_cast %35 : vector<1x256x256xbf16> to vector<256x256xbf16>
    %cst_36 = arith.constant dense<0.000000e+00> : vector<65x256xf32>
    %37 = tpu.matmul %34, %36, %cst_36 {dimension_numbers = #tpu.dot_dimension_numbers<[1], [0], [0], [1], [0, 0, 1, 1], [], []>} : vector<65x256xbf16>, vector<256x256xbf16>, vector<65x256xf32> -> vector<65x256xf32>
    %c1_37 = arith.constant 1 : index
    %c0_38 = arith.constant 0 : index
    %38 = vector.load %arg21[%c1_37, %c0_38] : memref<68x256xbf16, #tpu.memory_space<vmem>>, vector<65x256xbf16>
    %c1_39 = arith.constant 1 : index
    %c0_40 = arith.constant 0 : index
    %c0_41 = arith.constant 0 : index
    %39 = vector.load %arg3[%c1_39, %c0_40, %c0_41] : memref<4x256x256xbf16, #tpu.memory_space<vmem>>, vector<1x256x256xbf16>
    %40 = vector.shape_cast %39 : vector<1x256x256xbf16> to vector<256x256xbf16>
    %cst_42 = arith.constant dense<0.000000e+00> : vector<65x256xf32>
    %41 = tpu.matmul %38, %40, %cst_42 {dimension_numbers = #tpu.dot_dimension_numbers<[1], [0], [0], [1], [0, 0, 1, 1], [], []>} : vector<65x256xbf16>, vector<256x256xbf16>, vector<65x256xf32> -> vector<65x256xf32>
    %42 = arith.addf %37, %41 : vector<65x256xf32>
    %c2_43 = arith.constant 2 : index
    %c0_44 = arith.constant 0 : index
    %43 = vector.load %arg21[%c2_43, %c0_44] : memref<68x256xbf16, #tpu.memory_space<vmem>>, vector<65x256xbf16>
    %c2_45 = arith.constant 2 : index
    %c0_46 = arith.constant 0 : index
    %c0_47 = arith.constant 0 : index
    %44 = vector.load %arg3[%c2_45, %c0_46, %c0_47] : memref<4x256x256xbf16, #tpu.memory_space<vmem>>, vector<1x256x256xbf16>
    %45 = vector.shape_cast %44 : vector<1x256x256xbf16> to vector<256x256xbf16>
    %cst_48 = arith.constant dense<0.000000e+00> : vector<65x256xf32>
    %46 = tpu.matmul %43, %45, %cst_48 {dimension_numbers = #tpu.dot_dimension_numbers<[1], [0], [0], [1], [0, 0, 1, 1], [], []>} : vector<65x256xbf16>, vector<256x256xbf16>, vector<65x256xf32> -> vector<65x256xf32>
    %47 = arith.addf %42, %46 : vector<65x256xf32>
    %c3_49 = arith.constant 3 : index
    %c0_50 = arith.constant 0 : index
    %48 = vector.load %arg21[%c3_49, %c0_50] : memref<68x256xbf16, #tpu.memory_space<vmem>>, vector<65x256xbf16>
    %c3_51 = arith.constant 3 : index
    %c0_52 = arith.constant 0 : index
    %c0_53 = arith.constant 0 : index
    %49 = vector.load %arg3[%c3_51, %c0_52, %c0_53] : memref<4x256x256xbf16, #tpu.memory_space<vmem>>, vector<1x256x256xbf16>
    %50 = vector.shape_cast %49 : vector<1x256x256xbf16> to vector<256x256xbf16>
    %cst_54 = arith.constant dense<0.000000e+00> : vector<65x256xf32>
    %51 = tpu.matmul %48, %50, %cst_54 {dimension_numbers = #tpu.dot_dimension_numbers<[1], [0], [0], [1], [0, 0, 1, 1], [], []>} : vector<65x256xbf16>, vector<256x256xbf16>, vector<65x256xf32> -> vector<65x256xf32>
    %52 = arith.addf %47, %51 : vector<65x256xf32>
    %c0_55 = arith.constant 0 : index
    %c0_56 = arith.constant 0 : index
    %53 = vector.load %arg12[%c0_55, %c0_56] : memref<4x128xf32, #tpu.memory_space<vmem>>, vector<1x65xf32>
    %c0_57 = arith.constant 0 : index
    %c0_58 = arith.constant 0 : index
    %54 = vector.load %arg14[%c0_57, %c0_58] : memref<256x16xf32, #tpu.memory_space<vmem>>, vector<256x16xf32>
    %c0_59 = arith.constant 0 : index
    %c0_60 = arith.constant 0 : index
    %55 = vector.load %arg17[%c0_59, %c0_60] : memref<16x256xf32, #tpu.memory_space<vmem>>, vector<16x256xf32>
    %c0_61 = arith.constant 0 : index
    %c0_62 = arith.constant 0 : index
    %56 = vector.load %arg13[%c0_61, %c0_62] : memref<8x256xf32, #tpu.memory_space<vmem>>, vector<1x256xf32>
    %c1_63 = arith.constant 1 : index
    %c0_64 = arith.constant 0 : index
    %57 = vector.load %arg13[%c1_63, %c0_64] : memref<8x256xf32, #tpu.memory_space<vmem>>, vector<1x256xf32>
    %cst_65 = arith.constant dense<0.000000e+00> : vector<1x256xf32>
    %58 = tpu.matmul %53, %52, %cst_65 {dimension_numbers = #tpu.dot_dimension_numbers<[1], [0], [0], [1], [0, 0, 1, 1], [], []>} : vector<1x65xf32>, vector<65x256xf32>, vector<1x256xf32> -> vector<1x256xf32>
    %cst_66 = arith.constant dense<0.000000e+00> : vector<1x16xf32>
    %59 = tpu.matmul %58, %54, %cst_66 {dimension_numbers = #tpu.dot_dimension_numbers<[1], [0], [0], [1], [0, 0, 1, 1], [], []>} : vector<1x256xf32>, vector<256x16xf32>, vector<1x16xf32> -> vector<1x16xf32>
    %cst_67 = arith.constant 0.001953125 : f32
    %60 = vector.broadcast %cst_67 : f32 to vector<1x16xf32>
    %61 = arith.mulf %59, %60 : vector<1x16xf32>
    %cst_68 = arith.constant dense<0.000000e+00> : vector<1x256xf32>
    %62 = tpu.matmul %61, %55, %cst_68 {dimension_numbers = #tpu.dot_dimension_numbers<[1], [0], [0], [1], [0, 0, 1, 1], [], []>} : vector<1x16xf32>, vector<16x256xf32>, vector<1x256xf32> -> vector<1x256xf32>
    %63 = vector.broadcast %62 : vector<1x256xf32> to vector<65x256xf32>
    %64 = arith.subf %52, %63 : vector<65x256xf32>
    %65 = arith.mulf %64, %64 : vector<65x256xf32>
    %cst_69 = arith.constant dense<0.000000e+00> : vector<1x256xf32>
    %66 = tpu.matmul %53, %65, %cst_69 {dimension_numbers = #tpu.dot_dimension_numbers<[1], [0], [0], [1], [0, 0, 1, 1], [], []>} : vector<1x65xf32>, vector<65x256xf32>, vector<1x256xf32> -> vector<1x256xf32>
    %cst_70 = arith.constant dense<0.000000e+00> : vector<1x16xf32>
    %67 = tpu.matmul %66, %54, %cst_70 {dimension_numbers = #tpu.dot_dimension_numbers<[1], [0], [0], [1], [0, 0, 1, 1], [], []>} : vector<1x256xf32>, vector<256x16xf32>, vector<1x16xf32> -> vector<1x16xf32>
    %cst_71 = arith.constant 0.001953125 : f32
    %68 = vector.broadcast %cst_71 : f32 to vector<1x16xf32>
    %69 = arith.mulf %67, %68 : vector<1x16xf32>
    %cst_72 = arith.constant 9.99999974E-6 : f32
    %70 = vector.broadcast %cst_72 : f32 to vector<1x16xf32>
    %71 = arith.addf %69, %70 : vector<1x16xf32>
    %72 = math.rsqrt %71 : vector<1x16xf32>
    %cst_73 = arith.constant dense<0.000000e+00> : vector<1x256xf32>
    %73 = tpu.matmul %72, %55, %cst_73 {dimension_numbers = #tpu.dot_dimension_numbers<[1], [0], [0], [1], [0, 0, 1, 1], [], []>} : vector<1x16xf32>, vector<16x256xf32>, vector<1x256xf32> -> vector<1x256xf32>
    %74 = arith.mulf %56, %73 : vector<1x256xf32>
    %75 = vector.broadcast %74 : vector<1x256xf32> to vector<65x256xf32>
    %76 = arith.mulf %64, %75 : vector<65x256xf32>
    %77 = vector.broadcast %57 : vector<1x256xf32> to vector<65x256xf32>
    %78 = arith.addf %76, %77 : vector<65x256xf32>
    %cst_74 = arith.constant 0.000000e+00 : f32
    %79 = vector.broadcast %cst_74 : f32 to vector<65x256xf32>
    %80 = arith.cmpf oge, %78, %79 : vector<65x256xf32>
    %cst_75 = arith.constant 2.000000e-01 : f32
    %81 = vector.broadcast %cst_75 : f32 to vector<65x256xf32>
    %82 = arith.mulf %81, %78 : vector<65x256xf32>
    %83 = arith.select %80, %78, %82 : vector<65x256xi1>, vector<65x256xf32>
    %c0_76 = arith.constant 0 : index
    %c0_77 = arith.constant 0 : index
    %84 = vector.load %arg8[%c0_76, %c0_77] : memref<36x65xbf16, #tpu.memory_space<vmem>>, vector<36x65xbf16>
    %85 = arith.truncf %83 : vector<65x256xf32> to vector<65x256xbf16>
    %cst_78 = arith.constant dense<0.000000e+00> : vector<36x256xf32>
    %86 = tpu.matmul %84, %85, %cst_78 {dimension_numbers = #tpu.dot_dimension_numbers<[1], [0], [0], [1], [0, 0, 1, 1], [], []>} : vector<36x65xbf16>, vector<65x256xbf16>, vector<36x256xf32> -> vector<36x256xf32>
    %87 = arith.truncf %86 : vector<36x256xf32> to vector<36x256xbf16>
    %c0_79 = arith.constant 0 : index
    %c0_80 = arith.constant 0 : index
    %88 = vector.load %arg22[%c0_79, %c0_80] : memref<36x256xbf16, #tpu.memory_space<vmem>>, vector<36x256xbf16>
    tpu.vector_store %arg22[%c0_79, %c0_80], %87 {strides = array<i32>} : memref<36x256xbf16, #tpu.memory_space<vmem>>, vector<36x256xbf16>,
    %c0_81 = arith.constant 0 : index
    %c0_82 = arith.constant 0 : index
    %89 = vector.load %arg22[%c0_81, %c0_82] : memref<36x256xbf16, #tpu.memory_space<vmem>>, vector<33x256xbf16>
    %c0_83 = arith.constant 0 : index
    %c0_84 = arith.constant 0 : index
    %c0_85 = arith.constant 0 : index
    %90 = vector.load %arg4[%c0_83, %c0_84, %c0_85] : memref<4x256x256xbf16, #tpu.memory_space<vmem>>, vector<1x256x256xbf16>
    %91 = vector.shape_cast %90 : vector<1x256x256xbf16> to vector<256x256xbf16>
    %cst_86 = arith.constant dense<0.000000e+00> : vector<33x256xf32>
    %92 = tpu.matmul %89, %91, %cst_86 {dimension_numbers = #tpu.dot_dimension_numbers<[1], [0], [0], [1], [0, 0, 1, 1], [], []>} : vector<33x256xbf16>, vector<256x256xbf16>, vector<33x256xf32> -> vector<33x256xf32>
    %c1_87 = arith.constant 1 : index
    %c0_88 = arith.constant 0 : index
    %93 = vector.load %arg22[%c1_87, %c0_88] : memref<36x256xbf16, #tpu.memory_space<vmem>>, vector<33x256xbf16>
    %c1_89 = arith.constant 1 : index
    %c0_90 = arith.constant 0 : index
    %c0_91 = arith.constant 0 : index
    %94 = vector.load %arg4[%c1_89, %c0_90, %c0_91] : memref<4x256x256xbf16, #tpu.memory_space<vmem>>, vector<1x256x256xbf16>
    %95 = vector.shape_cast %94 : vector<1x256x256xbf16> to vector<256x256xbf16>
    %cst_92 = arith.constant dense<0.000000e+00> : vector<33x256xf32>
    %96 = tpu.matmul %93, %95, %cst_92 {dimension_numbers = #tpu.dot_dimension_numbers<[1], [0], [0], [1], [0, 0, 1, 1], [], []>} : vector<33x256xbf16>, vector<256x256xbf16>, vector<33x256xf32> -> vector<33x256xf32>
    %97 = arith.addf %92, %96 : vector<33x256xf32>
    %c2_93 = arith.constant 2 : index
    %c0_94 = arith.constant 0 : index
    %98 = vector.load %arg22[%c2_93, %c0_94] : memref<36x256xbf16, #tpu.memory_space<vmem>>, vector<33x256xbf16>
    %c2_95 = arith.constant 2 : index
    %c0_96 = arith.constant 0 : index
    %c0_97 = arith.constant 0 : index
    %99 = vector.load %arg4[%c2_95, %c0_96, %c0_97] : memref<4x256x256xbf16, #tpu.memory_space<vmem>>, vector<1x256x256xbf16>
    %100 = vector.shape_cast %99 : vector<1x256x256xbf16> to vector<256x256xbf16>
    %cst_98 = arith.constant dense<0.000000e+00> : vector<33x256xf32>
    %101 = tpu.matmul %98, %100, %cst_98 {dimension_numbers = #tpu.dot_dimension_numbers<[1], [0], [0], [1], [0, 0, 1, 1], [], []>} : vector<33x256xbf16>, vector<256x256xbf16>, vector<33x256xf32> -> vector<33x256xf32>
    %102 = arith.addf %97, %101 : vector<33x256xf32>
    %c3_99 = arith.constant 3 : index
    %c0_100 = arith.constant 0 : index
    %103 = vector.load %arg22[%c3_99, %c0_100] : memref<36x256xbf16, #tpu.memory_space<vmem>>, vector<33x256xbf16>
    %c3_101 = arith.constant 3 : index
    %c0_102 = arith.constant 0 : index
    %c0_103 = arith.constant 0 : index
    %104 = vector.load %arg4[%c3_101, %c0_102, %c0_103] : memref<4x256x256xbf16, #tpu.memory_space<vmem>>, vector<1x256x256xbf16>
    %105 = vector.shape_cast %104 : vector<1x256x256xbf16> to vector<256x256xbf16>
    %cst_104 = arith.constant dense<0.000000e+00> : vector<33x256xf32>
    %106 = tpu.matmul %103, %105, %cst_104 {dimension_numbers = #tpu.dot_dimension_numbers<[1], [0], [0], [1], [0, 0, 1, 1], [], []>} : vector<33x256xbf16>, vector<256x256xbf16>, vector<33x256xf32> -> vector<33x256xf32>
    %107 = arith.addf %102, %106 : vector<33x256xf32>
    %c1_105 = arith.constant 1 : index
    %c0_106 = arith.constant 0 : index
    %108 = vector.load %arg12[%c1_105, %c0_106] : memref<4x128xf32, #tpu.memory_space<vmem>>, vector<1x33xf32>
    %c0_107 = arith.constant 0 : index
    %c0_108 = arith.constant 0 : index
    %109 = vector.load %arg15[%c0_107, %c0_108] : memref<256x32xf32, #tpu.memory_space<vmem>>, vector<256x32xf32>
    %c0_109 = arith.constant 0 : index
    %c0_110 = arith.constant 0 : index
    %110 = vector.load %arg18[%c0_109, %c0_110] : memref<32x256xf32, #tpu.memory_space<vmem>>, vector<32x256xf32>
    %c2_111 = arith.constant 2 : index
    %c0_112 = arith.constant 0 : index
    %111 = vector.load %arg13[%c2_111, %c0_112] : memref<8x256xf32, #tpu.memory_space<vmem>>, vector<1x256xf32>
    %c3_113 = arith.constant 3 : index
    %c0_114 = arith.constant 0 : index
    %112 = vector.load %arg13[%c3_113, %c0_114] : memref<8x256xf32, #tpu.memory_space<vmem>>, vector<1x256xf32>
    %cst_115 = arith.constant dense<0.000000e+00> : vector<1x256xf32>
    %113 = tpu.matmul %108, %107, %cst_115 {dimension_numbers = #tpu.dot_dimension_numbers<[1], [0], [0], [1], [0, 0, 1, 1], [], []>} : vector<1x33xf32>, vector<33x256xf32>, vector<1x256xf32> -> vector<1x256xf32>
    %cst_116 = arith.constant dense<0.000000e+00> : vector<1x32xf32>
    %114 = tpu.matmul %113, %109, %cst_116 {dimension_numbers = #tpu.dot_dimension_numbers<[1], [0], [0], [1], [0, 0, 1, 1], [], []>} : vector<1x256xf32>, vector<256x32xf32>, vector<1x32xf32> -> vector<1x32xf32>
    %cst_117 = arith.constant 7.812500e-03 : f32
    %115 = vector.broadcast %cst_117 : f32 to vector<1x32xf32>
    %116 = arith.mulf %114, %115 : vector<1x32xf32>
    %cst_118 = arith.constant dense<0.000000e+00> : vector<1x256xf32>
    %117 = tpu.matmul %116, %110, %cst_118 {dimension_numbers = #tpu.dot_dimension_numbers<[1], [0], [0], [1], [0, 0, 1, 1], [], []>} : vector<1x32xf32>, vector<32x256xf32>, vector<1x256xf32> -> vector<1x256xf32>
    %118 = vector.broadcast %117 : vector<1x256xf32> to vector<33x256xf32>
    %119 = arith.subf %107, %118 : vector<33x256xf32>
    %120 = arith.mulf %119, %119 : vector<33x256xf32>
    %cst_119 = arith.constant dense<0.000000e+00> : vector<1x256xf32>
    %121 = tpu.matmul %108, %120, %cst_119 {dimension_numbers = #tpu.dot_dimension_numbers<[1], [0], [0], [1], [0, 0, 1, 1], [], []>} : vector<1x33xf32>, vector<33x256xf32>, vector<1x256xf32> -> vector<1x256xf32>
    %cst_120 = arith.constant dense<0.000000e+00> : vector<1x32xf32>
    %122 = tpu.matmul %121, %109, %cst_120 {dimension_numbers = #tpu.dot_dimension_numbers<[1], [0], [0], [1], [0, 0, 1, 1], [], []>} : vector<1x256xf32>, vector<256x32xf32>, vector<1x32xf32> -> vector<1x32xf32>
    %cst_121 = arith.constant 7.812500e-03 : f32
    %123 = vector.broadcast %cst_121 : f32 to vector<1x32xf32>
    %124 = arith.mulf %122, %123 : vector<1x32xf32>
    %cst_122 = arith.constant 9.99999974E-6 : f32
    %125 = vector.broadcast %cst_122 : f32 to vector<1x32xf32>
    %126 = arith.addf %124, %125 : vector<1x32xf32>
    %127 = math.rsqrt %126 : vector<1x32xf32>
    %cst_123 = arith.constant dense<0.000000e+00> : vector<1x256xf32>
    %128 = tpu.matmul %127, %110, %cst_123 {dimension_numbers = #tpu.dot_dimension_numbers<[1], [0], [0], [1], [0, 0, 1, 1], [], []>} : vector<1x32xf32>, vector<32x256xf32>, vector<1x256xf32> -> vector<1x256xf32>
    %129 = arith.mulf %111, %128 : vector<1x256xf32>
    %130 = vector.broadcast %129 : vector<1x256xf32> to vector<33x256xf32>
    %131 = arith.mulf %119, %130 : vector<33x256xf32>
    %132 = vector.broadcast %112 : vector<1x256xf32> to vector<33x256xf32>
    %133 = arith.addf %131, %132 : vector<33x256xf32>
    %cst_124 = arith.constant 0.000000e+00 : f32
    %134 = vector.broadcast %cst_124 : f32 to vector<33x256xf32>
    %135 = arith.cmpf oge, %133, %134 : vector<33x256xf32>
    %cst_125 = arith.constant 2.000000e-01 : f32
    %136 = vector.broadcast %cst_125 : f32 to vector<33x256xf32>
    %137 = arith.mulf %136, %133 : vector<33x256xf32>
    %138 = arith.select %135, %133, %137 : vector<33x256xi1>, vector<33x256xf32>
    %c0_126 = arith.constant 0 : index
    %c0_127 = arith.constant 0 : index
    %139 = vector.load %arg9[%c0_126, %c0_127] : memref<20x33xbf16, #tpu.memory_space<vmem>>, vector<20x33xbf16>
    %140 = arith.truncf %138 : vector<33x256xf32> to vector<33x256xbf16>
    %cst_128 = arith.constant dense<0.000000e+00> : vector<20x256xf32>
    %141 = tpu.matmul %139, %140, %cst_128 {dimension_numbers = #tpu.dot_dimension_numbers<[1], [0], [0], [1], [0, 0, 1, 1], [], []>} : vector<20x33xbf16>, vector<33x256xbf16>, vector<20x256xf32> -> vector<20x256xf32>
    %142 = arith.truncf %141 : vector<20x256xf32> to vector<20x256xbf16>
    %c0_129 = arith.constant 0 : index
    %c0_130 = arith.constant 0 : index
    %143 = vector.load %arg23[%c0_129, %c0_130] : memref<20x256xbf16, #tpu.memory_space<vmem>>, vector<20x256xbf16>
    tpu.vector_store %arg23[%c0_129, %c0_130], %142 {strides = array<i32>} : memref<20x256xbf16, #tpu.memory_space<vmem>>, vector<20x256xbf16>,
    %c0_131 = arith.constant 0 : index
    %c0_132 = arith.constant 0 : index
    %144 = vector.load %arg23[%c0_131, %c0_132] : memref<20x256xbf16, #tpu.memory_space<vmem>>, vector<17x256xbf16>
    %c0_133 = arith.constant 0 : index
    %c0_134 = arith.constant 0 : index
    %c0_135 = arith.constant 0 : index
    %145 = vector.load %arg5[%c0_133, %c0_134, %c0_135] : memref<4x256x256xbf16, #tpu.memory_space<vmem>>, vector<1x256x256xbf16>
    %146 = vector.shape_cast %145 : vector<1x256x256xbf16> to vector<256x256xbf16>
    %cst_136 = arith.constant dense<0.000000e+00> : vector<17x256xf32>
    %147 = tpu.matmul %144, %146, %cst_136 {dimension_numbers = #tpu.dot_dimension_numbers<[1], [0], [0], [1], [0, 0, 1, 1], [], []>} : vector<17x256xbf16>, vector<256x256xbf16>, vector<17x256xf32> -> vector<17x256xf32>
    %c1_137 = arith.constant 1 : index
    %c0_138 = arith.constant 0 : index
    %148 = vector.load %arg23[%c1_137, %c0_138] : memref<20x256xbf16, #tpu.memory_space<vmem>>, vector<17x256xbf16>
    %c1_139 = arith.constant 1 : index
    %c0_140 = arith.constant 0 : index
    %c0_141 = arith.constant 0 : index
    %149 = vector.load %arg5[%c1_139, %c0_140, %c0_141] : memref<4x256x256xbf16, #tpu.memory_space<vmem>>, vector<1x256x256xbf16>
    %150 = vector.shape_cast %149 : vector<1x256x256xbf16> to vector<256x256xbf16>
    %cst_142 = arith.constant dense<0.000000e+00> : vector<17x256xf32>
    %151 = tpu.matmul %148, %150, %cst_142 {dimension_numbers = #tpu.dot_dimension_numbers<[1], [0], [0], [1], [0, 0, 1, 1], [], []>} : vector<17x256xbf16>, vector<256x256xbf16>, vector<17x256xf32> -> vector<17x256xf32>
    %152 = arith.addf %147, %151 : vector<17x256xf32>
    %c2_143 = arith.constant 2 : index
    %c0_144 = arith.constant 0 : index
    %153 = vector.load %arg23[%c2_143, %c0_144] : memref<20x256xbf16, #tpu.memory_space<vmem>>, vector<17x256xbf16>
    %c2_145 = arith.constant 2 : index
    %c0_146 = arith.constant 0 : index
    %c0_147 = arith.constant 0 : index
    %154 = vector.load %arg5[%c2_145, %c0_146, %c0_147] : memref<4x256x256xbf16, #tpu.memory_space<vmem>>, vector<1x256x256xbf16>
    %155 = vector.shape_cast %154 : vector<1x256x256xbf16> to vector<256x256xbf16>
    %cst_148 = arith.constant dense<0.000000e+00> : vector<17x256xf32>
    %156 = tpu.matmul %153, %155, %cst_148 {dimension_numbers = #tpu.dot_dimension_numbers<[1], [0], [0], [1], [0, 0, 1, 1], [], []>} : vector<17x256xbf16>, vector<256x256xbf16>, vector<17x256xf32> -> vector<17x256xf32>
    %157 = arith.addf %152, %156 : vector<17x256xf32>
    %c3_149 = arith.constant 3 : index
    %c0_150 = arith.constant 0 : index
    %158 = vector.load %arg23[%c3_149, %c0_150] : memref<20x256xbf16, #tpu.memory_space<vmem>>, vector<17x256xbf16>
    %c3_151 = arith.constant 3 : index
    %c0_152 = arith.constant 0 : index
    %c0_153 = arith.constant 0 : index
    %159 = vector.load %arg5[%c3_151, %c0_152, %c0_153] : memref<4x256x256xbf16, #tpu.memory_space<vmem>>, vector<1x256x256xbf16>
    %160 = vector.shape_cast %159 : vector<1x256x256xbf16> to vector<256x256xbf16>
    %cst_154 = arith.constant dense<0.000000e+00> : vector<17x256xf32>
    %161 = tpu.matmul %158, %160, %cst_154 {dimension_numbers = #tpu.dot_dimension_numbers<[1], [0], [0], [1], [0, 0, 1, 1], [], []>} : vector<17x256xbf16>, vector<256x256xbf16>, vector<17x256xf32> -> vector<17x256xf32>
    %162 = arith.addf %157, %161 : vector<17x256xf32>
    %c2_155 = arith.constant 2 : index
    %c0_156 = arith.constant 0 : index
    %163 = vector.load %arg12[%c2_155, %c0_156] : memref<4x128xf32, #tpu.memory_space<vmem>>, vector<1x17xf32>
    %c0_157 = arith.constant 0 : index
    %c0_158 = arith.constant 0 : index
    %164 = vector.load %arg16[%c0_157, %c0_158] : memref<256x64xf32, #tpu.memory_space<vmem>>, vector<256x64xf32>
    %c0_159 = arith.constant 0 : index
    %c0_160 = arith.constant 0 : index
    %165 = vector.load %arg19[%c0_159, %c0_160] : memref<64x256xf32, #tpu.memory_space<vmem>>, vector<64x256xf32>
    %c4_161 = arith.constant 4 : index
    %c0_162 = arith.constant 0 : index
    %166 = vector.load %arg13[%c4_161, %c0_162] : memref<8x256xf32, #tpu.memory_space<vmem>>, vector<1x256xf32>
    %c5 = arith.constant 5 : index
    %c0_163 = arith.constant 0 : index
    %167 = vector.load %arg13[%c5, %c0_163] : memref<8x256xf32, #tpu.memory_space<vmem>>, vector<1x256xf32>
    %cst_164 = arith.constant dense<0.000000e+00> : vector<1x256xf32>
    %168 = tpu.matmul %163, %162, %cst_164 {dimension_numbers = #tpu.dot_dimension_numbers<[1], [0], [0], [1], [0, 0, 1, 1], [], []>} : vector<1x17xf32>, vector<17x256xf32>, vector<1x256xf32> -> vector<1x256xf32>
    %cst_165 = arith.constant dense<0.000000e+00> : vector<1x64xf32>
    %169 = tpu.matmul %168, %164, %cst_165 {dimension_numbers = #tpu.dot_dimension_numbers<[1], [0], [0], [1], [0, 0, 1, 1], [], []>} : vector<1x256xf32>, vector<256x64xf32>, vector<1x64xf32> -> vector<1x64xf32>
    %cst_166 = arith.constant 3.125000e-02 : f32
    %170 = vector.broadcast %cst_166 : f32 to vector<1x64xf32>
    %171 = arith.mulf %169, %170 : vector<1x64xf32>
    %cst_167 = arith.constant dense<0.000000e+00> : vector<1x256xf32>
    %172 = tpu.matmul %171, %165, %cst_167 {dimension_numbers = #tpu.dot_dimension_numbers<[1], [0], [0], [1], [0, 0, 1, 1], [], []>} : vector<1x64xf32>, vector<64x256xf32>, vector<1x256xf32> -> vector<1x256xf32>
    %173 = vector.broadcast %172 : vector<1x256xf32> to vector<17x256xf32>
    %174 = arith.subf %162, %173 : vector<17x256xf32>
    %175 = arith.mulf %174, %174 : vector<17x256xf32>
    %cst_168 = arith.constant dense<0.000000e+00> : vector<1x256xf32>
    %176 = tpu.matmul %163, %175, %cst_168 {dimension_numbers = #tpu.dot_dimension_numbers<[1], [0], [0], [1], [0, 0, 1, 1], [], []>} : vector<1x17xf32>, vector<17x256xf32>, vector<1x256xf32> -> vector<1x256xf32>
    %cst_169 = arith.constant dense<0.000000e+00> : vector<1x64xf32>
    %177 = tpu.matmul %176, %164, %cst_169 {dimension_numbers = #tpu.dot_dimension_numbers<[1], [0], [0], [1], [0, 0, 1, 1], [], []>} : vector<1x256xf32>, vector<256x64xf32>, vector<1x64xf32> -> vector<1x64xf32>
    %cst_170 = arith.constant 3.125000e-02 : f32
    %178 = vector.broadcast %cst_170 : f32 to vector<1x64xf32>
    %179 = arith.mulf %177, %178 : vector<1x64xf32>
    %cst_171 = arith.constant 9.99999974E-6 : f32
    %180 = vector.broadcast %cst_171 : f32 to vector<1x64xf32>
    %181 = arith.addf %179, %180 : vector<1x64xf32>
    %182 = math.rsqrt %181 : vector<1x64xf32>
    %cst_172 = arith.constant dense<0.000000e+00> : vector<1x256xf32>
    %183 = tpu.matmul %182, %165, %cst_172 {dimension_numbers = #tpu.dot_dimension_numbers<[1], [0], [0], [1], [0, 0, 1, 1], [], []>} : vector<1x64xf32>, vector<64x256xf32>, vector<1x256xf32> -> vector<1x256xf32>
    %184 = arith.mulf %166, %183 : vector<1x256xf32>
    %185 = vector.broadcast %184 : vector<1x256xf32> to vector<17x256xf32>
    %186 = arith.mulf %174, %185 : vector<17x256xf32>
    %187 = vector.broadcast %167 : vector<1x256xf32> to vector<17x256xf32>
    %188 = arith.addf %186, %187 : vector<17x256xf32>
    %cst_173 = arith.constant 0.000000e+00 : f32
    %189 = vector.broadcast %cst_173 : f32 to vector<17x256xf32>
    %190 = arith.cmpf oge, %188, %189 : vector<17x256xf32>
    %cst_174 = arith.constant 2.000000e-01 : f32
    %191 = vector.broadcast %cst_174 : f32 to vector<17x256xf32>
    %192 = arith.mulf %191, %188 : vector<17x256xf32>
    %193 = arith.select %190, %188, %192 : vector<17x256xi1>, vector<17x256xf32>
    %c0_175 = arith.constant 0 : index
    %c0_176 = arith.constant 0 : index
    %194 = vector.load %arg10[%c0_175, %c0_176] : memref<8x17xbf16, #tpu.memory_space<vmem>>, vector<8x17xbf16>
    %195 = arith.truncf %193 : vector<17x256xf32> to vector<17x256xbf16>
    %cst_177 = arith.constant dense<0.000000e+00> : vector<8x256xf32>
    %196 = tpu.matmul %194, %195, %cst_177 {dimension_numbers = #tpu.dot_dimension_numbers<[1], [0], [0], [1], [0, 0, 1, 1], [], []>} : vector<8x17xbf16>, vector<17x256xbf16>, vector<8x256xf32> -> vector<8x256xf32>
    %197 = arith.truncf %196 : vector<8x256xf32> to vector<8x256xbf16>
    %c0_178 = arith.constant 0 : index
    %c0_179 = arith.constant 0 : index
    %198 = vector.load %arg24[%c0_178, %c0_179] : memref<8x256xbf16, #tpu.memory_space<vmem>>, vector<8x256xbf16>
    tpu.vector_store %arg24[%c0_178, %c0_179], %197 {strides = array<i32>} : memref<8x256xbf16, #tpu.memory_space<vmem>>, vector<8x256xbf16>,
    %c0_180 = arith.constant 0 : index
    %c0_181 = arith.constant 0 : index
    %199 = vector.load %arg24[%c0_180, %c0_181] : memref<8x256xbf16, #tpu.memory_space<vmem>>, vector<5x256xbf16>
    %c0_182 = arith.constant 0 : index
    %c0_183 = arith.constant 0 : index
    %c0_184 = arith.constant 0 : index
    %200 = vector.load %arg6[%c0_182, %c0_183, %c0_184] : memref<4x256x8xbf16, #tpu.memory_space<vmem>>, vector<1x256x8xbf16>
    %201 = vector.shape_cast %200 : vector<1x256x8xbf16> to vector<256x8xbf16>
    %cst_185 = arith.constant dense<0.000000e+00> : vector<5x8xf32>
    %202 = tpu.matmul %199, %201, %cst_185 {dimension_numbers = #tpu.dot_dimension_numbers<[1], [0], [0], [1], [0, 0, 1, 1], [], []>} : vector<5x256xbf16>, vector<256x8xbf16>, vector<5x8xf32> -> vector<5x8xf32>
    %c1_186 = arith.constant 1 : index
    %c0_187 = arith.constant 0 : index
    %203 = vector.load %arg24[%c1_186, %c0_187] : memref<8x256xbf16, #tpu.memory_space<vmem>>, vector<5x256xbf16>
    %c1_188 = arith.constant 1 : index
    %c0_189 = arith.constant 0 : index
    %c0_190 = arith.constant 0 : index
    %204 = vector.load %arg6[%c1_188, %c0_189, %c0_190] : memref<4x256x8xbf16, #tpu.memory_space<vmem>>, vector<1x256x8xbf16>
    %205 = vector.shape_cast %204 : vector<1x256x8xbf16> to vector<256x8xbf16>
    %cst_191 = arith.constant dense<0.000000e+00> : vector<5x8xf32>
    %206 = tpu.matmul %203, %205, %cst_191 {dimension_numbers = #tpu.dot_dimension_numbers<[1], [0], [0], [1], [0, 0, 1, 1], [], []>} : vector<5x256xbf16>, vector<256x8xbf16>, vector<5x8xf32> -> vector<5x8xf32>
    %207 = arith.addf %202, %206 : vector<5x8xf32>
    %c2_192 = arith.constant 2 : index
    %c0_193 = arith.constant 0 : index
    %208 = vector.load %arg24[%c2_192, %c0_193] : memref<8x256xbf16, #tpu.memory_space<vmem>>, vector<5x256xbf16>
    %c2_194 = arith.constant 2 : index
    %c0_195 = arith.constant 0 : index
    %c0_196 = arith.constant 0 : index
    %209 = vector.load %arg6[%c2_194, %c0_195, %c0_196] : memref<4x256x8xbf16, #tpu.memory_space<vmem>>, vector<1x256x8xbf16>
    %210 = vector.shape_cast %209 : vector<1x256x8xbf16> to vector<256x8xbf16>
    %cst_197 = arith.constant dense<0.000000e+00> : vector<5x8xf32>
    %211 = tpu.matmul %208, %210, %cst_197 {dimension_numbers = #tpu.dot_dimension_numbers<[1], [0], [0], [1], [0, 0, 1, 1], [], []>} : vector<5x256xbf16>, vector<256x8xbf16>, vector<5x8xf32> -> vector<5x8xf32>
    %212 = arith.addf %207, %211 : vector<5x8xf32>
    %c3_198 = arith.constant 3 : index
    %c0_199 = arith.constant 0 : index
    %213 = vector.load %arg24[%c3_198, %c0_199] : memref<8x256xbf16, #tpu.memory_space<vmem>>, vector<5x256xbf16>
    %c3_200 = arith.constant 3 : index
    %c0_201 = arith.constant 0 : index
    %c0_202 = arith.constant 0 : index
    %214 = vector.load %arg6[%c3_200, %c0_201, %c0_202] : memref<4x256x8xbf16, #tpu.memory_space<vmem>>, vector<1x256x8xbf16>
    %215 = vector.shape_cast %214 : vector<1x256x8xbf16> to vector<256x8xbf16>
    %cst_203 = arith.constant dense<0.000000e+00> : vector<5x8xf32>
    %216 = tpu.matmul %213, %215, %cst_203 {dimension_numbers = #tpu.dot_dimension_numbers<[1], [0], [0], [1], [0, 0, 1, 1], [], []>} : vector<5x256xbf16>, vector<256x8xbf16>, vector<5x8xf32> -> vector<5x8xf32>
    %217 = arith.addf %212, %216 : vector<5x8xf32>
    %c0_204 = arith.constant 0 : index
    %c0_205 = arith.constant 0 : index
    %218 = vector.load %arg11[%c0_204, %c0_205] : memref<2x5xf32, #tpu.memory_space<vmem>>, vector<2x5xf32>
    %cst_206 = arith.constant dense<0.000000e+00> : vector<2x8xf32>
    %219 = tpu.matmul %218, %217, %cst_206 {dimension_numbers = #tpu.dot_dimension_numbers<[1], [0], [0], [1], [0, 0, 1, 1], [], []>} : vector<2x5xf32>, vector<5x8xf32>, vector<2x8xf32> -> vector<2x8xf32>
    %220 = vector.extract_strided_slice %219 {offsets = [0, 0], sizes = [2, 1], strides = [1, 1]} : vector<2x8xf32> to vector<2x1xf32>
    %cst_207 = arith.constant 0.000000e+00 : f32
    %221 = vector.broadcast %cst_207 : f32 to vector<2x1xf32>
    %222 = arith.subf %221, %220 : vector<2x1xf32>
    %223 = math.exp %222 : vector<2x1xf32>
    %cst_208 = arith.constant 1.000000e+00 : f32
    %224 = vector.broadcast %cst_208 : f32 to vector<2x1xf32>
    %225 = arith.addf %224, %223 : vector<2x1xf32>
    %cst_209 = arith.constant 1.000000e+00 : f32
    %226 = vector.broadcast %cst_209 : f32 to vector<2x1xf32>
    %227 = arith.divf %226, %225 : vector<2x1xf32>
    %c0_210 = arith.constant 0 : index
    %c0_211 = arith.constant 0 : index
    %228 = vector.load %arg20[%c0_210, %c0_211] : memref<2x1xf32, #tpu.memory_space<vmem>>, vector<2x1xf32>
    tpu.vector_store %arg20[%c0_210, %c0_211], %227 {strides = array<i32>} : memref<2x1xf32, #tpu.memory_space<vmem>>, vector<2x1xf32>,
    return
  }
  func.func @transform_0(%arg0: i32) -> (i32, i32) {
    %c0_i32 = arith.constant 0 : i32
    %c0_i32_0 = arith.constant 0 : i32
    %c0_i32_1 = arith.constant 0 : i32
    return %c0_i32, %c0_i32_0 : i32, i32
  }
  func.func @transform_1(%arg0: i32) -> (i32, i32, i32) {
    %c0_i32 = arith.constant 0 : i32
    %c0_i32_0 = arith.constant 0 : i32
    %c0_i32_1 = arith.constant 0 : i32
    %c0_i32_2 = arith.constant 0 : i32
    return %c0_i32, %c0_i32_0, %c0_i32_1 : i32, i32, i32
  }
  func.func @transform_2(%arg0: i32) -> (i32, i32, i32) {
    %c0_i32 = arith.constant 0 : i32
    %c0_i32_0 = arith.constant 0 : i32
    %c0_i32_1 = arith.constant 0 : i32
    %c0_i32_2 = arith.constant 0 : i32
    return %c0_i32, %c0_i32_0, %c0_i32_1 : i32, i32, i32
  }
  func.func @transform_3(%arg0: i32) -> (i32, i32, i32) {
    %c0_i32 = arith.constant 0 : i32
    %c0_i32_0 = arith.constant 0 : i32
    %c0_i32_1 = arith.constant 0 : i32
    %c0_i32_2 = arith.constant 0 : i32
    return %c0_i32, %c0_i32_0, %c0_i32_1 : i32, i32, i32
  }
  func.func @transform_4(%arg0: i32) -> (i32, i32, i32) {
    %c0_i32 = arith.constant 0 : i32
    %c0_i32_0 = arith.constant 0 : i32
    %c0_i32_1 = arith.constant 0 : i32
    %c0_i32_2 = arith.constant 0 : i32
    return %c0_i32, %c0_i32_0, %c0_i32_1 : i32, i32, i32
  }
  func.func @transform_5(%arg0: i32) -> (i32, i32, i32) {
    %c0_i32 = arith.constant 0 : i32
    %c0_i32_0 = arith.constant 0 : i32
    %c0_i32_1 = arith.constant 0 : i32
    %c0_i32_2 = arith.constant 0 : i32
    return %c0_i32, %c0_i32_0, %c0_i32_1 : i32, i32, i32
  }
  func.func @transform_6(%arg0: i32) -> (i32, i32) {
    %c0_i32 = arith.constant 0 : i32
    %c0_i32_0 = arith.constant 0 : i32
    %c0_i32_1 = arith.constant 0 : i32
    return %c0_i32, %c0_i32_0 : i32, i32
  }
  func.func @transform_7(%arg0: i32) -> (i32, i32) {
    %c0_i32 = arith.constant 0 : i32
    %c0_i32_0 = arith.constant 0 : i32
    %c0_i32_1 = arith.constant 0 : i32
    return %c0_i32, %c0_i32_0 : i32, i32
  }
  func.func @transform_8(%arg0: i32) -> (i32, i32) {
    %c0_i32 = arith.constant 0 : i32
    %c0_i32_0 = arith.constant 0 : i32
    %c0_i32_1 = arith.constant 0 : i32
    return %c0_i32, %c0_i32_0 : i32, i32
  }
  func.func @transform_9(%arg0: i32) -> (i32, i32) {
    %c0_i32 = arith.constant 0 : i32
    %c0_i32_0 = arith.constant 0 : i32
    %c0_i32_1 = arith.constant 0 : i32
    return %c0_i32, %c0_i32_0 : i32, i32
  }
  func.func @transform_10(%arg0: i32) -> (i32, i32) {
    %c0_i32 = arith.constant 0 : i32
    %c0_i32_0 = arith.constant 0 : i32
    %c0_i32_1 = arith.constant 0 : i32
    return %c0_i32, %c0_i32_0 : i32, i32
  }
  func.func @transform_11(%arg0: i32) -> (i32, i32) {
    %c0_i32 = arith.constant 0 : i32
    %c0_i32_0 = arith.constant 0 : i32
    %c0_i32_1 = arith.constant 0 : i32
    return %c0_i32, %c0_i32_0 : i32, i32
  }
  func.func @transform_12(%arg0: i32) -> (i32, i32) {
    %c0_i32 = arith.constant 0 : i32
    %c0_i32_0 = arith.constant 0 : i32
    %c0_i32_1 = arith.constant 0 : i32
    return %c0_i32, %c0_i32_0 : i32, i32
  }
  func.func @transform_13(%arg0: i32) -> (i32, i32) {
    %c0_i32 = arith.constant 0 : i32
    %c0_i32_0 = arith.constant 0 : i32
    %c0_i32_1 = arith.constant 0 : i32
    return %c0_i32, %c0_i32_0 : i32, i32
  }
  func.func @transform_14(%arg0: i32) -> (i32, i32) {
    %c0_i32 = arith.constant 0 : i32
    %c0_i32_0 = arith.constant 0 : i32
    %c0_i32_1 = arith.constant 0 : i32
    return %c0_i32, %c0_i32_0 : i32, i32
  }
  func.func @transform_15(%arg0: i32) -> (i32, i32) {
    %c0_i32 = arith.constant 0 : i32
    %c0_i32_0 = arith.constant 0 : i32
    %c0_i32_1 = arith.constant 0 : i32
    return %c0_i32, %c0_i32_0 : i32, i32
  }
  func.func @transform_16(%arg0: i32) -> (i32, i32) {
    %c0_i32 = arith.constant 0 : i32
    %c0_i32_0 = arith.constant 0 : i32
    %c0_i32_1 = arith.constant 0 : i32
    return %c0_i32, %c0_i32_0 : i32, i32
  }
  func.func @transform_17(%arg0: i32) -> (i32, i32) {
    %c0_i32 = arith.constant 0 : i32
    %c0_i32_0 = arith.constant 0 : i32
    %c0_i32_1 = arith.constant 0 : i32
    return %c0_i32, %c0_i32_0 : i32, i32
  }
  func.func @transform_18(%arg0: i32) -> (i32, i32) {
    %c0_i32 = arith.constant 0 : i32
    %c0_i32_0 = arith.constant 0 : i32
    %c0_i32_1 = arith.constant 0 : i32
    return %c0_i32, %c0_i32_0 : i32, i32
  }
  func.func @transform_19(%arg0: i32) -> (i32, i32) {
    %c0_i32 = arith.constant 0 : i32
    %c0_i32_0 = arith.constant 0 : i32
    %c0_i32_1 = arith.constant 0 : i32
    return %c0_i32, %c0_i32_0 : i32, i32
  }
}

</mosaic_0001>

<llo_original>
// kernel: forward.1
$region0: #{forward.1}
  #allocation0 [shape = 'u32[]', space=smem, size = 0x4, offset = 0x4, fixed_abs, tag = 'smem constant byte address 0x4 - core index']
  #allocation1 [shape = 'u32[144,128]{1,0:T(1,128)}', space=vmem, size = 0x12000, scoped, tag = 'internal scratch']
  #allocation2 [shape = 'bf16[68,256]{1,0:T(8,128)(2,1)}', space=vmem, size = 0x9000, scoped, tag = 'scratch operand']
  #allocation3 [shape = 'bf16[36,256]{1,0:T(8,128)(2,1)}', space=vmem, size = 0x5000, scoped, tag = 'scratch operand']
  #allocation4 [shape = 'bf16[20,256]{1,0:T(8,128)(2,1)}', space=vmem, size = 0x3000, scoped, tag = 'scratch operand']
  #allocation5 [shape = 'bf16[8,256]{1,0:T(8,128)(2,1)}', space=vmem, size = 0x1000, scoped, tag = 'scratch operand']
  %s0 = inlined_call_operand.vmem [shape: bf16[196,288], index: 0, kind: input, shape index: {}]
  %s1 = inlined_call_operand.vmem [shape: bf16[5,288,256], index: 1, kind: input, shape index: {}]
  %s2 = inlined_call_operand.vmem [shape: bf16[4,256,256], index: 2, kind: input, shape index: {}]
  %s3 = inlined_call_operand.vmem [shape: bf16[4,256,256], index: 3, kind: input, shape index: {}]
  %s4 = inlined_call_operand.vmem [shape: bf16[4,256,256], index: 4, kind: input, shape index: {}]
  %s5 = inlined_call_operand.vmem [shape: bf16[4,256,8], index: 5, kind: input, shape index: {}]
  %s6 = inlined_call_operand.vmem [shape: bf16[68,192], index: 6, kind: input, shape index: {}]
  %s7 = inlined_call_operand.hbm [shape: bf16[36,65], index: 7, kind: input, shape index: {}]
  %s8 = inlined_call_operand.vmem [shape: bf16[20,33], index: 8, kind: input, shape index: {}]
  %s9 = inlined_call_operand.hbm [shape: bf16[8,17], index: 9, kind: input, shape index: {}]
  %s10 = inlined_call_operand.hbm [shape: f32[2,5], index: 10, kind: input, shape index: {}]
  %s11 = inlined_call_operand.hbm [shape: f32[4,128], index: 11, kind: input, shape index: {}]
  %s12 = inlined_call_operand.hbm [shape: f32[8,256], index: 12, kind: input, shape index: {}]
  %s13 = inlined_call_operand.vmem [shape: f32[256,16], index: 13, kind: input, shape index: {}]
  %s14 = inlined_call_operand.vmem [shape: f32[256,32], index: 14, kind: input, shape index: {}]
  %s15 = inlined_call_operand.vmem [shape: f32[256,64], index: 15, kind: input, shape index: {}]
  %s16 = inlined_call_operand.vmem [shape: f32[16,256], index: 16, kind: input, shape index: {}]
  %s17 = inlined_call_operand.hbm [shape: f32[32,256], index: 17, kind: input, shape index: {}]
  %s18 = inlined_call_operand.hbm [shape: f32[64,256], index: 18, kind: input, shape index: {}]
  %s19 = inlined_call_operand.vmem [shape: f32[2,1], index: 19, kind: output, shape index: {}]
  %s20 = sld [smem:[#allocation0]]
  $region114: #{forward.1} parent=0
    _
  %s22 = ssub.s32 1, %s20
  %s23 = scalar_select 0, %s22, %s20
  $region1: #{forward.1} parent=0
    #allocation6 [shape = 'u8[10240]{0}', space=vmem, size = 0x2800, scoped, tag = 'input window, operand 7, single buffered']
    #allocation7 [shape = 's32[1]{0}', space=sflag, size = 0x4, scoped, tag = 'scoped memory for forward.1']
    #allocation8 [shape = 'u8[2048]{0}', space=vmem, size = 0x800, scoped, tag = 'input window, operand 9, single buffered']
    #allocation9 [shape = 's32[1]{0}', space=sflag, size = 0x4, scoped, tag = 'scoped memory for forward.1']
    #allocation10 [shape = 'u8[1024]{0}', space=vmem, size = 0x400, scoped, tag = 'input window, operand 10, single buffered']
    #allocation11 [shape = 'u8[2048]{0}', space=vmem, size = 0x800, scoped, tag = 'input window, operand 11, single buffered']
    #allocation12 [shape = 's32[1]{0}', space=sflag, size = 0x4, scoped, tag = 'scoped memory for forward.1']
    #allocation13 [shape = 'u8[8192]{0}', space=vmem, size = 0x2000, scoped, tag = 'input window, operand 12, single buffered']
    #allocation14 [shape = 'u8[32768]{0}', space=vmem, size = 0x8000, scoped, tag = 'input window, operand 17, single buffered']
    #allocation15 [shape = 's32[1]{0}', space=sflag, size = 0x4, scoped, tag = 'scoped memory for forward.1']
    #allocation16 [shape = 'u8[65536]{0}', space=vmem, size = 0x10000, scoped, tag = 'input window, operand 18, single buffered']
    %24 = vsyncpa [#allocation7], 0
    %25 = vsyncpa [#allocation9], 0
    %26 = vsyncpa [#allocation12], 0
    %27 = vsyncpa [#allocation15], 0
    // Predicated region
    $region2: #{forward.1} parent=1 // pred_check
      _
    $region3: #{forward.1} parent=1 // pred_check_branch
      %29 = sbr.rel (0) target = $region5
    $region4: #{forward.1} parent=1 // pred_region
      _
    $region5: #{forward.1} parent=1 // pred_fallthru
      _
    // Predicated region
    $region6: #{forward.1} parent=1 // pred_check
      _
    $region7: #{forward.1} parent=1 // pred_check_branch
      %31 = sbr.rel (0) target = $region9
    $region8: #{forward.1} parent=1 // pred_region
      _
    $region9: #{forward.1} parent=1 // pred_fallthru
      _
    // Predicated region
    $region10: #{forward.1} parent=1 // pred_check
      _
    $region11: #{forward.1} parent=1 // pred_check_branch
      %33 = sbr.rel (0) target = $region13
    $region12: #{forward.1} parent=1 // pred_region
      _
    $region13: #{forward.1} parent=1 // pred_fallthru
      _
    // Predicated region
    $region14: #{forward.1} parent=1 // pred_check
      _
    $region15: #{forward.1} parent=1 // pred_check_branch
      %35 = sbr.rel (0) target = $region17
    $region16: #{forward.1} parent=1 // pred_region
      _
    $region17: #{forward.1} parent=1 // pred_fallthru
      _
    // Predicated region
    $region18: #{forward.1} parent=1 // pred_check
      _
    $region19: #{forward.1} parent=1 // pred_check_branch
      %37 = sbr.rel (0) target = $region21
    $region20: #{forward.1} parent=1 // pred_region
      _
    $region21: #{forward.1} parent=1 // pred_fallthru
      _
    // Predicated region
    $region22: #{forward.1} parent=1 // pred_check
      _
    $region23: #{forward.1} parent=1 // pred_check_branch
      %39 = sbr.rel (0) target = $region25
    $region24: #{forward.1} parent=1 // pred_region
      _
    $region25: #{forward.1} parent=1 // pred_fallthru
      _
    // Predicated region
    $region26: #{forward.1} parent=1 // pred_check
      _
    $region27: #{forward.1} parent=1 // pred_check_branch
      %41 = sbr.rel (0) target = $region29
    $region28: #{forward.1} parent=1 // pred_region
      _
    $region29: #{forward.1} parent=1 // pred_fallthru
      _
    // Predicated region
    $region30: #{forward.1} parent=1 // pred_check
      _
    $region31: #{forward.1} parent=1 // pred_check_branch
      %43 = sbr.rel (0) target = $region33
    $region32: #{forward.1} parent=1 // pred_region
      %s45 = ssub.s32 320, 320
      %46 = vsyncadd [#allocation7], %s45
      %s47 = sshll.u32 [#allocation6], 4
      %s48 = int_to_ptr.vmem [resolvable:$true] %s47
      %53 = dma.hbm_to_vmem [thread:$0]  %s7, 320, %s48, [#allocation7], 64, 64, 4
    $region33: #{forward.1} parent=1 // pred_fallthru
      _
    // Predicated region
    $region34: #{forward.1} parent=1 // pred_check
      _
    $region35: #{forward.1} parent=1 // pred_check_branch
      %55 = sbr.rel (0) target = $region37
    $region36: #{forward.1} parent=1 // pred_region
      _
    $region37: #{forward.1} parent=1 // pred_fallthru
      _
    // Predicated region
    $region38: #{forward.1} parent=1 // pred_check
      _
    $region39: #{forward.1} parent=1 // pred_check_branch
      %57 = sbr.rel (0) target = $region41
    $region40: #{forward.1} parent=1 // pred_region
      %s59 = ssub.s32 64, 64
      %60 = vsyncadd [#allocation9], %s59
      %s62 = sshll.u32 [#allocation8], 4
      %s63 = int_to_ptr.vmem [resolvable:$true] %s62
      %65 = dma.hbm_to_vmem [thread:$0]  %s9, 64, %s63, [#allocation9]
    $region41: #{forward.1} parent=1 // pred_fallthru
      _
    // Predicated region
    $region42: #{forward.1} parent=1 // pred_check
      _
    $region43: #{forward.1} parent=1 // pred_check_branch
      %67 = sbr.rel (0) target = $region45
    $region44: #{forward.1} parent=1 // pred_region
      %s69 = ssub.s32 32, 32
      %70 = vsyncadd [#allocation9], %s69
      %s72 = sshll.u32 [#allocation10], 4
      %s73 = int_to_ptr.vmem [resolvable:$true] %s72
      %75 = dma.hbm_to_vmem [thread:$0]  %s10, 32, %s73, [#allocation9]
    $region45: #{forward.1} parent=1 // pred_fallthru
      _
    // Predicated region
    $region46: #{forward.1} parent=1 // pred_check
      _
    $region47: #{forward.1} parent=1 // pred_check_branch
      %77 = sbr.rel (0) target = $region49
    $region48: #{forward.1} parent=1 // pred_region
      %s79 = ssub.s32 64, 64
      %80 = vsyncadd [#allocation12], %s79
      %s82 = sshll.u32 [#allocation11], 4
      %s83 = int_to_ptr.vmem [resolvable:$true] %s82
      %85 = dma.hbm_to_vmem [thread:$0]  %s11, 64, %s83, [#allocation12]
    $region49: #{forward.1} parent=1 // pred_fallthru
      _
    // Predicated region
    $region50: #{forward.1} parent=1 // pred_check
      _
    $region51: #{forward.1} parent=1 // pred_check_branch
      %87 = sbr.rel (0) target = $region53
    $region52: #{forward.1} parent=1 // pred_region
      %s89 = ssub.s32 256, 256
      %90 = vsyncadd [#allocation12], %s89
      %s92 = sshll.u32 [#allocation13], 4
      %s93 = int_to_ptr.vmem [resolvable:$true] %s92
      %95 = dma.hbm_to_vmem [thread:$0]  %s12, 256, %s93, [#allocation12]
    $region53: #{forward.1} parent=1 // pred_fallthru
      _
    // Predicated region
    $region54: #{forward.1} parent=1 // pred_check
      _
    $region55: #{forward.1} parent=1 // pred_check_branch
      %97 = sbr.rel (0) target = $region57
    $region56: #{forward.1} parent=1 // pred_region
      _
    $region57: #{forward.1} parent=1 // pred_fallthru
      _
    // Predicated region
    $region58: #{forward.1} parent=1 // pred_check
      _
    $region59: #{forward.1} parent=1 // pred_check_branch
      %99 = sbr.rel (0) target = $region61
    $region60: #{forward.1} parent=1 // pred_region
      _
    $region61: #{forward.1} parent=1 // pred_fallthru
      _
    // Predicated region
    $region62: #{forward.1} parent=1 // pred_check
      _
    $region63: #{forward.1} parent=1 // pred_check_branch
      %101 = sbr.rel (0) target = $region65
    $region64: #{forward.1} parent=1 // pred_region
      _
    $region65: #{forward.1} parent=1 // pred_fallthru
      _
    // Predicated region
    $region66: #{forward.1} parent=1 // pred_check
      _
    $region67: #{forward.1} parent=1 // pred_check_branch
      %103 = sbr.rel (0) target = $region69
    $region68: #{forward.1} parent=1 // pred_region
      _
    $region69: #{forward.1} parent=1 // pred_fallthru
      _
    // Predicated region
    $region70: #{forward.1} parent=1 // pred_check
      _
    $region71: #{forward.1} parent=1 // pred_check_branch
      %105 = sbr.rel (0) target = $region73
    $region72: #{forward.1} parent=1 // pred_region
      %s107 = ssub.s32 1024, 1024
      %108 = vsyncadd [#allocation15], %s107
      %s109 = sshll.u32 [#allocation14], 4
      %s110 = int_to_ptr.vmem [resolvable:$true] %s109
      %115 = dma.hbm_to_vmem [thread:$0]  %s17, 1024, %s110, [#allocation15], 256, 256, 16
    $region73: #{forward.1} parent=1 // pred_fallthru
      _
    // Predicated region
    $region74: #{forward.1} parent=1 // pred_check
      _
    $region75: #{forward.1} parent=1 // pred_check_branch
      %117 = sbr.rel (0) target = $region77
    $region76: #{forward.1} parent=1 // pred_region
      %s119 = ssub.s32 2048, 2048
      %120 = vsyncadd [#allocation15], %s119
      %s121 = sshll.u32 [#allocation16], 4
      %s122 = int_to_ptr.vmem [resolvable:$true] %s121
      %127 = dma.hbm_to_vmem [thread:$0]  %s18, 2048, %s122, [#allocation15], 256, 256, 16
    $region77: #{forward.1} parent=1 // pred_fallthru
      _
    // Predicated region
    $region78: #{forward.1} parent=1 // pred_check
      _
    $region79: #{forward.1} parent=1 // pred_check_branch
      %129 = sbr.rel (0) target = $region81
    $region80: #{forward.1} parent=1 // pred_region
      %130 = dma.done [#allocation7], 320
    $region81: #{forward.1} parent=1 // pred_fallthru
      _
    // Predicated region
    $region82: #{forward.1} parent=1 // pred_check
      _
    $region83: #{forward.1} parent=1 // pred_check_branch
      %132 = sbr.rel (0) target = $region85
    $region84: #{forward.1} parent=1 // pred_region
      %133 = dma.done [#allocation9], 64
    $region85: #{forward.1} parent=1 // pred_fallthru
      _
    // Predicated region
    $region86: #{forward.1} parent=1 // pred_check
      _
    $region87: #{forward.1} parent=1 // pred_check_branch
      %135 = sbr.rel (0) target = $region89
    $region88: #{forward.1} parent=1 // pred_region
      %136 = dma.done [#allocation9], 32
    $region89: #{forward.1} parent=1 // pred_fallthru
      _
    // Predicated region
    $region90: #{forward.1} parent=1 // pred_check
      _
    $region91: #{forward.1} parent=1 // pred_check_branch
      %138 = sbr.rel (0) target = $region93
    $region92: #{forward.1} parent=1 // pred_region
      %139 = dma.done [#allocation12], 64
    $region93: #{forward.1} parent=1 // pred_fallthru
      _
    // Predicated region
    $region94: #{forward.1} parent=1 // pred_check
      _
    $region95: #{forward.1} parent=1 // pred_check_branch
      %141 = sbr.rel (0) target = $region97
    $region96: #{forward.1} parent=1 // pred_region
      %142 = dma.done [#allocation12], 256
    $region97: #{forward.1} parent=1 // pred_fallthru
      _
    // Predicated region
    $region98: #{forward.1} parent=1 // pred_check
      _
    $region99: #{forward.1} parent=1 // pred_check_branch
      %144 = sbr.rel (0) target = $region101
    $region100: #{forward.1} parent=1 // pred_region
      %145 = dma.done [#allocation15], 1024
    $region101: #{forward.1} parent=1 // pred_fallthru
      _
    // Predicated region
    $region102: #{forward.1} parent=1 // pred_check
      _
    $region103: #{forward.1} parent=1 // pred_check_branch
      %147 = sbr.rel (0) target = $region105
    $region104: #{forward.1} parent=1 // pred_region
      %148 = dma.done [#allocation15], 2048
    $region105: #{forward.1} parent=1 // pred_fallthru
      _
    %v150 = vld [vmem:[%s0] sm:$0xff]
    %v151 = vld [vmem:[%s0 + $0x8] sm:$0xf]
    %v152 = vld [vmem:[%s0 + $0xc] sm:$0xff]
    %v153 = vld [vmem:[%s0 + $0x14] sm:$0xf]
    %v154 = vld [vmem:[%s0 + $0x18] sm:$0xff]
    %v155 = vld [vmem:[%s0 + $0x20] sm:$0xf]
    %v156 = vld [vmem:[%s0 + $0x24] sm:$0xff]
    %v157 = vld [vmem:[%s0 + $0x2c] sm:$0xf]
    %v158 = vld [vmem:[%s0 + $0x30] sm:$0xff]
    %v159 = vld [vmem:[%s0 + $0x38] sm:$0xf]
    %v160 = vld [vmem:[%s0 + $0x3c] sm:$0xff]
    %v161 = vld [vmem:[%s0 + $0x44] sm:$0xf]
    %v162 = vld [vmem:[%s0 + $0x48] sm:$0xff]
    %v163 = vld [vmem:[%s0 + $0x50] sm:$0xf]
    %v164 = vld [vmem:[%s0 + $0x54] sm:$0xff]
    %v165 = vld [vmem:[%s0 + $0x5c] sm:$0xf]
    %v166 = vld [vmem:[%s0 + $0x60] sm:$0xff]
    %v167 = vld [vmem:[%s0 + $0x68] sm:$0xf]
    %v168 = vld [vmem:[%s0 + $0x6c] sm:$0xff]
    %v169 = vld [vmem:[%s0 + $0x74] sm:$0xf]
    %v170 = vld [vmem:[%s0 + $0x78] sm:$0xff]
    %v171 = vld [vmem:[%s0 + $0x80] sm:$0xf]
    %v172 = vld [vmem:[%s0 + $0x84] sm:$0xff]
    %v173 = vld [vmem:[%s0 + $0x8c] sm:$0xf]
    %v174 = vld [vmem:[%s0 + $0x90] sm:$0xff]
    %v175 = vld [vmem:[%s0 + $0x98] sm:$0xf]
    %v176 = vld [vmem:[%s0 + $0x9c] sm:$0xff]
    %v177 = vld [vmem:[%s0 + $0xa4] sm:$0xf]
    %v178 = vld [vmem:[%s0 + $0xa8] sm:$0xff]
    %v179 = vld [vmem:[%s0 + $0xb0] sm:$0xf]
    %v180 = vld [vmem:[%s0 + $0xb4] sm:$0xff]
    %v181 = vld [vmem:[%s0 + $0xbc] sm:$0xf]
    %v182 = vld [vmem:[%s0 + $0xc0] sm:$0xff]
    %v183 = vld [vmem:[%s0 + $0xc8] sm:$0xf]
    %v184 = vld [vmem:[%s0 + $0xcc] sm:$0xff]
    %v185 = vld [vmem:[%s0 + $0xd4] sm:$0xf]
    %v186 = vld [vmem:[%s0 + $0xd8] sm:$0xff]
    %v187 = vld [vmem:[%s0 + $0xe0] sm:$0xf]
    %v188 = vld [vmem:[%s0 + $0xe4] sm:$0xff]
    %v189 = vld [vmem:[%s0 + $0xec] sm:$0xf]
    %v190 = vld [vmem:[%s0 + $0xf0] sm:$0xff]
    %v191 = vld [vmem:[%s0 + $0xf8] sm:$0xf]
    %v192 = vld [vmem:[%s0 + $0xfc] sm:$0xff]
    %v193 = vld [vmem:[%s0 + $0x104] sm:$0xf]
    %v194 = vld [vmem:[%s0 + $0x108] sm:$0xff]
    %v195 = vld [vmem:[%s0 + $0x110] sm:$0xf]
    %v196 = vld [vmem:[%s0 + $0x114] sm:$0xff]
    %v197 = vld [vmem:[%s0 + $0x11c] sm:$0xf]
    %v198 = vld [vmem:[%s1] sm:$0xff]
    %v199 = vld [vmem:[%s1 + $0x8] sm:$0xff]
    %v200 = vld [vmem:[%s1 + $0x10] sm:$0xff]
    %v201 = vld [vmem:[%s1 + $0x18] sm:$0xff]
    %v202 = vld [vmem:[%s1 + $0x20] sm:$0xff]
    %v203 = vld [vmem:[%s1 + $0x28] sm:$0xff]
    %v204 = vld [vmem:[%s1 + $0x30] sm:$0xff]
    %v205 = vld [vmem:[%s1 + $0x38] sm:$0xff]
    %v206 = vld [vmem:[%s1 + $0x40] sm:$0xff]
    %v207 = vld [vmem:[%s1 + $0x48] sm:$0xff]
    %v208 = vld [vmem:[%s1 + $0x50] sm:$0xff]
    %v209 = vld [vmem:[%s1 + $0x58] sm:$0xff]
    %v210 = vld [vmem:[%s1 + $0x60] sm:$0xff]
    %v211 = vld [vmem:[%s1 + $0x68] sm:$0xff]
    %v212 = vld [vmem:[%s1 + $0x70] sm:$0xff]
    %v213 = vld [vmem:[%s1 + $0x78] sm:$0xff]
    %v214 = vld [vmem:[%s1 + $0x80] sm:$0xff]
    %v215 = vld [vmem:[%s1 + $0x88] sm:$0xff]
    %v216 = vld [vmem:[%s1 + $0x90] sm:$0xff]
    %v217 = vld [vmem:[%s1 + $0x98] sm:$0xff]
    %v218 = vld [vmem:[%s1 + $0xa0] sm:$0xff]
    %v219 = vld [vmem:[%s1 + $0xa8] sm:$0xff]
    %v220 = vld [vmem:[%s1 + $0xb0] sm:$0xff]
    %v221 = vld [vmem:[%s1 + $0xb8] sm:$0xff]
    %v222 = vld [vmem:[%s1 + $0xc0] sm:$0xff]
    %v223 = vld [vmem:[%s1 + $0xc8] sm:$0xff]
    %v224 = vld [vmem:[%s1 + $0xd0] sm:$0xff]
    %v225 = vld [vmem:[%s1 + $0xd8] sm:$0xff]
    %v226 = vld [vmem:[%s1 + $0xe0] sm:$0xff]
    %v227 = vld [vmem:[%s1 + $0xe8] sm:$0xff]
    %v228 = vld [vmem:[%s1 + $0xf0] sm:$0xff]
    %v229 = vld [vmem:[%s1 + $0xf8] sm:$0xff]
    %v230 = vld [vmem:[%s1 + $0x100] sm:$0xff]
    %v231 = vld [vmem:[%s1 + $0x108] sm:$0xff]
    %v232 = vld [vmem:[%s1 + $0x110] sm:$0xff]
    %v233 = vld [vmem:[%s1 + $0x118] sm:$0xff]
    %v234 = vld [vmem:[%s0 + $0x120] sm:$0x11]
    %v235 = vld [vmem:[%s0 + $0x128] sm:$0x1]
    %s236 = scalar_lea.vmem %s1, 288
    %v237 = vld [vmem:[%s236] sm:$0xff]
    %v238 = vld [vmem:[%s236 + $0x8] sm:$0xff]
    %v239 = vld [vmem:[%s236 + $0x10] sm:$0xff]
    %v240 = vld [vmem:[%s236 + $0x18] sm:$0xff]
    %v241 = vld [vmem:[%s236 + $0x20] sm:$0xff]
    %v242 = vld [vmem:[%s236 + $0x28] sm:$0xff]
    %v243 = vld [vmem:[%s236 + $0x30] sm:$0xff]
    %v244 = vld [vmem:[%s236 + $0x38] sm:$0xff]
    %v245 = vld [vmem:[%s236 + $0x40] sm:$0xff]
    %v246 = vld [vmem:[%s236 + $0x48] sm:$0xff]
    %v247 = vld [vmem:[%s236 + $0x50] sm:$0xff]
    %v248 = vld [vmem:[%s236 + $0x58] sm:$0xff]
    %v249 = vld [vmem:[%s236 + $0x60] sm:$0xff]
    %v250 = vld [vmem:[%s236 + $0x68] sm:$0xff]
    %v251 = vld [vmem:[%s236 + $0x70] sm:$0xff]
    %v252 = vld [vmem:[%s236 + $0x78] sm:$0xff]
    %v253 = vld [vmem:[%s236 + $0x80] sm:$0xff]
    %v254 = vld [vmem:[%s236 + $0x88] sm:$0xff]
    %v255 = vld [vmem:[%s236 + $0x90] sm:$0xff]
    %v256 = vld [vmem:[%s236 + $0x98] sm:$0xff]
    %v257 = vld [vmem:[%s236 + $0xa0] sm:$0xff]
    %v258 = vld [vmem:[%s236 + $0xa8] sm:$0xff]
    %v259 = vld [vmem:[%s236 + $0xb0] sm:$0xff]
    %v260 = vld [vmem:[%s236 + $0xb8] sm:$0xff]
    %v261 = vld [vmem:[%s236 + $0xc0] sm:$0xff]
    %v262 = vld [vmem:[%s236 + $0xc8] sm:$0xff]
    %v263 = vld [vmem:[%s236 + $0xd0] sm:$0xff]
    %v264 = vld [vmem:[%s236 + $0xd8] sm:$0xff]
    %v265 = vld [vmem:[%s236 + $0xe0] sm:$0xff]
    %v266 = vld [vmem:[%s236 + $0xe8] sm:$0xff]
    %v267 = vld [vmem:[%s236 + $0xf0] sm:$0xff]
    %v268 = vld [vmem:[%s236 + $0xf8] sm:$0xff]
    %v269 = vld [vmem:[%s236 + $0x100] sm:$0xff]
    %v270 = vld [vmem:[%s236 + $0x108] sm:$0xff]
    %v271 = vld [vmem:[%s236 + $0x110] sm:$0xff]
    %v272 = vld [vmem:[%s236 + $0x118] sm:$0xff]
    %v323 = vunpack.c.l.b16 %v150
    %v324 = vunpack.c.h.b16 %v150
    %v325 = vunpack.c.l.b16 %v151
    %v326 = vunpack.c.l.b16 %v152
    %v327 = vunpack.c.h.b16 %v152
    %v328 = vunpack.c.l.b16 %v153
    %v329 = vunpack.c.l.b16 %v154
    %v330 = vunpack.c.h.b16 %v154
    %v331 = vunpack.c.l.b16 %v155
    %v332 = vunpack.c.l.b16 %v156
    %v333 = vunpack.c.h.b16 %v156
    %v334 = vunpack.c.l.b16 %v157
    %v335 = vunpack.c.l.b16 %v158
    %v336 = vunpack.c.h.b16 %v158
    %v337 = vunpack.c.l.b16 %v159
    %v338 = vunpack.c.l.b16 %v160
    %v339 = vunpack.c.h.b16 %v160
    %v340 = vunpack.c.l.b16 %v161
    %v341 = vunpack.c.l.b16 %v162
    %v342 = vunpack.c.h.b16 %v162
    %v343 = vunpack.c.l.b16 %v163
    %v344 = vunpack.c.l.b16 %v164
    %v345 = vunpack.c.h.b16 %v164
    %v346 = vunpack.c.l.b16 %v165
    %v347 = vunpack.c.l.b16 %v166
    %v348 = vunpack.c.h.b16 %v166
    %v349 = vunpack.c.l.b16 %v167
    %v350 = vunpack.c.l.b16 %v168
    %v351 = vunpack.c.h.b16 %v168
    %v352 = vunpack.c.l.b16 %v169
    %v353 = vunpack.c.l.b16 %v170
    %v354 = vunpack.c.h.b16 %v170
    %v355 = vunpack.c.l.b16 %v171
    %v356 = vunpack.c.l.b16 %v172
    %v357 = vunpack.c.h.b16 %v172
    %v358 = vunpack.c.l.b16 %v173
    %v359 = vunpack.c.l.b16 %v174
    %v360 = vunpack.c.h.b16 %v174
    %v361 = vunpack.c.l.b16 %v175
    %v362 = vunpack.c.l.b16 %v176
    %v363 = vunpack.c.h.b16 %v176
    %v364 = vunpack.c.l.b16 %v177
    %v365 = vunpack.c.l.b16 %v178
    %v366 = vunpack.c.h.b16 %v178
    %v367 = vunpack.c.l.b16 %v179
    %v368 = vunpack.c.l.b16 %v180
    %v369 = vunpack.c.h.b16 %v180
    %v370 = vunpack.c.l.b16 %v181
    %v371 = vunpack.c.l.b16 %v182
    %v372 = vunpack.c.h.b16 %v182
    %v373 = vunpack.c.l.b16 %v183
    %v374 = vunpack.c.l.b16 %v184
    %v375 = vunpack.c.h.b16 %v184
    %v376 = vunpack.c.l.b16 %v185
    %v377 = vunpack.c.l.b16 %v186
    %v378 = vunpack.c.h.b16 %v186
    %v379 = vunpack.c.l.b16 %v187
    %v380 = vunpack.c.l.b16 %v188
    %v381 = vunpack.c.h.b16 %v188
    %v382 = vunpack.c.l.b16 %v189
    %v383 = vunpack.c.l.b16 %v190
    %v384 = vunpack.c.h.b16 %v190
    %v385 = vunpack.c.l.b16 %v191
    %v386 = vunpack.c.l.b16 %v192
    %v387 = vunpack.c.h.b16 %v192
    %v388 = vunpack.c.l.b16 %v193
    %v389 = vunpack.c.l.b16 %v194
    %v390 = vunpack.c.h.b16 %v194
    %v391 = vunpack.c.l.b16 %v195
    %v392 = vunpack.c.l.b16 %v196
    %v393 = vunpack.c.h.b16 %v196
    %v394 = vunpack.c.l.b16 %v197
    %v395 = vunpack.c.l.b16 %v234
    %v396 = vunpack.c.h.b16 %v234
    %v397 = vunpack.c.l.b16 %v235
    %v398 = vpack.c.b16 %v326, %v323
    %v399 = vpack.c.b16 %v327, %v324
    %v400 = vpack.c.b16 %v328, %v325
    %v401 = vpack.c.b16 %v332, %v329
    %v402 = vpack.c.b16 %v333, %v330
    %v403 = vpack.c.b16 %v334, %v331
    %v404 = vpack.c.b16 %v338, %v335
    %v405 = vpack.c.b16 %v339, %v336
    %v406 = vpack.c.b16 %v340, %v337
    %v407 = vpack.c.b16 %v344, %v341
    %v408 = vpack.c.b16 %v345, %v342
    %v409 = vpack.c.b16 %v346, %v343
    %v410 = vpack.c.b16 %v350, %v347
    %v411 = vpack.c.b16 %v351, %v348
    %v412 = vpack.c.b16 %v352, %v349
    %v413 = vpack.c.b16 %v356, %v353
    %v414 = vpack.c.b16 %v357, %v354
    %v415 = vpack.c.b16 %v358, %v355
    %v416 = vpack.c.b16 %v362, %v359
    %v417 = vpack.c.b16 %v363, %v360
    %v418 = vpack.c.b16 %v364, %v361
    %v419 = vpack.c.b16 %v368, %v365
    %v420 = vpack.c.b16 %v369, %v366
    %v421 = vpack.c.b16 %v370, %v367
    %v422 = vpack.c.b16 %v374, %v371
    %v423 = vpack.c.b16 %v375, %v372
    %v424 = vpack.c.b16 %v376, %v373
    %v425 = vpack.c.b16 %v380, %v377
    %v426 = vpack.c.b16 %v381, %v378
    %v427 = vpack.c.b16 %v382, %v379
    %v428 = vpack.c.b16 %v386, %v383
    %v429 = vpack.c.b16 %v387, %v384
    %v430 = vpack.c.b16 %v388, %v385
    %v431 = vpack.c.b16 %v392, %v389
    %v432 = vpack.c.b16 %v393, %v390
    %v433 = vpack.c.b16 %v394, %v391
    %v434 = vpack.c.b16 %v395, %v395
    %v435 = vpack.c.b16 %v396, %v396
    %v436 = vpack.c.b16 %v397, %v397
    %vm437 = vsmask.f32 7424
    %v439 = vshrl.u32 %v398, 16
    %v441 = vshll.u32 %v398, 16
    %v443 = vrot.slane %v441, 1
    %v444 = vor.u32 %v439, %v443
    %v446 = vshll.u32 %v401, 16
    %v448 = vrot.slane %v446, 1
    %v449 = vsel %vm437, %v444, %v448
    %v451 = vshrl.u32 %v399, 16
    %v453 = vshll.u32 %v399, 16
    %v455 = vrot.slane %v453, 1
    %v456 = vor.u32 %v451, %v455
    %v458 = vshll.u32 %v402, 16
    %v460 = vrot.slane %v458, 1
    %v461 = vsel %vm437, %v456, %v460
    %v463 = vshrl.u32 %v400, 16
    %v465 = vshll.u32 %v400, 16
    %v467 = vrot.slane %v465, 1
    %v468 = vor.u32 %v463, %v467
    %v470 = vshll.u32 %v403, 16
    %v472 = vrot.slane %v470, 1
    %v473 = vsel %vm437, %v468, %v472
    %v474 = vshrl.u32 %v401, 16
    %v476 = vor.u32 %v474, %v448
    %v478 = vshll.u32 %v404, 16
    %v480 = vrot.slane %v478, 1
    %v481 = vsel %vm437, %v476, %v480
    %v482 = vshrl.u32 %v402, 16
    %v484 = vor.u32 %v482, %v460
    %v486 = vshll.u32 %v405, 16
    %v488 = vrot.slane %v486, 1
    %v489 = vsel %vm437, %v484, %v488
    %v490 = vshrl.u32 %v403, 16
    %v492 = vor.u32 %v490, %v472
    %v494 = vshll.u32 %v406, 16
    %v496 = vrot.slane %v494, 1
    %v497 = vsel %vm437, %v492, %v496
    %v498 = vshrl.u32 %v404, 16
    %v500 = vor.u32 %v498, %v480
    %v502 = vshll.u32 %v407, 16
    %v504 = vrot.slane %v502, 1
    %v505 = vsel %vm437, %v500, %v504
    %v506 = vshrl.u32 %v405, 16
    %v508 = vor.u32 %v506, %v488
    %v510 = vshll.u32 %v408, 16
    %v512 = vrot.slane %v510, 1
    %v513 = vsel %vm437, %v508, %v512
    %v514 = vshrl.u32 %v406, 16
    %v516 = vor.u32 %v514, %v496
    %v518 = vshll.u32 %v409, 16
    %v520 = vrot.slane %v518, 1
    %v521 = vsel %vm437, %v516, %v520
    %v522 = vshrl.u32 %v407, 16
    %v524 = vor.u32 %v522, %v504
    %v526 = vshll.u32 %v410, 16
    %v528 = vrot.slane %v526, 1
    %v529 = vsel %vm437, %v524, %v528
    %v530 = vshrl.u32 %v408, 16
    %v532 = vor.u32 %v530, %v512
    %v534 = vshll.u32 %v411, 16
    %v536 = vrot.slane %v534, 1
    %v537 = vsel %vm437, %v532, %v536
    %v538 = vshrl.u32 %v409, 16
    %v540 = vor.u32 %v538, %v520
    %v542 = vshll.u32 %v412, 16
    %v544 = vrot.slane %v542, 1
    %v545 = vsel %vm437, %v540, %v544
    %v546 = vshrl.u32 %v410, 16
    %v548 = vor.u32 %v546, %v528
    %v550 = vshll.u32 %v413, 16
    %v552 = vrot.slane %v550, 1
    %v553 = vsel %vm437, %v548, %v552
    %v554 = vshrl.u32 %v411, 16
    %v556 = vor.u32 %v554, %v536
    %v558 = vshll.u32 %v414, 16
    %v560 = vrot.slane %v558, 1
    %v561 = vsel %vm437, %v556, %v560
    %v562 = vshrl.u32 %v412, 16
    %v564 = vor.u32 %v562, %v544
    %v566 = vshll.u32 %v415, 16
    %v568 = vrot.slane %v566, 1
    %v569 = vsel %vm437, %v564, %v568
    %v570 = vshrl.u32 %v413, 16
    %v572 = vor.u32 %v570, %v552
    %v574 = vshll.u32 %v416, 16
    %v576 = vrot.slane %v574, 1
    %v577 = vsel %vm437, %v572, %v576
    %v578 = vshrl.u32 %v414, 16
    %v580 = vor.u32 %v578, %v560
    %v582 = vshll.u32 %v417, 16
    %v584 = vrot.slane %v582, 1
    %v585 = vsel %vm437, %v580, %v584
    %v586 = vshrl.u32 %v415, 16
    %v588 = vor.u32 %v586, %v568
    %v590 = vshll.u32 %v418, 16
    %v592 = vrot.slane %v590, 1
    %v593 = vsel %vm437, %v588, %v592
    %v594 = vshrl.u32 %v416, 16
    %v596 = vor.u32 %v594, %v576
    %v598 = vshll.u32 %v419, 16
    %v600 = vrot.slane %v598, 1
    %v601 = vsel %vm437, %v596, %v600
    %v602 = vshrl.u32 %v417, 16
    %v604 = vor.u32 %v602, %v584
    %v606 = vshll.u32 %v420, 16
    %v608 = vrot.slane %v606, 1
    %v609 = vsel %vm437, %v604, %v608
    %v610 = vshrl.u32 %v418, 16
    %v612 = vor.u32 %v610, %v592
    %v614 = vshll.u32 %v421, 16
    %v616 = vrot.slane %v614, 1
    %v617 = vsel %vm437, %v612, %v616
    %v618 = vshrl.u32 %v419, 16
    %v620 = vor.u32 %v618, %v600
    %v622 = vshll.u32 %v422, 16
    %v624 = vrot.slane %v622, 1
    %v625 = vsel %vm437, %v620, %v624
    %v626 = vshrl.u32 %v420, 16
    %v628 = vor.u32 %v626, %v608
    %v630 = vshll.u32 %v423, 16
    %v632 = vrot.slane %v630, 1
    %v633 = vsel %vm437, %v628, %v632
    %v634 = vshrl.u32 %v421, 16
    %v636 = vor.u32 %v634, %v616
    %v638 = vshll.u32 %v424, 16
    %v640 = vrot.slane %v638, 1
    %v641 = vsel %vm437, %v636, %v640
    %v642 = vshrl.u32 %v422, 16
    %v644 = vor.u32 %v642, %v624
    %v646 = vshll.u32 %v425, 16
    %v648 = vrot.slane %v646, 1
    %v649 = vsel %vm437, %v644, %v648
    %v650 = vshrl.u32 %v423, 16
    %v652 = vor.u32 %v650, %v632
    %v654 = vshll.u32 %v426, 16
    %v656 = vrot.slane %v654, 1
    %v657 = vsel %vm437, %v652, %v656
    %v658 = vshrl.u32 %v424, 16
    %v660 = vor.u32 %v658, %v640
    %v662 = vshll.u32 %v427, 16
    %v664 = vrot.slane %v662, 1
    %v665 = vsel %vm437, %v660, %v664
    %v666 = vshrl.u32 %v425, 16
    %v668 = vor.u32 %v666, %v648
    %v670 = vshll.u32 %v428, 16
    %v672 = vrot.slane %v670, 1
    %v673 = vsel %vm437, %v668, %v672
    %v674 = vshrl.u32 %v426, 16
    %v676 = vor.u32 %v674, %v656
    %v678 = vshll.u32 %v429, 16
    %v680 = vrot.slane %v678, 1
    %v681 = vsel %vm437, %v676, %v680
    %v682 = vshrl.u32 %v427, 16
    %v684 = vor.u32 %v682, %v664
    %v686 = vshll.u32 %v430, 16
    %v688 = vrot.slane %v686, 1
    %v689 = vsel %vm437, %v684, %v688
    %v690 = vshrl.u32 %v428, 16
    %v692 = vor.u32 %v690, %v672
    %v694 = vshll.u32 %v431, 16
    %v696 = vrot.slane %v694, 1
    %v697 = vsel %vm437, %v692, %v696
    %v698 = vshrl.u32 %v429, 16
    %v700 = vor.u32 %v698, %v680
    %v702 = vshll.u32 %v432, 16
    %v704 = vrot.slane %v702, 1
    %v705 = vsel %vm437, %v700, %v704
    %v706 = vshrl.u32 %v430, 16
    %v708 = vor.u32 %v706, %v688
    %v710 = vshll.u32 %v433, 16
    %v712 = vrot.slane %v710, 1
    %v713 = vsel %vm437, %v708, %v712
    %v714 = vshrl.u32 %v431, 16
    %v716 = vor.u32 %v714, %v696
    %v718 = vshll.u32 %v434, 16
    %v720 = vrot.slane %v718, 1
    %v721 = vsel %vm437, %v716, %v720
    %v722 = vshrl.u32 %v432, 16
    %v724 = vor.u32 %v722, %v704
    %v726 = vshll.u32 %v435, 16
    %v728 = vrot.slane %v726, 1
    %v729 = vsel %vm437, %v724, %v728
    %v730 = vshrl.u32 %v433, 16
    %v732 = vor.u32 %v730, %v712
    %v734 = vshll.u32 %v436, 16
    %v736 = vrot.slane %v734, 1
    %v737 = vsel %vm437, %v732, %v736
    %v798 = vunpack.c.l.b16 %v237
    %v799 = vunpack.c.h.b16 %v237
    %v800 = vunpack.c.l.b16 %v238
    %v801 = vunpack.c.h.b16 %v238
    %v802 = vunpack.c.l.b16 %v239
    %v803 = vunpack.c.h.b16 %v239
    %v804 = vunpack.c.l.b16 %v240
    %v805 = vunpack.c.h.b16 %v240
    %v806 = vunpack.c.l.b16 %v241
    %v807 = vunpack.c.h.b16 %v241
    %v808 = vunpack.c.l.b16 %v242
    %v809 = vunpack.c.h.b16 %v242
    %v810 = vunpack.c.l.b16 %v243
    %v811 = vunpack.c.h.b16 %v243
    %v812 = vunpack.c.l.b16 %v244
    %v813 = vunpack.c.h.b16 %v244
    %v814 = vunpack.c.l.b16 %v245
    %v815 = vunpack.c.h.b16 %v245
    %v816 = vunpack.c.l.b16 %v246
    %v817 = vunpack.c.h.b16 %v246
    %v818 = vunpack.c.l.b16 %v247
    %v819 = vunpack.c.h.b16 %v247
    %v820 = vunpack.c.l.b16 %v248
    %v821 = vunpack.c.h.b16 %v248
    %v822 = vunpack.c.l.b16 %v249
    %v823 = vunpack.c.h.b16 %v249
    %v824 = vunpack.c.l.b16 %v250
    %v825 = vunpack.c.h.b16 %v250
    %v826 = vunpack.c.l.b16 %v251
    %v827 = vunpack.c.h.b16 %v251
    %v828 = vunpack.c.l.b16 %v252
    %v829 = vunpack.c.h.b16 %v252
    %v830 = vunpack.c.l.b16 %v253
    %v831 = vunpack.c.h.b16 %v253
    %v832 = vunpack.c.l.b16 %v254
    %v833 = vunpack.c.h.b16 %v254
    %v834 = vunpack.c.l.b16 %v255
    %v835 = vunpack.c.h.b16 %v255
    %v836 = vunpack.c.l.b16 %v256
    %v837 = vunpack.c.h.b16 %v256
    %v838 = vunpack.c.l.b16 %v257
    %v839 = vunpack.c.h.b16 %v257
    %v840 = vunpack.c.l.b16 %v258
    %v841 = vunpack.c.h.b16 %v258
    %v842 = vunpack.c.l.b16 %v259
    %v843 = vunpack.c.h.b16 %v259
    %v844 = vunpack.c.l.b16 %v260
    %v845 = vunpack.c.h.b16 %v260
    %v846 = vunpack.c.l.b16 %v261
    %v847 = vunpack.c.h.b16 %v261
    %v848 = vunpack.c.l.b16 %v262
    %v849 = vunpack.c.h.b16 %v262
    %v850 = vunpack.c.l.b16 %v263
    %v851 = vunpack.c.h.b16 %v263
    %v852 = vunpack.c.l.b16 %v264
    %v853 = vunpack.c.h.b16 %v264
    %v854 = vunpack.c.l.b16 %v265
    %v855 = vunpack.c.h.b16 %v265
    %v856 = vunpack.c.l.b16 %v266
    %v857 = vunpack.c.h.b16 %v266
    %v858 = vunpack.c.l.b16 %v267
    %v859 = vunpack.c.h.b16 %v267
    %v860 = vunpack.c.l.b16 %v268
    %v861 = vunpack.c.h.b16 %v268
    %v862 = vunpack.c.l.b16 %v269
    %v863 = vunpack.c.h.b16 %v269
    %v864 = vunpack.c.l.b16 %v270
    %v865 = vunpack.c.h.b16 %v270
    %v866 = vunpack.c.l.b16 %v271
    %v867 = vunpack.c.h.b16 %v271
    %v868 = vunpack.c.l.b16 %v272
    %v869 = vunpack.c.h.b16 %v272
    %v870 = vpack.c.b16 %v800, %v798
    %v871 = vpack.c.b16 %v801, %v799
    %v872 = vpack.c.b16 %v804, %v802
    %v873 = vpack.c.b16 %v805, %v803
    %v874 = vpack.c.b16 %v808, %v806
    %v875 = vpack.c.b16 %v809, %v807
    %v876 = vpack.c.b16 %v812, %v810
    %v877 = vpack.c.b16 %v813, %v811
    %v878 = vpack.c.b16 %v816, %v814
    %v879 = vpack.c.b16 %v817, %v815
    %v880 = vpack.c.b16 %v820, %v818
    %v881 = vpack.c.b16 %v821, %v819
    %v882 = vpack.c.b16 %v824, %v822
    %v883 = vpack.c.b16 %v825, %v823
    %v884 = vpack.c.b16 %v828, %v826
    %v885 = vpack.c.b16 %v829, %v827
    %v886 = vpack.c.b16 %v832, %v830
    %v887 = vpack.c.b16 %v833, %v831
    %v888 = vpack.c.b16 %v836, %v834
    %v889 = vpack.c.b16 %v837, %v835
    %v890 = vpack.c.b16 %v840, %v838
    %v891 = vpack.c.b16 %v841, %v839
    %v892 = vpack.c.b16 %v844, %v842
    %v893 = vpack.c.b16 %v845, %v843
    %v894 = vpack.c.b16 %v848, %v846
    %v895 = vpack.c.b16 %v849, %v847
    %v896 = vpack.c.b16 %v852, %v850
    %v897 = vpack.c.b16 %v853, %v851
    %v898 = vpack.c.b16 %v856, %v854
    %v899 = vpack.c.b16 %v857, %v855
    %v900 = vpack.c.b16 %v860, %v858
    %v901 = vpack.c.b16 %v861, %v859
    %v902 = vpack.c.b16 %v864, %v862
    %v903 = vpack.c.b16 %v865, %v863
    %v904 = vpack.c.b16 %v868, %v866
    %v905 = vpack.c.b16 %v869, %v867
    %vm942 = vcmask 261120
    %v944 = vsel %vm942, %v473, 0
    %v947 = vsel %vm942, %v497, 0
    %v950 = vsel %vm942, %v521, 0
    %v953 = vsel %vm942, %v545, 0
    %v956 = vsel %vm942, %v569, 0
    %v959 = vsel %vm942, %v593, 0
    %v962 = vsel %vm942, %v617, 0
    %v965 = vsel %vm942, %v641, 0
    %v968 = vsel %vm942, %v665, 0
    %v971 = vsel %vm942, %v689, 0
    %v974 = vsel %vm942, %v713, 0
    %v977 = vsel %vm942, %v737, 0
    %979 = vmatprep.subr.bf16.mxu0 %v871
    %980 = vmatpush1.bf16.msra.mxu0 %v870
    %981 = vmatprep.subr.bf16.mxu0 %v873
    %982 = vmatpush1.bf16.msra.mxu0 %v872
    %983 = vmatprep.subr.bf16.mxu0 %v875
    %984 = vmatpush1.bf16.msra.mxu0 %v874
    %985 = vmatprep.subr.bf16.mxu0 %v877
    %986 = vmatpush1.bf16.msra.mxu0 %v876
    %987 = vmatprep.subr.bf16.mxu0 %v879
    %988 = vmatpush1.bf16.msra.mxu0 %v878
    %989 = vmatprep.subr.bf16.mxu0 %v881
    %990 = vmatpush1.bf16.msra.mxu0 %v880
    %991 = vmatprep.subr.bf16.mxu0 %v883
    %992 = vmatpush1.bf16.msra.mxu0 %v882
    %993 = vmatprep.subr.bf16.mxu0 %v885
    %994 = vmatpush1.bf16.msra.mxu0 %v884
    %995 = vmatprep.subr.bf16.mxu0 %v887
    %996 = vmatpush1.bf16.msra.mxu0 %v886
    %997 = vmatprep.subr.bf16.mxu0 %v889
    %998 = vmatpush1.bf16.msra.mxu0 %v888
    %999 = vmatprep.subr.bf16.mxu0 %v891
    %1000 = vmatpush1.bf16.msra.mxu0 %v890
    %1001 = vmatprep.subr.bf16.mxu0 %v893
    %1002 = vmatpush1.bf16.msra.mxu0 %v892
    %1003 = vmatprep.subr.bf16.mxu0 %v895
    %1004 = vmatpush1.bf16.msra.mxu0 %v894
    %1005 = vmatprep.subr.bf16.mxu0 %v897
    %1006 = vmatpush1.bf16.msra.mxu0 %v896
    %1007 = vmatprep.subr.bf16.mxu0 %v899
    %1008 = vmatpush1.bf16.msra.mxu0 %v898
    %1009 = vmatprep.subr.bf16.mxu0 %v901
    %1010 = vmatpush1.bf16.msra.mxu0 %v900
    %1011 = vmatprep.mubr.bf16.mxu0 %v461
    %1012 = vmatmul.mubr.bf16.gmra.mrb[0].mxu0 %v449
    %v1013 = vpop.f32.mrb[0].mxu0
    %v1014 = vadd.f32 0.0, %v1013
    %v1015 = vpop.f32.mrb[0].mxu0
    %v1016 = vadd.f32 0.0, %v1015
    %v1017 = vpop.f32.mrb[0].mxu0
    %v1018 = vadd.f32 0.0, %v1017
    %v1019 = vpop.f32.mrb[0].mxu0
    %v1020 = vadd.f32 0.0, %v1019
    %1021 = vmatprep.mubr.bf16.mxu0 %v489
    %1022 = vmatmul.mubr.bf16.gmra.mrb[0].mxu0 %v481
    %v1023 = vpop.f32.mrb[0].mxu0
    %v1024 = vadd.f32 0.0, %v1023
    %v1025 = vpop.f32.mrb[0].mxu0
    %v1026 = vadd.f32 0.0, %v1025
    %v1027 = vpop.f32.mrb[0].mxu0
    %v1028 = vadd.f32 0.0, %v1027
    %v1029 = vpop.f32.mrb[0].mxu0
    %v1030 = vadd.f32 0.0, %v1029
    %1031 = vmatprep.mubr.bf16.mxu0 %v513
    %1032 = vmatmul.mubr.bf16.gmra.mrb[0].mxu0 %v505
    %v1033 = vpop.f32.mrb[0].mxu0
    %v1034 = vadd.f32 0.0, %v1033
    %v1035 = vpop.f32.mrb[0].mxu0
    %v1036 = vadd.f32 0.0, %v1035
    %v1037 = vpop.f32.mrb[0].mxu0
    %v1038 = vadd.f32 0.0, %v1037
    %v1039 = vpop.f32.mrb[0].mxu0
    %v1040 = vadd.f32 0.0, %v1039
    %1041 = vmatprep.mubr.bf16.mxu0 %v537
    %1042 = vmatmul.mubr.bf16.gmra.mrb[0].mxu0 %v529
    %v1043 = vpop.f32.mrb[0].mxu0
    %v1044 = vadd.f32 0.0, %v1043
    %v1045 = vpop.f32.mrb[0].mxu0
    %v1046 = vadd.f32 0.0, %v1045
    %v1047 = vpop.f32.mrb[0].mxu0
    %v1048 = vadd.f32 0.0, %v1047
    %v1049 = vpop.f32.mrb[0].mxu0
    %v1050 = vadd.f32 0.0, %v1049
    %1051 = vmatprep.mubr.bf16.mxu0 %v561
    %1052 = vmatmul.mubr.bf16.gmra.mrb[0].mxu0 %v553
    %v1053 = vpop.f32.mrb[0].mxu0
    %v1054 = vadd.f32 0.0, %v1053
    %v1055 = vpop.f32.mrb[0].mxu0
    %v1056 = vadd.f32 0.0, %v1055
    %v1057 = vpop.f32.mrb[0].mxu0
    %v1058 = vadd.f32 0.0, %v1057
    %v1059 = vpop.f32.mrb[0].mxu0
    %v1060 = vadd.f32 0.0, %v1059
    %1061 = vmatprep.mubr.bf16.mxu0 %v585
    %1062 = vmatmul.mubr.bf16.gmra.mrb[0].mxu0 %v577
    %v1063 = vpop.f32.mrb[0].mxu0
    %v1064 = vadd.f32 0.0, %v1063
    %v1065 = vpop.f32.mrb[0].mxu0
    %v1066 = vadd.f32 0.0, %v1065
    %v1067 = vpop.f32.mrb[0].mxu0
    %v1068 = vadd.f32 0.0, %v1067
    %v1069 = vpop.f32.mrb[0].mxu0
    %v1070 = vadd.f32 0.0, %v1069
    %1071 = vmatprep.mubr.bf16.mxu0 %v609
    %1072 = vmatmul.mubr.bf16.gmra.mrb[0].mxu0 %v601
    %v1073 = vpop.f32.mrb[0].mxu0
    %v1074 = vadd.f32 0.0, %v1073
    %v1075 = vpop.f32.mrb[0].mxu0
    %v1076 = vadd.f32 0.0, %v1075
    %v1077 = vpop.f32.mrb[0].mxu0
    %v1078 = vadd.f32 0.0, %v1077
    %v1079 = vpop.f32.mrb[0].mxu0
    %v1080 = vadd.f32 0.0, %v1079
    %1081 = vmatprep.mubr.bf16.mxu0 %v633
    %1082 = vmatmul.mubr.bf16.gmra.mrb[0].mxu0 %v625
    %v1083 = vpop.f32.mrb[0].mxu0
    %v1084 = vadd.f32 0.0, %v1083
    %v1085 = vpop.f32.mrb[0].mxu0
    %v1086 = vadd.f32 0.0, %v1085
    %v1087 = vpop.f32.mrb[0].mxu0
    %v1088 = vadd.f32 0.0, %v1087
    %v1089 = vpop.f32.mrb[0].mxu0
    %v1090 = vadd.f32 0.0, %v1089
    %1091 = vmatprep.mubr.bf16.mxu0 %v657
    %1092 = vmatmul.mubr.bf16.gmra.mrb[0].mxu0 %v649
    %v1093 = vpop.f32.mrb[0].mxu0
    %v1094 = vadd.f32 0.0, %v1093
    %v1095 = vpop.f32.mrb[0].mxu0
    %v1096 = vadd.f32 0.0, %v1095
    %v1097 = vpop.f32.mrb[0].mxu0
    %v1098 = vadd.f32 0.0, %v1097
    %v1099 = vpop.f32.mrb[0].mxu0
    %v1100 = vadd.f32 0.0, %v1099
    %1101 = vmatprep.mubr.bf16.mxu0 %v681
    %1102 = vmatmul.mubr.bf16.gmra.mrb[0].mxu0 %v673
    %v1103 = vpop.f32.mrb[0].mxu0
    %v1104 = vadd.f32 0.0, %v1103
    %v1105 = vpop.f32.mrb[0].mxu0
    %v1106 = vadd.f32 0.0, %v1105
    %v1107 = vpop.f32.mrb[0].mxu0
    %v1108 = vadd.f32 0.0, %v1107
    %v1109 = vpop.f32.mrb[0].mxu0
    %v1110 = vadd.f32 0.0, %v1109
    %1111 = vmatprep.mubr.bf16.mxu0 %v705
    %1112 = vmatmul.mubr.bf16.gmra.mrb[0].mxu0 %v697
    %v1113 = vpop.f32.mrb[0].mxu0
    %v1114 = vadd.f32 0.0, %v1113
    %v1115 = vpop.f32.mrb[0].mxu0
    %v1116 = vadd.f32 0.0, %v1115
    %v1117 = vpop.f32.mrb[0].mxu0
    %v1118 = vadd.f32 0.0, %v1117
    %v1119 = vpop.f32.mrb[0].mxu0
    %v1120 = vadd.f32 0.0, %v1119
    %1121 = vmatprep.mubr.bf16.mxu0 %v729
    %1122 = vmatmul.mubr.bf16.gmra.mrb[0].mxu0 %v721
    %v1123 = vpop.f32.mrb[0].mxu0
    %v1124 = vadd.f32 0.0, %v1123
    %v1125 = vpop.f32.mrb[0].mxu0
    %v1126 = vadd.f32 0.0, %v1125
    %v1127 = vpop.f32.mrb[0].mxu0
    %v1128 = vadd.f32 0.0, %v1127
    %v1129 = vpop.f32.mrb[0].mxu0
    %v1130 = vadd.f32 0.0, %v1129
    %1131 = vdwg.mxu0
    %1132 = vmatprep.subr.bf16.mxu0 %v903
    %1133 = vmatpush1.bf16.msra.mxu0 %v902
    %1134 = vmatprep.subr.bf16.mxu0 %v905
    %1135 = vmatpush1.bf16.msra.mxu0 %v904
    %1136 = vmatprep.subr.bf16.mxu0 0
    %1137 = vmatpush1.bf16.msra.mxu0 0
    %1138 = vmatprep.subr.bf16.mxu0 0
    %1139 = vmatpush1.bf16.msra.mxu0 0
    %1140 = vmatprep.subr.bf16.mxu0 0
    %1141 = vmatpush1.bf16.msra.mxu0 0
    %1142 = vmatprep.subr.bf16.mxu0 0
    %1143 = vmatpush1.bf16.msra.mxu0 0
    %1144 = vmatprep.subr.bf16.mxu0 0
    %1145 = vmatpush1.bf16.msra.mxu0 0
    %1146 = vmatprep.subr.bf16.mxu0 0
    %1147 = vmatpush1.bf16.msra.mxu0 0
    %1148 = vmatprep.subr.bf16.mxu0 0
    %1149 = vmatpush1.bf16.msra.mxu0 0
    %1150 = vmatprep.subr.bf16.mxu0 0
    %1151 = vmatpush1.bf16.msra.mxu0 0
    %1152 = vmatprep.subr.bf16.mxu0 0
    %1153 = vmatpush1.bf16.msra.mxu0 0
    %1154 = vmatprep.subr.bf16.mxu0 0
    %1155 = vmatpush1.bf16.msra.mxu0 0
    %1156 = vmatprep.subr.bf16.mxu0 0
    %1157 = vmatpush1.bf16.msra.mxu0 0
    %1158 = vmatprep.subr.bf16.mxu0 0
    %1159 = vmatpush1.bf16.msra.mxu0 0
    %1160 = vmatprep.subr.bf16.mxu0 0
    %1161 = vmatpush1.bf16.msra.mxu0 0
    %1162 = vmatprep.subr.bf16.mxu0 0
    %1163 = vmatpush1.bf16.msra.mxu0 0
    %1164 = vmatprep.mubr.bf16.mxu0 0
    %1165 = vmatmul.mubr.bf16.gmra.mrb[0].mxu0 %v944
    %v1166 = vpop.f32.mrb[0].mxu0
    %v1167 = vadd.f32 %v1014, %v1166
    %v1168 = vpop.f32.mrb[0].mxu0
    %v1169 = vadd.f32 %v1016, %v1168
    %v1170 = vpop.f32.mrb[0].mxu0
    %v1171 = vadd.f32 %v1018, %v1170
    %v1172 = vpop.f32.mrb[0].mxu0
    %v1173 = vadd.f32 %v1020, %v1172
    %1174 = vmatprep.mubr.bf16.mxu0 0
    %1175 = vmatmul.mubr.bf16.gmra.mrb[0].mxu0 %v947
    %v1176 = vpop.f32.mrb[0].mxu0
    %v1177 = vadd.f32 %v1024, %v1176
    %v1178 = vpop.f32.mrb[0].mxu0
    %v1179 = vadd.f32 %v1026, %v1178
    %v1180 = vpop.f32.mrb[0].mxu0
    %v1181 = vadd.f32 %v1028, %v1180
    %v1182 = vpop.f32.mrb[0].mxu0
    %v1183 = vadd.f32 %v1030, %v1182
    %1184 = vmatprep.mubr.bf16.mxu0 0
    %1185 = vmatmul.mubr.bf16.gmra.mrb[0].mxu0 %v950
    %v1186 = vpop.f32.mrb[0].mxu0
    %v1187 = vadd.f32 %v1034, %v1186
    %v1188 = vpop.f32.mrb[0].mxu0
    %v1189 = vadd.f32 %v1036, %v1188
    %v1190 = vpop.f32.mrb[0].mxu0
    %v1191 = vadd.f32 %v1038, %v1190
    %v1192 = vpop.f32.mrb[0].mxu0
    %v1193 = vadd.f32 %v1040, %v1192
    %1194 = vmatprep.mubr.bf16.mxu0 0
    %1195 = vmatmul.mubr.bf16.gmra.mrb[0].mxu0 %v953
    %v1196 = vpop.f32.mrb[0].mxu0
    %v1197 = vadd.f32 %v1044, %v1196
    %v1198 = vpop.f32.mrb[0].mxu0
    %v1199 = vadd.f32 %v1046, %v1198
    %v1200 = vpop.f32.mrb[0].mxu0
    %v1201 = vadd.f32 %v1048, %v1200
    %v1202 = vpop.f32.mrb[0].mxu0
    %v1203 = vadd.f32 %v1050, %v1202
    %1204 = vmatprep.mubr.bf16.mxu0 0
    %1205 = vmatmul.mubr.bf16.gmra.mrb[0].mxu0 %v956
    %v1206 = vpop.f32.mrb[0].mxu0
    %v1207 = vadd.f32 %v1054, %v1206
    %v1208 = vpop.f32.mrb[0].mxu0
    %v1209 = vadd.f32 %v1056, %v1208
    %v1210 = vpop.f32.mrb[0].mxu0
    %v1211 = vadd.f32 %v1058, %v1210
    %v1212 = vpop.f32.mrb[0].mxu0
    %v1213 = vadd.f32 %v1060, %v1212
    %1214 = vmatprep.mubr.bf16.mxu0 0
    %1215 = vmatmul.mubr.bf16.gmra.mrb[0].mxu0 %v959
    %v1216 = vpop.f32.mrb[0].mxu0
    %v1217 = vadd.f32 %v1064, %v1216
    %v1218 = vpop.f32.mrb[0].mxu0
    %v1219 = vadd.f32 %v1066, %v1218
    %v1220 = vpop.f32.mrb[0].mxu0
    %v1221 = vadd.f32 %v1068, %v1220
    %v1222 = vpop.f32.mrb[0].mxu0
    %v1223 = vadd.f32 %v1070, %v1222
    %1224 = vmatprep.mubr.bf16.mxu0 0
    %1225 = vmatmul.mubr.bf16.gmra.mrb[0].mxu0 %v962
    %v1226 = vpop.f32.mrb[0].mxu0
    %v1227 = vadd.f32 %v1074, %v1226
    %v1228 = vpop.f32.mrb[0].mxu0
    %v1229 = vadd.f32 %v1076, %v1228
    %v1230 = vpop.f32.mrb[0].mxu0
    %v1231 = vadd.f32 %v1078, %v1230
    %v1232 = vpop.f32.mrb[0].mxu0
    %v1233 = vadd.f32 %v1080, %v1232
    %1234 = vmatprep.mubr.bf16.mxu0 0
    %1235 = vmatmul.mubr.bf16.gmra.mrb[0].mxu0 %v965
    %v1236 = vpop.f32.mrb[0].mxu0
    %v1237 = vadd.f32 %v1084, %v1236
    %v1238 = vpop.f32.mrb[0].mxu0
    %v1239 = vadd.f32 %v1086, %v1238
    %v1240 = vpop.f32.mrb[0].mxu0
    %v1241 = vadd.f32 %v1088, %v1240
    %v1242 = vpop.f32.mrb[0].mxu0
    %v1243 = vadd.f32 %v1090, %v1242
    %1244 = vmatprep.mubr.bf16.mxu0 0
    %1245 = vmatmul.mubr.bf16.gmra.mrb[0].mxu0 %v968
    %v1246 = vpop.f32.mrb[0].mxu0
    %v1247 = vadd.f32 %v1094, %v1246
    %v1248 = vpop.f32.mrb[0].mxu0
    %v1249 = vadd.f32 %v1096, %v1248
    %v1250 = vpop.f32.mrb[0].mxu0
    %v1251 = vadd.f32 %v1098, %v1250
    %v1252 = vpop.f32.mrb[0].mxu0
    %v1253 = vadd.f32 %v1100, %v1252
    %1254 = vmatprep.mubr.bf16.mxu0 0
    %1255 = vmatmul.mubr.bf16.gmra.mrb[0].mxu0 %v971
    %v1256 = vpop.f32.mrb[0].mxu0
    %v1257 = vadd.f32 %v1104, %v1256
    %v1258 = vpop.f32.mrb[0].mxu0
    %v1259 = vadd.f32 %v1106, %v1258
    %v1260 = vpop.f32.mrb[0].mxu0
    %v1261 = vadd.f32 %v1108, %v1260
    %v1262 = vpop.f32.mrb[0].mxu0
    %v1263 = vadd.f32 %v1110, %v1262
    %1264 = vmatprep.mubr.bf16.mxu0 0
    %1265 = vmatmul.mubr.bf16.gmra.mrb[0].mxu0 %v974
    %v1266 = vpop.f32.mrb[0].mxu0
    %v1267 = vadd.f32 %v1114, %v1266
    %v1268 = vpop.f32.mrb[0].mxu0
    %v1269 = vadd.f32 %v1116, %v1268
    %v1270 = vpop.f32.mrb[0].mxu0
    %v1271 = vadd.f32 %v1118, %v1270
    %v1272 = vpop.f32.mrb[0].mxu0
    %v1273 = vadd.f32 %v1120, %v1272
    %1274 = vmatprep.mubr.bf16.mxu0 0
    %1275 = vmatmul.mubr.bf16.gmra.mrb[0].mxu0 %v977
    %v1276 = vpop.f32.mrb[0].mxu0
    %v1277 = vadd.f32 %v1124, %v1276
    %v1278 = vpop.f32.mrb[0].mxu0
    %v1279 = vadd.f32 %v1126, %v1278
    %v1280 = vpop.f32.mrb[0].mxu0
    %v1281 = vadd.f32 %v1128, %v1280
    %v1282 = vpop.f32.mrb[0].mxu0
    %v1283 = vadd.f32 %v1130, %v1282
    %1284 = vdwg.mxu0
    %v1345 = vunpack.c.l.b16 %v198
    %v1346 = vunpack.c.h.b16 %v198
    %v1347 = vunpack.c.l.b16 %v199
    %v1348 = vunpack.c.h.b16 %v199
    %v1349 = vunpack.c.l.b16 %v200
    %v1350 = vunpack.c.h.b16 %v200
    %v1351 = vunpack.c.l.b16 %v201
    %v1352 = vunpack.c.h.b16 %v201
    %v1353 = vunpack.c.l.b16 %v202
    %v1354 = vunpack.c.h.b16 %v202
    %v1355 = vunpack.c.l.b16 %v203
    %v1356 = vunpack.c.h.b16 %v203
    %v1357 = vunpack.c.l.b16 %v204
    %v1358 = vunpack.c.h.b16 %v204
    %v1359 = vunpack.c.l.b16 %v205
    %v1360 = vunpack.c.h.b16 %v205
    %v1361 = vunpack.c.l.b16 %v206
    %v1362 = vunpack.c.h.b16 %v206
    %v1363 = vunpack.c.l.b16 %v207
    %v1364 = vunpack.c.h.b16 %v207
    %v1365 = vunpack.c.l.b16 %v208
    %v1366 = vunpack.c.h.b16 %v208
    %v1367 = vunpack.c.l.b16 %v209
    %v1368 = vunpack.c.h.b16 %v209
    %v1369 = vunpack.c.l.b16 %v210
    %v1370 = vunpack.c.h.b16 %v210
    %v1371 = vunpack.c.l.b16 %v211
    %v1372 = vunpack.c.h.b16 %v211
    %v1373 = vunpack.c.l.b16 %v212
    %v1374 = vunpack.c.h.b16 %v212
    %v1375 = vunpack.c.l.b16 %v213
    %v1376 = vunpack.c.h.b16 %v213
    %v1377 = vunpack.c.l.b16 %v214
    %v1378 = vunpack.c.h.b16 %v214
    %v1379 = vunpack.c.l.b16 %v215
    %v1380 = vunpack.c.h.b16 %v215
    %v1381 = vunpack.c.l.b16 %v216
    %v1382 = vunpack.c.h.b16 %v216
    %v1383 = vunpack.c.l.b16 %v217
    %v1384 = vunpack.c.h.b16 %v217
    %v1385 = vunpack.c.l.b16 %v218
    %v1386 = vunpack.c.h.b16 %v218
    %v1387 = vunpack.c.l.b16 %v219
    %v1388 = vunpack.c.h.b16 %v219
    %v1389 = vunpack.c.l.b16 %v220
    %v1390 = vunpack.c.h.b16 %v220
    %v1391 = vunpack.c.l.b16 %v221
    %v1392 = vunpack.c.h.b16 %v221
    %v1393 = vunpack.c.l.b16 %v222
    %v1394 = vunpack.c.h.b16 %v222
    %v1395 = vunpack.c.l.b16 %v223
    %v1396 = vunpack.c.h.b16 %v223
    %v1397 = vunpack.c.l.b16 %v224
    %v1398 = vunpack.c.h.b16 %v224
    %v1399 = vunpack.c.l.b16 %v225
    %v1400 = vunpack.c.h.b16 %v225
    %v1401 = vunpack.c.l.b16 %v226
    %v1402 = vunpack.c.h.b16 %v226
    %v1403 = vunpack.c.l.b16 %v227
    %v1404 = vunpack.c.h.b16 %v227
    %v1405 = vunpack.c.l.b16 %v228
    %v1406 = vunpack.c.h.b16 %v228
    %v1407 = vunpack.c.l.b16 %v229
    %v1408 = vunpack.c.h.b16 %v229
    %v1409 = vunpack.c.l.b16 %v230
    %v1410 = vunpack.c.h.b16 %v230
    %v1411 = vunpack.c.l.b16 %v231
    %v1412 = vunpack.c.h.b16 %v231
    %v1413 = vunpack.c.l.b16 %v232
    %v1414 = vunpack.c.h.b16 %v232
    %v1415 = vunpack.c.l.b16 %v233
    %v1416 = vunpack.c.h.b16 %v233
    %v1417 = vpack.c.b16 %v1347, %v1345
    %v1418 = vpack.c.b16 %v1348, %v1346
    %v1419 = vpack.c.b16 %v1351, %v1349
    %v1420 = vpack.c.b16 %v1352, %v1350
    %v1421 = vpack.c.b16 %v1355, %v1353
    %v1422 = vpack.c.b16 %v1356, %v1354
    %v1423 = vpack.c.b16 %v1359, %v1357
    %v1424 = vpack.c.b16 %v1360, %v1358
    %v1425 = vpack.c.b16 %v1363, %v1361
    %v1426 = vpack.c.b16 %v1364, %v1362
    %v1427 = vpack.c.b16 %v1367, %v1365
    %v1428 = vpack.c.b16 %v1368, %v1366
    %v1429 = vpack.c.b16 %v1371, %v1369
    %v1430 = vpack.c.b16 %v1372, %v1370
    %v1431 = vpack.c.b16 %v1375, %v1373
    %v1432 = vpack.c.b16 %v1376, %v1374
    %v1433 = vpack.c.b16 %v1379, %v1377
    %v1434 = vpack.c.b16 %v1380, %v1378
    %v1435 = vpack.c.b16 %v1383, %v1381
    %v1436 = vpack.c.b16 %v1384, %v1382
    %v1437 = vpack.c.b16 %v1387, %v1385
    %v1438 = vpack.c.b16 %v1388, %v1386
    %v1439 = vpack.c.b16 %v1391, %v1389
    %v1440 = vpack.c.b16 %v1392, %v1390
    %v1441 = vpack.c.b16 %v1395, %v1393
    %v1442 = vpack.c.b16 %v1396, %v1394
    %v1443 = vpack.c.b16 %v1399, %v1397
    %v1444 = vpack.c.b16 %v1400, %v1398
    %v1445 = vpack.c.b16 %v1403, %v1401
    %v1446 = vpack.c.b16 %v1404, %v1402
    %v1447 = vpack.c.b16 %v1407, %v1405
    %v1448 = vpack.c.b16 %v1408, %v1406
    %v1449 = vpack.c.b16 %v1411, %v1409
    %v1450 = vpack.c.b16 %v1412, %v1410
    %v1451 = vpack.c.b16 %v1415, %v1413
    %v1452 = vpack.c.b16 %v1416, %v1414
    %v1489 = vsel %vm942, %v400, 0
    %v1491 = vsel %vm942, %v403, 0
    %v1493 = vsel %vm942, %v406, 0
    %v1495 = vsel %vm942, %v409, 0
    %v1497 = vsel %vm942, %v412, 0
    %v1499 = vsel %vm942, %v415, 0
    %v1501 = vsel %vm942, %v418, 0
    %v1503 = vsel %vm942, %v421, 0
    %v1505 = vsel %vm942, %v424, 0
    %v1507 = vsel %vm942, %v427, 0
    %v1509 = vsel %vm942, %v430, 0
    %v1511 = vsel %vm942, %v433, 0
    %1513 = vmatprep.subr.bf16.mxu0 %v1418
    %1514 = vmatpush1.bf16.msra.mxu0 %v1417
    %1515 = vmatprep.subr.bf16.mxu0 %v1420
    %1516 = vmatpush1.bf16.msra.mxu0 %v1419
    %1517 = vmatprep.subr.bf16.mxu0 %v1422
    %1518 = vmatpush1.bf16.msra.mxu0 %v1421
    %1519 = vmatprep.subr.bf16.mxu0 %v1424
    %1520 = vmatpush1.bf16.msra.mxu0 %v1423
    %1521 = vmatprep.subr.bf16.mxu0 %v1426
    %1522 = vmatpush1.bf16.msra.mxu0 %v1425
    %1523 = vmatprep.subr.bf16.mxu0 %v1428
    %1524 = vmatpush1.bf16.msra.mxu0 %v1427
    %1525 = vmatprep.subr.bf16.mxu0 %v1430
    %1526 = vmatpush1.bf16.msra.mxu0 %v1429
    %1527 = vmatprep.subr.bf16.mxu0 %v1432
    %1528 = vmatpush1.bf16.msra.mxu0 %v1431
    %1529 = vmatprep.subr.bf16.mxu0 %v1434
    %1530 = vmatpush1.bf16.msra.mxu0 %v1433
    %1531 = vmatprep.subr.bf16.mxu0 %v1436
    %1532 = vmatpush1.bf16.msra.mxu0 %v1435
    %1533 = vmatprep.subr.bf16.mxu0 %v1438
    %1534 = vmatpush1.bf16.msra.mxu0 %v1437
    %1535 = vmatprep.subr.bf16.mxu0 %v1440
    %1536 = vmatpush1.bf16.msra.mxu0 %v1439
    %1537 = vmatprep.subr.bf16.mxu0 %v1442
    %1538 = vmatpush1.bf16.msra.mxu0 %v1441
    %1539 = vmatprep.subr.bf16.mxu0 %v1444
    %1540 = vmatpush1.bf16.msra.mxu0 %v1443
    %1541 = vmatprep.subr.bf16.mxu0 %v1446
    %1542 = vmatpush1.bf16.msra.mxu0 %v1445
    %1543 = vmatprep.subr.bf16.mxu0 %v1448
    %1544 = vmatpush1.bf16.msra.mxu0 %v1447
    %1545 = vmatprep.mubr.bf16.mxu0 %v399
    %1546 = vmatmul.mubr.bf16.gmra.mrb[0].mxu0 %v398
    %v1547 = vpop.f32.mrb[0].mxu0
    %v1548 = vadd.f32 %v1167, %v1547
    %v1549 = vpop.f32.mrb[0].mxu0
    %v1550 = vadd.f32 %v1169, %v1549
    %v1551 = vpop.f32.mrb[0].mxu0
    %v1552 = vadd.f32 %v1171, %v1551
    %v1553 = vpop.f32.mrb[0].mxu0
    %v1554 = vadd.f32 %v1173, %v1553
    %1555 = vmatprep.mubr.bf16.mxu0 %v402
    %1556 = vmatmul.mubr.bf16.gmra.mrb[0].mxu0 %v401
    %v1557 = vpop.f32.mrb[0].mxu0
    %v1558 = vadd.f32 %v1177, %v1557
    %v1559 = vpop.f32.mrb[0].mxu0
    %v1560 = vadd.f32 %v1179, %v1559
    %v1561 = vpop.f32.mrb[0].mxu0
    %v1562 = vadd.f32 %v1181, %v1561
    %v1563 = vpop.f32.mrb[0].mxu0
    %v1564 = vadd.f32 %v1183, %v1563
    %1565 = vmatprep.mubr.bf16.mxu0 %v405
    %1566 = vmatmul.mubr.bf16.gmra.mrb[0].mxu0 %v404
    %v1567 = vpop.f32.mrb[0].mxu0
    %v1568 = vadd.f32 %v1187, %v1567
    %v1569 = vpop.f32.mrb[0].mxu0
    %v1570 = vadd.f32 %v1189, %v1569
    %v1571 = vpop.f32.mrb[0].mxu0
    %v1572 = vadd.f32 %v1191, %v1571
    %v1573 = vpop.f32.mrb[0].mxu0
    %v1574 = vadd.f32 %v1193, %v1573
    %1575 = vmatprep.mubr.bf16.mxu0 %v408
    %1576 = vmatmul.mubr.bf16.gmra.mrb[0].mxu0 %v407
    %v1577 = vpop.f32.mrb[0].mxu0
    %v1578 = vadd.f32 %v1197, %v1577
    %v1579 = vpop.f32.mrb[0].mxu0
    %v1580 = vadd.f32 %v1199, %v1579
    %v1581 = vpop.f32.mrb[0].mxu0
    %v1582 = vadd.f32 %v1201, %v1581
    %v1583 = vpop.f32.mrb[0].mxu0
    %v1584 = vadd.f32 %v1203, %v1583
    %1585 = vmatprep.mubr.bf16.mxu0 %v411
    %1586 = vmatmul.mubr.bf16.gmra.mrb[0].mxu0 %v410
    %v1587 = vpop.f32.mrb[0].mxu0
    %v1588 = vadd.f32 %v1207, %v1587
    %v1589 = vpop.f32.mrb[0].mxu0
    %v1590 = vadd.f32 %v1209, %v1589
    %v1591 = vpop.f32.mrb[0].mxu0
    %v1592 = vadd.f32 %v1211, %v1591
    %v1593 = vpop.f32.mrb[0].mxu0
    %v1594 = vadd.f32 %v1213, %v1593
    %1595 = vmatprep.mubr.bf16.mxu0 %v414
    %1596 = vmatmul.mubr.bf16.gmra.mrb[0].mxu0 %v413
    %v1597 = vpop.f32.mrb[0].mxu0
    %v1598 = vadd.f32 %v1217, %v1597
    %v1599 = vpop.f32.mrb[0].mxu0
    %v1600 = vadd.f32 %v1219, %v1599
    %v1601 = vpop.f32.mrb[0].mxu0
    %v1602 = vadd.f32 %v1221, %v1601
    %v1603 = vpop.f32.mrb[0].mxu0
    %v1604 = vadd.f32 %v1223, %v1603
    %1605 = vmatprep.mubr.bf16.mxu0 %v417
    %1606 = vmatmul.mubr.bf16.gmra.mrb[0].mxu0 %v416
    %v1607 = vpop.f32.mrb[0].mxu0
    %v1608 = vadd.f32 %v1227, %v1607
    %v1609 = vpop.f32.mrb[0].mxu0
    %v1610 = vadd.f32 %v1229, %v1609
    %v1611 = vpop.f32.mrb[0].mxu0
    %v1612 = vadd.f32 %v1231, %v1611
    %v1613 = vpop.f32.mrb[0].mxu0
    %v1614 = vadd.f32 %v1233, %v1613
    %1615 = vmatprep.mubr.bf16.mxu0 %v420
    %1616 = vmatmul.mubr.bf16.gmra.mrb[0].mxu0 %v419
    %v1617 = vpop.f32.mrb[0].mxu0
    %v1618 = vadd.f32 %v1237, %v1617
    %v1619 = vpop.f32.mrb[0].mxu0
    %v1620 = vadd.f32 %v1239, %v1619
    %v1621 = vpop.f32.mrb[0].mxu0
    %v1622 = vadd.f32 %v1241, %v1621
    %v1623 = vpop.f32.mrb[0].mxu0
    %v1624 = vadd.f32 %v1243, %v1623
    %1625 = vmatprep.mubr.bf16.mxu0 %v423
    %1626 = vmatmul.mubr.bf16.gmra.mrb[0].mxu0 %v422
    %v1627 = vpop.f32.mrb[0].mxu0
    %v1628 = vadd.f32 %v1247, %v1627
    %v1629 = vpop.f32.mrb[0].mxu0
    %v1630 = vadd.f32 %v1249, %v1629
    %v1631 = vpop.f32.mrb[0].mxu0
    %v1632 = vadd.f32 %v1251, %v1631
    %v1633 = vpop.f32.mrb[0].mxu0
    %v1634 = vadd.f32 %v1253, %v1633
    %1635 = vmatprep.mubr.bf16.mxu0 %v426
    %1636 = vmatmul.mubr.bf16.gmra.mrb[0].mxu0 %v425
    %v1637 = vpop.f32.mrb[0].mxu0
    %v1638 = vadd.f32 %v1257, %v1637
    %v1639 = vpop.f32.mrb[0].mxu0
    %v1640 = vadd.f32 %v1259, %v1639
    %v1641 = vpop.f32.mrb[0].mxu0
    %v1642 = vadd.f32 %v1261, %v1641
    %v1643 = vpop.f32.mrb[0].mxu0
    %v1644 = vadd.f32 %v1263, %v1643
    %1645 = vmatprep.mubr.bf16.mxu0 %v429
    %1646 = vmatmul.mubr.bf16.gmra.mrb[0].mxu0 %v428
    %v1647 = vpop.f32.mrb[0].mxu0
    %v1648 = vadd.f32 %v1267, %v1647
    %v1649 = vpop.f32.mrb[0].mxu0
    %v1650 = vadd.f32 %v1269, %v1649
    %v1651 = vpop.f32.mrb[0].mxu0
    %v1652 = vadd.f32 %v1271, %v1651
    %v1653 = vpop.f32.mrb[0].mxu0
    %v1654 = vadd.f32 %v1273, %v1653
    %1655 = vmatprep.mubr.bf16.mxu0 %v432
    %1656 = vmatmul.mubr.bf16.gmra.mrb[0].mxu0 %v431
    %v1657 = vpop.f32.mrb[0].mxu0
    %v1658 = vadd.f32 %v1277, %v1657
    %v1659 = vpop.f32.mrb[0].mxu0
    %v1660 = vadd.f32 %v1279, %v1659
    %v1661 = vpop.f32.mrb[0].mxu0
    %v1662 = vadd.f32 %v1281, %v1661
    %v1663 = vpop.f32.mrb[0].mxu0
    %v1664 = vadd.f32 %v1283, %v1663
    %1665 = vdwg.mxu0
    %1666 = vmatprep.subr.bf16.mxu0 %v1450
    %1667 = vmatpush1.bf16.msra.mxu0 %v1449
    %1668 = vmatprep.subr.bf16.mxu0 %v1452
    %1669 = vmatpush1.bf16.msra.mxu0 %v1451
    %1670 = vmatprep.subr.bf16.mxu0 0
    %1671 = vmatpush1.bf16.msra.mxu0 0
    %1672 = vmatprep.subr.bf16.mxu0 0
    %1673 = vmatpush1.bf16.msra.mxu0 0
    %1674 = vmatprep.subr.bf16.mxu0 0
    %1675 = vmatpush1.bf16.msra.mxu0 0
    %1676 = vmatprep.subr.bf16.mxu0 0
    %1677 = vmatpush1.bf16.msra.mxu0 0
    %1678 = vmatprep.subr.bf16.mxu0 0
    %1679 = vmatpush1.bf16.msra.mxu0 0
    %1680 = vmatprep.subr.bf16.mxu0 0
    %1681 = vmatpush1.bf16.msra.mxu0 0
    %1682 = vmatprep.subr.bf16.mxu0 0
    %1683 = vmatpush1.bf16.msra.mxu0 0
    %1684 = vmatprep.subr.bf16.mxu0 0
    %1685 = vmatpush1.bf16.msra.mxu0 0
    %1686 = vmatprep.subr.bf16.mxu0 0
    %1687 = vmatpush1.bf16.msra.mxu0 0
    %1688 = vmatprep.subr.bf16.mxu0 0
    %1689 = vmatpush1.bf16.msra.mxu0 0
    %1690 = vmatprep.subr.bf16.mxu0 0
    %1691 = vmatpush1.bf16.msra.mxu0 0
    %1692 = vmatprep.subr.bf16.mxu0 0
    %1693 = vmatpush1.bf16.msra.mxu0 0
    %1694 = vmatprep.subr.bf16.mxu0 0
    %1695 = vmatpush1.bf16.msra.mxu0 0
    %1696 = vmatprep.subr.bf16.mxu0 0
    %1697 = vmatpush1.bf16.msra.mxu0 0
    %1698 = vmatprep.mubr.bf16.mxu0 0
    %1699 = vmatmul.mubr.bf16.gmra.mrb[0].mxu0 %v1489
    %v1700 = vpop.f32.mrb[0].mxu0
    %v1701 = vadd.f32 %v1548, %v1700
    %v1702 = vpop.f32.mrb[0].mxu0
    %v1703 = vadd.f32 %v1550, %v1702
    %v1704 = vpop.f32.mrb[0].mxu0
    %v1705 = vadd.f32 %v1552, %v1704
    %v1706 = vpop.f32.mrb[0].mxu0
    %v1707 = vadd.f32 %v1554, %v1706
    %1708 = vmatprep.mubr.bf16.mxu0 0
    %1709 = vmatmul.mubr.bf16.gmra.mrb[0].mxu0 %v1491
    %v1710 = vpop.f32.mrb[0].mxu0
    %v1711 = vadd.f32 %v1558, %v1710
    %v1712 = vpop.f32.mrb[0].mxu0
    %v1713 = vadd.f32 %v1560, %v1712
    %v1714 = vpop.f32.mrb[0].mxu0
    %v1715 = vadd.f32 %v1562, %v1714
    %v1716 = vpop.f32.mrb[0].mxu0
    %v1717 = vadd.f32 %v1564, %v1716
    %1718 = vmatprep.mubr.bf16.mxu0 0
    %1719 = vmatmul.mubr.bf16.gmra.mrb[0].mxu0 %v1493
    %v1720 = vpop.f32.mrb[0].mxu0
    %v1721 = vadd.f32 %v1568, %v1720
    %v1722 = vpop.f32.mrb[0].mxu0
    %v1723 = vadd.f32 %v1570, %v1722
    %v1724 = vpop.f32.mrb[0].mxu0
    %v1725 = vadd.f32 %v1572, %v1724
    %v1726 = vpop.f32.mrb[0].mxu0
    %v1727 = vadd.f32 %v1574, %v1726
    %1728 = vmatprep.mubr.bf16.mxu0 0
    %1729 = vmatmul.mubr.bf16.gmra.mrb[0].mxu0 %v1495
    %v1730 = vpop.f32.mrb[0].mxu0
    %v1731 = vadd.f32 %v1578, %v1730
    %v1732 = vpop.f32.mrb[0].mxu0
    %v1733 = vadd.f32 %v1580, %v1732
    %v1734 = vpop.f32.mrb[0].mxu0
    %v1735 = vadd.f32 %v1582, %v1734
    %v1736 = vpop.f32.mrb[0].mxu0
    %v1737 = vadd.f32 %v1584, %v1736
    %1738 = vmatprep.mubr.bf16.mxu0 0
    %1739 = vmatmul.mubr.bf16.gmra.mrb[0].mxu0 %v1497
    %v1740 = vpop.f32.mrb[0].mxu0
    %v1741 = vadd.f32 %v1588, %v1740
    %v1742 = vpop.f32.mrb[0].mxu0
    %v1743 = vadd.f32 %v1590, %v1742
    %v1744 = vpop.f32.mrb[0].mxu0
    %v1745 = vadd.f32 %v1592, %v1744
    %v1746 = vpop.f32.mrb[0].mxu0
    %v1747 = vadd.f32 %v1594, %v1746
    %1748 = vmatprep.mubr.bf16.mxu0 0
    %1749 = vmatmul.mubr.bf16.gmra.mrb[0].mxu0 %v1499
    %v1750 = vpop.f32.mrb[0].mxu0
    %v1751 = vadd.f32 %v1598, %v1750
    %v1752 = vpop.f32.mrb[0].mxu0
    %v1753 = vadd.f32 %v1600, %v1752
    %v1754 = vpop.f32.mrb[0].mxu0
    %v1755 = vadd.f32 %v1602, %v1754
    %v1756 = vpop.f32.mrb[0].mxu0
    %v1757 = vadd.f32 %v1604, %v1756
    %1758 = vmatprep.mubr.bf16.mxu0 0
    %1759 = vmatmul.mubr.bf16.gmra.mrb[0].mxu0 %v1501
    %v1760 = vpop.f32.mrb[0].mxu0
    %v1761 = vadd.f32 %v1608, %v1760
    %v1762 = vpop.f32.mrb[0].mxu0
    %v1763 = vadd.f32 %v1610, %v1762
    %v1764 = vpop.f32.mrb[0].mxu0
    %v1765 = vadd.f32 %v1612, %v1764
    %v1766 = vpop.f32.mrb[0].mxu0
    %v1767 = vadd.f32 %v1614, %v1766
    %1768 = vmatprep.mubr.bf16.mxu0 0
    %1769 = vmatmul.mubr.bf16.gmra.mrb[0].mxu0 %v1503
    %v1770 = vpop.f32.mrb[0].mxu0
    %v1771 = vadd.f32 %v1618, %v1770
    %v1772 = vpop.f32.mrb[0].mxu0
    %v1773 = vadd.f32 %v1620, %v1772
    %v1774 = vpop.f32.mrb[0].mxu0
    %v1775 = vadd.f32 %v1622, %v1774
    %v1776 = vpop.f32.mrb[0].mxu0
    %v1777 = vadd.f32 %v1624, %v1776
    %1778 = vmatprep.mubr.bf16.mxu0 0
    %1779 = vmatmul.mubr.bf16.gmra.mrb[0].mxu0 %v1505
    %v1780 = vpop.f32.mrb[0].mxu0
    %v1781 = vadd.f32 %v1628, %v1780
    %v1782 = vpop.f32.mrb[0].mxu0
    %v1783 = vadd.f32 %v1630, %v1782
    %v1784 = vpop.f32.mrb[0].mxu0
    %v1785 = vadd.f32 %v1632, %v1784
    %v1786 = vpop.f32.mrb[0].mxu0
    %v1787 = vadd.f32 %v1634, %v1786
    %1788 = vmatprep.mubr.bf16.mxu0 0
    %1789 = vmatmul.mubr.bf16.gmra.mrb[0].mxu0 %v1507
    %v1790 = vpop.f32.mrb[0].mxu0
    %v1791 = vadd.f32 %v1638, %v1790
    %v1792 = vpop.f32.mrb[0].mxu0
    %v1793 = vadd.f32 %v1640, %v1792
    %v1794 = vpop.f32.mrb[0].mxu0
    %v1795 = vadd.f32 %v1642, %v1794
    %v1796 = vpop.f32.mrb[0].mxu0
    %v1797 = vadd.f32 %v1644, %v1796
    %1798 = vmatprep.mubr.bf16.mxu0 0
    %1799 = vmatmul.mubr.bf16.gmra.mrb[0].mxu0 %v1509
    %v1800 = vpop.f32.mrb[0].mxu0
    %v1801 = vadd.f32 %v1648, %v1800
    %v1802 = vpop.f32.mrb[0].mxu0
    %v1803 = vadd.f32 %v1650, %v1802
    %v1804 = vpop.f32.mrb[0].mxu0
    %v1805 = vadd.f32 %v1652, %v1804
    %v1806 = vpop.f32.mrb[0].mxu0
    %v1807 = vadd.f32 %v1654, %v1806
    %1808 = vmatprep.mubr.bf16.mxu0 0
    %1809 = vmatmul.mubr.bf16.gmra.mrb[0].mxu0 %v1511
    %v1810 = vpop.f32.mrb[0].mxu0
    %v1811 = vadd.f32 %v1658, %v1810
    %v1812 = vpop.f32.mrb[0].mxu0
    %v1813 = vadd.f32 %v1660, %v1812
    %v1814 = vpop.f32.mrb[0].mxu0
    %v1815 = vadd.f32 %v1662, %v1814
    %v1816 = vpop.f32.mrb[0].mxu0
    %v1817 = vadd.f32 %v1664, %v1816
    %1818 = vdwg.mxu0
    %v1819 = vld [vmem:[%s0] sm:$0xee]
    %v1820 = vld [vmem:[%s0 + $0x8] sm:$0xe]
    %s1821 = scalar_lea.vmem %s1, 576
    %v1822 = vld [vmem:[%s1821] sm:$0xff]
    %v1823 = vld [vmem:[%s1821 + $0x8] sm:$0xff]
    %v1824 = vld [vmem:[%s1821 + $0x10] sm:$0xff]
    %v1825 = vld [vmem:[%s1821 + $0x18] sm:$0xff]
    %v1826 = vld [vmem:[%s1821 + $0x20] sm:$0xff]
    %v1827 = vld [vmem:[%s1821 + $0x28] sm:$0xff]
    %v1828 = vld [vmem:[%s1821 + $0x30] sm:$0xff]
    %v1829 = vld [vmem:[%s1821 + $0x38] sm:$0xff]
    %v1830 = vld [vmem:[%s1821 + $0x40] sm:$0xff]
    %v1831 = vld [vmem:[%s1821 + $0x48] sm:$0xff]
    %v1832 = vld [vmem:[%s1821 + $0x50] sm:$0xff]
    %v1833 = vld [vmem:[%s1821 + $0x58] sm:$0xff]
    %v1834 = vld [vmem:[%s1821 + $0x60] sm:$0xff]
    %v1835 = vld [vmem:[%s1821 + $0x68] sm:$0xff]
    %v1836 = vld [vmem:[%s1821 + $0x70] sm:$0xff]
    %v1837 = vld [vmem:[%s1821 + $0x78] sm:$0xff]
    %v1838 = vld [vmem:[%s1821 + $0x80] sm:$0xff]
    %v1839 = vld [vmem:[%s1821 + $0x88] sm:$0xff]
    %v1840 = vld [vmem:[%s1821 + $0x90] sm:$0xff]
    %v1841 = vld [vmem:[%s1821 + $0x98] sm:$0xff]
    %v1842 = vld [vmem:[%s1821 + $0xa0] sm:$0xff]
    %v1843 = vld [vmem:[%s1821 + $0xa8] sm:$0xff]
    %v1844 = vld [vmem:[%s1821 + $0xb0] sm:$0xff]
    %v1845 = vld [vmem:[%s1821 + $0xb8] sm:$0xff]
    %v1846 = vld [vmem:[%s1821 + $0xc0] sm:$0xff]
    %v1847 = vld [vmem:[%s1821 + $0xc8] sm:$0xff]
    %v1848 = vld [vmem:[%s1821 + $0xd0] sm:$0xff]
    %v1849 = vld [vmem:[%s1821 + $0xd8] sm:$0xff]
    %v1850 = vld [vmem:[%s1821 + $0xe0] sm:$0xff]
    %v1851 = vld [vmem:[%s1821 + $0xe8] sm:$0xff]
    %v1852 = vld [vmem:[%s1821 + $0xf0] sm:$0xff]
    %v1853 = vld [vmem:[%s1821 + $0xf8] sm:$0xff]
    %v1854 = vld [vmem:[%s1821 + $0x100] sm:$0xff]
    %v1855 = vld [vmem:[%s1821 + $0x108] sm:$0xff]
    %v1856 = vld [vmem:[%s1821 + $0x110] sm:$0xff]
    %v1857 = vld [vmem:[%s1821 + $0x118] sm:$0xff]
    %v1860 = vunpack.c.l.b16 %v1819
    %v1861 = vunpack.c.h.b16 %v1819
    %v1862 = vunpack.c.l.b16 %v1820
    %v1863 = vpack.c.b16 %v326, %v1860
    %v1864 = vpack.c.b16 %v327, %v1861
    %v1865 = vpack.c.b16 %v328, %v1862
    %vm1866 = vcmask 1046528
    %v1867 = vrot.slane %v1863, 1
    %v1868 = vrot.slane %v401, 1
    %v1869 = vsel %vm1866, %v1867, %v1868
    %v1870 = vrot.slane %v1864, 1
    %v1871 = vrot.slane %v402, 1
    %v1872 = vsel %vm1866, %v1870, %v1871
    %v1873 = vrot.slane %v1865, 1
    %v1874 = vrot.slane %v403, 1
    %v1875 = vsel %vm1866, %v1873, %v1874
    %v1876 = vrot.slane %v404, 1
    %v1877 = vsel %vm1866, %v1868, %v1876
    %v1878 = vrot.slane %v405, 1
    %v1879 = vsel %vm1866, %v1871, %v1878
    %v1880 = vrot.slane %v406, 1
    %v1881 = vsel %vm1866, %v1874, %v1880
    %v1882 = vrot.slane %v407, 1
    %v1883 = vsel %vm1866, %v1876, %v1882
    %v1884 = vrot.slane %v408, 1
    %v1885 = vsel %vm1866, %v1878, %v1884
    %v1886 = vrot.slane %v409, 1
    %v1887 = vsel %vm1866, %v1880, %v1886
    %v1888 = vrot.slane %v410, 1
    %v1889 = vsel %vm1866, %v1882, %v1888
    %v1890 = vrot.slane %v411, 1
    %v1891 = vsel %vm1866, %v1884, %v1890
    %v1892 = vrot.slane %v412, 1
    %v1893 = vsel %vm1866, %v1886, %v1892
    %v1894 = vrot.slane %v413, 1
    %v1895 = vsel %vm1866, %v1888, %v1894
    %v1896 = vrot.slane %v414, 1
    %v1897 = vsel %vm1866, %v1890, %v1896
    %v1898 = vrot.slane %v415, 1
    %v1899 = vsel %vm1866, %v1892, %v1898
    %v1900 = vrot.slane %v416, 1
    %v1901 = vsel %vm1866, %v1894, %v1900
    %v1902 = vrot.slane %v417, 1
    %v1903 = vsel %vm1866, %v1896, %v1902
    %v1904 = vrot.slane %v418, 1
    %v1905 = vsel %vm1866, %v1898, %v1904
    %v1906 = vrot.slane %v419, 1
    %v1907 = vsel %vm1866, %v1900, %v1906
    %v1908 = vrot.slane %v420, 1
    %v1909 = vsel %vm1866, %v1902, %v1908
    %v1910 = vrot.slane %v421, 1
    %v1911 = vsel %vm1866, %v1904, %v1910
    %v1912 = vrot.slane %v422, 1
    %v1913 = vsel %vm1866, %v1906, %v1912
    %v1914 = vrot.slane %v423, 1
    %v1915 = vsel %vm1866, %v1908, %v1914
    %v1916 = vrot.slane %v424, 1
    %v1917 = vsel %vm1866, %v1910, %v1916
    %v1918 = vrot.slane %v425, 1
    %v1919 = vsel %vm1866, %v1912, %v1918
    %v1920 = vrot.slane %v426, 1
    %v1921 = vsel %vm1866, %v1914, %v1920
    %v1922 = vrot.slane %v427, 1
    %v1923 = vsel %vm1866, %v1916, %v1922
    %v1924 = vrot.slane %v428, 1
    %v1925 = vsel %vm1866, %v1918, %v1924
    %v1926 = vrot.slane %v429, 1
    %v1927 = vsel %vm1866, %v1920, %v1926
    %v1928 = vrot.slane %v430, 1
    %v1929 = vsel %vm1866, %v1922, %v1928
    %v1930 = vrot.slane %v431, 1
    %v1931 = vsel %vm1866, %v1924, %v1930
    %v1932 = vrot.slane %v432, 1
    %v1933 = vsel %vm1866, %v1926, %v1932
    %v1934 = vrot.slane %v433, 1
    %v1935 = vsel %vm1866, %v1928, %v1934
    %v1936 = vrot.slane %v434, 1
    %v1937 = vsel %vm1866, %v1930, %v1936
    %v1938 = vrot.slane %v435, 1
    %v1939 = vsel %vm1866, %v1932, %v1938
    %v1940 = vrot.slane %v436, 1
    %v1941 = vsel %vm1866, %v1934, %v1940
    %v2002 = vunpack.c.l.b16 %v1822
    %v2003 = vunpack.c.h.b16 %v1822
    %v2004 = vunpack.c.l.b16 %v1823
    %v2005 = vunpack.c.h.b16 %v1823
    %v2006 = vunpack.c.l.b16 %v1824
    %v2007 = vunpack.c.h.b16 %v1824
    %v2008 = vunpack.c.l.b16 %v1825
    %v2009 = vunpack.c.h.b16 %v1825
    %v2010 = vunpack.c.l.b16 %v1826
    %v2011 = vunpack.c.h.b16 %v1826
    %v2012 = vunpack.c.l.b16 %v1827
    %v2013 = vunpack.c.h.b16 %v1827
    %v2014 = vunpack.c.l.b16 %v1828
    %v2015 = vunpack.c.h.b16 %v1828
    %v2016 = vunpack.c.l.b16 %v1829
    %v2017 = vunpack.c.h.b16 %v1829
    %v2018 = vunpack.c.l.b16 %v1830
    %v2019 = vunpack.c.h.b16 %v1830
    %v2020 = vunpack.c.l.b16 %v1831
    %v2021 = vunpack.c.h.b16 %v1831
    %v2022 = vunpack.c.l.b16 %v1832
    %v2023 = vunpack.c.h.b16 %v1832
    %v2024 = vunpack.c.l.b16 %v1833
    %v2025 = vunpack.c.h.b16 %v1833
    %v2026 = vunpack.c.l.b16 %v1834
    %v2027 = vunpack.c.h.b16 %v1834
    %v2028 = vunpack.c.l.b16 %v1835
    %v2029 = vunpack.c.h.b16 %v1835
    %v2030 = vunpack.c.l.b16 %v1836
    %v2031 = vunpack.c.h.b16 %v1836
    %v2032 = vunpack.c.l.b16 %v1837
    %v2033 = vunpack.c.h.b16 %v1837
    %v2034 = vunpack.c.l.b16 %v1838
    %v2035 = vunpack.c.h.b16 %v1838
    %v2036 = vunpack.c.l.b16 %v1839
    %v2037 = vunpack.c.h.b16 %v1839
    %v2038 = vunpack.c.l.b16 %v1840
    %v2039 = vunpack.c.h.b16 %v1840
    %v2040 = vunpack.c.l.b16 %v1841
    %v2041 = vunpack.c.h.b16 %v1841
    %v2042 = vunpack.c.l.b16 %v1842
    %v2043 = vunpack.c.h.b16 %v1842
    %v2044 = vunpack.c.l.b16 %v1843
    %v2045 = vunpack.c.h.b16 %v1843
    %v2046 = vunpack.c.l.b16 %v1844
    %v2047 = vunpack.c.h.b16 %v1844
    %v2048 = vunpack.c.l.b16 %v1845
    %v2049 = vunpack.c.h.b16 %v1845
    %v2050 = vunpack.c.l.b16 %v1846
    %v2051 = vunpack.c.h.b16 %v1846
    %v2052 = vunpack.c.l.b16 %v1847
    %v2053 = vunpack.c.h.b16 %v1847
    %v2054 = vunpack.c.l.b16 %v1848
    %v2055 = vunpack.c.h.b16 %v1848
    %v2056 = vunpack.c.l.b16 %v1849
    %v2057 = vunpack.c.h.b16 %v1849
    %v2058 = vunpack.c.l.b16 %v1850
    %v2059 = vunpack.c.h.b16 %v1850
    %v2060 = vunpack.c.l.b16 %v1851
    %v2061 = vunpack.c.h.b16 %v1851
    %v2062 = vunpack.c.l.b16 %v1852
    %v2063 = vunpack.c.h.b16 %v1852
    %v2064 = vunpack.c.l.b16 %v1853
    %v2065 = vunpack.c.h.b16 %v1853
    %v2066 = vunpack.c.l.b16 %v1854
    %v2067 = vunpack.c.h.b16 %v1854
    %v2068 = vunpack.c.l.b16 %v1855
    %v2069 = vunpack.c.h.b16 %v1855
    %v2070 = vunpack.c.l.b16 %v1856
    %v2071 = vunpack.c.h.b16 %v1856
    %v2072 = vunpack.c.l.b16 %v1857
    %v2073 = vunpack.c.h.b16 %v1857
    %v2074 = vpack.c.b16 %v2004, %v2002
    %v2075 = vpack.c.b16 %v2005, %v2003
    %v2076 = vpack.c.b16 %v2008, %v2006
    %v2077 = vpack.c.b16 %v2009, %v2007
    %v2078 = vpack.c.b16 %v2012, %v2010
    %v2079 = vpack.c.b16 %v2013, %v2011
    %v2080 = vpack.c.b16 %v2016, %v2014
    %v2081 = vpack.c.b16 %v2017, %v2015
    %v2082 = vpack.c.b16 %v2020, %v2018
    %v2083 = vpack.c.b16 %v2021, %v2019
    %v2084 = vpack.c.b16 %v2024, %v2022
    %v2085 = vpack.c.b16 %v2025, %v2023
    %v2086 = vpack.c.b16 %v2028, %v2026
    %v2087 = vpack.c.b16 %v2029, %v2027
    %v2088 = vpack.c.b16 %v2032, %v2030
    %v2089 = vpack.c.b16 %v2033, %v2031
    %v2090 = vpack.c.b16 %v2036, %v2034
    %v2091 = vpack.c.b16 %v2037, %v2035
    %v2092 = vpack.c.b16 %v2040, %v2038
    %v2093 = vpack.c.b16 %v2041, %v2039
    %v2094 = vpack.c.b16 %v2044, %v2042
    %v2095 = vpack.c.b16 %v2045, %v2043
    %v2096 = vpack.c.b16 %v2048, %v2046
    %v2097 = vpack.c.b16 %v2049, %v2047
    %v2098 = vpack.c.b16 %v2052, %v2050
    %v2099 = vpack.c.b16 %v2053, %v2051
    %v2100 = vpack.c.b16 %v2056, %v2054
    %v2101 = vpack.c.b16 %v2057, %v2055
    %v2102 = vpack.c.b16 %v2060, %v2058
    %v2103 = vpack.c.b16 %v2061, %v2059
    %v2104 = vpack.c.b16 %v2064, %v2062
    %v2105 = vpack.c.b16 %v2065, %v2063
    %v2106 = vpack.c.b16 %v2068, %v2066
    %v2107 = vpack.c.b16 %v2069, %v2067
    %v2108 = vpack.c.b16 %v2072, %v2070
    %v2109 = vpack.c.b16 %v2073, %v2071
    %v2147 = vsel %vm942, %v1875, 0
    %v2150 = vsel %vm942, %v1881, 0
    %v2153 = vsel %vm942, %v1887, 0
    %v2156 = vsel %vm942, %v1893, 0
    %v2159 = vsel %vm942, %v1899, 0
    %v2162 = vsel %vm942, %v1905, 0
    %v2165 = vsel %vm942, %v1911, 0
    %v2168 = vsel %vm942, %v1917, 0
    %v2171 = vsel %vm942, %v1923, 0
    %v2174 = vsel %vm942, %v1929, 0
    %v2177 = vsel %vm942, %v1935, 0
    %v2180 = vsel %vm942, %v1941, 0
    %2182 = vmatprep.subr.bf16.mxu0 %v2075
    %2183 = vmatpush1.bf16.msra.mxu0 %v2074
    %2184 = vmatprep.subr.bf16.mxu0 %v2077
    %2185 = vmatpush1.bf16.msra.mxu0 %v2076
    %2186 = vmatprep.subr.bf16.mxu0 %v2079
    %2187 = vmatpush1.bf16.msra.mxu0 %v2078
    %2188 = vmatprep.subr.bf16.mxu0 %v2081
    %2189 = vmatpush1.bf16.msra.mxu0 %v2080
    %2190 = vmatprep.subr.bf16.mxu0 %v2083
    %2191 = vmatpush1.bf16.msra.mxu0 %v2082
    %2192 = vmatprep.subr.bf16.mxu0 %v2085
    %2193 = vmatpush1.bf16.msra.mxu0 %v2084
    %2194 = vmatprep.subr.bf16.mxu0 %v2087
    %2195 = vmatpush1.bf16.msra.mxu0 %v2086
    %2196 = vmatprep.subr.bf16.mxu0 %v2089
    %2197 = vmatpush1.bf16.msra.mxu0 %v2088
    %2198 = vmatprep.subr.bf16.mxu0 %v2091
    %2199 = vmatpush1.bf16.msra.mxu0 %v2090
    %2200 = vmatprep.subr.bf16.mxu0 %v2093
    %2201 = vmatpush1.bf16.msra.mxu0 %v2092
    %2202 = vmatprep.subr.bf16.mxu0 %v2095
    %2203 = vmatpush1.bf16.msra.mxu0 %v2094
    %2204 = vmatprep.subr.bf16.mxu0 %v2097
    %2205 = vmatpush1.bf16.msra.mxu0 %v2096
    %2206 = vmatprep.subr.bf16.mxu0 %v2099
    %2207 = vmatpush1.bf16.msra.mxu0 %v2098
    %2208 = vmatprep.subr.bf16.mxu0 %v2101
    %2209 = vmatpush1.bf16.msra.mxu0 %v2100
    %2210 = vmatprep.subr.bf16.mxu0 %v2103
    %2211 = vmatpush1.bf16.msra.mxu0 %v2102
    %2212 = vmatprep.subr.bf16.mxu0 %v2105
    %2213 = vmatpush1.bf16.msra.mxu0 %v2104
    %2214 = vmatprep.mubr.bf16.mxu0 %v1872
    %2215 = vmatmul.mubr.bf16.gmra.mrb[0].mxu0 %v1869
    %v2216 = vpop.f32.mrb[0].mxu0
    %v2217 = vadd.f32 0.0, %v2216
    %v2218 = vpop.f32.mrb[0].mxu0
    %v2219 = vadd.f32 0.0, %v2218
    %v2220 = vpop.f32.mrb[0].mxu0
    %v2221 = vadd.f32 0.0, %v2220
    %v2222 = vpop.f32.mrb[0].mxu0
    %v2223 = vadd.f32 0.0, %v2222
    %2224 = vmatprep.mubr.bf16.mxu0 %v1879
    %2225 = vmatmul.mubr.bf16.gmra.mrb[0].mxu0 %v1877
    %v2226 = vpop.f32.mrb[0].mxu0
    %v2227 = vadd.f32 0.0, %v2226
    %v2228 = vpop.f32.mrb[0].mxu0
    %v2229 = vadd.f32 0.0, %v2228
    %v2230 = vpop.f32.mrb[0].mxu0
    %v2231 = vadd.f32 0.0, %v2230
    %v2232 = vpop.f32.mrb[0].mxu0
    %v2233 = vadd.f32 0.0, %v2232
    %2234 = vmatprep.mubr.bf16.mxu0 %v1885
    %2235 = vmatmul.mubr.bf16.gmra.mrb[0].mxu0 %v1883
    %v2236 = vpop.f32.mrb[0].mxu0
    %v2237 = vadd.f32 0.0, %v2236
    %v2238 = vpop.f32.mrb[0].mxu0
    %v2239 = vadd.f32 0.0, %v2238
    %v2240 = vpop.f32.mrb[0].mxu0
    %v2241 = vadd.f32 0.0, %v2240
    %v2242 = vpop.f32.mrb[0].mxu0
    %v2243 = vadd.f32 0.0, %v2242
    %2244 = vmatprep.mubr.bf16.mxu0 %v1891
    %2245 = vmatmul.mubr.bf16.gmra.mrb[0].mxu0 %v1889
    %v2246 = vpop.f32.mrb[0].mxu0
    %v2247 = vadd.f32 0.0, %v2246
    %v2248 = vpop.f32.mrb[0].mxu0
    %v2249 = vadd.f32 0.0, %v2248
    %v2250 = vpop.f32.mrb[0].mxu0
    %v2251 = vadd.f32 0.0, %v2250
    %v2252 = vpop.f32.mrb[0].mxu0
    %v2253 = vadd.f32 0.0, %v2252
    %2254 = vmatprep.mubr.bf16.mxu0 %v1897
    %2255 = vmatmul.mubr.bf16.gmra.mrb[0].mxu0 %v1895
    %v2256 = vpop.f32.mrb[0].mxu0
    %v2257 = vadd.f32 0.0, %v2256
    %v2258 = vpop.f32.mrb[0].mxu0
    %v2259 = vadd.f32 0.0, %v2258
    %v2260 = vpop.f32.mrb[0].mxu0
    %v2261 = vadd.f32 0.0, %v2260
    %v2262 = vpop.f32.mrb[0].mxu0
    %v2263 = vadd.f32 0.0, %v2262
    %2264 = vmatprep.mubr.bf16.mxu0 %v1903
    %2265 = vmatmul.mubr.bf16.gmra.mrb[0].mxu0 %v1901
    %v2266 = vpop.f32.mrb[0].mxu0
    %v2267 = vadd.f32 0.0, %v2266
    %v2268 = vpop.f32.mrb[0].mxu0
    %v2269 = vadd.f32 0.0, %v2268
    %v2270 = vpop.f32.mrb[0].mxu0
    %v2271 = vadd.f32 0.0, %v2270
    %v2272 = vpop.f32.mrb[0].mxu0
    %v2273 = vadd.f32 0.0, %v2272
    %2274 = vmatprep.mubr.bf16.mxu0 %v1909
    %2275 = vmatmul.mubr.bf16.gmra.mrb[0].mxu0 %v1907
    %v2276 = vpop.f32.mrb[0].mxu0
    %v2277 = vadd.f32 0.0, %v2276
    %v2278 = vpop.f32.mrb[0].mxu0
    %v2279 = vadd.f32 0.0, %v2278
    %v2280 = vpop.f32.mrb[0].mxu0
    %v2281 = vadd.f32 0.0, %v2280
    %v2282 = vpop.f32.mrb[0].mxu0
    %v2283 = vadd.f32 0.0, %v2282
    %2284 = vmatprep.mubr.bf16.mxu0 %v1915
    %2285 = vmatmul.mubr.bf16.gmra.mrb[0].mxu0 %v1913
    %v2286 = vpop.f32.mrb[0].mxu0
    %v2287 = vadd.f32 0.0, %v2286
    %v2288 = vpop.f32.mrb[0].mxu0
    %v2289 = vadd.f32 0.0, %v2288
    %v2290 = vpop.f32.mrb[0].mxu0
    %v2291 = vadd.f32 0.0, %v2290
    %v2292 = vpop.f32.mrb[0].mxu0
    %v2293 = vadd.f32 0.0, %v2292
    %2294 = vmatprep.mubr.bf16.mxu0 %v1921
    %2295 = vmatmul.mubr.bf16.gmra.mrb[0].mxu0 %v1919
    %v2296 = vpop.f32.mrb[0].mxu0
    %v2297 = vadd.f32 0.0, %v2296
    %v2298 = vpop.f32.mrb[0].mxu0
    %v2299 = vadd.f32 0.0, %v2298
    %v2300 = vpop.f32.mrb[0].mxu0
    %v2301 = vadd.f32 0.0, %v2300
    %v2302 = vpop.f32.mrb[0].mxu0
    %v2303 = vadd.f32 0.0, %v2302
    %2304 = vmatprep.mubr.bf16.mxu0 %v1927
    %2305 = vmatmul.mubr.bf16.gmra.mrb[0].mxu0 %v1925
    %v2306 = vpop.f32.mrb[0].mxu0
    %v2307 = vadd.f32 0.0, %v2306
    %v2308 = vpop.f32.mrb[0].mxu0
    %v2309 = vadd.f32 0.0, %v2308
    %v2310 = vpop.f32.mrb[0].mxu0
    %v2311 = vadd.f32 0.0, %v2310
    %v2312 = vpop.f32.mrb[0].mxu0
    %v2313 = vadd.f32 0.0, %v2312
    %2314 = vmatprep.mubr.bf16.mxu0 %v1933
    %2315 = vmatmul.mubr.bf16.gmra.mrb[0].mxu0 %v1931
    %v2316 = vpop.f32.mrb[0].mxu0
    %v2317 = vadd.f32 0.0, %v2316
    %v2318 = vpop.f32.mrb[0].mxu0
    %v2319 = vadd.f32 0.0, %v2318
    %v2320 = vpop.f32.mrb[0].mxu0
    %v2321 = vadd.f32 0.0, %v2320
    %v2322 = vpop.f32.mrb[0].mxu0
    %v2323 = vadd.f32 0.0, %v2322
    %2324 = vmatprep.mubr.bf16.mxu0 %v1939
    %2325 = vmatmul.mubr.bf16.gmra.mrb[0].mxu0 %v1937
    %v2326 = vpop.f32.mrb[0].mxu0
    %v2327 = vadd.f32 0.0, %v2326
    %v2328 = vpop.f32.mrb[0].mxu0
    %v2329 = vadd.f32 0.0, %v2328
    %v2330 = vpop.f32.mrb[0].mxu0
    %v2331 = vadd.f32 0.0, %v2330
    %v2332 = vpop.f32.mrb[0].mxu0
    %v2333 = vadd.f32 0.0, %v2332
    %2334 = vdwg.mxu0
    %2335 = vmatprep.subr.bf16.mxu0 %v2107
    %2336 = vmatpush1.bf16.msra.mxu0 %v2106
    %2337 = vmatprep.subr.bf16.mxu0 %v2109
    %2338 = vmatpush1.bf16.msra.mxu0 %v2108
    %2339 = vmatprep.subr.bf16.mxu0 0
    %2340 = vmatpush1.bf16.msra.mxu0 0
    %2341 = vmatprep.subr.bf16.mxu0 0
    %2342 = vmatpush1.bf16.msra.mxu0 0
    %2343 = vmatprep.subr.bf16.mxu0 0
    %2344 = vmatpush1.bf16.msra.mxu0 0
    %2345 = vmatprep.subr.bf16.mxu0 0
    %2346 = vmatpush1.bf16.msra.mxu0 0
    %2347 = vmatprep.subr.bf16.mxu0 0
    %2348 = vmatpush1.bf16.msra.mxu0 0
    %2349 = vmatprep.subr.bf16.mxu0 0
    %2350 = vmatpush1.bf16.msra.mxu0 0
    %2351 = vmatprep.subr.bf16.mxu0 0
    %2352 = vmatpush1.bf16.msra.mxu0 0
    %2353 = vmatprep.subr.bf16.mxu0 0
    %2354 = vmatpush1.bf16.msra.mxu0 0
    %2355 = vmatprep.subr.bf16.mxu0 0
    %2356 = vmatpush1.bf16.msra.mxu0 0
    %2357 = vmatprep.subr.bf16.mxu0 0
    %2358 = vmatpush1.bf16.msra.mxu0 0
    %2359 = vmatprep.subr.bf16.mxu0 0
    %2360 = vmatpush1.bf16.msra.mxu0 0
    %2361 = vmatprep.subr.bf16.mxu0 0
    %2362 = vmatpush1.bf16.msra.mxu0 0
    %2363 = vmatprep.subr.bf16.mxu0 0
    %2364 = vmatpush1.bf16.msra.mxu0 0
    %2365 = vmatprep.subr.bf16.mxu0 0
    %2366 = vmatpush1.bf16.msra.mxu0 0
    %2367 = vmatprep.mubr.bf16.mxu0 0
    %2368 = vmatmul.mubr.bf16.gmra.mrb[0].mxu0 %v2147
    %v2369 = vpop.f32.mrb[0].mxu0
    %v2370 = vadd.f32 %v2217, %v2369
    %v2371 = vpop.f32.mrb[0].mxu0
    %v2372 = vadd.f32 %v2219, %v2371
    %v2373 = vpop.f32.mrb[0].mxu0
    %v2374 = vadd.f32 %v2221, %v2373
    %v2375 = vpop.f32.mrb[0].mxu0
    %v2376 = vadd.f32 %v2223, %v2375
    %2377 = vmatprep.mubr.bf16.mxu0 0
    %2378 = vmatmul.mubr.bf16.gmra.mrb[0].mxu0 %v2150
    %v2379 = vpop.f32.mrb[0].mxu0
    %v2380 = vadd.f32 %v2227, %v2379
    %v2381 = vpop.f32.mrb[0].mxu0
    %v2382 = vadd.f32 %v2229, %v2381
    %v2383 = vpop.f32.mrb[0].mxu0
    %v2384 = vadd.f32 %v2231, %v2383
    %v2385 = vpop.f32.mrb[0].mxu0
    %v2386 = vadd.f32 %v2233, %v2385
    %2387 = vmatprep.mubr.bf16.mxu0 0
    %2388 = vmatmul.mubr.bf16.gmra.mrb[0].mxu0 %v2153
    %v2389 = vpop.f32.mrb[0].mxu0
    %v2390 = vadd.f32 %v2237, %v2389
    %v2391 = vpop.f32.mrb[0].mxu0
    %v2392 = vadd.f32 %v2239, %v2391
    %v2393 = vpop.f32.mrb[0].mxu0
    %v2394 = vadd.f32 %v2241, %v2393
    %v2395 = vpop.f32.mrb[0].mxu0
    %v2396 = vadd.f32 %v2243, %v2395
    %2397 = vmatprep.mubr.bf16.mxu0 0
    %2398 = vmatmul.mubr.bf16.gmra.mrb[0].mxu0 %v2156
    %v2399 = vpop.f32.mrb[0].mxu0
    %v2400 = vadd.f32 %v2247, %v2399
    %v2401 = vpop.f32.mrb[0].mxu0
    %v2402 = vadd.f32 %v2249, %v2401
    %v2403 = vpop.f32.mrb[0].mxu0
    %v2404 = vadd.f32 %v2251, %v2403
    %v2405 = vpop.f32.mrb[0].mxu0
    %v2406 = vadd.f32 %v2253, %v2405
    %2407 = vmatprep.mubr.bf16.mxu0 0
    %2408 = vmatmul.mubr.bf16.gmra.mrb[0].mxu0 %v2159
    %v2409 = vpop.f32.mrb[0].mxu0
    %v2410 = vadd.f32 %v2257, %v2409
    %v2411 = vpop.f32.mrb[0].mxu0
    %v2412 = vadd.f32 %v2259, %v2411
    %v2413 = vpop.f32.mrb[0].mxu0
    %v2414 = vadd.f32 %v2261, %v2413
    %v2415 = vpop.f32.mrb[0].mxu0
    %v2416 = vadd.f32 %v2263, %v2415
    %2417 = vmatprep.mubr.bf16.mxu0 0
    %2418 = vmatmul.mubr.bf16.gmra.mrb[0].mxu0 %v2162
    %v2419 = vpop.f32.mrb[0].mxu0
    %v2420 = vadd.f32 %v2267, %v2419
    %v2421 = vpop.f32.mrb[0].mxu0
    %v2422 = vadd.f32 %v2269, %v2421
    %v2423 = vpop.f32.mrb[0].mxu0
    %v2424 = vadd.f32 %v2271, %v2423
    %v2425 = vpop.f32.mrb[0].mxu0
    %v2426 = vadd.f32 %v2273, %v2425
    %2427 = vmatprep.mubr.bf16.mxu0 0
    %2428 = vmatmul.mubr.bf16.gmra.mrb[0].mxu0 %v2165
    %v2429 = vpop.f32.mrb[0].mxu0
    %v2430 = vadd.f32 %v2277, %v2429
    %v2431 = vpop.f32.mrb[0].mxu0
    %v2432 = vadd.f32 %v2279, %v2431
    %v2433 = vpop.f32.mrb[0].mxu0
    %v2434 = vadd.f32 %v2281, %v2433
    %v2435 = vpop.f32.mrb[0].mxu0
    %v2436 = vadd.f32 %v2283, %v2435
    %2437 = vmatprep.mubr.bf16.mxu0 0
    %2438 = vmatmul.mubr.bf16.gmra.mrb[0].mxu0 %v2168
    %v2439 = vpop.f32.mrb[0].mxu0
    %v2440 = vadd.f32 %v2287, %v2439
    %v2441 = vpop.f32.mrb[0].mxu0
    %v2442 = vadd.f32 %v2289, %v2441
    %v2443 = vpop.f32.mrb[0].mxu0
    %v2444 = vadd.f32 %v2291, %v2443
    %v2445 = vpop.f32.mrb[0].mxu0
    %v2446 = vadd.f32 %v2293, %v2445
    %2447 = vmatprep.mubr.bf16.mxu0 0
    %2448 = vmatmul.mubr.bf16.gmra.mrb[0].mxu0 %v2171
    %v2449 = vpop.f32.mrb[0].mxu0
    %v2450 = vadd.f32 %v2297, %v2449
    %v2451 = vpop.f32.mrb[0].mxu0
    %v2452 = vadd.f32 %v2299, %v2451
    %v2453 = vpop.f32.mrb[0].mxu0
    %v2454 = vadd.f32 %v2301, %v2453
    %v2455 = vpop.f32.mrb[0].mxu0
    %v2456 = vadd.f32 %v2303, %v2455
    %2457 = vmatprep.mubr.bf16.mxu0 0
    %2458 = vmatmul.mubr.bf16.gmra.mrb[0].mxu0 %v2174
    %v2459 = vpop.f32.mrb[0].mxu0
    %v2460 = vadd.f32 %v2307, %v2459
    %v2461 = vpop.f32.mrb[0].mxu0
    %v2462 = vadd.f32 %v2309, %v2461
    %v2463 = vpop.f32.mrb[0].mxu0
    %v2464 = vadd.f32 %v2311, %v2463
    %v2465 = vpop.f32.mrb[0].mxu0
    %v2466 = vadd.f32 %v2313, %v2465
    %2467 = vmatprep.mubr.bf16.mxu0 0
    %2468 = vmatmul.mubr.bf16.gmra.mrb[0].mxu0 %v2177
    %v2469 = vpop.f32.mrb[0].mxu0
    %v2470 = vadd.f32 %v2317, %v2469
    %v2471 = vpop.f32.mrb[0].mxu0
    %v2472 = vadd.f32 %v2319, %v2471
    %v2473 = vpop.f32.mrb[0].mxu0
    %v2474 = vadd.f32 %v2321, %v2473
    %v2475 = vpop.f32.mrb[0].mxu0
    %v2476 = vadd.f32 %v2323, %v2475
    %2477 = vmatprep.mubr.bf16.mxu0 0
    %2478 = vmatmul.mubr.bf16.gmra.mrb[0].mxu0 %v2180
    %v2479 = vpop.f32.mrb[0].mxu0
    %v2480 = vadd.f32 %v2327, %v2479
    %v2481 = vpop.f32.mrb[0].mxu0
    %v2482 = vadd.f32 %v2329, %v2481
    %v2483 = vpop.f32.mrb[0].mxu0
    %v2484 = vadd.f32 %v2331, %v2483
    %v2485 = vpop.f32.mrb[0].mxu0
    %v2486 = vadd.f32 %v2333, %v2485
    %2487 = vdwg.mxu0
    %v2488 = vadd.f32 %v1701, %v2370
    %v2489 = vadd.f32 %v1703, %v2372
    %v2490 = vadd.f32 %v1705, %v2374
    %v2491 = vadd.f32 %v1707, %v2376
    %v2492 = vadd.f32 %v1711, %v2380
    %v2493 = vadd.f32 %v1713, %v2382
    %v2494 = vadd.f32 %v1715, %v2384
    %v2495 = vadd.f32 %v1717, %v2386
    %v2496 = vadd.f32 %v1721, %v2390
    %v2497 = vadd.f32 %v1723, %v2392
    %v2498 = vadd.f32 %v1725, %v2394
    %v2499 = vadd.f32 %v1727, %v2396
    %v2500 = vadd.f32 %v1731, %v2400
    %v2501 = vadd.f32 %v1733, %v2402
    %v2502 = vadd.f32 %v1735, %v2404
    %v2503 = vadd.f32 %v1737, %v2406
    %v2504 = vadd.f32 %v1741, %v2410
    %v2505 = vadd.f32 %v1743, %v2412
    %v2506 = vadd.f32 %v1745, %v2414
    %v2507 = vadd.f32 %v1747, %v2416
    %v2508 = vadd.f32 %v1751, %v2420
    %v2509 = vadd.f32 %v1753, %v2422
    %v2510 = vadd.f32 %v1755, %v2424
    %v2511 = vadd.f32 %v1757, %v2426
    %v2512 = vadd.f32 %v1761, %v2430
    %v2513 = vadd.f32 %v1763, %v2432
    %v2514 = vadd.f32 %v1765, %v2434
    %v2515 = vadd.f32 %v1767, %v2436
    %v2516 = vadd.f32 %v1771, %v2440
    %v2517 = vadd.f32 %v1773, %v2442
    %v2518 = vadd.f32 %v1775, %v2444
    %v2519 = vadd.f32 %v1777, %v2446
    %v2520 = vadd.f32 %v1781, %v2450
    %v2521 = vadd.f32 %v1783, %v2452
    %v2522 = vadd.f32 %v1785, %v2454
    %v2523 = vadd.f32 %v1787, %v2456
    %v2524 = vadd.f32 %v1791, %v2460
    %v2525 = vadd.f32 %v1793, %v2462
    %v2526 = vadd.f32 %v1795, %v2464
    %v2527 = vadd.f32 %v1797, %v2466
    %v2528 = vadd.f32 %v1801, %v2470
    %v2529 = vadd.f32 %v1803, %v2472
    %v2530 = vadd.f32 %v1805, %v2474
    %v2531 = vadd.f32 %v1807, %v2476
    %v2532 = vadd.f32 %v1811, %v2480
    %v2533 = vadd.f32 %v1813, %v2482
    %v2534 = vadd.f32 %v1815, %v2484
    %v2535 = vadd.f32 %v1817, %v2486
    %v2536 = vld [vmem:[%s0 + $0x120] sm:$0x33]
    %v2537 = vld [vmem:[%s0 + $0x128] sm:$0x3]
    %s2538 = scalar_lea.vmem %s1, 864
    %v2539 = vld [vmem:[%s2538] sm:$0xff]
    %v2540 = vld [vmem:[%s2538 + $0x8] sm:$0xff]
    %v2541 = vld [vmem:[%s2538 + $0x10] sm:$0xff]
    %v2542 = vld [vmem:[%s2538 + $0x18] sm:$0xff]
    %v2543 = vld [vmem:[%s2538 + $0x20] sm:$0xff]
    %v2544 = vld [vmem:[%s2538 + $0x28] sm:$0xff]
    %v2545 = vld [vmem:[%s2538 + $0x30] sm:$0xff]
    %v2546 = vld [vmem:[%s2538 + $0x38] sm:$0xff]
    %v2547 = vld [vmem:[%s2538 + $0x40] sm:$0xff]
    %v2548 = vld [vmem:[%s2538 + $0x48] sm:$0xff]
    %v2549 = vld [vmem:[%s2538 + $0x50] sm:$0xff]
    %v2550 = vld [vmem:[%s2538 + $0x58] sm:$0xff]
    %v2551 = vld [vmem:[%s2538 + $0x60] sm:$0xff]
    %v2552 = vld [vmem:[%s2538 + $0x68] sm:$0xff]
    %v2553 = vld [vmem:[%s2538 + $0x70] sm:$0xff]
    %v2554 = vld [vmem:[%s2538 + $0x78] sm:$0xff]
    %v2555 = vld [vmem:[%s2538 + $0x80] sm:$0xff]
    %v2556 = vld [vmem:[%s2538 + $0x88] sm:$0xff]
    %v2557 = vld [vmem:[%s2538 + $0x90] sm:$0xff]
    %v2558 = vld [vmem:[%s2538 + $0x98] sm:$0xff]
    %v2559 = vld [vmem:[%s2538 + $0xa0] sm:$0xff]
    %v2560 = vld [vmem:[%s2538 + $0xa8] sm:$0xff]
    %v2561 = vld [vmem:[%s2538 + $0xb0] sm:$0xff]
    %v2562 = vld [vmem:[%s2538 + $0xb8] sm:$0xff]
    %v2563 = vld [vmem:[%s2538 + $0xc0] sm:$0xff]
    %v2564 = vld [vmem:[%s2538 + $0xc8] sm:$0xff]
    %v2565 = vld [vmem:[%s2538 + $0xd0] sm:$0xff]
    %v2566 = vld [vmem:[%s2538 + $0xd8] sm:$0xff]
    %v2567 = vld [vmem:[%s2538 + $0xe0] sm:$0xff]
    %v2568 = vld [vmem:[%s2538 + $0xe8] sm:$0xff]
    %v2569 = vld [vmem:[%s2538 + $0xf0] sm:$0xff]
    %v2570 = vld [vmem:[%s2538 + $0xf8] sm:$0xff]
    %v2571 = vld [vmem:[%s2538 + $0x100] sm:$0xff]
    %v2572 = vld [vmem:[%s2538 + $0x108] sm:$0xff]
    %v2573 = vld [vmem:[%s2538 + $0x110] sm:$0xff]
    %v2574 = vld [vmem:[%s2538 + $0x118] sm:$0xff]
    %v2577 = vunpack.c.l.b16 %v2536
    %v2578 = vunpack.c.h.b16 %v2536
    %v2579 = vunpack.c.l.b16 %v2537
    %v2580 = vpack.c.b16 %v2577, %v2577
    %v2581 = vpack.c.b16 %v2578, %v2578
    %v2582 = vpack.c.b16 %v2579, %v2579
    %vm2583 = vsmask.f32 6400
    %v2585 = vshrl.u32 %v1863, 16
    %v2587 = vrot.slane %v2585, 1
    %v2588 = vshll.u32 %v1863, 16
    %v2590 = vrot.slane %v2588, 2
    %v2591 = vor.u32 %v2587, %v2590
    %v2592 = vrot.slane %v474, 1
    %v2593 = vrot.slane %v446, 2
    %v2594 = vor.u32 %v2592, %v2593
    %v2595 = vsel %vm2583, %v2591, %v2594
    %v2597 = vshrl.u32 %v1864, 16
    %v2599 = vrot.slane %v2597, 1
    %v2600 = vshll.u32 %v1864, 16
    %v2602 = vrot.slane %v2600, 2
    %v2603 = vor.u32 %v2599, %v2602
    %v2604 = vrot.slane %v482, 1
    %v2605 = vrot.slane %v458, 2
    %v2606 = vor.u32 %v2604, %v2605
    %v2607 = vsel %vm2583, %v2603, %v2606
    %v2609 = vshrl.u32 %v1865, 16
    %v2611 = vrot.slane %v2609, 1
    %v2612 = vshll.u32 %v1865, 16
    %v2614 = vrot.slane %v2612, 2
    %v2615 = vor.u32 %v2611, %v2614
    %v2616 = vrot.slane %v490, 1
    %v2617 = vrot.slane %v470, 2
    %v2618 = vor.u32 %v2616, %v2617
    %v2619 = vsel %vm2583, %v2615, %v2618
    %v2620 = vrot.slane %v498, 1
    %v2621 = vrot.slane %v478, 2
    %v2622 = vor.u32 %v2620, %v2621
    %v2623 = vsel %vm2583, %v2594, %v2622
    %v2624 = vrot.slane %v506, 1
    %v2625 = vrot.slane %v486, 2
    %v2626 = vor.u32 %v2624, %v2625
    %v2627 = vsel %vm2583, %v2606, %v2626
    %v2628 = vrot.slane %v514, 1
    %v2629 = vrot.slane %v494, 2
    %v2630 = vor.u32 %v2628, %v2629
    %v2631 = vsel %vm2583, %v2618, %v2630
    %v2632 = vrot.slane %v522, 1
    %v2633 = vrot.slane %v502, 2
    %v2634 = vor.u32 %v2632, %v2633
    %v2635 = vsel %vm2583, %v2622, %v2634
    %v2636 = vrot.slane %v530, 1
    %v2637 = vrot.slane %v510, 2
    %v2638 = vor.u32 %v2636, %v2637
    %v2639 = vsel %vm2583, %v2626, %v2638
    %v2640 = vrot.slane %v538, 1
    %v2641 = vrot.slane %v518, 2
    %v2642 = vor.u32 %v2640, %v2641
    %v2643 = vsel %vm2583, %v2630, %v2642
    %v2644 = vrot.slane %v546, 1
    %v2645 = vrot.slane %v526, 2
    %v2646 = vor.u32 %v2644, %v2645
    %v2647 = vsel %vm2583, %v2634, %v2646
    %v2648 = vrot.slane %v554, 1
    %v2649 = vrot.slane %v534, 2
    %v2650 = vor.u32 %v2648, %v2649
    %v2651 = vsel %vm2583, %v2638, %v2650
    %v2652 = vrot.slane %v562, 1
    %v2653 = vrot.slane %v542, 2
    %v2654 = vor.u32 %v2652, %v2653
    %v2655 = vsel %vm2583, %v2642, %v2654
    %v2656 = vrot.slane %v570, 1
    %v2657 = vrot.slane %v550, 2
    %v2658 = vor.u32 %v2656, %v2657
    %v2659 = vsel %vm2583, %v2646, %v2658
    %v2660 = vrot.slane %v578, 1
    %v2661 = vrot.slane %v558, 2
    %v2662 = vor.u32 %v2660, %v2661
    %v2663 = vsel %vm2583, %v2650, %v2662
    %v2664 = vrot.slane %v586, 1
    %v2665 = vrot.slane %v566, 2
    %v2666 = vor.u32 %v2664, %v2665
    %v2667 = vsel %vm2583, %v2654, %v2666
    %v2668 = vrot.slane %v594, 1
    %v2669 = vrot.slane %v574, 2
    %v2670 = vor.u32 %v2668, %v2669
    %v2671 = vsel %vm2583, %v2658, %v2670
    %v2672 = vrot.slane %v602, 1
    %v2673 = vrot.slane %v582, 2
    %v2674 = vor.u32 %v2672, %v2673
    %v2675 = vsel %vm2583, %v2662, %v2674
    %v2676 = vrot.slane %v610, 1
    %v2677 = vrot.slane %v590, 2
    %v2678 = vor.u32 %v2676, %v2677
    %v2679 = vsel %vm2583, %v2666, %v2678
    %v2680 = vrot.slane %v618, 1
    %v2681 = vrot.slane %v598, 2
    %v2682 = vor.u32 %v2680, %v2681
    %v2683 = vsel %vm2583, %v2670, %v2682
    %v2684 = vrot.slane %v626, 1
    %v2685 = vrot.slane %v606, 2
    %v2686 = vor.u32 %v2684, %v2685
    %v2687 = vsel %vm2583, %v2674, %v2686
    %v2688 = vrot.slane %v634, 1
    %v2689 = vrot.slane %v614, 2
    %v2690 = vor.u32 %v2688, %v2689
    %v2691 = vsel %vm2583, %v2678, %v2690
    %v2692 = vrot.slane %v642, 1
    %v2693 = vrot.slane %v622, 2
    %v2694 = vor.u32 %v2692, %v2693
    %v2695 = vsel %vm2583, %v2682, %v2694
    %v2696 = vrot.slane %v650, 1
    %v2697 = vrot.slane %v630, 2
    %v2698 = vor.u32 %v2696, %v2697
    %v2699 = vsel %vm2583, %v2686, %v2698
    %v2700 = vrot.slane %v658, 1
    %v2701 = vrot.slane %v638, 2
    %v2702 = vor.u32 %v2700, %v2701
    %v2703 = vsel %vm2583, %v2690, %v2702
    %v2704 = vrot.slane %v666, 1
    %v2705 = vrot.slane %v646, 2
    %v2706 = vor.u32 %v2704, %v2705
    %v2707 = vsel %vm2583, %v2694, %v2706
    %v2708 = vrot.slane %v674, 1
    %v2709 = vrot.slane %v654, 2
    %v2710 = vor.u32 %v2708, %v2709
    %v2711 = vsel %vm2583, %v2698, %v2710
    %v2712 = vrot.slane %v682, 1
    %v2713 = vrot.slane %v662, 2
    %v2714 = vor.u32 %v2712, %v2713
    %v2715 = vsel %vm2583, %v2702, %v2714
    %v2716 = vrot.slane %v690, 1
    %v2717 = vrot.slane %v670, 2
    %v2718 = vor.u32 %v2716, %v2717
    %v2719 = vsel %vm2583, %v2706, %v2718
    %v2720 = vrot.slane %v698, 1
    %v2721 = vrot.slane %v678, 2
    %v2722 = vor.u32 %v2720, %v2721
    %v2723 = vsel %vm2583, %v2710, %v2722
    %v2724 = vrot.slane %v706, 1
    %v2725 = vrot.slane %v686, 2
    %v2726 = vor.u32 %v2724, %v2725
    %v2727 = vsel %vm2583, %v2714, %v2726
    %v2728 = vrot.slane %v714, 1
    %v2729 = vrot.slane %v694, 2
    %v2730 = vor.u32 %v2728, %v2729
    %v2731 = vsel %vm2583, %v2718, %v2730
    %v2732 = vrot.slane %v722, 1
    %v2733 = vrot.slane %v702, 2
    %v2734 = vor.u32 %v2732, %v2733
    %v2735 = vsel %vm2583, %v2722, %v2734
    %v2736 = vrot.slane %v730, 1
    %v2737 = vrot.slane %v710, 2
    %v2738 = vor.u32 %v2736, %v2737
    %v2739 = vsel %vm2583, %v2726, %v2738
    %v2741 = vshrl.u32 %v2580, 16
    %v2743 = vrot.slane %v2741, 1
    %v2744 = vshll.u32 %v2580, 16
    %v2746 = vrot.slane %v2744, 2
    %v2747 = vor.u32 %v2743, %v2746
    %v2748 = vsel %vm2583, %v2730, %v2747
    %v2750 = vshrl.u32 %v2581, 16
    %v2752 = vrot.slane %v2750, 1
    %v2753 = vshll.u32 %v2581, 16
    %v2755 = vrot.slane %v2753, 2
    %v2756 = vor.u32 %v2752, %v2755
    %v2757 = vsel %vm2583, %v2734, %v2756
    %v2759 = vshrl.u32 %v2582, 16
    %v2761 = vrot.slane %v2759, 1
    %v2762 = vshll.u32 %v2582, 16
    %v2764 = vrot.slane %v2762, 2
    %v2765 = vor.u32 %v2761, %v2764
    %v2766 = vsel %vm2583, %v2738, %v2765
    %v2827 = vunpack.c.l.b16 %v2539
    %v2828 = vunpack.c.h.b16 %v2539
    %v2829 = vunpack.c.l.b16 %v2540
    %v2830 = vunpack.c.h.b16 %v2540
    %v2831 = vunpack.c.l.b16 %v2541
    %v2832 = vunpack.c.h.b16 %v2541
    %v2833 = vunpack.c.l.b16 %v2542
    %v2834 = vunpack.c.h.b16 %v2542
    %v2835 = vunpack.c.l.b16 %v2543
    %v2836 = vunpack.c.h.b16 %v2543
    %v2837 = vunpack.c.l.b16 %v2544
    %v2838 = vunpack.c.h.b16 %v2544
    %v2839 = vunpack.c.l.b16 %v2545
    %v2840 = vunpack.c.h.b16 %v2545
    %v2841 = vunpack.c.l.b16 %v2546
    %v2842 = vunpack.c.h.b16 %v2546
    %v2843 = vunpack.c.l.b16 %v2547
    %v2844 = vunpack.c.h.b16 %v2547
    %v2845 = vunpack.c.l.b16 %v2548
    %v2846 = vunpack.c.h.b16 %v2548
    %v2847 = vunpack.c.l.b16 %v2549
    %v2848 = vunpack.c.h.b16 %v2549
    %v2849 = vunpack.c.l.b16 %v2550
    %v2850 = vunpack.c.h.b16 %v2550
    %v2851 = vunpack.c.l.b16 %v2551
    %v2852 = vunpack.c.h.b16 %v2551
    %v2853 = vunpack.c.l.b16 %v2552
    %v2854 = vunpack.c.h.b16 %v2552
    %v2855 = vunpack.c.l.b16 %v2553
    %v2856 = vunpack.c.h.b16 %v2553
    %v2857 = vunpack.c.l.b16 %v2554
    %v2858 = vunpack.c.h.b16 %v2554
    %v2859 = vunpack.c.l.b16 %v2555
    %v2860 = vunpack.c.h.b16 %v2555
    %v2861 = vunpack.c.l.b16 %v2556
    %v2862 = vunpack.c.h.b16 %v2556
    %v2863 = vunpack.c.l.b16 %v2557
    %v2864 = vunpack.c.h.b16 %v2557
    %v2865 = vunpack.c.l.b16 %v2558
    %v2866 = vunpack.c.h.b16 %v2558
    %v2867 = vunpack.c.l.b16 %v2559
    %v2868 = vunpack.c.h.b16 %v2559
    %v2869 = vunpack.c.l.b16 %v2560
    %v2870 = vunpack.c.h.b16 %v2560
    %v2871 = vunpack.c.l.b16 %v2561
    %v2872 = vunpack.c.h.b16 %v2561
    %v2873 = vunpack.c.l.b16 %v2562
    %v2874 = vunpack.c.h.b16 %v2562
    %v2875 = vunpack.c.l.b16 %v2563
    %v2876 = vunpack.c.h.b16 %v2563
    %v2877 = vunpack.c.l.b16 %v2564
    %v2878 = vunpack.c.h.b16 %v2564
    %v2879 = vunpack.c.l.b16 %v2565
    %v2880 = vunpack.c.h.b16 %v2565
    %v2881 = vunpack.c.l.b16 %v2566
    %v2882 = vunpack.c.h.b16 %v2566
    %v2883 = vunpack.c.l.b16 %v2567
    %v2884 = vunpack.c.h.b16 %v2567
    %v2885 = vunpack.c.l.b16 %v2568
    %v2886 = vunpack.c.h.b16 %v2568
    %v2887 = vunpack.c.l.b16 %v2569
    %v2888 = vunpack.c.h.b16 %v2569
    %v2889 = vunpack.c.l.b16 %v2570
    %v2890 = vunpack.c.h.b16 %v2570
    %v2891 = vunpack.c.l.b16 %v2571
    %v2892 = vunpack.c.h.b16 %v2571
    %v2893 = vunpack.c.l.b16 %v2572
    %v2894 = vunpack.c.h.b16 %v2572
    %v2895 = vunpack.c.l.b16 %v2573
    %v2896 = vunpack.c.h.b16 %v2573
    %v2897 = vunpack.c.l.b16 %v2574
    %v2898 = vunpack.c.h.b16 %v2574
    %v2899 = vpack.c.b16 %v2829, %v2827
    %v2900 = vpack.c.b16 %v2830, %v2828
    %v2901 = vpack.c.b16 %v2833, %v2831
    %v2902 = vpack.c.b16 %v2834, %v2832
    %v2903 = vpack.c.b16 %v2837, %v2835
    %v2904 = vpack.c.b16 %v2838, %v2836
    %v2905 = vpack.c.b16 %v2841, %v2839
    %v2906 = vpack.c.b16 %v2842, %v2840
    %v2907 = vpack.c.b16 %v2845, %v2843
    %v2908 = vpack.c.b16 %v2846, %v2844
    %v2909 = vpack.c.b16 %v2849, %v2847
    %v2910 = vpack.c.b16 %v2850, %v2848
    %v2911 = vpack.c.b16 %v2853, %v2851
    %v2912 = vpack.c.b16 %v2854, %v2852
    %v2913 = vpack.c.b16 %v2857, %v2855
    %v2914 = vpack.c.b16 %v2858, %v2856
    %v2915 = vpack.c.b16 %v2861, %v2859
    %v2916 = vpack.c.b16 %v2862, %v2860
    %v2917 = vpack.c.b16 %v2865, %v2863
    %v2918 = vpack.c.b16 %v2866, %v2864
    %v2919 = vpack.c.b16 %v2869, %v2867
    %v2920 = vpack.c.b16 %v2870, %v2868
    %v2921 = vpack.c.b16 %v2873, %v2871
    %v2922 = vpack.c.b16 %v2874, %v2872
    %v2923 = vpack.c.b16 %v2877, %v2875
    %v2924 = vpack.c.b16 %v2878, %v2876
    %v2925 = vpack.c.b16 %v2881, %v2879
    %v2926 = vpack.c.b16 %v2882, %v2880
    %v2927 = vpack.c.b16 %v2885, %v2883
    %v2928 = vpack.c.b16 %v2886, %v2884
    %v2929 = vpack.c.b16 %v2889, %v2887
    %v2930 = vpack.c.b16 %v2890, %v2888
    %v2931 = vpack.c.b16 %v2893, %v2891
    %v2932 = vpack.c.b16 %v2894, %v2892
    %v2933 = vpack.c.b16 %v2897, %v2895
    %v2934 = vpack.c.b16 %v2898, %v2896
    %v2972 = vsel %vm942, %v2619, 0
    %v2975 = vsel %vm942, %v2631, 0
    %v2978 = vsel %vm942, %v2643, 0
    %v2981 = vsel %vm942, %v2655, 0
    %v2984 = vsel %vm942, %v2667, 0
    %v2987 = vsel %vm942, %v2679, 0
    %v2990 = vsel %vm942, %v2691, 0
    %v2993 = vsel %vm942, %v2703, 0
    %v2996 = vsel %vm942, %v2715, 0
    %v2999 = vsel %vm942, %v2727, 0
    %v3002 = vsel %vm942, %v2739, 0
    %v3005 = vsel %vm942, %v2766, 0
    %3007 = vmatprep.subr.bf16.mxu0 %v2900
    %3008 = vmatpush1.bf16.msra.mxu0 %v2899
    %3009 = vmatprep.subr.bf16.mxu0 %v2902
    %3010 = vmatpush1.bf16.msra.mxu0 %v2901
    %3011 = vmatprep.subr.bf16.mxu0 %v2904
    %3012 = vmatpush1.bf16.msra.mxu0 %v2903
    %3013 = vmatprep.subr.bf16.mxu0 %v2906
    %3014 = vmatpush1.bf16.msra.mxu0 %v2905
    %3015 = vmatprep.subr.bf16.mxu0 %v2908
    %3016 = vmatpush1.bf16.msra.mxu0 %v2907
    %3017 = vmatprep.subr.bf16.mxu0 %v2910
    %3018 = vmatpush1.bf16.msra.mxu0 %v2909
    %3019 = vmatprep.subr.bf16.mxu0 %v2912
    %3020 = vmatpush1.bf16.msra.mxu0 %v2911
    %3021 = vmatprep.subr.bf16.mxu0 %v2914
    %3022 = vmatpush1.bf16.msra.mxu0 %v2913
    %3023 = vmatprep.subr.bf16.mxu0 %v2916
    %3024 = vmatpush1.bf16.msra.mxu0 %v2915
    %3025 = vmatprep.subr.bf16.mxu0 %v2918
    %3026 = vmatpush1.bf16.msra.mxu0 %v2917
    %3027 = vmatprep.subr.bf16.mxu0 %v2920
    %3028 = vmatpush1.bf16.msra.mxu0 %v2919
    %3029 = vmatprep.subr.bf16.mxu0 %v2922
    %3030 = vmatpush1.bf16.msra.mxu0 %v2921
    %3031 = vmatprep.subr.bf16.mxu0 %v2924
    %3032 = vmatpush1.bf16.msra.mxu0 %v2923
    %3033 = vmatprep.subr.bf16.mxu0 %v2926
    %3034 = vmatpush1.bf16.msra.mxu0 %v2925
    %3035 = vmatprep.subr.bf16.mxu0 %v2928
    %3036 = vmatpush1.bf16.msra.mxu0 %v2927
    %3037 = vmatprep.subr.bf16.mxu0 %v2930
    %3038 = vmatpush1.bf16.msra.mxu0 %v2929
    %3039 = vmatprep.mubr.bf16.mxu0 %v2607
    %3040 = vmatmul.mubr.bf16.gmra.mrb[0].mxu0 %v2595
    %v3041 = vpop.f32.mrb[0].mxu0
    %v3042 = vadd.f32 0.0, %v3041
    %v3043 = vpop.f32.mrb[0].mxu0
    %v3044 = vadd.f32 0.0, %v3043
    %v3045 = vpop.f32.mrb[0].mxu0
    %v3046 = vadd.f32 0.0, %v3045
    %v3047 = vpop.f32.mrb[0].mxu0
    %v3048 = vadd.f32 0.0, %v3047
    %3049 = vmatprep.mubr.bf16.mxu0 %v2627
    %3050 = vmatmul.mubr.bf16.gmra.mrb[0].mxu0 %v2623
    %v3051 = vpop.f32.mrb[0].mxu0
    %v3052 = vadd.f32 0.0, %v3051
    %v3053 = vpop.f32.mrb[0].mxu0
    %v3054 = vadd.f32 0.0, %v3053
    %v3055 = vpop.f32.mrb[0].mxu0
    %v3056 = vadd.f32 0.0, %v3055
    %v3057 = vpop.f32.mrb[0].mxu0
    %v3058 = vadd.f32 0.0, %v3057
    %3059 = vmatprep.mubr.bf16.mxu0 %v2639
    %3060 = vmatmul.mubr.bf16.gmra.mrb[0].mxu0 %v2635
    %v3061 = vpop.f32.mrb[0].mxu0
    %v3062 = vadd.f32 0.0, %v3061
    %v3063 = vpop.f32.mrb[0].mxu0
    %v3064 = vadd.f32 0.0, %v3063
    %v3065 = vpop.f32.mrb[0].mxu0
    %v3066 = vadd.f32 0.0, %v3065
    %v3067 = vpop.f32.mrb[0].mxu0
    %v3068 = vadd.f32 0.0, %v3067
    %3069 = vmatprep.mubr.bf16.mxu0 %v2651
    %3070 = vmatmul.mubr.bf16.gmra.mrb[0].mxu0 %v2647
    %v3071 = vpop.f32.mrb[0].mxu0
    %v3072 = vadd.f32 0.0, %v3071
    %v3073 = vpop.f32.mrb[0].mxu0
    %v3074 = vadd.f32 0.0, %v3073
    %v3075 = vpop.f32.mrb[0].mxu0
    %v3076 = vadd.f32 0.0, %v3075
    %v3077 = vpop.f32.mrb[0].mxu0
    %v3078 = vadd.f32 0.0, %v3077
    %3079 = vmatprep.mubr.bf16.mxu0 %v2663
    %3080 = vmatmul.mubr.bf16.gmra.mrb[0].mxu0 %v2659
    %v3081 = vpop.f32.mrb[0].mxu0
    %v3082 = vadd.f32 0.0, %v3081
    %v3083 = vpop.f32.mrb[0].mxu0
    %v3084 = vadd.f32 0.0, %v3083
    %v3085 = vpop.f32.mrb[0].mxu0
    %v3086 = vadd.f32 0.0, %v3085
    %v3087 = vpop.f32.mrb[0].mxu0
    %v3088 = vadd.f32 0.0, %v3087
    %3089 = vmatprep.mubr.bf16.mxu0 %v2675
    %3090 = vmatmul.mubr.bf16.gmra.mrb[0].mxu0 %v2671
    %v3091 = vpop.f32.mrb[0].mxu0
    %v3092 = vadd.f32 0.0, %v3091
    %v3093 = vpop.f32.mrb[0].mxu0
    %v3094 = vadd.f32 0.0, %v3093
    %v3095 = vpop.f32.mrb[0].mxu0
    %v3096 = vadd.f32 0.0, %v3095
    %v3097 = vpop.f32.mrb[0].mxu0
    %v3098 = vadd.f32 0.0, %v3097
    %3099 = vmatprep.mubr.bf16.mxu0 %v2687
    %3100 = vmatmul.mubr.bf16.gmra.mrb[0].mxu0 %v2683
    %v3101 = vpop.f32.mrb[0].mxu0
    %v3102 = vadd.f32 0.0, %v3101
    %v3103 = vpop.f32.mrb[0].mxu0
    %v3104 = vadd.f32 0.0, %v3103
    %v3105 = vpop.f32.mrb[0].mxu0
    %v3106 = vadd.f32 0.0, %v3105
    %v3107 = vpop.f32.mrb[0].mxu0
    %v3108 = vadd.f32 0.0, %v3107
    %3109 = vmatprep.mubr.bf16.mxu0 %v2699
    %3110 = vmatmul.mubr.bf16.gmra.mrb[0].mxu0 %v2695
    %v3111 = vpop.f32.mrb[0].mxu0
    %v3112 = vadd.f32 0.0, %v3111
    %v3113 = vpop.f32.mrb[0].mxu0
    %v3114 = vadd.f32 0.0, %v3113
    %v3115 = vpop.f32.mrb[0].mxu0
    %v3116 = vadd.f32 0.0, %v3115
    %v3117 = vpop.f32.mrb[0].mxu0
    %v3118 = vadd.f32 0.0, %v3117
    %3119 = vmatprep.mubr.bf16.mxu0 %v2711
    %3120 = vmatmul.mubr.bf16.gmra.mrb[0].mxu0 %v2707
    %v3121 = vpop.f32.mrb[0].mxu0
    %v3122 = vadd.f32 0.0, %v3121
    %v3123 = vpop.f32.mrb[0].mxu0
    %v3124 = vadd.f32 0.0, %v3123
    %v3125 = vpop.f32.mrb[0].mxu0
    %v3126 = vadd.f32 0.0, %v3125
    %v3127 = vpop.f32.mrb[0].mxu0
    %v3128 = vadd.f32 0.0, %v3127
    %3129 = vmatprep.mubr.bf16.mxu0 %v2723
    %3130 = vmatmul.mubr.bf16.gmra.mrb[0].mxu0 %v2719
    %v3131 = vpop.f32.mrb[0].mxu0
    %v3132 = vadd.f32 0.0, %v3131
    %v3133 = vpop.f32.mrb[0].mxu0
    %v3134 = vadd.f32 0.0, %v3133
    %v3135 = vpop.f32.mrb[0].mxu0
    %v3136 = vadd.f32 0.0, %v3135
    %v3137 = vpop.f32.mrb[0].mxu0
    %v3138 = vadd.f32 0.0, %v3137
    %3139 = vmatprep.mubr.bf16.mxu0 %v2735
    %3140 = vmatmul.mubr.bf16.gmra.mrb[0].mxu0 %v2731
    %v3141 = vpop.f32.mrb[0].mxu0
    %v3142 = vadd.f32 0.0, %v3141
    %v3143 = vpop.f32.mrb[0].mxu0
    %v3144 = vadd.f32 0.0, %v3143
    %v3145 = vpop.f32.mrb[0].mxu0
    %v3146 = vadd.f32 0.0, %v3145
    %v3147 = vpop.f32.mrb[0].mxu0
    %v3148 = vadd.f32 0.0, %v3147
    %3149 = vmatprep.mubr.bf16.mxu0 %v2757
    %3150 = vmatmul.mubr.bf16.gmra.mrb[0].mxu0 %v2748
    %v3151 = vpop.f32.mrb[0].mxu0
    %v3152 = vadd.f32 0.0, %v3151
    %v3153 = vpop.f32.mrb[0].mxu0
    %v3154 = vadd.f32 0.0, %v3153
    %v3155 = vpop.f32.mrb[0].mxu0
    %v3156 = vadd.f32 0.0, %v3155
    %v3157 = vpop.f32.mrb[0].mxu0
    %v3158 = vadd.f32 0.0, %v3157
    %3159 = vdwg.mxu0
    %3160 = vmatprep.subr.bf16.mxu0 %v2932
    %3161 = vmatpush1.bf16.msra.mxu0 %v2931
    %3162 = vmatprep.subr.bf16.mxu0 %v2934
    %3163 = vmatpush1.bf16.msra.mxu0 %v2933
    %3164 = vmatprep.subr.bf16.mxu0 0
    %3165 = vmatpush1.bf16.msra.mxu0 0
    %3166 = vmatprep.subr.bf16.mxu0 0
    %3167 = vmatpush1.bf16.msra.mxu0 0
    %3168 = vmatprep.subr.bf16.mxu0 0
    %3169 = vmatpush1.bf16.msra.mxu0 0
    %3170 = vmatprep.subr.bf16.mxu0 0
    %3171 = vmatpush1.bf16.msra.mxu0 0
    %3172 = vmatprep.subr.bf16.mxu0 0
    %3173 = vmatpush1.bf16.msra.mxu0 0
    %3174 = vmatprep.subr.bf16.mxu0 0
    %3175 = vmatpush1.bf16.msra.mxu0 0
    %3176 = vmatprep.subr.bf16.mxu0 0
    %3177 = vmatpush1.bf16.msra.mxu0 0
    %3178 = vmatprep.subr.bf16.mxu0 0
    %3179 = vmatpush1.bf16.msra.mxu0 0
    %3180 = vmatprep.subr.bf16.mxu0 0
    %3181 = vmatpush1.bf16.msra.mxu0 0
    %3182 = vmatprep.subr.bf16.mxu0 0
    %3183 = vmatpush1.bf16.msra.mxu0 0
    %3184 = vmatprep.subr.bf16.mxu0 0
    %3185 = vmatpush1.bf16.msra.mxu0 0
    %3186 = vmatprep.subr.bf16.mxu0 0
    %3187 = vmatpush1.bf16.msra.mxu0 0
    %3188 = vmatprep.subr.bf16.mxu0 0
    %3189 = vmatpush1.bf16.msra.mxu0 0
    %3190 = vmatprep.subr.bf16.mxu0 0
    %3191 = vmatpush1.bf16.msra.mxu0 0
    %3192 = vmatprep.mubr.bf16.mxu0 0
    %3193 = vmatmul.mubr.bf16.gmra.mrb[0].mxu0 %v2972
    %v3194 = vpop.f32.mrb[0].mxu0
    %v3195 = vadd.f32 %v3042, %v3194
    %v3196 = vpop.f32.mrb[0].mxu0
    %v3197 = vadd.f32 %v3044, %v3196
    %v3198 = vpop.f32.mrb[0].mxu0
    %v3199 = vadd.f32 %v3046, %v3198
    %v3200 = vpop.f32.mrb[0].mxu0
    %v3201 = vadd.f32 %v3048, %v3200
    %3202 = vmatprep.mubr.bf16.mxu0 0
    %3203 = vmatmul.mubr.bf16.gmra.mrb[0].mxu0 %v2975
    %v3204 = vpop.f32.mrb[0].mxu0
    %v3205 = vadd.f32 %v3052, %v3204
    %v3206 = vpop.f32.mrb[0].mxu0
    %v3207 = vadd.f32 %v3054, %v3206
    %v3208 = vpop.f32.mrb[0].mxu0
    %v3209 = vadd.f32 %v3056, %v3208
    %v3210 = vpop.f32.mrb[0].mxu0
    %v3211 = vadd.f32 %v3058, %v3210
    %3212 = vmatprep.mubr.bf16.mxu0 0
    %3213 = vmatmul.mubr.bf16.gmra.mrb[0].mxu0 %v2978
    %v3214 = vpop.f32.mrb[0].mxu0
    %v3215 = vadd.f32 %v3062, %v3214
    %v3216 = vpop.f32.mrb[0].mxu0
    %v3217 = vadd.f32 %v3064, %v3216
    %v3218 = vpop.f32.mrb[0].mxu0
    %v3219 = vadd.f32 %v3066, %v3218
    %v3220 = vpop.f32.mrb[0].mxu0
    %v3221 = vadd.f32 %v3068, %v3220
    %3222 = vmatprep.mubr.bf16.mxu0 0
    %3223 = vmatmul.mubr.bf16.gmra.mrb[0].mxu0 %v2981
    %v3224 = vpop.f32.mrb[0].mxu0
    %v3225 = vadd.f32 %v3072, %v3224
    %v3226 = vpop.f32.mrb[0].mxu0
    %v3227 = vadd.f32 %v3074, %v3226
    %v3228 = vpop.f32.mrb[0].mxu0
    %v3229 = vadd.f32 %v3076, %v3228
    %v3230 = vpop.f32.mrb[0].mxu0
    %v3231 = vadd.f32 %v3078, %v3230
    %3232 = vmatprep.mubr.bf16.mxu0 0
    %3233 = vmatmul.mubr.bf16.gmra.mrb[0].mxu0 %v2984
    %v3234 = vpop.f32.mrb[0].mxu0
    %v3235 = vadd.f32 %v3082, %v3234
    %v3236 = vpop.f32.mrb[0].mxu0
    %v3237 = vadd.f32 %v3084, %v3236
    %v3238 = vpop.f32.mrb[0].mxu0
    %v3239 = vadd.f32 %v3086, %v3238
    %v3240 = vpop.f32.mrb[0].mxu0
    %v3241 = vadd.f32 %v3088, %v3240
    %3242 = vmatprep.mubr.bf16.mxu0 0
    %3243 = vmatmul.mubr.bf16.gmra.mrb[0].mxu0 %v2987
    %v3244 = vpop.f32.mrb[0].mxu0
    %v3245 = vadd.f32 %v3092, %v3244
    %v3246 = vpop.f32.mrb[0].mxu0
    %v3247 = vadd.f32 %v3094, %v3246
    %v3248 = vpop.f32.mrb[0].mxu0
    %v3249 = vadd.f32 %v3096, %v3248
    %v3250 = vpop.f32.mrb[0].mxu0
    %v3251 = vadd.f32 %v3098, %v3250
    %3252 = vmatprep.mubr.bf16.mxu0 0
    %3253 = vmatmul.mubr.bf16.gmra.mrb[0].mxu0 %v2990
    %v3254 = vpop.f32.mrb[0].mxu0
    %v3255 = vadd.f32 %v3102, %v3254
    %v3256 = vpop.f32.mrb[0].mxu0
    %v3257 = vadd.f32 %v3104, %v3256
    %v3258 = vpop.f32.mrb[0].mxu0
    %v3259 = vadd.f32 %v3106, %v3258
    %v3260 = vpop.f32.mrb[0].mxu0
    %v3261 = vadd.f32 %v3108, %v3260
    %3262 = vmatprep.mubr.bf16.mxu0 0
    %3263 = vmatmul.mubr.bf16.gmra.mrb[0].mxu0 %v2993
    %v3264 = vpop.f32.mrb[0].mxu0
    %v3265 = vadd.f32 %v3112, %v3264
    %v3266 = vpop.f32.mrb[0].mxu0
    %v3267 = vadd.f32 %v3114, %v3266
    %v3268 = vpop.f32.mrb[0].mxu0
    %v3269 = vadd.f32 %v3116, %v3268
    %v3270 = vpop.f32.mrb[0].mxu0
    %v3271 = vadd.f32 %v3118, %v3270
    %3272 = vmatprep.mubr.bf16.mxu0 0
    %3273 = vmatmul.mubr.bf16.gmra.mrb[0].mxu0 %v2996
    %v3274 = vpop.f32.mrb[0].mxu0
    %v3275 = vadd.f32 %v3122, %v3274
    %v3276 = vpop.f32.mrb[0].mxu0
    %v3277 = vadd.f32 %v3124, %v3276
    %v3278 = vpop.f32.mrb[0].mxu0
    %v3279 = vadd.f32 %v3126, %v3278
    %v3280 = vpop.f32.mrb[0].mxu0
    %v3281 = vadd.f32 %v3128, %v3280
    %3282 = vmatprep.mubr.bf16.mxu0 0
    %3283 = vmatmul.mubr.bf16.gmra.mrb[0].mxu0 %v2999
    %v3284 = vpop.f32.mrb[0].mxu0
    %v3285 = vadd.f32 %v3132, %v3284
    %v3286 = vpop.f32.mrb[0].mxu0
    %v3287 = vadd.f32 %v3134, %v3286
    %v3288 = vpop.f32.mrb[0].mxu0
    %v3289 = vadd.f32 %v3136, %v3288
    %v3290 = vpop.f32.mrb[0].mxu0
    %v3291 = vadd.f32 %v3138, %v3290
    %3292 = vmatprep.mubr.bf16.mxu0 0
    %3293 = vmatmul.mubr.bf16.gmra.mrb[0].mxu0 %v3002
    %v3294 = vpop.f32.mrb[0].mxu0
    %v3295 = vadd.f32 %v3142, %v3294
    %v3296 = vpop.f32.mrb[0].mxu0
    %v3297 = vadd.f32 %v3144, %v3296
    %v3298 = vpop.f32.mrb[0].mxu0
    %v3299 = vadd.f32 %v3146, %v3298
    %v3300 = vpop.f32.mrb[0].mxu0
    %v3301 = vadd.f32 %v3148, %v3300
    %3302 = vmatprep.mubr.bf16.mxu0 0
    %3303 = vmatmul.mubr.bf16.gmra.mrb[0].mxu0 %v3005
    %v3304 = vpop.f32.mrb[0].mxu0
    %v3305 = vadd.f32 %v3152, %v3304
    %v3306 = vpop.f32.mrb[0].mxu0
    %v3307 = vadd.f32 %v3154, %v3306
    %v3308 = vpop.f32.mrb[0].mxu0
    %v3309 = vadd.f32 %v3156, %v3308
    %v3310 = vpop.f32.mrb[0].mxu0
    %v3311 = vadd.f32 %v3158, %v3310
    %3312 = vdwg.mxu0
    %v3313 = vadd.f32 %v2488, %v3195
    %v3314 = vadd.f32 %v2489, %v3197
    %v3315 = vadd.f32 %v2490, %v3199
    %v3316 = vadd.f32 %v2491, %v3201
    %v3317 = vadd.f32 %v2492, %v3205
    %v3318 = vadd.f32 %v2493, %v3207
    %v3319 = vadd.f32 %v2494, %v3209
    %v3320 = vadd.f32 %v2495, %v3211
    %v3321 = vadd.f32 %v2496, %v3215
    %v3322 = vadd.f32 %v2497, %v3217
    %v3323 = vadd.f32 %v2498, %v3219
    %v3324 = vadd.f32 %v2499, %v3221
    %v3325 = vadd.f32 %v2500, %v3225
    %v3326 = vadd.f32 %v2501, %v3227
    %v3327 = vadd.f32 %v2502, %v3229
    %v3328 = vadd.f32 %v2503, %v3231
    %v3329 = vadd.f32 %v2504, %v3235
    %v3330 = vadd.f32 %v2505, %v3237
    %v3331 = vadd.f32 %v2506, %v3239
    %v3332 = vadd.f32 %v2507, %v3241
    %v3333 = vadd.f32 %v2508, %v3245
    %v3334 = vadd.f32 %v2509, %v3247
    %v3335 = vadd.f32 %v2510, %v3249
    %v3336 = vadd.f32 %v2511, %v3251
    %v3337 = vadd.f32 %v2512, %v3255
    %v3338 = vadd.f32 %v2513, %v3257
    %v3339 = vadd.f32 %v2514, %v3259
    %v3340 = vadd.f32 %v2515, %v3261
    %v3341 = vadd.f32 %v2516, %v3265
    %v3342 = vadd.f32 %v2517, %v3267
    %v3343 = vadd.f32 %v2518, %v3269
    %v3344 = vadd.f32 %v2519, %v3271
    %v3345 = vadd.f32 %v2520, %v3275
    %v3346 = vadd.f32 %v2521, %v3277
    %v3347 = vadd.f32 %v2522, %v3279
    %v3348 = vadd.f32 %v2523, %v3281
    %v3349 = vadd.f32 %v2524, %v3285
    %v3350 = vadd.f32 %v2525, %v3287
    %v3351 = vadd.f32 %v2526, %v3289
    %v3352 = vadd.f32 %v2527, %v3291
    %v3353 = vadd.f32 %v2528, %v3295
    %v3354 = vadd.f32 %v2529, %v3297
    %v3355 = vadd.f32 %v2530, %v3299
    %v3356 = vadd.f32 %v2531, %v3301
    %v3357 = vadd.f32 %v2532, %v3305
    %v3358 = vadd.f32 %v2533, %v3307
    %v3359 = vadd.f32 %v2534, %v3309
    %v3360 = vadd.f32 %v2535, %v3311
    %v3361 = vld [vmem:[%s0] sm:$0xcc]
    %v3362 = vld [vmem:[%s0 + $0x8] sm:$0xc]
    %s3363 = scalar_lea.vmem %s1, 1152
    %v3364 = vld [vmem:[%s3363] sm:$0xff]
    %v3365 = vld [vmem:[%s3363 + $0x8] sm:$0xff]
    %v3366 = vld [vmem:[%s3363 + $0x10] sm:$0xff]
    %v3367 = vld [vmem:[%s3363 + $0x18] sm:$0xff]
    %v3368 = vld [vmem:[%s3363 + $0x20] sm:$0xff]
    %v3369 = vld [vmem:[%s3363 + $0x28] sm:$0xff]
    %v3370 = vld [vmem:[%s3363 + $0x30] sm:$0xff]
    %v3371 = vld [vmem:[%s3363 + $0x38] sm:$0xff]
    %v3372 = vld [vmem:[%s3363 + $0x40] sm:$0xff]
    %v3373 = vld [vmem:[%s3363 + $0x48] sm:$0xff]
    %v3374 = vld [vmem:[%s3363 + $0x50] sm:$0xff]
    %v3375 = vld [vmem:[%s3363 + $0x58] sm:$0xff]
    %v3376 = vld [vmem:[%s3363 + $0x60] sm:$0xff]
    %v3377 = vld [vmem:[%s3363 + $0x68] sm:$0xff]
    %v3378 = vld [vmem:[%s3363 + $0x70] sm:$0xff]
    %v3379 = vld [vmem:[%s3363 + $0x78] sm:$0xff]
    %v3380 = vld [vmem:[%s3363 + $0x80] sm:$0xff]
    %v3381 = vld [vmem:[%s3363 + $0x88] sm:$0xff]
    %v3382 = vld [vmem:[%s3363 + $0x90] sm:$0xff]
    %v3383 = vld [vmem:[%s3363 + $0x98] sm:$0xff]
    %v3384 = vld [vmem:[%s3363 + $0xa0] sm:$0xff]
    %v3385 = vld [vmem:[%s3363 + $0xa8] sm:$0xff]
    %v3386 = vld [vmem:[%s3363 + $0xb0] sm:$0xff]
    %v3387 = vld [vmem:[%s3363 + $0xb8] sm:$0xff]
    %v3388 = vld [vmem:[%s3363 + $0xc0] sm:$0xff]
    %v3389 = vld [vmem:[%s3363 + $0xc8] sm:$0xff]
    %v3390 = vld [vmem:[%s3363 + $0xd0] sm:$0xff]
    %v3391 = vld [vmem:[%s3363 + $0xd8] sm:$0xff]
    %v3392 = vld [vmem:[%s3363 + $0xe0] sm:$0xff]
    %v3393 = vld [vmem:[%s3363 + $0xe8] sm:$0xff]
    %v3394 = vld [vmem:[%s3363 + $0xf0] sm:$0xff]
    %v3395 = vld [vmem:[%s3363 + $0xf8] sm:$0xff]
    %v3396 = vld [vmem:[%s3363 + $0x100] sm:$0xff]
    %v3397 = vld [vmem:[%s3363 + $0x108] sm:$0xff]
    %v3398 = vld [vmem:[%s3363 + $0x110] sm:$0xff]
    %v3399 = vld [vmem:[%s3363 + $0x118] sm:$0xff]
    %v3402 = vunpack.c.l.b16 %v3361
    %v3403 = vunpack.c.h.b16 %v3361
    %v3404 = vunpack.c.l.b16 %v3362
    %v3405 = vpack.c.b16 %v326, %v3402
    %v3406 = vpack.c.b16 %v327, %v3403
    %v3407 = vpack.c.b16 %v328, %v3404
    %vm3408 = vcmask 1045504
    %v3409 = vrot.slane %v3405, 2
    %v3410 = vrot.slane %v401, 2
    %v3411 = vsel %vm3408, %v3409, %v3410
    %v3412 = vrot.slane %v3406, 2
    %v3413 = vrot.slane %v402, 2
    %v3414 = vsel %vm3408, %v3412, %v3413
    %v3415 = vrot.slane %v3407, 2
    %v3416 = vrot.slane %v403, 2
    %v3417 = vsel %vm3408, %v3415, %v3416
    %v3418 = vrot.slane %v404, 2
    %v3419 = vsel %vm3408, %v3410, %v3418
    %v3420 = vrot.slane %v405, 2
    %v3421 = vsel %vm3408, %v3413, %v3420
    %v3422 = vrot.slane %v406, 2
    %v3423 = vsel %vm3408, %v3416, %v3422
    %v3424 = vrot.slane %v407, 2
    %v3425 = vsel %vm3408, %v3418, %v3424
    %v3426 = vrot.slane %v408, 2
    %v3427 = vsel %vm3408, %v3420, %v3426
    %v3428 = vrot.slane %v409, 2
    %v3429 = vsel %vm3408, %v3422, %v3428
    %v3430 = vrot.slane %v410, 2
    %v3431 = vsel %vm3408, %v3424, %v3430
    %v3432 = vrot.slane %v411, 2
    %v3433 = vsel %vm3408, %v3426, %v3432
    %v3434 = vrot.slane %v412, 2
    %v3435 = vsel %vm3408, %v3428, %v3434
    %v3436 = vrot.slane %v413, 2
    %v3437 = vsel %vm3408, %v3430, %v3436
    %v3438 = vrot.slane %v414, 2
    %v3439 = vsel %vm3408, %v3432, %v3438
    %v3440 = vrot.slane %v415, 2
    %v3441 = vsel %vm3408, %v3434, %v3440
    %v3442 = vrot.slane %v416, 2
    %v3443 = vsel %vm3408, %v3436, %v3442
    %v3444 = vrot.slane %v417, 2
    %v3445 = vsel %vm3408, %v3438, %v3444
    %v3446 = vrot.slane %v418, 2
    %v3447 = vsel %vm3408, %v3440, %v3446
    %v3448 = vrot.slane %v419, 2
    %v3449 = vsel %vm3408, %v3442, %v3448
    %v3450 = vrot.slane %v420, 2
    %v3451 = vsel %vm3408, %v3444, %v3450
    %v3452 = vrot.slane %v421, 2
    %v3453 = vsel %vm3408, %v3446, %v3452
    %v3454 = vrot.slane %v422, 2
    %v3455 = vsel %vm3408, %v3448, %v3454
    %v3456 = vrot.slane %v423, 2
    %v3457 = vsel %vm3408, %v3450, %v3456
    %v3458 = vrot.slane %v424, 2
    %v3459 = vsel %vm3408, %v3452, %v3458
    %v3460 = vrot.slane %v425, 2
    %v3461 = vsel %vm3408, %v3454, %v3460
    %v3462 = vrot.slane %v426, 2
    %v3463 = vsel %vm3408, %v3456, %v3462
    %v3464 = vrot.slane %v427, 2
    %v3465 = vsel %vm3408, %v3458, %v3464
    %v3466 = vrot.slane %v428, 2
    %v3467 = vsel %vm3408, %v3460, %v3466
    %v3468 = vrot.slane %v429, 2
    %v3469 = vsel %vm3408, %v3462, %v3468
    %v3470 = vrot.slane %v430, 2
    %v3471 = vsel %vm3408, %v3464, %v3470
    %v3472 = vrot.slane %v431, 2
    %v3473 = vsel %vm3408, %v3466, %v3472
    %v3474 = vrot.slane %v432, 2
    %v3475 = vsel %vm3408, %v3468, %v3474
    %v3476 = vrot.slane %v433, 2
    %v3477 = vsel %vm3408, %v3470, %v3476
    %v3478 = vrot.slane %v2580, 2
    %v3479 = vsel %vm3408, %v3472, %v3478
    %v3480 = vrot.slane %v2581, 2
    %v3481 = vsel %vm3408, %v3474, %v3480
    %v3482 = vrot.slane %v2582, 2
    %v3483 = vsel %vm3408, %v3476, %v3482
    %v3544 = vunpack.c.l.b16 %v3364
    %v3545 = vunpack.c.h.b16 %v3364
    %v3546 = vunpack.c.l.b16 %v3365
    %v3547 = vunpack.c.h.b16 %v3365
    %v3548 = vunpack.c.l.b16 %v3366
    %v3549 = vunpack.c.h.b16 %v3366
    %v3550 = vunpack.c.l.b16 %v3367
    %v3551 = vunpack.c.h.b16 %v3367
    %v3552 = vunpack.c.l.b16 %v3368
    %v3553 = vunpack.c.h.b16 %v3368
    %v3554 = vunpack.c.l.b16 %v3369
    %v3555 = vunpack.c.h.b16 %v3369
    %v3556 = vunpack.c.l.b16 %v3370
    %v3557 = vunpack.c.h.b16 %v3370
    %v3558 = vunpack.c.l.b16 %v3371
    %v3559 = vunpack.c.h.b16 %v3371
    %v3560 = vunpack.c.l.b16 %v3372
    %v3561 = vunpack.c.h.b16 %v3372
    %v3562 = vunpack.c.l.b16 %v3373
    %v3563 = vunpack.c.h.b16 %v3373
    %v3564 = vunpack.c.l.b16 %v3374
    %v3565 = vunpack.c.h.b16 %v3374
    %v3566 = vunpack.c.l.b16 %v3375
    %v3567 = vunpack.c.h.b16 %v3375
    %v3568 = vunpack.c.l.b16 %v3376
    %v3569 = vunpack.c.h.b16 %v3376
    %v3570 = vunpack.c.l.b16 %v3377
    %v3571 = vunpack.c.h.b16 %v3377
    %v3572 = vunpack.c.l.b16 %v3378
    %v3573 = vunpack.c.h.b16 %v3378
    %v3574 = vunpack.c.l.b16 %v3379
    %v3575 = vunpack.c.h.b16 %v3379
    %v3576 = vunpack.c.l.b16 %v3380
    %v3577 = vunpack.c.h.b16 %v3380
    %v3578 = vunpack.c.l.b16 %v3381
    %v3579 = vunpack.c.h.b16 %v3381
    %v3580 = vunpack.c.l.b16 %v3382
    %v3581 = vunpack.c.h.b16 %v3382
    %v3582 = vunpack.c.l.b16 %v3383
    %v3583 = vunpack.c.h.b16 %v3383
    %v3584 = vunpack.c.l.b16 %v3384
    %v3585 = vunpack.c.h.b16 %v3384
    %v3586 = vunpack.c.l.b16 %v3385
    %v3587 = vunpack.c.h.b16 %v3385
    %v3588 = vunpack.c.l.b16 %v3386
    %v3589 = vunpack.c.h.b16 %v3386
    %v3590 = vunpack.c.l.b16 %v3387
    %v3591 = vunpack.c.h.b16 %v3387
    %v3592 = vunpack.c.l.b16 %v3388
    %v3593 = vunpack.c.h.b16 %v3388
    %v3594 = vunpack.c.l.b16 %v3389
    %v3595 = vunpack.c.h.b16 %v3389
    %v3596 = vunpack.c.l.b16 %v3390
    %v3597 = vunpack.c.h.b16 %v3390
    %v3598 = vunpack.c.l.b16 %v3391
    %v3599 = vunpack.c.h.b16 %v3391
    %v3600 = vunpack.c.l.b16 %v3392
    %v3601 = vunpack.c.h.b16 %v3392
    %v3602 = vunpack.c.l.b16 %v3393
    %v3603 = vunpack.c.h.b16 %v3393
    %v3604 = vunpack.c.l.b16 %v3394
    %v3605 = vunpack.c.h.b16 %v3394
    %v3606 = vunpack.c.l.b16 %v3395
    %v3607 = vunpack.c.h.b16 %v3395
    %v3608 = vunpack.c.l.b16 %v3396
    %v3609 = vunpack.c.h.b16 %v3396
    %v3610 = vunpack.c.l.b16 %v3397
    %v3611 = vunpack.c.h.b16 %v3397
    %v3612 = vunpack.c.l.b16 %v3398
    %v3613 = vunpack.c.h.b16 %v3398
    %v3614 = vunpack.c.l.b16 %v3399
    %v3615 = vunpack.c.h.b16 %v3399
    %v3616 = vpack.c.b16 %v3546, %v3544
    %v3617 = vpack.c.b16 %v3547, %v3545
    %v3618 = vpack.c.b16 %v3550, %v3548
    %v3619 = vpack.c.b16 %v3551, %v3549
    %v3620 = vpack.c.b16 %v3554, %v3552
    %v3621 = vpack.c.b16 %v3555, %v3553
    %v3622 = vpack.c.b16 %v3558, %v3556
    %v3623 = vpack.c.b16 %v3559, %v3557
    %v3624 = vpack.c.b16 %v3562, %v3560
    %v3625 = vpack.c.b16 %v3563, %v3561
    %v3626 = vpack.c.b16 %v3566, %v3564
    %v3627 = vpack.c.b16 %v3567, %v3565
    %v3628 = vpack.c.b16 %v3570, %v3568
    %v3629 = vpack.c.b16 %v3571, %v3569
    %v3630 = vpack.c.b16 %v3574, %v3572
    %v3631 = vpack.c.b16 %v3575, %v3573
    %v3632 = vpack.c.b16 %v3578, %v3576
    %v3633 = vpack.c.b16 %v3579, %v3577
    %v3634 = vpack.c.b16 %v3582, %v3580
    %v3635 = vpack.c.b16 %v3583, %v3581
    %v3636 = vpack.c.b16 %v3586, %v3584
    %v3637 = vpack.c.b16 %v3587, %v3585
    %v3638 = vpack.c.b16 %v3590, %v3588
    %v3639 = vpack.c.b16 %v3591, %v3589
    %v3640 = vpack.c.b16 %v3594, %v3592
    %v3641 = vpack.c.b16 %v3595, %v3593
    %v3642 = vpack.c.b16 %v3598, %v3596
    %v3643 = vpack.c.b16 %v3599, %v3597
    %v3644 = vpack.c.b16 %v3602, %v3600
    %v3645 = vpack.c.b16 %v3603, %v3601
    %v3646 = vpack.c.b16 %v3606, %v3604
    %v3647 = vpack.c.b16 %v3607, %v3605
    %v3648 = vpack.c.b16 %v3610, %v3608
    %v3649 = vpack.c.b16 %v3611, %v3609
    %v3650 = vpack.c.b16 %v3614, %v3612
    %v3651 = vpack.c.b16 %v3615, %v3613
    %v3689 = vsel %vm942, %v3417, 0
    %v3692 = vsel %vm942, %v3423, 0
    %v3695 = vsel %vm942, %v3429, 0
    %v3698 = vsel %vm942, %v3435, 0
    %v3701 = vsel %vm942, %v3441, 0
    %v3704 = vsel %vm942, %v3447, 0
    %v3707 = vsel %vm942, %v3453, 0
    %v3710 = vsel %vm942, %v3459, 0
    %v3713 = vsel %vm942, %v3465, 0
    %v3716 = vsel %vm942, %v3471, 0
    %v3719 = vsel %vm942, %v3477, 0
    %v3722 = vsel %vm942, %v3483, 0
    %3724 = vmatprep.subr.bf16.mxu0 %v3617
    %3725 = vmatpush1.bf16.msra.mxu0 %v3616
    %3726 = vmatprep.subr.bf16.mxu0 %v3619
    %3727 = vmatpush1.bf16.msra.mxu0 %v3618
    %3728 = vmatprep.subr.bf16.mxu0 %v3621
    %3729 = vmatpush1.bf16.msra.mxu0 %v3620
    %3730 = vmatprep.subr.bf16.mxu0 %v3623
    %3731 = vmatpush1.bf16.msra.mxu0 %v3622
    %3732 = vmatprep.subr.bf16.mxu0 %v3625
    %3733 = vmatpush1.bf16.msra.mxu0 %v3624
    %3734 = vmatprep.subr.bf16.mxu0 %v3627
    %3735 = vmatpush1.bf16.msra.mxu0 %v3626
    %3736 = vmatprep.subr.bf16.mxu0 %v3629
    %3737 = vmatpush1.bf16.msra.mxu0 %v3628
    %3738 = vmatprep.subr.bf16.mxu0 %v3631
    %3739 = vmatpush1.bf16.msra.mxu0 %v3630
    %3740 = vmatprep.subr.bf16.mxu0 %v3633
    %3741 = vmatpush1.bf16.msra.mxu0 %v3632
    %3742 = vmatprep.subr.bf16.mxu0 %v3635
    %3743 = vmatpush1.bf16.msra.mxu0 %v3634
    %3744 = vmatprep.subr.bf16.mxu0 %v3637
    %3745 = vmatpush1.bf16.msra.mxu0 %v3636
    %3746 = vmatprep.subr.bf16.mxu0 %v3639
    %3747 = vmatpush1.bf16.msra.mxu0 %v3638
    %3748 = vmatprep.subr.bf16.mxu0 %v3641
    %3749 = vmatpush1.bf16.msra.mxu0 %v3640
    %3750 = vmatprep.subr.bf16.mxu0 %v3643
    %3751 = vmatpush1.bf16.msra.mxu0 %v3642
    %3752 = vmatprep.subr.bf16.mxu0 %v3645
    %3753 = vmatpush1.bf16.msra.mxu0 %v3644
    %3754 = vmatprep.subr.bf16.mxu0 %v3647
    %3755 = vmatpush1.bf16.msra.mxu0 %v3646
    %3756 = vmatprep.mubr.bf16.mxu0 %v3414
    %3757 = vmatmul.mubr.bf16.gmra.mrb[0].mxu0 %v3411
    %v3758 = vpop.f32.mrb[0].mxu0
    %v3759 = vadd.f32 0.0, %v3758
    %v3760 = vpop.f32.mrb[0].mxu0
    %v3761 = vadd.f32 0.0, %v3760
    %v3762 = vpop.f32.mrb[0].mxu0
    %v3763 = vadd.f32 0.0, %v3762
    %v3764 = vpop.f32.mrb[0].mxu0
    %v3765 = vadd.f32 0.0, %v3764
    %3766 = vmatprep.mubr.bf16.mxu0 %v3421
    %3767 = vmatmul.mubr.bf16.gmra.mrb[0].mxu0 %v3419
    %v3768 = vpop.f32.mrb[0].mxu0
    %v3769 = vadd.f32 0.0, %v3768
    %v3770 = vpop.f32.mrb[0].mxu0
    %v3771 = vadd.f32 0.0, %v3770
    %v3772 = vpop.f32.mrb[0].mxu0
    %v3773 = vadd.f32 0.0, %v3772
    %v3774 = vpop.f32.mrb[0].mxu0
    %v3775 = vadd.f32 0.0, %v3774
    %3776 = vmatprep.mubr.bf16.mxu0 %v3427
    %3777 = vmatmul.mubr.bf16.gmra.mrb[0].mxu0 %v3425
    %v3778 = vpop.f32.mrb[0].mxu0
    %v3779 = vadd.f32 0.0, %v3778
    %v3780 = vpop.f32.mrb[0].mxu0
    %v3781 = vadd.f32 0.0, %v3780
    %v3782 = vpop.f32.mrb[0].mxu0
    %v3783 = vadd.f32 0.0, %v3782
    %v3784 = vpop.f32.mrb[0].mxu0
    %v3785 = vadd.f32 0.0, %v3784
    %3786 = vmatprep.mubr.bf16.mxu0 %v3433
    %3787 = vmatmul.mubr.bf16.gmra.mrb[0].mxu0 %v3431
    %v3788 = vpop.f32.mrb[0].mxu0
    %v3789 = vadd.f32 0.0, %v3788
    %v3790 = vpop.f32.mrb[0].mxu0
    %v3791 = vadd.f32 0.0, %v3790
    %v3792 = vpop.f32.mrb[0].mxu0
    %v3793 = vadd.f32 0.0, %v3792
    %v3794 = vpop.f32.mrb[0].mxu0
    %v3795 = vadd.f32 0.0, %v3794
    %3796 = vmatprep.mubr.bf16.mxu0 %v3439
    %3797 = vmatmul.mubr.bf16.gmra.mrb[0].mxu0 %v3437
    %v3798 = vpop.f32.mrb[0].mxu0
    %v3799 = vadd.f32 0.0, %v3798
    %v3800 = vpop.f32.mrb[0].mxu0
    %v3801 = vadd.f32 0.0, %v3800
    %v3802 = vpop.f32.mrb[0].mxu0
    %v3803 = vadd.f32 0.0, %v3802
    %v3804 = vpop.f32.mrb[0].mxu0
    %v3805 = vadd.f32 0.0, %v3804
    %3806 = vmatprep.mubr.bf16.mxu0 %v3445
    %3807 = vmatmul.mubr.bf16.gmra.mrb[0].mxu0 %v3443
    %v3808 = vpop.f32.mrb[0].mxu0
    %v3809 = vadd.f32 0.0, %v3808
    %v3810 = vpop.f32.mrb[0].mxu0
    %v3811 = vadd.f32 0.0, %v3810
    %v3812 = vpop.f32.mrb[0].mxu0
    %v3813 = vadd.f32 0.0, %v3812
    %v3814 = vpop.f32.mrb[0].mxu0
    %v3815 = vadd.f32 0.0, %v3814
    %3816 = vmatprep.mubr.bf16.mxu0 %v3451
    %3817 = vmatmul.mubr.bf16.gmra.mrb[0].mxu0 %v3449
    %v3818 = vpop.f32.mrb[0].mxu0
    %v3819 = vadd.f32 0.0, %v3818
    %v3820 = vpop.f32.mrb[0].mxu0
    %v3821 = vadd.f32 0.0, %v3820
    %v3822 = vpop.f32.mrb[0].mxu0
    %v3823 = vadd.f32 0.0, %v3822
    %v3824 = vpop.f32.mrb[0].mxu0
    %v3825 = vadd.f32 0.0, %v3824
    %3826 = vmatprep.mubr.bf16.mxu0 %v3457
    %3827 = vmatmul.mubr.bf16.gmra.mrb[0].mxu0 %v3455
    %v3828 = vpop.f32.mrb[0].mxu0
    %v3829 = vadd.f32 0.0, %v3828
    %v3830 = vpop.f32.mrb[0].mxu0
    %v3831 = vadd.f32 0.0, %v3830
    %v3832 = vpop.f32.mrb[0].mxu0
    %v3833 = vadd.f32 0.0, %v3832
    %v3834 = vpop.f32.mrb[0].mxu0
    %v3835 = vadd.f32 0.0, %v3834
    %3836 = vmatprep.mubr.bf16.mxu0 %v3463
    %3837 = vmatmul.mubr.bf16.gmra.mrb[0].mxu0 %v3461
    %v3838 = vpop.f32.mrb[0].mxu0
    %v3839 = vadd.f32 0.0, %v3838
    %v3840 = vpop.f32.mrb[0].mxu0
    %v3841 = vadd.f32 0.0, %v3840
    %v3842 = vpop.f32.mrb[0].mxu0
    %v3843 = vadd.f32 0.0, %v3842
    %v3844 = vpop.f32.mrb[0].mxu0
    %v3845 = vadd.f32 0.0, %v3844
    %3846 = vmatprep.mubr.bf16.mxu0 %v3469
    %3847 = vmatmul.mubr.bf16.gmra.mrb[0].mxu0 %v3467
    %v3848 = vpop.f32.mrb[0].mxu0
    %v3849 = vadd.f32 0.0, %v3848
    %v3850 = vpop.f32.mrb[0].mxu0
    %v3851 = vadd.f32 0.0, %v3850
    %v3852 = vpop.f32.mrb[0].mxu0
    %v3853 = vadd.f32 0.0, %v3852
    %v3854 = vpop.f32.mrb[0].mxu0
    %v3855 = vadd.f32 0.0, %v3854
    %3856 = vmatprep.mubr.bf16.mxu0 %v3475
    %3857 = vmatmul.mubr.bf16.gmra.mrb[0].mxu0 %v3473
    %v3858 = vpop.f32.mrb[0].mxu0
    %v3859 = vadd.f32 0.0, %v3858
    %v3860 = vpop.f32.mrb[0].mxu0
    %v3861 = vadd.f32 0.0, %v3860
    %v3862 = vpop.f32.mrb[0].mxu0
    %v3863 = vadd.f32 0.0, %v3862
    %v3864 = vpop.f32.mrb[0].mxu0
    %v3865 = vadd.f32 0.0, %v3864
    %3866 = vmatprep.mubr.bf16.mxu0 %v3481
    %3867 = vmatmul.mubr.bf16.gmra.mrb[0].mxu0 %v3479
    %v3868 = vpop.f32.mrb[0].mxu0
    %v3869 = vadd.f32 0.0, %v3868
    %v3870 = vpop.f32.mrb[0].mxu0
    %v3871 = vadd.f32 0.0, %v3870
    %v3872 = vpop.f32.mrb[0].mxu0
    %v3873 = vadd.f32 0.0, %v3872
    %v3874 = vpop.f32.mrb[0].mxu0
    %v3875 = vadd.f32 0.0, %v3874
    %3876 = vdwg.mxu0
    %3877 = vmatprep.subr.bf16.mxu0 %v3649
    %3878 = vmatpush1.bf16.msra.mxu0 %v3648
    %3879 = vmatprep.subr.bf16.mxu0 %v3651
    %3880 = vmatpush1.bf16.msra.mxu0 %v3650
    %3881 = vmatprep.subr.bf16.mxu0 0
    %3882 = vmatpush1.bf16.msra.mxu0 0
    %3883 = vmatprep.subr.bf16.mxu0 0
    %3884 = vmatpush1.bf16.msra.mxu0 0
    %3885 = vmatprep.subr.bf16.mxu0 0
    %3886 = vmatpush1.bf16.msra.mxu0 0
    %3887 = vmatprep.subr.bf16.mxu0 0
    %3888 = vmatpush1.bf16.msra.mxu0 0
    %3889 = vmatprep.subr.bf16.mxu0 0
    %3890 = vmatpush1.bf16.msra.mxu0 0
    %3891 = vmatprep.subr.bf16.mxu0 0
    %3892 = vmatpush1.bf16.msra.mxu0 0
    %3893 = vmatprep.subr.bf16.mxu0 0
    %3894 = vmatpush1.bf16.msra.mxu0 0
    %3895 = vmatprep.subr.bf16.mxu0 0
    %3896 = vmatpush1.bf16.msra.mxu0 0
    %3897 = vmatprep.subr.bf16.mxu0 0
    %3898 = vmatpush1.bf16.msra.mxu0 0
    %3899 = vmatprep.subr.bf16.mxu0 0
    %3900 = vmatpush1.bf16.msra.mxu0 0
    %3901 = vmatprep.subr.bf16.mxu0 0
    %3902 = vmatpush1.bf16.msra.mxu0 0
    %3903 = vmatprep.subr.bf16.mxu0 0
    %3904 = vmatpush1.bf16.msra.mxu0 0
    %3905 = vmatprep.subr.bf16.mxu0 0
    %3906 = vmatpush1.bf16.msra.mxu0 0
    %3907 = vmatprep.subr.bf16.mxu0 0
    %3908 = vmatpush1.bf16.msra.mxu0 0
    %3909 = vmatprep.mubr.bf16.mxu0 0
    %3910 = vmatmul.mubr.bf16.gmra.mrb[0].mxu0 %v3689
    %v3911 = vpop.f32.mrb[0].mxu0
    %v3912 = vadd.f32 %v3759, %v3911
    %v3913 = vpop.f32.mrb[0].mxu0
    %v3914 = vadd.f32 %v3761, %v3913
    %v3915 = vpop.f32.mrb[0].mxu0
    %v3916 = vadd.f32 %v3763, %v3915
    %v3917 = vpop.f32.mrb[0].mxu0
    %v3918 = vadd.f32 %v3765, %v3917
    %3919 = vmatprep.mubr.bf16.mxu0 0
    %3920 = vmatmul.mubr.bf16.gmra.mrb[0].mxu0 %v3692
    %v3921 = vpop.f32.mrb[0].mxu0
    %v3922 = vadd.f32 %v3769, %v3921
    %v3923 = vpop.f32.mrb[0].mxu0
    %v3924 = vadd.f32 %v3771, %v3923
    %v3925 = vpop.f32.mrb[0].mxu0
    %v3926 = vadd.f32 %v3773, %v3925
    %v3927 = vpop.f32.mrb[0].mxu0
    %v3928 = vadd.f32 %v3775, %v3927
    %3929 = vmatprep.mubr.bf16.mxu0 0
    %3930 = vmatmul.mubr.bf16.gmra.mrb[0].mxu0 %v3695
    %v3931 = vpop.f32.mrb[0].mxu0
    %v3932 = vadd.f32 %v3779, %v3931
    %v3933 = vpop.f32.mrb[0].mxu0
    %v3934 = vadd.f32 %v3781, %v3933
    %v3935 = vpop.f32.mrb[0].mxu0
    %v3936 = vadd.f32 %v3783, %v3935
    %v3937 = vpop.f32.mrb[0].mxu0
    %v3938 = vadd.f32 %v3785, %v3937
    %3939 = vmatprep.mubr.bf16.mxu0 0
    %3940 = vmatmul.mubr.bf16.gmra.mrb[0].mxu0 %v3698
    %v3941 = vpop.f32.mrb[0].mxu0
    %v3942 = vadd.f32 %v3789, %v3941
    %v3943 = vpop.f32.mrb[0].mxu0
    %v3944 = vadd.f32 %v3791, %v3943
    %v3945 = vpop.f32.mrb[0].mxu0
    %v3946 = vadd.f32 %v3793, %v3945
    %v3947 = vpop.f32.mrb[0].mxu0
    %v3948 = vadd.f32 %v3795, %v3947
    %3949 = vmatprep.mubr.bf16.mxu0 0
    %3950 = vmatmul.mubr.bf16.gmra.mrb[0].mxu0 %v3701
    %v3951 = vpop.f32.mrb[0].mxu0
    %v3952 = vadd.f32 %v3799, %v3951
    %v3953 = vpop.f32.mrb[0].mxu0
    %v3954 = vadd.f32 %v3801, %v3953
    %v3955 = vpop.f32.mrb[0].mxu0
    %v3956 = vadd.f32 %v3803, %v3955
    %v3957 = vpop.f32.mrb[0].mxu0
    %v3958 = vadd.f32 %v3805, %v3957
    %3959 = vmatprep.mubr.bf16.mxu0 0
    %3960 = vmatmul.mubr.bf16.gmra.mrb[0].mxu0 %v3704
    %v3961 = vpop.f32.mrb[0].mxu0
    %v3962 = vadd.f32 %v3809, %v3961
    %v3963 = vpop.f32.mrb[0].mxu0
    %v3964 = vadd.f32 %v3811, %v3963
    %v3965 = vpop.f32.mrb[0].mxu0
    %v3966 = vadd.f32 %v3813, %v3965
    %v3967 = vpop.f32.mrb[0].mxu0
    %v3968 = vadd.f32 %v3815, %v3967
    %3969 = vmatprep.mubr.bf16.mxu0 0
    %3970 = vmatmul.mubr.bf16.gmra.mrb[0].mxu0 %v3707
    %v3971 = vpop.f32.mrb[0].mxu0
    %v3972 = vadd.f32 %v3819, %v3971
    %v3973 = vpop.f32.mrb[0].mxu0
    %v3974 = vadd.f32 %v3821, %v3973
    %v3975 = vpop.f32.mrb[0].mxu0
    %v3976 = vadd.f32 %v3823, %v3975
    %v3977 = vpop.f32.mrb[0].mxu0
    %v3978 = vadd.f32 %v3825, %v3977
    %3979 = vmatprep.mubr.bf16.mxu0 0
    %3980 = vmatmul.mubr.bf16.gmra.mrb[0].mxu0 %v3710
    %v3981 = vpop.f32.mrb[0].mxu0
    %v3982 = vadd.f32 %v3829, %v3981
    %v3983 = vpop.f32.mrb[0].mxu0
    %v3984 = vadd.f32 %v3831, %v3983
    %v3985 = vpop.f32.mrb[0].mxu0
    %v3986 = vadd.f32 %v3833, %v3985
    %v3987 = vpop.f32.mrb[0].mxu0
    %v3988 = vadd.f32 %v3835, %v3987
    %3989 = vmatprep.mubr.bf16.mxu0 0
    %3990 = vmatmul.mubr.bf16.gmra.mrb[0].mxu0 %v3713
    %v3991 = vpop.f32.mrb[0].mxu0
    %v3992 = vadd.f32 %v3839, %v3991
    %v3993 = vpop.f32.mrb[0].mxu0
    %v3994 = vadd.f32 %v3841, %v3993
    %v3995 = vpop.f32.mrb[0].mxu0
    %v3996 = vadd.f32 %v3843, %v3995
    %v3997 = vpop.f32.mrb[0].mxu0
    %v3998 = vadd.f32 %v3845, %v3997
    %3999 = vmatprep.mubr.bf16.mxu0 0
    %4000 = vmatmul.mubr.bf16.gmra.mrb[0].mxu0 %v3716
    %v4001 = vpop.f32.mrb[0].mxu0
    %v4002 = vadd.f32 %v3849, %v4001
    %v4003 = vpop.f32.mrb[0].mxu0
    %v4004 = vadd.f32 %v3851, %v4003
    %v4005 = vpop.f32.mrb[0].mxu0
    %v4006 = vadd.f32 %v3853, %v4005
    %v4007 = vpop.f32.mrb[0].mxu0
    %v4008 = vadd.f32 %v3855, %v4007
    %4009 = vmatprep.mubr.bf16.mxu0 0
    %4010 = vmatmul.mubr.bf16.gmra.mrb[0].mxu0 %v3719
    %v4011 = vpop.f32.mrb[0].mxu0
    %v4012 = vadd.f32 %v3859, %v4011
    %v4013 = vpop.f32.mrb[0].mxu0
    %v4014 = vadd.f32 %v3861, %v4013
    %v4015 = vpop.f32.mrb[0].mxu0
    %v4016 = vadd.f32 %v3863, %v4015
    %v4017 = vpop.f32.mrb[0].mxu0
    %v4018 = vadd.f32 %v3865, %v4017
    %4019 = vmatprep.mubr.bf16.mxu0 0
    %4020 = vmatmul.mubr.bf16.gmra.mrb[0].mxu0 %v3722
    %v4021 = vpop.f32.mrb[0].mxu0
    %v4022 = vadd.f32 %v3869, %v4021
    %v4023 = vpop.f32.mrb[0].mxu0
    %v4024 = vadd.f32 %v3871, %v4023
    %v4025 = vpop.f32.mrb[0].mxu0
    %v4026 = vadd.f32 %v3873, %v4025
    %v4027 = vpop.f32.mrb[0].mxu0
    %v4028 = vadd.f32 %v3875, %v4027
    %4029 = vdwg.mxu0
    %v4030 = vadd.f32 %v3313, %v3912
    %v4031 = vadd.f32 %v3314, %v3914
    %v4032 = vadd.f32 %v3315, %v3916
    %v4033 = vadd.f32 %v3316, %v3918
    %v4034 = vadd.f32 %v3317, %v3922
    %v4035 = vadd.f32 %v3318, %v3924
    %v4036 = vadd.f32 %v3319, %v3926
    %v4037 = vadd.f32 %v3320, %v3928
    %v4038 = vadd.f32 %v3321, %v3932
    %v4039 = vadd.f32 %v3322, %v3934
    %v4040 = vadd.f32 %v3323, %v3936
    %v4041 = vadd.f32 %v3324, %v3938
    %v4042 = vadd.f32 %v3325, %v3942
    %v4043 = vadd.f32 %v3326, %v3944
    %v4044 = vadd.f32 %v3327, %v3946
    %v4045 = vadd.f32 %v3328, %v3948
    %v4046 = vadd.f32 %v3329, %v3952
    %v4047 = vadd.f32 %v3330, %v3954
    %v4048 = vadd.f32 %v3331, %v3956
    %v4049 = vadd.f32 %v3332, %v3958
    %v4050 = vadd.f32 %v3333, %v3962
    %v4051 = vadd.f32 %v3334, %v3964
    %v4052 = vadd.f32 %v3335, %v3966
    %v4053 = vadd.f32 %v3336, %v3968
    %v4054 = vadd.f32 %v3337, %v3972
    %v4055 = vadd.f32 %v3338, %v3974
    %v4056 = vadd.f32 %v3339, %v3976
    %v4057 = vadd.f32 %v3340, %v3978
    %v4058 = vadd.f32 %v3341, %v3982
    %v4059 = vadd.f32 %v3342, %v3984
    %v4060 = vadd.f32 %v3343, %v3986
    %v4061 = vadd.f32 %v3344, %v3988
    %v4062 = vadd.f32 %v3345, %v3992
    %v4063 = vadd.f32 %v3346, %v3994
    %v4064 = vadd.f32 %v3347, %v3996
    %v4065 = vadd.f32 %v3348, %v3998
    %v4066 = vadd.f32 %v3349, %v4002
    %v4067 = vadd.f32 %v3350, %v4004
    %v4068 = vadd.f32 %v3351, %v4006
    %v4069 = vadd.f32 %v3352, %v4008
    %v4070 = vadd.f32 %v3353, %v4012
    %v4071 = vadd.f32 %v3354, %v4014
    %v4072 = vadd.f32 %v3355, %v4016
    %v4073 = vadd.f32 %v3356, %v4018
    %v4074 = vadd.f32 %v3357, %v4022
    %v4075 = vadd.f32 %v3358, %v4024
    %v4076 = vadd.f32 %v3359, %v4026
    %v4077 = vadd.f32 %v3360, %v4028
    %vm4078 = vcmp.ge.f32.partialorder %v4030, 0.0
    %vm4079 = vcmp.ge.f32.partialorder %v4031, 0.0
    %vm4080 = vcmp.ge.f32.partialorder %v4032, 0.0
    %vm4081 = vcmp.ge.f32.partialorder %v4033, 0.0
    %vm4082 = vcmp.ge.f32.partialorder %v4034, 0.0
    %vm4083 = vcmp.ge.f32.partialorder %v4035, 0.0
    %vm4084 = vcmp.ge.f32.partialorder %v4036, 0.0
    %vm4085 = vcmp.ge.f32.partialorder %v4037, 0.0
    %vm4086 = vcmp.ge.f32.partialorder %v4038, 0.0
    %vm4087 = vcmp.ge.f32.partialorder %v4039, 0.0
    %vm4088 = vcmp.ge.f32.partialorder %v4040, 0.0
    %vm4089 = vcmp.ge.f32.partialorder %v4041, 0.0
    %vm4090 = vcmp.ge.f32.partialorder %v4042, 0.0
    %vm4091 = vcmp.ge.f32.partialorder %v4043, 0.0
    %vm4092 = vcmp.ge.f32.partialorder %v4044, 0.0
    %vm4093 = vcmp.ge.f32.partialorder %v4045, 0.0
    %vm4094 = vcmp.ge.f32.partialorder %v4046, 0.0
    %vm4095 = vcmp.ge.f32.partialorder %v4047, 0.0
    %vm4096 = vcmp.ge.f32.partialorder %v4048, 0.0
    %vm4097 = vcmp.ge.f32.partialorder %v4049, 0.0
    %vm4098 = vcmp.ge.f32.partialorder %v4050, 0.0
    %vm4099 = vcmp.ge.f32.partialorder %v4051, 0.0
    %vm4100 = vcmp.ge.f32.partialorder %v4052, 0.0
    %vm4101 = vcmp.ge.f32.partialorder %v4053, 0.0
    %vm4102 = vcmp.ge.f32.partialorder %v4054, 0.0
    %vm4103 = vcmp.ge.f32.partialorder %v4055, 0.0
    %vm4104 = vcmp.ge.f32.partialorder %v4056, 0.0
    %vm4105 = vcmp.ge.f32.partialorder %v4057, 0.0
    %vm4106 = vcmp.ge.f32.partialorder %v4058, 0.0
    %vm4107 = vcmp.ge.f32.partialorder %v4059, 0.0
    %vm4108 = vcmp.ge.f32.partialorder %v4060, 0.0
    %vm4109 = vcmp.ge.f32.partialorder %v4061, 0.0
    %vm4110 = vcmp.ge.f32.partialorder %v4062, 0.0
    %vm4111 = vcmp.ge.f32.partialorder %v4063, 0.0
    %vm4112 = vcmp.ge.f32.partialorder %v4064, 0.0
    %vm4113 = vcmp.ge.f32.partialorder %v4065, 0.0
    %vm4114 = vcmp.ge.f32.partialorder %v4066, 0.0
    %vm4115 = vcmp.ge.f32.partialorder %v4067, 0.0
    %vm4116 = vcmp.ge.f32.partialorder %v4068, 0.0
    %vm4117 = vcmp.ge.f32.partialorder %v4069, 0.0
    %vm4118 = vcmp.ge.f32.partialorder %v4070, 0.0
    %vm4119 = vcmp.ge.f32.partialorder %v4071, 0.0
    %vm4120 = vcmp.ge.f32.partialorder %v4072, 0.0
    %vm4121 = vcmp.ge.f32.partialorder %v4073, 0.0
    %vm4122 = vcmp.ge.f32.partialorder %v4074, 0.0
    %vm4123 = vcmp.ge.f32.partialorder %v4075, 0.0
    %vm4124 = vcmp.ge.f32.partialorder %v4076, 0.0
    %vm4125 = vcmp.ge.f32.partialorder %v4077, 0.0
    %v4126 = vmul.f32 %v4030, 0.2
    %v4127 = vmul.f32 %v4031, 0.2
    %v4128 = vmul.f32 %v4032, 0.2
    %v4129 = vmul.f32 %v4033, 0.2
    %v4130 = vmul.f32 %v4034, 0.2
    %v4131 = vmul.f32 %v4035, 0.2
    %v4132 = vmul.f32 %v4036, 0.2
    %v4133 = vmul.f32 %v4037, 0.2
    %v4134 = vmul.f32 %v4038, 0.2
    %v4135 = vmul.f32 %v4039, 0.2
    %v4136 = vmul.f32 %v4040, 0.2
    %v4137 = vmul.f32 %v4041, 0.2
    %v4138 = vmul.f32 %v4042, 0.2
    %v4139 = vmul.f32 %v4043, 0.2
    %v4140 = vmul.f32 %v4044, 0.2
    %v4141 = vmul.f32 %v4045, 0.2
    %v4142 = vmul.f32 %v4046, 0.2
    %v4143 = vmul.f32 %v4047, 0.2
    %v4144 = vmul.f32 %v4048, 0.2
    %v4145 = vmul.f32 %v4049, 0.2
    %v4146 = vmul.f32 %v4050, 0.2
    %v4147 = vmul.f32 %v4051, 0.2
    %v4148 = vmul.f32 %v4052, 0.2
    %v4149 = vmul.f32 %v4053, 0.2
    %v4150 = vmul.f32 %v4054, 0.2
    %v4151 = vmul.f32 %v4055, 0.2
    %v4152 = vmul.f32 %v4056, 0.2
    %v4153 = vmul.f32 %v4057, 0.2
    %v4154 = vmul.f32 %v4058, 0.2
    %v4155 = vmul.f32 %v4059, 0.2
    %v4156 = vmul.f32 %v4060, 0.2
    %v4157 = vmul.f32 %v4061, 0.2
    %v4158 = vmul.f32 %v4062, 0.2
    %v4159 = vmul.f32 %v4063, 0.2
    %v4160 = vmul.f32 %v4064, 0.2
    %v4161 = vmul.f32 %v4065, 0.2
    %v4162 = vmul.f32 %v4066, 0.2
    %v4163 = vmul.f32 %v4067, 0.2
    %v4164 = vmul.f32 %v4068, 0.2
    %v4165 = vmul.f32 %v4069, 0.2
    %v4166 = vmul.f32 %v4070, 0.2
    %v4167 = vmul.f32 %v4071, 0.2
    %v4168 = vmul.f32 %v4072, 0.2
    %v4169 = vmul.f32 %v4073, 0.2
    %v4170 = vmul.f32 %v4074, 0.2
    %v4171 = vmul.f32 %v4075, 0.2
    %v4172 = vmul.f32 %v4076, 0.2
    %v4173 = vmul.f32 %v4077, 0.2
    %v4174 = vsel %vm4078, %v4030, %v4126
    %v4175 = vsel %vm4079, %v4031, %v4127
    %v4176 = vsel %vm4080, %v4032, %v4128
    %v4177 = vsel %vm4081, %v4033, %v4129
    %v4178 = vsel %vm4082, %v4034, %v4130
    %v4179 = vsel %vm4083, %v4035, %v4131
    %v4180 = vsel %vm4084, %v4036, %v4132
    %v4181 = vsel %vm4085, %v4037, %v4133
    %v4182 = vsel %vm4086, %v4038, %v4134
    %v4183 = vsel %vm4087, %v4039, %v4135
    %v4184 = vsel %vm4088, %v4040, %v4136
    %v4185 = vsel %vm4089, %v4041, %v4137
    %v4186 = vsel %vm4090, %v4042, %v4138
    %v4187 = vsel %vm4091, %v4043, %v4139
    %v4188 = vsel %vm4092, %v4044, %v4140
    %v4189 = vsel %vm4093, %v4045, %v4141
    %v4190 = vsel %vm4094, %v4046, %v4142
    %v4191 = vsel %vm4095, %v4047, %v4143
    %v4192 = vsel %vm4096, %v4048, %v4144
    %v4193 = vsel %vm4097, %v4049, %v4145
    %v4194 = vsel %vm4098, %v4050, %v4146
    %v4195 = vsel %vm4099, %v4051, %v4147
    %v4196 = vsel %vm4100, %v4052, %v4148
    %v4197 = vsel %vm4101, %v4053, %v4149
    %v4198 = vsel %vm4102, %v4054, %v4150
    %v4199 = vsel %vm4103, %v4055, %v4151
    %v4200 = vsel %vm4104, %v4056, %v4152
    %v4201 = vsel %vm4105, %v4057, %v4153
    %v4202 = vsel %vm4106, %v4058, %v4154
    %v4203 = vsel %vm4107, %v4059, %v4155
    %v4204 = vsel %vm4108, %v4060, %v4156
    %v4205 = vsel %vm4109, %v4061, %v4157
    %v4206 = vsel %vm4110, %v4062, %v4158
    %v4207 = vsel %vm4111, %v4063, %v4159
    %v4208 = vsel %vm4112, %v4064, %v4160
    %v4209 = vsel %vm4113, %v4065, %v4161
    %v4210 = vsel %vm4114, %v4066, %v4162
    %v4211 = vsel %vm4115, %v4067, %v4163
    %v4212 = vsel %vm4116, %v4068, %v4164
    %v4213 = vsel %vm4117, %v4069, %v4165
    %v4214 = vsel %vm4118, %v4070, %v4166
    %v4215 = vsel %vm4119, %v4071, %v4167
    %v4216 = vsel %vm4120, %v4072, %v4168
    %v4217 = vsel %vm4121, %v4073, %v4169
    %v4218 = vsel %vm4122, %v4074, %v4170
    %v4219 = vsel %vm4123, %v4075, %v4171
    %v4220 = vsel %vm4124, %v4076, %v4172
    %v4221 = vsel %vm4125, %v4077, %v4173
    %v4222 = vld [vmem:[%s6] sm:$0xff]
    %v4223 = vld [vmem:[%s6 + $0x8] sm:$0xff]
    %v4224 = vld [vmem:[%s6 + $0x10] sm:$0xff]
    %v4225 = vld [vmem:[%s6 + $0x18] sm:$0xff]
    %v4226 = vld [vmem:[%s6 + $0x20] sm:$0xff]
    %v4227 = vld [vmem:[%s6 + $0x28] sm:$0xff]
    %v4228 = vld [vmem:[%s6 + $0x30] sm:$0xff]
    %v4229 = vld [vmem:[%s6 + $0x38] sm:$0xff]
    %v4230 = vld [vmem:[%s6 + $0x40] sm:$0x33]
    %v4231 = vpack.c.bf16 %v4176, %v4174
    %v4232 = vpack.c.bf16 %v4177, %v4175
    %v4233 = vpack.c.bf16 %v4180, %v4178
    %v4234 = vpack.c.bf16 %v4181, %v4179
    %v4235 = vpack.c.bf16 %v4184, %v4182
    %v4236 = vpack.c.bf16 %v4185, %v4183
    %v4237 = vpack.c.bf16 %v4188, %v4186
    %v4238 = vpack.c.bf16 %v4189, %v4187
    %v4239 = vpack.c.bf16 %v4192, %v4190
    %v4240 = vpack.c.bf16 %v4193, %v4191
    %v4241 = vpack.c.bf16 %v4196, %v4194
    %v4242 = vpack.c.bf16 %v4197, %v4195
    %v4243 = vpack.c.bf16 %v4200, %v4198
    %v4244 = vpack.c.bf16 %v4201, %v4199
    %v4245 = vpack.c.bf16 %v4204, %v4202
    %v4246 = vpack.c.bf16 %v4205, %v4203
    %v4247 = vpack.c.bf16 %v4208, %v4206
    %v4248 = vpack.c.bf16 %v4209, %v4207
    %v4249 = vpack.c.bf16 %v4212, %v4210
    %v4250 = vpack.c.bf16 %v4213, %v4211
    %v4251 = vpack.c.bf16 %v4216, %v4214
    %v4252 = vpack.c.bf16 %v4217, %v4215
    %v4253 = vpack.c.bf16 %v4220, %v4218
    %v4254 = vpack.c.bf16 %v4221, %v4219
    %v4264 = vunpack.c.l.b16 %v4222
    %v4265 = vunpack.c.h.b16 %v4222
    %v4266 = vunpack.c.l.b16 %v4223
    %v4267 = vunpack.c.h.b16 %v4223
    %v4268 = vunpack.c.l.b16 %v4224
    %v4269 = vunpack.c.h.b16 %v4224
    %v4270 = vunpack.c.l.b16 %v4225
    %v4271 = vunpack.c.h.b16 %v4225
    %v4272 = vunpack.c.l.b16 %v4226
    %v4273 = vunpack.c.h.b16 %v4226
    %v4274 = vunpack.c.l.b16 %v4227
    %v4275 = vunpack.c.h.b16 %v4227
    %v4276 = vunpack.c.l.b16 %v4228
    %v4277 = vunpack.c.h.b16 %v4228
    %v4278 = vunpack.c.l.b16 %v4229
    %v4279 = vunpack.c.h.b16 %v4229
    %v4280 = vunpack.c.l.b16 %v4230
    %v4281 = vunpack.c.h.b16 %v4230
    %v4282 = vpack.c.b16 %v4266, %v4264
    %v4283 = vpack.c.b16 %v4267, %v4265
    %v4284 = vpack.c.b16 %v4270, %v4268
    %v4285 = vpack.c.b16 %v4271, %v4269
    %v4286 = vpack.c.b16 %v4274, %v4272
    %v4287 = vpack.c.b16 %v4275, %v4273
    %v4288 = vpack.c.b16 %v4278, %v4276
    %v4289 = vpack.c.b16 %v4279, %v4277
    %v4290 = vpack.c.b16 %v4280, %v4280
    %v4291 = vpack.c.b16 %v4281, %v4281
    %vm4297 = vcmask 523264
    %v4299 = vsel %vm4297, %v4283, 0
    %v4302 = vsel %vm4297, %v4285, 0
    %v4305 = vsel %vm4297, %v4287, 0
    %v4308 = vsel %vm4297, %v4289, 0
    %v4311 = vsel %vm4297, %v4291, 0
    %4313 = vmatprep.subr.bf16.mxu0 %v4232
    %4314 = vmatpush1.bf16.msra.mxu0 %v4231
    %4315 = vmatprep.subr.bf16.mxu0 %v4234
    %4316 = vmatpush1.bf16.msra.mxu0 %v4233
    %4317 = vmatprep.subr.bf16.mxu0 %v4236
    %4318 = vmatpush1.bf16.msra.mxu0 %v4235
    %4319 = vmatprep.subr.bf16.mxu0 %v4238
    %4320 = vmatpush1.bf16.msra.mxu0 %v4237
    %4321 = vmatprep.subr.bf16.mxu0 %v4240
    %4322 = vmatpush1.bf16.msra.mxu0 %v4239
    %4323 = vmatprep.subr.bf16.mxu0 %v4242
    %4324 = vmatpush1.bf16.msra.mxu0 %v4241
    %4325 = vmatprep.subr.bf16.mxu0 %v4244
    %4326 = vmatpush1.bf16.msra.mxu0 %v4243
    %4327 = vmatprep.subr.bf16.mxu0 %v4246
    %4328 = vmatpush1.bf16.msra.mxu0 %v4245
    %4329 = vmatprep.subr.bf16.mxu0 %v4248
    %4330 = vmatpush1.bf16.msra.mxu0 %v4247
    %4331 = vmatprep.subr.bf16.mxu0 %v4250
    %4332 = vmatpush1.bf16.msra.mxu0 %v4249
    %4333 = vmatprep.subr.bf16.mxu0 %v4252
    %4334 = vmatpush1.bf16.msra.mxu0 %v4251
    %4335 = vmatprep.subr.bf16.mxu0 %v4254
    %4336 = vmatpush1.bf16.msra.mxu0 %v4253
    %4337 = vmatprep.subr.bf16.mxu0 0
    %4338 = vmatpush1.bf16.msra.mxu0 0
    %4339 = vmatprep.subr.bf16.mxu0 0
    %4340 = vmatpush1.bf16.msra.mxu0 0
    %4341 = vmatprep.subr.bf16.mxu0 0
    %4342 = vmatpush1.bf16.msra.mxu0 0
    %4343 = vmatprep.subr.bf16.mxu0 0
    %4344 = vmatpush1.bf16.msra.mxu0 0
    %4345 = vmatprep.mubr.bf16.mxu0 %v4299
    %4346 = vmatmul.mubr.bf16.gmra.mrb[0].mxu0 %v4282
    %v4347 = vpop.f32.mrb[0].mxu0
    %v4348 = vadd.f32 0.0, %v4347
    %v4349 = vpop.f32.mrb[0].mxu0
    %v4350 = vadd.f32 0.0, %v4349
    %v4351 = vpop.f32.mrb[0].mxu0
    %v4352 = vadd.f32 0.0, %v4351
    %v4353 = vpop.f32.mrb[0].mxu0
    %v4354 = vadd.f32 0.0, %v4353
    %4355 = vmatprep.mubr.bf16.mxu0 %v4302
    %4356 = vmatmul.mubr.bf16.gmra.mrb[0].mxu0 %v4284
    %v4357 = vpop.f32.mrb[0].mxu0
    %v4358 = vadd.f32 0.0, %v4357
    %v4359 = vpop.f32.mrb[0].mxu0
    %v4360 = vadd.f32 0.0, %v4359
    %v4361 = vpop.f32.mrb[0].mxu0
    %v4362 = vadd.f32 0.0, %v4361
    %v4363 = vpop.f32.mrb[0].mxu0
    %v4364 = vadd.f32 0.0, %v4363
    %4365 = vmatprep.mubr.bf16.mxu0 %v4305
    %4366 = vmatmul.mubr.bf16.gmra.mrb[0].mxu0 %v4286
    %v4367 = vpop.f32.mrb[0].mxu0
    %v4368 = vadd.f32 0.0, %v4367
    %v4369 = vpop.f32.mrb[0].mxu0
    %v4370 = vadd.f32 0.0, %v4369
    %v4371 = vpop.f32.mrb[0].mxu0
    %v4372 = vadd.f32 0.0, %v4371
    %v4373 = vpop.f32.mrb[0].mxu0
    %v4374 = vadd.f32 0.0, %v4373
    %4375 = vmatprep.mubr.bf16.mxu0 %v4308
    %4376 = vmatmul.mubr.bf16.gmra.mrb[0].mxu0 %v4288
    %v4377 = vpop.f32.mrb[0].mxu0
    %v4378 = vadd.f32 0.0, %v4377
    %v4379 = vpop.f32.mrb[0].mxu0
    %v4380 = vadd.f32 0.0, %v4379
    %v4381 = vpop.f32.mrb[0].mxu0
    %v4382 = vadd.f32 0.0, %v4381
    %v4383 = vpop.f32.mrb[0].mxu0
    %v4384 = vadd.f32 0.0, %v4383
    %4385 = vmatprep.mubr.bf16.mxu0 %v4311
    %4386 = vmatmul.mubr.bf16.gmra.mrb[0].mxu0 %v4290
    %v4387 = vpop.f32.mrb[0].mxu0
    %v4388 = vadd.f32 0.0, %v4387
    %v4389 = vpop.f32.mrb[0].mxu0
    %v4390 = vadd.f32 0.0, %v4389
    %v4391 = vpop.f32.mrb[0].mxu0
    %v4392 = vpop.f32.mrb[0].mxu0
    %4393 = vdwg.mxu0
    %v4394 = vpack.c.bf16 %v4352, %v4348
    %v4395 = vpack.c.bf16 %v4354, %v4350
    %v4396 = vpack.c.bf16 %v4362, %v4358
    %v4397 = vpack.c.bf16 %v4364, %v4360
    %v4398 = vpack.c.bf16 %v4372, %v4368
    %v4399 = vpack.c.bf16 %v4374, %v4370
    %v4400 = vpack.c.bf16 %v4382, %v4378
    %v4401 = vpack.c.bf16 %v4384, %v4380
    %v4402 = vpack.c.bf16 %v4388, %v4388
    %v4403 = vpack.c.bf16 %v4390, %v4390
    %v4414 = vunpack.c.l.b16 %v4394
    %v4415 = vunpack.c.l.b16 %v4395
    %v4416 = vunpack.c.h.b16 %v4394
    %v4417 = vunpack.c.h.b16 %v4395
    %v4418 = vunpack.c.l.b16 %v4396
    %v4419 = vunpack.c.l.b16 %v4397
    %v4420 = vunpack.c.h.b16 %v4396
    %v4421 = vunpack.c.h.b16 %v4397
    %v4422 = vunpack.c.l.b16 %v4398
    %v4423 = vunpack.c.l.b16 %v4399
    %v4424 = vunpack.c.h.b16 %v4398
    %v4425 = vunpack.c.h.b16 %v4399
    %v4426 = vunpack.c.l.b16 %v4400
    %v4427 = vunpack.c.l.b16 %v4401
    %v4428 = vunpack.c.h.b16 %v4400
    %v4429 = vunpack.c.h.b16 %v4401
    %v4430 = vunpack.c.l.b16 %v4402
    %v4431 = vunpack.c.l.b16 %v4403
    %v4432 = vpack.c.b16 %v4415, %v4414
    %v4433 = vpack.c.b16 %v4417, %v4416
    %v4434 = vpack.c.b16 %v4419, %v4418
    %v4435 = vpack.c.b16 %v4421, %v4420
    %v4436 = vpack.c.b16 %v4423, %v4422
    %v4437 = vpack.c.b16 %v4425, %v4424
    %v4438 = vpack.c.b16 %v4427, %v4426
    %v4439 = vpack.c.b16 %v4429, %v4428
    %v4440 = vpack.c.b16 %v4431, %v4430
    %4450 = vst [vmem:[#allocation2] sm:$0xff] %v4432
    %4451 = vst [vmem:[#allocation2 + $0x8] sm:$0xff] %v4433
    %4452 = vst [vmem:[#allocation2 + $0x10] sm:$0xff] %v4434
    %4453 = vst [vmem:[#allocation2 + $0x18] sm:$0xff] %v4435
    %4454 = vst [vmem:[#allocation2 + $0x20] sm:$0xff] %v4436
    %4455 = vst [vmem:[#allocation2 + $0x28] sm:$0xff] %v4437
    %4456 = vst [vmem:[#allocation2 + $0x30] sm:$0xff] %v4438
    %4457 = vst [vmem:[#allocation2 + $0x38] sm:$0xff] %v4439
    %4458 = vst [vmem:[#allocation2 + $0x40] sm:$0x33] %v4440
    %v4459 = vld [vmem:[#allocation2] sm:$0xff]
    %v4460 = vld [vmem:[#allocation2 + $0x8] sm:$0xff]
    %v4461 = vld [vmem:[#allocation2 + $0x10] sm:$0xff]
    %v4462 = vld [vmem:[#allocation2 + $0x18] sm:$0xff]
    %v4463 = vld [vmem:[#allocation2 + $0x20] sm:$0xff]
    %v4464 = vld [vmem:[#allocation2 + $0x28] sm:$0xff]
    %v4465 = vld [vmem:[#allocation2 + $0x30] sm:$0xff]
    %v4466 = vld [vmem:[#allocation2 + $0x38] sm:$0xff]
    %v4467 = vld [vmem:[#allocation2 + $0x40] sm:$0x11]
    %v4468 = vld [vmem:[%s2] sm:$0xff]
    %v4469 = vld [vmem:[%s2 + $0x8] sm:$0xff]
    %v4470 = vld [vmem:[%s2 + $0x10] sm:$0xff]
    %v4471 = vld [vmem:[%s2 + $0x18] sm:$0xff]
    %v4472 = vld [vmem:[%s2 + $0x20] sm:$0xff]
    %v4473 = vld [vmem:[%s2 + $0x28] sm:$0xff]
    %v4474 = vld [vmem:[%s2 + $0x30] sm:$0xff]
    %v4475 = vld [vmem:[%s2 + $0x38] sm:$0xff]
    %v4476 = vld [vmem:[%s2 + $0x40] sm:$0xff]
    %v4477 = vld [vmem:[%s2 + $0x48] sm:$0xff]
    %v4478 = vld [vmem:[%s2 + $0x50] sm:$0xff]
    %v4479 = vld [vmem:[%s2 + $0x58] sm:$0xff]
    %v4480 = vld [vmem:[%s2 + $0x60] sm:$0xff]
    %v4481 = vld [vmem:[%s2 + $0x68] sm:$0xff]
    %v4482 = vld [vmem:[%s2 + $0x70] sm:$0xff]
    %v4483 = vld [vmem:[%s2 + $0x78] sm:$0xff]
    %v4484 = vld [vmem:[%s2 + $0x80] sm:$0xff]
    %v4485 = vld [vmem:[%s2 + $0x88] sm:$0xff]
    %v4486 = vld [vmem:[%s2 + $0x90] sm:$0xff]
    %v4487 = vld [vmem:[%s2 + $0x98] sm:$0xff]
    %v4488 = vld [vmem:[%s2 + $0xa0] sm:$0xff]
    %v4489 = vld [vmem:[%s2 + $0xa8] sm:$0xff]
    %v4490 = vld [vmem:[%s2 + $0xb0] sm:$0xff]
    %v4491 = vld [vmem:[%s2 + $0xb8] sm:$0xff]
    %v4492 = vld [vmem:[%s2 + $0xc0] sm:$0xff]
    %v4493 = vld [vmem:[%s2 + $0xc8] sm:$0xff]
    %v4494 = vld [vmem:[%s2 + $0xd0] sm:$0xff]
    %v4495 = vld [vmem:[%s2 + $0xd8] sm:$0xff]
    %v4496 = vld [vmem:[%s2 + $0xe0] sm:$0xff]
    %v4497 = vld [vmem:[%s2 + $0xe8] sm:$0xff]
    %v4498 = vld [vmem:[%s2 + $0xf0] sm:$0xff]
    %v4499 = vld [vmem:[%s2 + $0xf8] sm:$0xff]
    %s4500 = scalar_lea.vmem %s2, 256
    %v4501 = vld [vmem:[%s4500] sm:$0xff]
    %v4502 = vld [vmem:[%s4500 + $0x8] sm:$0xff]
    %v4503 = vld [vmem:[%s4500 + $0x10] sm:$0xff]
    %v4504 = vld [vmem:[%s4500 + $0x18] sm:$0xff]
    %v4505 = vld [vmem:[%s4500 + $0x20] sm:$0xff]
    %v4506 = vld [vmem:[%s4500 + $0x28] sm:$0xff]
    %v4507 = vld [vmem:[%s4500 + $0x30] sm:$0xff]
    %v4508 = vld [vmem:[%s4500 + $0x38] sm:$0xff]
    %v4509 = vld [vmem:[%s4500 + $0x40] sm:$0xff]
    %v4510 = vld [vmem:[%s4500 + $0x48] sm:$0xff]
    %v4511 = vld [vmem:[%s4500 + $0x50] sm:$0xff]
    %v4512 = vld [vmem:[%s4500 + $0x58] sm:$0xff]
    %v4513 = vld [vmem:[%s4500 + $0x60] sm:$0xff]
    %v4514 = vld [vmem:[%s4500 + $0x68] sm:$0xff]
    %v4515 = vld [vmem:[%s4500 + $0x70] sm:$0xff]
    %v4516 = vld [vmem:[%s4500 + $0x78] sm:$0xff]
    %v4517 = vld [vmem:[%s4500 + $0x80] sm:$0xff]
    %v4518 = vld [vmem:[%s4500 + $0x88] sm:$0xff]
    %v4519 = vld [vmem:[%s4500 + $0x90] sm:$0xff]
    %v4520 = vld [vmem:[%s4500 + $0x98] sm:$0xff]
    %v4521 = vld [vmem:[%s4500 + $0xa0] sm:$0xff]
    %v4522 = vld [vmem:[%s4500 + $0xa8] sm:$0xff]
    %v4523 = vld [vmem:[%s4500 + $0xb0] sm:$0xff]
    %v4524 = vld [vmem:[%s4500 + $0xb8] sm:$0xff]
    %v4525 = vld [vmem:[%s4500 + $0xc0] sm:$0xff]
    %v4526 = vld [vmem:[%s4500 + $0xc8] sm:$0xff]
    %v4527 = vld [vmem:[%s4500 + $0xd0] sm:$0xff]
    %v4528 = vld [vmem:[%s4500 + $0xd8] sm:$0xff]
    %v4529 = vld [vmem:[%s4500 + $0xe0] sm:$0xff]
    %v4530 = vld [vmem:[%s4500 + $0xe8] sm:$0xff]
    %v4531 = vld [vmem:[%s4500 + $0xf0] sm:$0xff]
    %v4532 = vld [vmem:[%s4500 + $0xf8] sm:$0xff]
    %v4542 = vunpack.c.l.b16 %v4459
    %v4543 = vunpack.c.h.b16 %v4459
    %v4544 = vunpack.c.l.b16 %v4460
    %v4545 = vunpack.c.h.b16 %v4460
    %v4546 = vunpack.c.l.b16 %v4461
    %v4547 = vunpack.c.h.b16 %v4461
    %v4548 = vunpack.c.l.b16 %v4462
    %v4549 = vunpack.c.h.b16 %v4462
    %v4550 = vunpack.c.l.b16 %v4463
    %v4551 = vunpack.c.h.b16 %v4463
    %v4552 = vunpack.c.l.b16 %v4464
    %v4553 = vunpack.c.h.b16 %v4464
    %v4554 = vunpack.c.l.b16 %v4465
    %v4555 = vunpack.c.h.b16 %v4465
    %v4556 = vunpack.c.l.b16 %v4466
    %v4557 = vunpack.c.h.b16 %v4466
    %v4558 = vunpack.c.l.b16 %v4467
    %v4559 = vunpack.c.h.b16 %v4467
    %v4560 = vpack.c.b16 %v4544, %v4542
    %v4561 = vpack.c.b16 %v4545, %v4543
    %v4562 = vpack.c.b16 %v4548, %v4546
    %v4563 = vpack.c.b16 %v4549, %v4547
    %v4564 = vpack.c.b16 %v4552, %v4550
    %v4565 = vpack.c.b16 %v4553, %v4551
    %v4566 = vpack.c.b16 %v4556, %v4554
    %v4567 = vpack.c.b16 %v4557, %v4555
    %v4568 = vpack.c.b16 %v4558, %v4558
    %v4569 = vpack.c.b16 %v4559, %v4559
    %v4571 = vshrl.u32 %v4560, 16
    %v4573 = vshll.u32 %v4560, 16
    %v4575 = vrot.slane %v4573, 1
    %v4576 = vor.u32 %v4571, %v4575
    %v4578 = vshll.u32 %v4562, 16
    %v4580 = vrot.slane %v4578, 1
    %v4581 = vsel %vm437, %v4576, %v4580
    %v4583 = vshrl.u32 %v4561, 16
    %v4585 = vshll.u32 %v4561, 16
    %v4587 = vrot.slane %v4585, 1
    %v4588 = vor.u32 %v4583, %v4587
    %v4590 = vshll.u32 %v4563, 16
    %v4592 = vrot.slane %v4590, 1
    %v4593 = vsel %vm437, %v4588, %v4592
    %v4594 = vshrl.u32 %v4562, 16
    %v4596 = vor.u32 %v4594, %v4580
    %v4598 = vshll.u32 %v4564, 16
    %v4600 = vrot.slane %v4598, 1
    %v4601 = vsel %vm437, %v4596, %v4600
    %v4602 = vshrl.u32 %v4563, 16
    %v4604 = vor.u32 %v4602, %v4592
    %v4606 = vshll.u32 %v4565, 16
    %v4608 = vrot.slane %v4606, 1
    %v4609 = vsel %vm437, %v4604, %v4608
    %v4610 = vshrl.u32 %v4564, 16
    %v4612 = vor.u32 %v4610, %v4600
    %v4614 = vshll.u32 %v4566, 16
    %v4616 = vrot.slane %v4614, 1
    %v4617 = vsel %vm437, %v4612, %v4616
    %v4618 = vshrl.u32 %v4565, 16
    %v4620 = vor.u32 %v4618, %v4608
    %v4622 = vshll.u32 %v4567, 16
    %v4624 = vrot.slane %v4622, 1
    %v4625 = vsel %vm437, %v4620, %v4624
    %v4626 = vshrl.u32 %v4566, 16
    %v4628 = vor.u32 %v4626, %v4616
    %v4630 = vshll.u32 %v4568, 16
    %v4632 = vrot.slane %v4630, 1
    %v4633 = vsel %vm437, %v4628, %v4632
    %v4634 = vshrl.u32 %v4567, 16
    %v4636 = vor.u32 %v4634, %v4624
    %v4638 = vshll.u32 %v4569, 16
    %v4640 = vrot.slane %v4638, 1
    %v4641 = vsel %vm437, %v4636, %v4640
    %v4642 = vshrl.u32 %v4568, 16
    %v4644 = vshrl.u32 %v4569, 16
    %v4688 = vunpack.c.l.b16 %v4501
    %v4689 = vunpack.c.h.b16 %v4501
    %v4690 = vunpack.c.l.b16 %v4502
    %v4691 = vunpack.c.h.b16 %v4502
    %v4692 = vunpack.c.l.b16 %v4503
    %v4693 = vunpack.c.h.b16 %v4503
    %v4694 = vunpack.c.l.b16 %v4504
    %v4695 = vunpack.c.h.b16 %v4504
    %v4696 = vunpack.c.l.b16 %v4505
    %v4697 = vunpack.c.h.b16 %v4505
    %v4698 = vunpack.c.l.b16 %v4506
    %v4699 = vunpack.c.h.b16 %v4506
    %v4700 = vunpack.c.l.b16 %v4507
    %v4701 = vunpack.c.h.b16 %v4507
    %v4702 = vunpack.c.l.b16 %v4508
    %v4703 = vunpack.c.h.b16 %v4508
    %v4704 = vunpack.c.l.b16 %v4509
    %v4705 = vunpack.c.h.b16 %v4509
    %v4706 = vunpack.c.l.b16 %v4510
    %v4707 = vunpack.c.h.b16 %v4510
    %v4708 = vunpack.c.l.b16 %v4511
    %v4709 = vunpack.c.h.b16 %v4511
    %v4710 = vunpack.c.l.b16 %v4512
    %v4711 = vunpack.c.h.b16 %v4512
    %v4712 = vunpack.c.l.b16 %v4513
    %v4713 = vunpack.c.h.b16 %v4513
    %v4714 = vunpack.c.l.b16 %v4514
    %v4715 = vunpack.c.h.b16 %v4514
    %v4716 = vunpack.c.l.b16 %v4515
    %v4717 = vunpack.c.h.b16 %v4515
    %v4718 = vunpack.c.l.b16 %v4516
    %v4719 = vunpack.c.h.b16 %v4516
    %v4720 = vunpack.c.l.b16 %v4517
    %v4721 = vunpack.c.h.b16 %v4517
    %v4722 = vunpack.c.l.b16 %v4518
    %v4723 = vunpack.c.h.b16 %v4518
    %v4724 = vunpack.c.l.b16 %v4519
    %v4725 = vunpack.c.h.b16 %v4519
    %v4726 = vunpack.c.l.b16 %v4520
    %v4727 = vunpack.c.h.b16 %v4520
    %v4728 = vunpack.c.l.b16 %v4521
    %v4729 = vunpack.c.h.b16 %v4521
    %v4730 = vunpack.c.l.b16 %v4522
    %v4731 = vunpack.c.h.b16 %v4522
    %v4732 = vunpack.c.l.b16 %v4523
    %v4733 = vunpack.c.h.b16 %v4523
    %v4734 = vunpack.c.l.b16 %v4524
    %v4735 = vunpack.c.h.b16 %v4524
    %v4736 = vunpack.c.l.b16 %v4525
    %v4737 = vunpack.c.h.b16 %v4525
    %v4738 = vunpack.c.l.b16 %v4526
    %v4739 = vunpack.c.h.b16 %v4526
    %v4740 = vunpack.c.l.b16 %v4527
    %v4741 = vunpack.c.h.b16 %v4527
    %v4742 = vunpack.c.l.b16 %v4528
    %v4743 = vunpack.c.h.b16 %v4528
    %v4744 = vunpack.c.l.b16 %v4529
    %v4745 = vunpack.c.h.b16 %v4529
    %v4746 = vunpack.c.l.b16 %v4530
    %v4747 = vunpack.c.h.b16 %v4530
    %v4748 = vunpack.c.l.b16 %v4531
    %v4749 = vunpack.c.h.b16 %v4531
    %v4750 = vunpack.c.l.b16 %v4532
    %v4751 = vunpack.c.h.b16 %v4532
    %v4752 = vpack.c.b16 %v4690, %v4688
    %v4753 = vpack.c.b16 %v4691, %v4689
    %v4754 = vpack.c.b16 %v4694, %v4692
    %v4755 = vpack.c.b16 %v4695, %v4693
    %v4756 = vpack.c.b16 %v4698, %v4696
    %v4757 = vpack.c.b16 %v4699, %v4697
    %v4758 = vpack.c.b16 %v4702, %v4700
    %v4759 = vpack.c.b16 %v4703, %v4701
    %v4760 = vpack.c.b16 %v4706, %v4704
    %v4761 = vpack.c.b16 %v4707, %v4705
    %v4762 = vpack.c.b16 %v4710, %v4708
    %v4763 = vpack.c.b16 %v4711, %v4709
    %v4764 = vpack.c.b16 %v4714, %v4712
    %v4765 = vpack.c.b16 %v4715, %v4713
    %v4766 = vpack.c.b16 %v4718, %v4716
    %v4767 = vpack.c.b16 %v4719, %v4717
    %v4768 = vpack.c.b16 %v4722, %v4720
    %v4769 = vpack.c.b16 %v4723, %v4721
    %v4770 = vpack.c.b16 %v4726, %v4724
    %v4771 = vpack.c.b16 %v4727, %v4725
    %v4772 = vpack.c.b16 %v4730, %v4728
    %v4773 = vpack.c.b16 %v4731, %v4729
    %v4774 = vpack.c.b16 %v4734, %v4732
    %v4775 = vpack.c.b16 %v4735, %v4733
    %v4776 = vpack.c.b16 %v4738, %v4736
    %v4777 = vpack.c.b16 %v4739, %v4737
    %v4778 = vpack.c.b16 %v4742, %v4740
    %v4779 = vpack.c.b16 %v4743, %v4741
    %v4780 = vpack.c.b16 %v4746, %v4744
    %v4781 = vpack.c.b16 %v4747, %v4745
    %v4782 = vpack.c.b16 %v4750, %v4748
    %v4783 = vpack.c.b16 %v4751, %v4749
    %4816 = vmatprep.subr.bf16.mxu0 %v4753
    %4817 = vmatpush1.bf16.msra.mxu0 %v4752
    %4818 = vmatprep.subr.bf16.mxu0 %v4755
    %4819 = vmatpush1.bf16.msra.mxu0 %v4754
    %4820 = vmatprep.subr.bf16.mxu0 %v4757
    %4821 = vmatpush1.bf16.msra.mxu0 %v4756
    %4822 = vmatprep.subr.bf16.mxu0 %v4759
    %4823 = vmatpush1.bf16.msra.mxu0 %v4758
    %4824 = vmatprep.subr.bf16.mxu0 %v4761
    %4825 = vmatpush1.bf16.msra.mxu0 %v4760
    %4826 = vmatprep.subr.bf16.mxu0 %v4763
    %4827 = vmatpush1.bf16.msra.mxu0 %v4762
    %4828 = vmatprep.subr.bf16.mxu0 %v4765
    %4829 = vmatpush1.bf16.msra.mxu0 %v4764
    %4830 = vmatprep.subr.bf16.mxu0 %v4767
    %4831 = vmatpush1.bf16.msra.mxu0 %v4766
    %4832 = vmatprep.subr.bf16.mxu0 %v4769
    %4833 = vmatpush1.bf16.msra.mxu0 %v4768
    %4834 = vmatprep.subr.bf16.mxu0 %v4771
    %4835 = vmatpush1.bf16.msra.mxu0 %v4770
    %4836 = vmatprep.subr.bf16.mxu0 %v4773
    %4837 = vmatpush1.bf16.msra.mxu0 %v4772
    %4838 = vmatprep.subr.bf16.mxu0 %v4775
    %4839 = vmatpush1.bf16.msra.mxu0 %v4774
    %4840 = vmatprep.subr.bf16.mxu0 %v4777
    %4841 = vmatpush1.bf16.msra.mxu0 %v4776
    %4842 = vmatprep.subr.bf16.mxu0 %v4779
    %4843 = vmatpush1.bf16.msra.mxu0 %v4778
    %4844 = vmatprep.subr.bf16.mxu0 %v4781
    %4845 = vmatpush1.bf16.msra.mxu0 %v4780
    %4846 = vmatprep.subr.bf16.mxu0 %v4783
    %4847 = vmatpush1.bf16.msra.mxu0 %v4782
    %4848 = vmatprep.mubr.bf16.mxu0 %v4593
    %4849 = vmatmul.mubr.bf16.gmra.mrb[0].mxu0 %v4581
    %v4850 = vpop.f32.mrb[0].mxu0
    %v4851 = vadd.f32 0.0, %v4850
    %v4852 = vpop.f32.mrb[0].mxu0
    %v4853 = vadd.f32 0.0, %v4852
    %v4854 = vpop.f32.mrb[0].mxu0
    %v4855 = vadd.f32 0.0, %v4854
    %v4856 = vpop.f32.mrb[0].mxu0
    %v4857 = vadd.f32 0.0, %v4856
    %4858 = vmatprep.mubr.bf16.mxu0 %v4609
    %4859 = vmatmul.mubr.bf16.gmra.mrb[0].mxu0 %v4601
    %v4860 = vpop.f32.mrb[0].mxu0
    %v4861 = vadd.f32 0.0, %v4860
    %v4862 = vpop.f32.mrb[0].mxu0
    %v4863 = vadd.f32 0.0, %v4862
    %v4864 = vpop.f32.mrb[0].mxu0
    %v4865 = vadd.f32 0.0, %v4864
    %v4866 = vpop.f32.mrb[0].mxu0
    %v4867 = vadd.f32 0.0, %v4866
    %4868 = vmatprep.mubr.bf16.mxu0 %v4625
    %4869 = vmatmul.mubr.bf16.gmra.mrb[0].mxu0 %v4617
    %v4870 = vpop.f32.mrb[0].mxu0
    %v4871 = vadd.f32 0.0, %v4870
    %v4872 = vpop.f32.mrb[0].mxu0
    %v4873 = vadd.f32 0.0, %v4872
    %v4874 = vpop.f32.mrb[0].mxu0
    %v4875 = vadd.f32 0.0, %v4874
    %v4876 = vpop.f32.mrb[0].mxu0
    %v4877 = vadd.f32 0.0, %v4876
    %4878 = vmatprep.mubr.bf16.mxu0 %v4641
    %4879 = vmatmul.mubr.bf16.gmra.mrb[0].mxu0 %v4633
    %v4880 = vpop.f32.mrb[0].mxu0
    %v4881 = vadd.f32 0.0, %v4880
    %v4882 = vpop.f32.mrb[0].mxu0
    %v4883 = vadd.f32 0.0, %v4882
    %v4884 = vpop.f32.mrb[0].mxu0
    %v4885 = vadd.f32 0.0, %v4884
    %v4886 = vpop.f32.mrb[0].mxu0
    %v4887 = vadd.f32 0.0, %v4886
    %4888 = vmatprep.mubr.bf16.mxu0 %v4644
    %4889 = vmatmul.mubr.bf16.gmra.mrb[0].mxu0 %v4642
    %v4890 = vpop.f32.mrb[0].mxu0
    %v4891 = vadd.f32 0.0, %v4890
    %v4892 = vpop.f32.mrb[0].mxu0
    %v4893 = vadd.f32 0.0, %v4892
    %v4894 = vpop.f32.mrb[0].mxu0
    %v4895 = vpop.f32.mrb[0].mxu0
    %4896 = vdwg.mxu0
    %v4939 = vunpack.c.l.b16 %v4468
    %v4940 = vunpack.c.h.b16 %v4468
    %v4941 = vunpack.c.l.b16 %v4469
    %v4942 = vunpack.c.h.b16 %v4469
    %v4943 = vunpack.c.l.b16 %v4470
    %v4944 = vunpack.c.h.b16 %v4470
    %v4945 = vunpack.c.l.b16 %v4471
    %v4946 = vunpack.c.h.b16 %v4471
    %v4947 = vunpack.c.l.b16 %v4472
    %v4948 = vunpack.c.h.b16 %v4472
    %v4949 = vunpack.c.l.b16 %v4473
    %v4950 = vunpack.c.h.b16 %v4473
    %v4951 = vunpack.c.l.b16 %v4474
    %v4952 = vunpack.c.h.b16 %v4474
    %v4953 = vunpack.c.l.b16 %v4475
    %v4954 = vunpack.c.h.b16 %v4475
    %v4955 = vunpack.c.l.b16 %v4476
    %v4956 = vunpack.c.h.b16 %v4476
    %v4957 = vunpack.c.l.b16 %v4477
    %v4958 = vunpack.c.h.b16 %v4477
    %v4959 = vunpack.c.l.b16 %v4478
    %v4960 = vunpack.c.h.b16 %v4478
    %v4961 = vunpack.c.l.b16 %v4479
    %v4962 = vunpack.c.h.b16 %v4479
    %v4963 = vunpack.c.l.b16 %v4480
    %v4964 = vunpack.c.h.b16 %v4480
    %v4965 = vunpack.c.l.b16 %v4481
    %v4966 = vunpack.c.h.b16 %v4481
    %v4967 = vunpack.c.l.b16 %v4482
    %v4968 = vunpack.c.h.b16 %v4482
    %v4969 = vunpack.c.l.b16 %v4483
    %v4970 = vunpack.c.h.b16 %v4483
    %v4971 = vunpack.c.l.b16 %v4484
    %v4972 = vunpack.c.h.b16 %v4484
    %v4973 = vunpack.c.l.b16 %v4485
    %v4974 = vunpack.c.h.b16 %v4485
    %v4975 = vunpack.c.l.b16 %v4486
    %v4976 = vunpack.c.h.b16 %v4486
    %v4977 = vunpack.c.l.b16 %v4487
    %v4978 = vunpack.c.h.b16 %v4487
    %v4979 = vunpack.c.l.b16 %v4488
    %v4980 = vunpack.c.h.b16 %v4488
    %v4981 = vunpack.c.l.b16 %v4489
    %v4982 = vunpack.c.h.b16 %v4489
    %v4983 = vunpack.c.l.b16 %v4490
    %v4984 = vunpack.c.h.b16 %v4490
    %v4985 = vunpack.c.l.b16 %v4491
    %v4986 = vunpack.c.h.b16 %v4491
    %v4987 = vunpack.c.l.b16 %v4492
    %v4988 = vunpack.c.h.b16 %v4492
    %v4989 = vunpack.c.l.b16 %v4493
    %v4990 = vunpack.c.h.b16 %v4493
    %v4991 = vunpack.c.l.b16 %v4494
    %v4992 = vunpack.c.h.b16 %v4494
    %v4993 = vunpack.c.l.b16 %v4495
    %v4994 = vunpack.c.h.b16 %v4495
    %v4995 = vunpack.c.l.b16 %v4496
    %v4996 = vunpack.c.h.b16 %v4496
    %v4997 = vunpack.c.l.b16 %v4497
    %v4998 = vunpack.c.h.b16 %v4497
    %v4999 = vunpack.c.l.b16 %v4498
    %v5000 = vunpack.c.h.b16 %v4498
    %v5001 = vunpack.c.l.b16 %v4499
    %v5002 = vunpack.c.h.b16 %v4499
    %v5003 = vpack.c.b16 %v4941, %v4939
    %v5004 = vpack.c.b16 %v4942, %v4940
    %v5005 = vpack.c.b16 %v4945, %v4943
    %v5006 = vpack.c.b16 %v4946, %v4944
    %v5007 = vpack.c.b16 %v4949, %v4947
    %v5008 = vpack.c.b16 %v4950, %v4948
    %v5009 = vpack.c.b16 %v4953, %v4951
    %v5010 = vpack.c.b16 %v4954, %v4952
    %v5011 = vpack.c.b16 %v4957, %v4955
    %v5012 = vpack.c.b16 %v4958, %v4956
    %v5013 = vpack.c.b16 %v4961, %v4959
    %v5014 = vpack.c.b16 %v4962, %v4960
    %v5015 = vpack.c.b16 %v4965, %v4963
    %v5016 = vpack.c.b16 %v4966, %v4964
    %v5017 = vpack.c.b16 %v4969, %v4967
    %v5018 = vpack.c.b16 %v4970, %v4968
    %v5019 = vpack.c.b16 %v4973, %v4971
    %v5020 = vpack.c.b16 %v4974, %v4972
    %v5021 = vpack.c.b16 %v4977, %v4975
    %v5022 = vpack.c.b16 %v4978, %v4976
    %v5023 = vpack.c.b16 %v4981, %v4979
    %v5024 = vpack.c.b16 %v4982, %v4980
    %v5025 = vpack.c.b16 %v4985, %v4983
    %v5026 = vpack.c.b16 %v4986, %v4984
    %v5027 = vpack.c.b16 %v4989, %v4987
    %v5028 = vpack.c.b16 %v4990, %v4988
    %v5029 = vpack.c.b16 %v4993, %v4991
    %v5030 = vpack.c.b16 %v4994, %v4992
    %v5031 = vpack.c.b16 %v4997, %v4995
    %v5032 = vpack.c.b16 %v4998, %v4996
    %v5033 = vpack.c.b16 %v5001, %v4999
    %v5034 = vpack.c.b16 %v5002, %v5000
    %5067 = vmatprep.subr.bf16.mxu0 %v5004
    %5068 = vmatpush1.bf16.msra.mxu0 %v5003
    %5069 = vmatprep.subr.bf16.mxu0 %v5006
    %5070 = vmatpush1.bf16.msra.mxu0 %v5005
    %5071 = vmatprep.subr.bf16.mxu0 %v5008
    %5072 = vmatpush1.bf16.msra.mxu0 %v5007
    %5073 = vmatprep.subr.bf16.mxu0 %v5010
    %5074 = vmatpush1.bf16.msra.mxu0 %v5009
    %5075 = vmatprep.subr.bf16.mxu0 %v5012
    %5076 = vmatpush1.bf16.msra.mxu0 %v5011
    %5077 = vmatprep.subr.bf16.mxu0 %v5014
    %5078 = vmatpush1.bf16.msra.mxu0 %v5013
    %5079 = vmatprep.subr.bf16.mxu0 %v5016
    %5080 = vmatpush1.bf16.msra.mxu0 %v5015
    %5081 = vmatprep.subr.bf16.mxu0 %v5018
    %5082 = vmatpush1.bf16.msra.mxu0 %v5017
    %5083 = vmatprep.subr.bf16.mxu0 %v5020
    %5084 = vmatpush1.bf16.msra.mxu0 %v5019
    %5085 = vmatprep.subr.bf16.mxu0 %v5022
    %5086 = vmatpush1.bf16.msra.mxu0 %v5021
    %5087 = vmatprep.subr.bf16.mxu0 %v5024
    %5088 = vmatpush1.bf16.msra.mxu0 %v5023
    %5089 = vmatprep.subr.bf16.mxu0 %v5026
    %5090 = vmatpush1.bf16.msra.mxu0 %v5025
    %5091 = vmatprep.subr.bf16.mxu0 %v5028
    %5092 = vmatpush1.bf16.msra.mxu0 %v5027
    %5093 = vmatprep.subr.bf16.mxu0 %v5030
    %5094 = vmatpush1.bf16.msra.mxu0 %v5029
    %5095 = vmatprep.subr.bf16.mxu0 %v5032
    %5096 = vmatpush1.bf16.msra.mxu0 %v5031
    %5097 = vmatprep.subr.bf16.mxu0 %v5034
    %5098 = vmatpush1.bf16.msra.mxu0 %v5033
    %5099 = vmatprep.mubr.bf16.mxu0 %v4561
    %5100 = vmatmul.mubr.bf16.gmra.mrb[0].mxu0 %v4560
    %v5101 = vpop.f32.mrb[0].mxu0
    %v5102 = vadd.f32 %v4851, %v5101
    %v5103 = vpop.f32.mrb[0].mxu0
    %v5104 = vadd.f32 %v4853, %v5103
    %v5105 = vpop.f32.mrb[0].mxu0
    %v5106 = vadd.f32 %v4855, %v5105
    %v5107 = vpop.f32.mrb[0].mxu0
    %v5108 = vadd.f32 %v4857, %v5107
    %5109 = vmatprep.mubr.bf16.mxu0 %v4563
    %5110 = vmatmul.mubr.bf16.gmra.mrb[0].mxu0 %v4562
    %v5111 = vpop.f32.mrb[0].mxu0
    %v5112 = vadd.f32 %v4861, %v5111
    %v5113 = vpop.f32.mrb[0].mxu0
    %v5114 = vadd.f32 %v4863, %v5113
    %v5115 = vpop.f32.mrb[0].mxu0
    %v5116 = vadd.f32 %v4865, %v5115
    %v5117 = vpop.f32.mrb[0].mxu0
    %v5118 = vadd.f32 %v4867, %v5117
    %5119 = vmatprep.mubr.bf16.mxu0 %v4565
    %5120 = vmatmul.mubr.bf16.gmra.mrb[0].mxu0 %v4564
    %v5121 = vpop.f32.mrb[0].mxu0
    %v5122 = vadd.f32 %v4871, %v5121
    %v5123 = vpop.f32.mrb[0].mxu0
    %v5124 = vadd.f32 %v4873, %v5123
    %v5125 = vpop.f32.mrb[0].mxu0
    %v5126 = vadd.f32 %v4875, %v5125
    %v5127 = vpop.f32.mrb[0].mxu0
    %v5128 = vadd.f32 %v4877, %v5127
    %5129 = vmatprep.mubr.bf16.mxu0 %v4567
    %5130 = vmatmul.mubr.bf16.gmra.mrb[0].mxu0 %v4566
    %v5131 = vpop.f32.mrb[0].mxu0
    %v5132 = vadd.f32 %v4881, %v5131
    %v5133 = vpop.f32.mrb[0].mxu0
    %v5134 = vadd.f32 %v4883, %v5133
    %v5135 = vpop.f32.mrb[0].mxu0
    %v5136 = vadd.f32 %v4885, %v5135
    %v5137 = vpop.f32.mrb[0].mxu0
    %v5138 = vadd.f32 %v4887, %v5137
    %5139 = vmatprep.mubr.bf16.mxu0 %v4569
    %5140 = vmatmul.mubr.bf16.gmra.mrb[0].mxu0 %v4568
    %v5141 = vpop.f32.mrb[0].mxu0
    %v5142 = vadd.f32 %v4891, %v5141
    %v5143 = vpop.f32.mrb[0].mxu0
    %v5144 = vadd.f32 %v4893, %v5143
    %v5145 = vpop.f32.mrb[0].mxu0
    %v5146 = vpop.f32.mrb[0].mxu0
    %5147 = vdwg.mxu0
    %v5148 = vld [vmem:[#allocation2] sm:$0xee]
    %v5149 = vld [vmem:[#allocation2 + $0x40] sm:$0x33]
    %s5150 = scalar_lea.vmem %s2, 512
    %v5151 = vld [vmem:[%s5150] sm:$0xff]
    %v5152 = vld [vmem:[%s5150 + $0x8] sm:$0xff]
    %v5153 = vld [vmem:[%s5150 + $0x10] sm:$0xff]
    %v5154 = vld [vmem:[%s5150 + $0x18] sm:$0xff]
    %v5155 = vld [vmem:[%s5150 + $0x20] sm:$0xff]
    %v5156 = vld [vmem:[%s5150 + $0x28] sm:$0xff]
    %v5157 = vld [vmem:[%s5150 + $0x30] sm:$0xff]
    %v5158 = vld [vmem:[%s5150 + $0x38] sm:$0xff]
    %v5159 = vld [vmem:[%s5150 + $0x40] sm:$0xff]
    %v5160 = vld [vmem:[%s5150 + $0x48] sm:$0xff]
    %v5161 = vld [vmem:[%s5150 + $0x50] sm:$0xff]
    %v5162 = vld [vmem:[%s5150 + $0x58] sm:$0xff]
    %v5163 = vld [vmem:[%s5150 + $0x60] sm:$0xff]
    %v5164 = vld [vmem:[%s5150 + $0x68] sm:$0xff]
    %v5165 = vld [vmem:[%s5150 + $0x70] sm:$0xff]
    %v5166 = vld [vmem:[%s5150 + $0x78] sm:$0xff]
    %v5167 = vld [vmem:[%s5150 + $0x80] sm:$0xff]
    %v5168 = vld [vmem:[%s5150 + $0x88] sm:$0xff]
    %v5169 = vld [vmem:[%s5150 + $0x90] sm:$0xff]
    %v5170 = vld [vmem:[%s5150 + $0x98] sm:$0xff]
    %v5171 = vld [vmem:[%s5150 + $0xa0] sm:$0xff]
    %v5172 = vld [vmem:[%s5150 + $0xa8] sm:$0xff]
    %v5173 = vld [vmem:[%s5150 + $0xb0] sm:$0xff]
    %v5174 = vld [vmem:[%s5150 + $0xb8] sm:$0xff]
    %v5175 = vld [vmem:[%s5150 + $0xc0] sm:$0xff]
    %v5176 = vld [vmem:[%s5150 + $0xc8] sm:$0xff]
    %v5177 = vld [vmem:[%s5150 + $0xd0] sm:$0xff]
    %v5178 = vld [vmem:[%s5150 + $0xd8] sm:$0xff]
    %v5179 = vld [vmem:[%s5150 + $0xe0] sm:$0xff]
    %v5180 = vld [vmem:[%s5150 + $0xe8] sm:$0xff]
    %v5181 = vld [vmem:[%s5150 + $0xf0] sm:$0xff]
    %v5182 = vld [vmem:[%s5150 + $0xf8] sm:$0xff]
    %v5185 = vunpack.c.l.b16 %v5148
    %v5186 = vunpack.c.h.b16 %v5148
    %v5187 = vunpack.c.l.b16 %v5149
    %v5188 = vunpack.c.h.b16 %v5149
    %v5189 = vpack.c.b16 %v4544, %v5185
    %v5190 = vpack.c.b16 %v4545, %v5186
    %v5191 = vpack.c.b16 %v5187, %v5187
    %v5192 = vpack.c.b16 %v5188, %v5188
    %v5193 = vrot.slane %v5189, 1
    %v5194 = vrot.slane %v4562, 1
    %v5195 = vsel %vm1866, %v5193, %v5194
    %v5196 = vrot.slane %v5190, 1
    %v5197 = vrot.slane %v4563, 1
    %v5198 = vsel %vm1866, %v5196, %v5197
    %v5199 = vrot.slane %v4564, 1
    %v5200 = vsel %vm1866, %v5194, %v5199
    %v5201 = vrot.slane %v4565, 1
    %v5202 = vsel %vm1866, %v5197, %v5201
    %v5203 = vrot.slane %v4566, 1
    %v5204 = vsel %vm1866, %v5199, %v5203
    %v5205 = vrot.slane %v4567, 1
    %v5206 = vsel %vm1866, %v5201, %v5205
    %v5207 = vrot.slane %v5191, 1
    %v5208 = vsel %vm1866, %v5203, %v5207
    %v5209 = vrot.slane %v5192, 1
    %v5210 = vsel %vm1866, %v5205, %v5209
    %v5253 = vunpack.c.l.b16 %v5151
    %v5254 = vunpack.c.h.b16 %v5151
    %v5255 = vunpack.c.l.b16 %v5152
    %v5256 = vunpack.c.h.b16 %v5152
    %v5257 = vunpack.c.l.b16 %v5153
    %v5258 = vunpack.c.h.b16 %v5153
    %v5259 = vunpack.c.l.b16 %v5154
    %v5260 = vunpack.c.h.b16 %v5154
    %v5261 = vunpack.c.l.b16 %v5155
    %v5262 = vunpack.c.h.b16 %v5155
    %v5263 = vunpack.c.l.b16 %v5156
    %v5264 = vunpack.c.h.b16 %v5156
    %v5265 = vunpack.c.l.b16 %v5157
    %v5266 = vunpack.c.h.b16 %v5157
    %v5267 = vunpack.c.l.b16 %v5158
    %v5268 = vunpack.c.h.b16 %v5158
    %v5269 = vunpack.c.l.b16 %v5159
    %v5270 = vunpack.c.h.b16 %v5159
    %v5271 = vunpack.c.l.b16 %v5160
    %v5272 = vunpack.c.h.b16 %v5160
    %v5273 = vunpack.c.l.b16 %v5161
    %v5274 = vunpack.c.h.b16 %v5161
    %v5275 = vunpack.c.l.b16 %v5162
    %v5276 = vunpack.c.h.b16 %v5162
    %v5277 = vunpack.c.l.b16 %v5163
    %v5278 = vunpack.c.h.b16 %v5163
    %v5279 = vunpack.c.l.b16 %v5164
    %v5280 = vunpack.c.h.b16 %v5164
    %v5281 = vunpack.c.l.b16 %v5165
    %v5282 = vunpack.c.h.b16 %v5165
    %v5283 = vunpack.c.l.b16 %v5166
    %v5284 = vunpack.c.h.b16 %v5166
    %v5285 = vunpack.c.l.b16 %v5167
    %v5286 = vunpack.c.h.b16 %v5167
    %v5287 = vunpack.c.l.b16 %v5168
    %v5288 = vunpack.c.h.b16 %v5168
    %v5289 = vunpack.c.l.b16 %v5169
    %v5290 = vunpack.c.h.b16 %v5169
    %v5291 = vunpack.c.l.b16 %v5170
    %v5292 = vunpack.c.h.b16 %v5170
    %v5293 = vunpack.c.l.b16 %v5171
    %v5294 = vunpack.c.h.b16 %v5171
    %v5295 = vunpack.c.l.b16 %v5172
    %v5296 = vunpack.c.h.b16 %v5172
    %v5297 = vunpack.c.l.b16 %v5173
    %v5298 = vunpack.c.h.b16 %v5173
    %v5299 = vunpack.c.l.b16 %v5174
    %v5300 = vunpack.c.h.b16 %v5174
    %v5301 = vunpack.c.l.b16 %v5175
    %v5302 = vunpack.c.h.b16 %v5175
    %v5303 = vunpack.c.l.b16 %v5176
    %v5304 = vunpack.c.h.b16 %v5176
    %v5305 = vunpack.c.l.b16 %v5177
    %v5306 = vunpack.c.h.b16 %v5177
    %v5307 = vunpack.c.l.b16 %v5178
    %v5308 = vunpack.c.h.b16 %v5178
    %v5309 = vunpack.c.l.b16 %v5179
    %v5310 = vunpack.c.h.b16 %v5179
    %v5311 = vunpack.c.l.b16 %v5180
    %v5312 = vunpack.c.h.b16 %v5180
    %v5313 = vunpack.c.l.b16 %v5181
    %v5314 = vunpack.c.h.b16 %v5181
    %v5315 = vunpack.c.l.b16 %v5182
    %v5316 = vunpack.c.h.b16 %v5182
    %v5317 = vpack.c.b16 %v5255, %v5253
    %v5318 = vpack.c.b16 %v5256, %v5254
    %v5319 = vpack.c.b16 %v5259, %v5257
    %v5320 = vpack.c.b16 %v5260, %v5258
    %v5321 = vpack.c.b16 %v5263, %v5261
    %v5322 = vpack.c.b16 %v5264, %v5262
    %v5323 = vpack.c.b16 %v5267, %v5265
    %v5324 = vpack.c.b16 %v5268, %v5266
    %v5325 = vpack.c.b16 %v5271, %v5269
    %v5326 = vpack.c.b16 %v5272, %v5270
    %v5327 = vpack.c.b16 %v5275, %v5273
    %v5328 = vpack.c.b16 %v5276, %v5274
    %v5329 = vpack.c.b16 %v5279, %v5277
    %v5330 = vpack.c.b16 %v5280, %v5278
    %v5331 = vpack.c.b16 %v5283, %v5281
    %v5332 = vpack.c.b16 %v5284, %v5282
    %v5333 = vpack.c.b16 %v5287, %v5285
    %v5334 = vpack.c.b16 %v5288, %v5286
    %v5335 = vpack.c.b16 %v5291, %v5289
    %v5336 = vpack.c.b16 %v5292, %v5290
    %v5337 = vpack.c.b16 %v5295, %v5293
    %v5338 = vpack.c.b16 %v5296, %v5294
    %v5339 = vpack.c.b16 %v5299, %v5297
    %v5340 = vpack.c.b16 %v5300, %v5298
    %v5341 = vpack.c.b16 %v5303, %v5301
    %v5342 = vpack.c.b16 %v5304, %v5302
    %v5343 = vpack.c.b16 %v5307, %v5305
    %v5344 = vpack.c.b16 %v5308, %v5306
    %v5345 = vpack.c.b16 %v5311, %v5309
    %v5346 = vpack.c.b16 %v5312, %v5310
    %v5347 = vpack.c.b16 %v5315, %v5313
    %v5348 = vpack.c.b16 %v5316, %v5314
    %5381 = vmatprep.subr.bf16.mxu0 %v5318
    %5382 = vmatpush1.bf16.msra.mxu0 %v5317
    %5383 = vmatprep.subr.bf16.mxu0 %v5320
    %5384 = vmatpush1.bf16.msra.mxu0 %v5319
    %5385 = vmatprep.subr.bf16.mxu0 %v5322
    %5386 = vmatpush1.bf16.msra.mxu0 %v5321
    %5387 = vmatprep.subr.bf16.mxu0 %v5324
    %5388 = vmatpush1.bf16.msra.mxu0 %v5323
    %5389 = vmatprep.subr.bf16.mxu0 %v5326
    %5390 = vmatpush1.bf16.msra.mxu0 %v5325
    %5391 = vmatprep.subr.bf16.mxu0 %v5328
    %5392 = vmatpush1.bf16.msra.mxu0 %v5327
    %5393 = vmatprep.subr.bf16.mxu0 %v5330
    %5394 = vmatpush1.bf16.msra.mxu0 %v5329
    %5395 = vmatprep.subr.bf16.mxu0 %v5332
    %5396 = vmatpush1.bf16.msra.mxu0 %v5331
    %5397 = vmatprep.subr.bf16.mxu0 %v5334
    %5398 = vmatpush1.bf16.msra.mxu0 %v5333
    %5399 = vmatprep.subr.bf16.mxu0 %v5336
    %5400 = vmatpush1.bf16.msra.mxu0 %v5335
    %5401 = vmatprep.subr.bf16.mxu0 %v5338
    %5402 = vmatpush1.bf16.msra.mxu0 %v5337
    %5403 = vmatprep.subr.bf16.mxu0 %v5340
    %5404 = vmatpush1.bf16.msra.mxu0 %v5339
    %5405 = vmatprep.subr.bf16.mxu0 %v5342
    %5406 = vmatpush1.bf16.msra.mxu0 %v5341
    %5407 = vmatprep.subr.bf16.mxu0 %v5344
    %5408 = vmatpush1.bf16.msra.mxu0 %v5343
    %5409 = vmatprep.subr.bf16.mxu0 %v5346
    %5410 = vmatpush1.bf16.msra.mxu0 %v5345
    %5411 = vmatprep.subr.bf16.mxu0 %v5348
    %5412 = vmatpush1.bf16.msra.mxu0 %v5347
    %5413 = vmatprep.mubr.bf16.mxu0 %v5198
    %5414 = vmatmul.mubr.bf16.gmra.mrb[0].mxu0 %v5195
    %v5415 = vpop.f32.mrb[0].mxu0
    %v5416 = vadd.f32 0.0, %v5415
    %v5417 = vpop.f32.mrb[0].mxu0
    %v5418 = vadd.f32 0.0, %v5417
    %v5419 = vpop.f32.mrb[0].mxu0
    %v5420 = vadd.f32 0.0, %v5419
    %v5421 = vpop.f32.mrb[0].mxu0
    %v5422 = vadd.f32 0.0, %v5421
    %5423 = vmatprep.mubr.bf16.mxu0 %v5202
    %5424 = vmatmul.mubr.bf16.gmra.mrb[0].mxu0 %v5200
    %v5425 = vpop.f32.mrb[0].mxu0
    %v5426 = vadd.f32 0.0, %v5425
    %v5427 = vpop.f32.mrb[0].mxu0
    %v5428 = vadd.f32 0.0, %v5427
    %v5429 = vpop.f32.mrb[0].mxu0
    %v5430 = vadd.f32 0.0, %v5429
    %v5431 = vpop.f32.mrb[0].mxu0
    %v5432 = vadd.f32 0.0, %v5431
    %5433 = vmatprep.mubr.bf16.mxu0 %v5206
    %5434 = vmatmul.mubr.bf16.gmra.mrb[0].mxu0 %v5204
    %v5435 = vpop.f32.mrb[0].mxu0
    %v5436 = vadd.f32 0.0, %v5435
    %v5437 = vpop.f32.mrb[0].mxu0
    %v5438 = vadd.f32 0.0, %v5437
    %v5439 = vpop.f32.mrb[0].mxu0
    %v5440 = vadd.f32 0.0, %v5439
    %v5441 = vpop.f32.mrb[0].mxu0
    %v5442 = vadd.f32 0.0, %v5441
    %5443 = vmatprep.mubr.bf16.mxu0 %v5210
    %5444 = vmatmul.mubr.bf16.gmra.mrb[0].mxu0 %v5208
    %v5445 = vpop.f32.mrb[0].mxu0
    %v5446 = vadd.f32 0.0, %v5445
    %v5447 = vpop.f32.mrb[0].mxu0
    %v5448 = vadd.f32 0.0, %v5447
    %v5449 = vpop.f32.mrb[0].mxu0
    %v5450 = vadd.f32 0.0, %v5449
    %v5451 = vpop.f32.mrb[0].mxu0
    %v5452 = vadd.f32 0.0, %v5451
    %5453 = vmatprep.mubr.bf16.mxu0 %v5209
    %5454 = vmatmul.mubr.bf16.gmra.mrb[0].mxu0 %v5207
    %v5455 = vpop.f32.mrb[0].mxu0
    %v5456 = vadd.f32 0.0, %v5455
    %v5457 = vpop.f32.mrb[0].mxu0
    %v5458 = vadd.f32 0.0, %v5457
    %v5459 = vpop.f32.mrb[0].mxu0
    %v5460 = vpop.f32.mrb[0].mxu0
    %5461 = vdwg.mxu0
    %v5462 = vadd.f32 %v5102, %v5416
    %v5463 = vadd.f32 %v5104, %v5418
    %v5464 = vadd.f32 %v5106, %v5420
    %v5465 = vadd.f32 %v5108, %v5422
    %v5466 = vadd.f32 %v5112, %v5426
    %v5467 = vadd.f32 %v5114, %v5428
    %v5468 = vadd.f32 %v5116, %v5430
    %v5469 = vadd.f32 %v5118, %v5432
    %v5470 = vadd.f32 %v5122, %v5436
    %v5471 = vadd.f32 %v5124, %v5438
    %v5472 = vadd.f32 %v5126, %v5440
    %v5473 = vadd.f32 %v5128, %v5442
    %v5474 = vadd.f32 %v5132, %v5446
    %v5475 = vadd.f32 %v5134, %v5448
    %v5476 = vadd.f32 %v5136, %v5450
    %v5477 = vadd.f32 %v5138, %v5452
    %v5478 = vadd.f32 %v5142, %v5456
    %v5479 = vadd.f32 %v5144, %v5458
    %s5480 = scalar_lea.vmem %s2, 768
    %v5481 = vld [vmem:[%s5480] sm:$0xff]
    %v5482 = vld [vmem:[%s5480 + $0x8] sm:$0xff]
    %v5483 = vld [vmem:[%s5480 + $0x10] sm:$0xff]
    %v5484 = vld [vmem:[%s5480 + $0x18] sm:$0xff]
    %v5485 = vld [vmem:[%s5480 + $0x20] sm:$0xff]
    %v5486 = vld [vmem:[%s5480 + $0x28] sm:$0xff]
    %v5487 = vld [vmem:[%s5480 + $0x30] sm:$0xff]
    %v5488 = vld [vmem:[%s5480 + $0x38] sm:$0xff]
    %v5489 = vld [vmem:[%s5480 + $0x40] sm:$0xff]
    %v5490 = vld [vmem:[%s5480 + $0x48] sm:$0xff]
    %v5491 = vld [vmem:[%s5480 + $0x50] sm:$0xff]
    %v5492 = vld [vmem:[%s5480 + $0x58] sm:$0xff]
    %v5493 = vld [vmem:[%s5480 + $0x60] sm:$0xff]
    %v5494 = vld [vmem:[%s5480 + $0x68] sm:$0xff]
    %v5495 = vld [vmem:[%s5480 + $0x70] sm:$0xff]
    %v5496 = vld [vmem:[%s5480 + $0x78] sm:$0xff]
    %v5497 = vld [vmem:[%s5480 + $0x80] sm:$0xff]
    %v5498 = vld [vmem:[%s5480 + $0x88] sm:$0xff]
    %v5499 = vld [vmem:[%s5480 + $0x90] sm:$0xff]
    %v5500 = vld [vmem:[%s5480 + $0x98] sm:$0xff]
    %v5501 = vld [vmem:[%s5480 + $0xa0] sm:$0xff]
    %v5502 = vld [vmem:[%s5480 + $0xa8] sm:$0xff]
    %v5503 = vld [vmem:[%s5480 + $0xb0] sm:$0xff]
    %v5504 = vld [vmem:[%s5480 + $0xb8] sm:$0xff]
    %v5505 = vld [vmem:[%s5480 + $0xc0] sm:$0xff]
    %v5506 = vld [vmem:[%s5480 + $0xc8] sm:$0xff]
    %v5507 = vld [vmem:[%s5480 + $0xd0] sm:$0xff]
    %v5508 = vld [vmem:[%s5480 + $0xd8] sm:$0xff]
    %v5509 = vld [vmem:[%s5480 + $0xe0] sm:$0xff]
    %v5510 = vld [vmem:[%s5480 + $0xe8] sm:$0xff]
    %v5511 = vld [vmem:[%s5480 + $0xf0] sm:$0xff]
    %v5512 = vld [vmem:[%s5480 + $0xf8] sm:$0xff]
    %v5514 = vshrl.u32 %v5189, 16
    %v5516 = vrot.slane %v5514, 1
    %v5517 = vshll.u32 %v5189, 16
    %v5519 = vrot.slane %v5517, 2
    %v5520 = vor.u32 %v5516, %v5519
    %v5521 = vrot.slane %v4594, 1
    %v5522 = vrot.slane %v4578, 2
    %v5523 = vor.u32 %v5521, %v5522
    %v5524 = vsel %vm2583, %v5520, %v5523
    %v5526 = vshrl.u32 %v5190, 16
    %v5528 = vrot.slane %v5526, 1
    %v5529 = vshll.u32 %v5190, 16
    %v5531 = vrot.slane %v5529, 2
    %v5532 = vor.u32 %v5528, %v5531
    %v5533 = vrot.slane %v4602, 1
    %v5534 = vrot.slane %v4590, 2
    %v5535 = vor.u32 %v5533, %v5534
    %v5536 = vsel %vm2583, %v5532, %v5535
    %v5537 = vrot.slane %v4610, 1
    %v5538 = vrot.slane %v4598, 2
    %v5539 = vor.u32 %v5537, %v5538
    %v5540 = vsel %vm2583, %v5523, %v5539
    %v5541 = vrot.slane %v4618, 1
    %v5542 = vrot.slane %v4606, 2
    %v5543 = vor.u32 %v5541, %v5542
    %v5544 = vsel %vm2583, %v5535, %v5543
    %v5545 = vrot.slane %v4626, 1
    %v5546 = vrot.slane %v4614, 2
    %v5547 = vor.u32 %v5545, %v5546
    %v5548 = vsel %vm2583, %v5539, %v5547
    %v5549 = vrot.slane %v4634, 1
    %v5550 = vrot.slane %v4622, 2
    %v5551 = vor.u32 %v5549, %v5550
    %v5552 = vsel %vm2583, %v5543, %v5551
    %v5554 = vshrl.u32 %v5191, 16
    %v5556 = vrot.slane %v5554, 1
    %v5557 = vshll.u32 %v5191, 16
    %v5559 = vrot.slane %v5557, 2
    %v5560 = vor.u32 %v5556, %v5559
    %v5561 = vsel %vm2583, %v5547, %v5560
    %v5563 = vshrl.u32 %v5192, 16
    %v5565 = vrot.slane %v5563, 1
    %v5566 = vshll.u32 %v5192, 16
    %v5568 = vrot.slane %v5566, 2
    %v5569 = vor.u32 %v5565, %v5568
    %v5570 = vsel %vm2583, %v5551, %v5569
    %v5613 = vunpack.c.l.b16 %v5481
    %v5614 = vunpack.c.h.b16 %v5481
    %v5615 = vunpack.c.l.b16 %v5482
    %v5616 = vunpack.c.h.b16 %v5482
    %v5617 = vunpack.c.l.b16 %v5483
    %v5618 = vunpack.c.h.b16 %v5483
    %v5619 = vunpack.c.l.b16 %v5484
    %v5620 = vunpack.c.h.b16 %v5484
    %v5621 = vunpack.c.l.b16 %v5485
    %v5622 = vunpack.c.h.b16 %v5485
    %v5623 = vunpack.c.l.b16 %v5486
    %v5624 = vunpack.c.h.b16 %v5486
    %v5625 = vunpack.c.l.b16 %v5487
    %v5626 = vunpack.c.h.b16 %v5487
    %v5627 = vunpack.c.l.b16 %v5488
    %v5628 = vunpack.c.h.b16 %v5488
    %v5629 = vunpack.c.l.b16 %v5489
    %v5630 = vunpack.c.h.b16 %v5489
    %v5631 = vunpack.c.l.b16 %v5490
    %v5632 = vunpack.c.h.b16 %v5490
    %v5633 = vunpack.c.l.b16 %v5491
    %v5634 = vunpack.c.h.b16 %v5491
    %v5635 = vunpack.c.l.b16 %v5492
    %v5636 = vunpack.c.h.b16 %v5492
    %v5637 = vunpack.c.l.b16 %v5493
    %v5638 = vunpack.c.h.b16 %v5493
    %v5639 = vunpack.c.l.b16 %v5494
    %v5640 = vunpack.c.h.b16 %v5494
    %v5641 = vunpack.c.l.b16 %v5495
    %v5642 = vunpack.c.h.b16 %v5495
    %v5643 = vunpack.c.l.b16 %v5496
    %v5644 = vunpack.c.h.b16 %v5496
    %v5645 = vunpack.c.l.b16 %v5497
    %v5646 = vunpack.c.h.b16 %v5497
    %v5647 = vunpack.c.l.b16 %v5498
    %v5648 = vunpack.c.h.b16 %v5498
    %v5649 = vunpack.c.l.b16 %v5499
    %v5650 = vunpack.c.h.b16 %v5499
    %v5651 = vunpack.c.l.b16 %v5500
    %v5652 = vunpack.c.h.b16 %v5500
    %v5653 = vunpack.c.l.b16 %v5501
    %v5654 = vunpack.c.h.b16 %v5501
    %v5655 = vunpack.c.l.b16 %v5502
    %v5656 = vunpack.c.h.b16 %v5502
    %v5657 = vunpack.c.l.b16 %v5503
    %v5658 = vunpack.c.h.b16 %v5503
    %v5659 = vunpack.c.l.b16 %v5504
    %v5660 = vunpack.c.h.b16 %v5504
    %v5661 = vunpack.c.l.b16 %v5505
    %v5662 = vunpack.c.h.b16 %v5505
    %v5663 = vunpack.c.l.b16 %v5506
    %v5664 = vunpack.c.h.b16 %v5506
    %v5665 = vunpack.c.l.b16 %v5507
    %v5666 = vunpack.c.h.b16 %v5507
    %v5667 = vunpack.c.l.b16 %v5508
    %v5668 = vunpack.c.h.b16 %v5508
    %v5669 = vunpack.c.l.b16 %v5509
    %v5670 = vunpack.c.h.b16 %v5509
    %v5671 = vunpack.c.l.b16 %v5510
    %v5672 = vunpack.c.h.b16 %v5510
    %v5673 = vunpack.c.l.b16 %v5511
    %v5674 = vunpack.c.h.b16 %v5511
    %v5675 = vunpack.c.l.b16 %v5512
    %v5676 = vunpack.c.h.b16 %v5512
    %v5677 = vpack.c.b16 %v5615, %v5613
    %v5678 = vpack.c.b16 %v5616, %v5614
    %v5679 = vpack.c.b16 %v5619, %v5617
    %v5680 = vpack.c.b16 %v5620, %v5618
    %v5681 = vpack.c.b16 %v5623, %v5621
    %v5682 = vpack.c.b16 %v5624, %v5622
    %v5683 = vpack.c.b16 %v5627, %v5625
    %v5684 = vpack.c.b16 %v5628, %v5626
    %v5685 = vpack.c.b16 %v5631, %v5629
    %v5686 = vpack.c.b16 %v5632, %v5630
    %v5687 = vpack.c.b16 %v5635, %v5633
    %v5688 = vpack.c.b16 %v5636, %v5634
    %v5689 = vpack.c.b16 %v5639, %v5637
    %v5690 = vpack.c.b16 %v5640, %v5638
    %v5691 = vpack.c.b16 %v5643, %v5641
    %v5692 = vpack.c.b16 %v5644, %v5642
    %v5693 = vpack.c.b16 %v5647, %v5645
    %v5694 = vpack.c.b16 %v5648, %v5646
    %v5695 = vpack.c.b16 %v5651, %v5649
    %v5696 = vpack.c.b16 %v5652, %v5650
    %v5697 = vpack.c.b16 %v5655, %v5653
    %v5698 = vpack.c.b16 %v5656, %v5654
    %v5699 = vpack.c.b16 %v5659, %v5657
    %v5700 = vpack.c.b16 %v5660, %v5658
    %v5701 = vpack.c.b16 %v5663, %v5661
    %v5702 = vpack.c.b16 %v5664, %v5662
    %v5703 = vpack.c.b16 %v5667, %v5665
    %v5704 = vpack.c.b16 %v5668, %v5666
    %v5705 = vpack.c.b16 %v5671, %v5669
    %v5706 = vpack.c.b16 %v5672, %v5670
    %v5707 = vpack.c.b16 %v5675, %v5673
    %v5708 = vpack.c.b16 %v5676, %v5674
    %5741 = vmatprep.subr.bf16.mxu0 %v5678
    %5742 = vmatpush1.bf16.msra.mxu0 %v5677
    %5743 = vmatprep.subr.bf16.mxu0 %v5680
    %5744 = vmatpush1.bf16.msra.mxu0 %v5679
    %5745 = vmatprep.subr.bf16.mxu0 %v5682
    %5746 = vmatpush1.bf16.msra.mxu0 %v5681
    %5747 = vmatprep.subr.bf16.mxu0 %v5684
    %5748 = vmatpush1.bf16.msra.mxu0 %v5683
    %5749 = vmatprep.subr.bf16.mxu0 %v5686
    %5750 = vmatpush1.bf16.msra.mxu0 %v5685
    %5751 = vmatprep.subr.bf16.mxu0 %v5688
    %5752 = vmatpush1.bf16.msra.mxu0 %v5687
    %5753 = vmatprep.subr.bf16.mxu0 %v5690
    %5754 = vmatpush1.bf16.msra.mxu0 %v5689
    %5755 = vmatprep.subr.bf16.mxu0 %v5692
    %5756 = vmatpush1.bf16.msra.mxu0 %v5691
    %5757 = vmatprep.subr.bf16.mxu0 %v5694
    %5758 = vmatpush1.bf16.msra.mxu0 %v5693
    %5759 = vmatprep.subr.bf16.mxu0 %v5696
    %5760 = vmatpush1.bf16.msra.mxu0 %v5695
    %5761 = vmatprep.subr.bf16.mxu0 %v5698
    %5762 = vmatpush1.bf16.msra.mxu0 %v5697
    %5763 = vmatprep.subr.bf16.mxu0 %v5700
    %5764 = vmatpush1.bf16.msra.mxu0 %v5699
    %5765 = vmatprep.subr.bf16.mxu0 %v5702
    %5766 = vmatpush1.bf16.msra.mxu0 %v5701
    %5767 = vmatprep.subr.bf16.mxu0 %v5704
    %5768 = vmatpush1.bf16.msra.mxu0 %v5703
    %5769 = vmatprep.subr.bf16.mxu0 %v5706
    %5770 = vmatpush1.bf16.msra.mxu0 %v5705
    %5771 = vmatprep.subr.bf16.mxu0 %v5708
    %5772 = vmatpush1.bf16.msra.mxu0 %v5707
    %5773 = vmatprep.mubr.bf16.mxu0 %v5536
    %5774 = vmatmul.mubr.bf16.gmra.mrb[0].mxu0 %v5524
    %v5775 = vpop.f32.mrb[0].mxu0
    %v5776 = vadd.f32 0.0, %v5775
    %v5777 = vpop.f32.mrb[0].mxu0
    %v5778 = vadd.f32 0.0, %v5777
    %v5779 = vpop.f32.mrb[0].mxu0
    %v5780 = vadd.f32 0.0, %v5779
    %v5781 = vpop.f32.mrb[0].mxu0
    %v5782 = vadd.f32 0.0, %v5781
    %5783 = vmatprep.mubr.bf16.mxu0 %v5544
    %5784 = vmatmul.mubr.bf16.gmra.mrb[0].mxu0 %v5540
    %v5785 = vpop.f32.mrb[0].mxu0
    %v5786 = vadd.f32 0.0, %v5785
    %v5787 = vpop.f32.mrb[0].mxu0
    %v5788 = vadd.f32 0.0, %v5787
    %v5789 = vpop.f32.mrb[0].mxu0
    %v5790 = vadd.f32 0.0, %v5789
    %v5791 = vpop.f32.mrb[0].mxu0
    %v5792 = vadd.f32 0.0, %v5791
    %5793 = vmatprep.mubr.bf16.mxu0 %v5552
    %5794 = vmatmul.mubr.bf16.gmra.mrb[0].mxu0 %v5548
    %v5795 = vpop.f32.mrb[0].mxu0
    %v5796 = vadd.f32 0.0, %v5795
    %v5797 = vpop.f32.mrb[0].mxu0
    %v5798 = vadd.f32 0.0, %v5797
    %v5799 = vpop.f32.mrb[0].mxu0
    %v5800 = vadd.f32 0.0, %v5799
    %v5801 = vpop.f32.mrb[0].mxu0
    %v5802 = vadd.f32 0.0, %v5801
    %5803 = vmatprep.mubr.bf16.mxu0 %v5570
    %5804 = vmatmul.mubr.bf16.gmra.mrb[0].mxu0 %v5561
    %v5805 = vpop.f32.mrb[0].mxu0
    %v5806 = vadd.f32 0.0, %v5805
    %v5807 = vpop.f32.mrb[0].mxu0
    %v5808 = vadd.f32 0.0, %v5807
    %v5809 = vpop.f32.mrb[0].mxu0
    %v5810 = vadd.f32 0.0, %v5809
    %v5811 = vpop.f32.mrb[0].mxu0
    %v5812 = vadd.f32 0.0, %v5811
    %5813 = vmatprep.mubr.bf16.mxu0 %v5565
    %5814 = vmatmul.mubr.bf16.gmra.mrb[0].mxu0 %v5556
    %v5815 = vpop.f32.mrb[0].mxu0
    %v5816 = vadd.f32 0.0, %v5815
    %v5817 = vpop.f32.mrb[0].mxu0
    %v5818 = vadd.f32 0.0, %v5817
    %v5819 = vpop.f32.mrb[0].mxu0
    %v5820 = vpop.f32.mrb[0].mxu0
    %5821 = vdwg.mxu0
    %v5822 = vadd.f32 %v5462, %v5776
    %v5823 = vadd.f32 %v5463, %v5778
    %v5824 = vadd.f32 %v5464, %v5780
    %v5825 = vadd.f32 %v5465, %v5782
    %v5826 = vadd.f32 %v5466, %v5786
    %v5827 = vadd.f32 %v5467, %v5788
    %v5828 = vadd.f32 %v5468, %v5790
    %v5829 = vadd.f32 %v5469, %v5792
    %v5830 = vadd.f32 %v5470, %v5796
    %v5831 = vadd.f32 %v5471, %v5798
    %v5832 = vadd.f32 %v5472, %v5800
    %v5833 = vadd.f32 %v5473, %v5802
    %v5834 = vadd.f32 %v5474, %v5806
    %v5835 = vadd.f32 %v5475, %v5808
    %v5836 = vadd.f32 %v5476, %v5810
    %v5837 = vadd.f32 %v5477, %v5812
    %v5838 = vadd.f32 %v5478, %v5816
    %v5839 = vadd.f32 %v5479, %v5818
    %v5840 = vld [vmem:[#allocation11] sm:$0x1]
    %v5841 = vld [vmem:[%s13] sm:$0xff]
    %v5842 = vld [vmem:[%s13 + $0x8] sm:$0xff]
    %v5843 = vld [vmem:[%s13 + $0x10] sm:$0xff]
    %v5844 = vld [vmem:[%s13 + $0x18] sm:$0xff]
    %v5845 = vld [vmem:[%s13 + $0x20] sm:$0xff]
    %v5846 = vld [vmem:[%s13 + $0x28] sm:$0xff]
    %v5847 = vld [vmem:[%s13 + $0x30] sm:$0xff]
    %v5848 = vld [vmem:[%s13 + $0x38] sm:$0xff]
    %v5849 = vld [vmem:[%s13 + $0x40] sm:$0xff]
    %v5850 = vld [vmem:[%s13 + $0x48] sm:$0xff]
    %v5851 = vld [vmem:[%s13 + $0x50] sm:$0xff]
    %v5852 = vld [vmem:[%s13 + $0x58] sm:$0xff]
    %v5853 = vld [vmem:[%s13 + $0x60] sm:$0xff]
    %v5854 = vld [vmem:[%s13 + $0x68] sm:$0xff]
    %v5855 = vld [vmem:[%s13 + $0x70] sm:$0xff]
    %v5856 = vld [vmem:[%s13 + $0x78] sm:$0xff]
    %v5857 = vld [vmem:[%s13 + $0x80] sm:$0xff]
    %v5858 = vld [vmem:[%s13 + $0x88] sm:$0xff]
    %v5859 = vld [vmem:[%s13 + $0x90] sm:$0xff]
    %v5860 = vld [vmem:[%s13 + $0x98] sm:$0xff]
    %v5861 = vld [vmem:[%s13 + $0xa0] sm:$0xff]
    %v5862 = vld [vmem:[%s13 + $0xa8] sm:$0xff]
    %v5863 = vld [vmem:[%s13 + $0xb0] sm:$0xff]
    %v5864 = vld [vmem:[%s13 + $0xb8] sm:$0xff]
    %v5865 = vld [vmem:[%s13 + $0xc0] sm:$0xff]
    %v5866 = vld [vmem:[%s13 + $0xc8] sm:$0xff]
    %v5867 = vld [vmem:[%s13 + $0xd0] sm:$0xff]
    %v5868 = vld [vmem:[%s13 + $0xd8] sm:$0xff]
    %v5869 = vld [vmem:[%s13 + $0xe0] sm:$0xff]
    %v5870 = vld [vmem:[%s13 + $0xe8] sm:$0xff]
    %v5871 = vld [vmem:[%s13 + $0xf0] sm:$0xff]
    %v5872 = vld [vmem:[%s13 + $0xf8] sm:$0xff]
    %v5873 = vld [vmem:[%s16] sm:$0xff]
    %v5874 = vld [vmem:[%s16 + $0x8] sm:$0xff]
    %v5875 = vld [vmem:[%s16 + $0x10] sm:$0xff]
    %v5876 = vld [vmem:[%s16 + $0x18] sm:$0xff]
    %v5877 = vld [vmem:[#allocation13] ss:$8 sm:$0x3]
    %s5878 = scalar_lea.vmem [#allocation13], 1
    %v5879 = vld [vmem:[%s5878] ss:$8 sm:$0x3]
    %vm5880 = vcmask 531456
    %v5882 = vsel %vm5880, %v5840, 0
    %vm5884 = vcmask 1040384
    %v5886 = vsel %vm5884, %v5838, 0
    %v5889 = vsel %vm5884, %v5839, 0
    %5891 = vmatprep.subr.mxu0 %v5823
    %5892 = vmatpush1.msra.mxu0 %v5822
    %5893 = vmatprep.subr.mxu0 %v5825
    %5894 = vmatpush1.msra.mxu0 %v5824
    %5895 = vmatprep.subr.mxu0 %v5827
    %5896 = vmatpush1.msra.mxu0 %v5826
    %5897 = vmatprep.subr.mxu0 %v5829
    %5898 = vmatpush1.msra.mxu0 %v5828
    %5899 = vmatprep.subr.mxu0 %v5831
    %5900 = vmatpush1.msra.mxu0 %v5830
    %5901 = vmatprep.subr.mxu0 %v5833
    %5902 = vmatpush1.msra.mxu0 %v5832
    %5903 = vmatprep.subr.mxu0 %v5835
    %5904 = vmatpush1.msra.mxu0 %v5834
    %5905 = vmatprep.subr.mxu0 %v5837
    %5906 = vmatpush1.msra.mxu0 %v5836
    %5907 = vmatprep.subr.mxu0 %v5889
    %5908 = vmatpush1.msra.mxu0 %v5886
    %5909 = vmatprep.subr.mxu0 0.0
    %5910 = vmatpush1.msra.mxu0 0.0
    %5911 = vmatprep.subr.mxu0 0.0
    %5912 = vmatpush1.msra.mxu0 0.0
    %5913 = vmatprep.subr.mxu0 0.0
    %5914 = vmatpush1.msra.mxu0 0.0
    %5915 = vmatprep.subr.mxu0 0.0
    %5916 = vmatpush1.msra.mxu0 0.0
    %5917 = vmatprep.subr.mxu0 0.0
    %5918 = vmatpush1.msra.mxu0 0.0
    %5919 = vmatprep.subr.mxu0 0.0
    %5920 = vmatpush1.msra.mxu0 0.0
    %5921 = vmatprep.subr.mxu0 0.0
    %5922 = vmatpush1.msra.mxu0 0.0
    %5923 = vmatprep.subr.mxu0 0.0
    %5924 = vmatpush1.msra.mxu0 0.0
    %5925 = vmatprep.subr.mxu0 0.0
    %5926 = vmatpush1.msra.mxu0 0.0
    %5927 = vmatprep.subr.mxu0 0.0
    %5928 = vmatpush1.msra.mxu0 0.0
    %5929 = vmatprep.subr.mxu0 0.0
    %5930 = vmatpush1.msra.mxu0 0.0
    %5931 = vmatprep.subr.mxu0 0.0
    %5932 = vmatpush1.msra.mxu0 0.0
    %5933 = vmatprep.subr.mxu0 0.0
    %5934 = vmatpush1.msra.mxu0 0.0
    %5935 = vmatprep.subr.mxu0 0.0
    %5936 = vmatpush1.msra.mxu0 0.0
    %5937 = vmatprep.subr.mxu0 0.0
    %5938 = vmatpush1.msra.mxu0 0.0
    %5939 = vmatprep.subr.mxu0 0.0
    %5940 = vmatpush1.msra.mxu0 0.0
    %5941 = vmatprep.subr.mxu0 0.0
    %5942 = vmatpush1.msra.mxu0 0.0
    %5943 = vmatprep.subr.mxu0 0.0
    %5944 = vmatpush1.msra.mxu0 0.0
    %5945 = vmatprep.subr.mxu0 0.0
    %5946 = vmatpush1.msra.mxu0 0.0
    %5947 = vmatprep.subr.mxu0 0.0
    %5948 = vmatpush1.msra.mxu0 0.0
    %5949 = vmatprep.subr.mxu0 0.0
    %5950 = vmatpush1.msra.mxu0 0.0
    %5951 = vmatprep.subr.mxu0 0.0
    %5952 = vmatpush1.msra.mxu0 0.0
    %5953 = vmatprep.subr.mxu0 0.0
    %5954 = vmatpush1.msra.mxu0 0.0
    %5955 = vmatprep.mubr.f32.mxu0 0.0
    %5956 = vmatmul.mubr.f32.gmra.mrb[0].mxu0 %v5882
    %v5957 = vpop.f32.mrb[0].mxu0
    %v5958 = vadd.f32 0.0, %v5957
    %v5959 = vpop.f32.mrb[0].mxu0
    %v5960 = vadd.f32 0.0, %v5959
    %5961 = vdwg.mxu0
    %5962 = vmatprep.subr.mxu0 0.0
    %5963 = vmatpush1.msra.mxu0 %v5841
    %5964 = vmatprep.subr.mxu0 0.0
    %5965 = vmatpush1.msra.mxu0 %v5842
    %5966 = vmatprep.subr.mxu0 0.0
    %5967 = vmatpush1.msra.mxu0 %v5843
    %5968 = vmatprep.subr.mxu0 0.0
    %5969 = vmatpush1.msra.mxu0 %v5844
    %5970 = vmatprep.subr.mxu0 0.0
    %5971 = vmatpush1.msra.mxu0 %v5845
    %5972 = vmatprep.subr.mxu0 0.0
    %5973 = vmatpush1.msra.mxu0 %v5846
    %5974 = vmatprep.subr.mxu0 0.0
    %5975 = vmatpush1.msra.mxu0 %v5847
    %5976 = vmatprep.subr.mxu0 0.0
    %5977 = vmatpush1.msra.mxu0 %v5848
    %5978 = vmatprep.subr.mxu0 0.0
    %5979 = vmatpush1.msra.mxu0 %v5849
    %5980 = vmatprep.subr.mxu0 0.0
    %5981 = vmatpush1.msra.mxu0 %v5850
    %5982 = vmatprep.subr.mxu0 0.0
    %5983 = vmatpush1.msra.mxu0 %v5851
    %5984 = vmatprep.subr.mxu0 0.0
    %5985 = vmatpush1.msra.mxu0 %v5852
    %5986 = vmatprep.subr.mxu0 0.0
    %5987 = vmatpush1.msra.mxu0 %v5853
    %5988 = vmatprep.subr.mxu0 0.0
    %5989 = vmatpush1.msra.mxu0 %v5854
    %5990 = vmatprep.subr.mxu0 0.0
    %5991 = vmatpush1.msra.mxu0 %v5855
    %5992 = vmatprep.subr.mxu0 0.0
    %5993 = vmatpush1.msra.mxu0 %v5856
    %5994 = vmatprep.subr.mxu0 0.0
    %5995 = vmatpush1.msra.mxu0 %v5857
    %5996 = vmatprep.subr.mxu0 0.0
    %5997 = vmatpush1.msra.mxu0 %v5858
    %5998 = vmatprep.subr.mxu0 0.0
    %5999 = vmatpush1.msra.mxu0 %v5859
    %6000 = vmatprep.subr.mxu0 0.0
    %6001 = vmatpush1.msra.mxu0 %v5860
    %6002 = vmatprep.subr.mxu0 0.0
    %6003 = vmatpush1.msra.mxu0 %v5861
    %6004 = vmatprep.subr.mxu0 0.0
    %6005 = vmatpush1.msra.mxu0 %v5862
    %6006 = vmatprep.subr.mxu0 0.0
    %6007 = vmatpush1.msra.mxu0 %v5863
    %6008 = vmatprep.subr.mxu0 0.0
    %6009 = vmatpush1.msra.mxu0 %v5864
    %6010 = vmatprep.subr.mxu0 0.0
    %6011 = vmatpush1.msra.mxu0 %v5865
    %6012 = vmatprep.subr.mxu0 0.0
    %6013 = vmatpush1.msra.mxu0 %v5866
    %6014 = vmatprep.subr.mxu0 0.0
    %6015 = vmatpush1.msra.mxu0 %v5867
    %6016 = vmatprep.subr.mxu0 0.0
    %6017 = vmatpush1.msra.mxu0 %v5868
    %6018 = vmatprep.subr.mxu0 0.0
    %6019 = vmatpush1.msra.mxu0 %v5869
    %6020 = vmatprep.subr.mxu0 0.0
    %6021 = vmatpush1.msra.mxu0 %v5870
    %6022 = vmatprep.subr.mxu0 0.0
    %6023 = vmatpush1.msra.mxu0 %v5871
    %6024 = vmatprep.subr.mxu0 0.0
    %6025 = vmatpush1.msra.mxu0 %v5872
    %6026 = vmatprep.mubr.f32.mxu0 %v5960
    %6027 = vmatmul.mubr.f32.gmra.mrb[0].mxu0 %v5958
    %v6028 = vpop.f32.mrb[0].mxu0
    %v6029 = vadd.f32 0.0, %v6028
    %v6030 = vpop.f32.mrb[0].mxu0
    %6031 = vdwg.mxu0
    %v6032 = vmul.f32 %v6029, 0.001953125
    %vm6033 = vcmask 130048
    %v6035 = vsel %vm6033, %v6032, 0
    %6037 = vmatprep.subr.mxu0 %v5874
    %6038 = vmatpush1.msra.mxu0 %v5873
    %6039 = vmatprep.subr.mxu0 %v5876
    %6040 = vmatpush1.msra.mxu0 %v5875
    %6041 = vmatprep.subr.mxu0 0.0
    %6042 = vmatpush1.msra.mxu0 0.0
    %6043 = vmatprep.subr.mxu0 0.0
    %6044 = vmatpush1.msra.mxu0 0.0
    %6045 = vmatprep.subr.mxu0 0.0
    %6046 = vmatpush1.msra.mxu0 0.0
    %6047 = vmatprep.subr.mxu0 0.0
    %6048 = vmatpush1.msra.mxu0 0.0
    %6049 = vmatprep.subr.mxu0 0.0
    %6050 = vmatpush1.msra.mxu0 0.0
    %6051 = vmatprep.subr.mxu0 0.0
    %6052 = vmatpush1.msra.mxu0 0.0
    %6053 = vmatprep.subr.mxu0 0.0
    %6054 = vmatpush1.msra.mxu0 0.0
    %6055 = vmatprep.subr.mxu0 0.0
    %6056 = vmatpush1.msra.mxu0 0.0
    %6057 = vmatprep.subr.mxu0 0.0
    %6058 = vmatpush1.msra.mxu0 0.0
    %6059 = vmatprep.subr.mxu0 0.0
    %6060 = vmatpush1.msra.mxu0 0.0
    %6061 = vmatprep.subr.mxu0 0.0
    %6062 = vmatpush1.msra.mxu0 0.0
    %6063 = vmatprep.subr.mxu0 0.0
    %6064 = vmatpush1.msra.mxu0 0.0
    %6065 = vmatprep.subr.mxu0 0.0
    %6066 = vmatpush1.msra.mxu0 0.0
    %6067 = vmatprep.subr.mxu0 0.0
    %6068 = vmatpush1.msra.mxu0 0.0
    %6069 = vmatprep.subr.mxu0 0.0
    %6070 = vmatpush1.msra.mxu0 0.0
    %6071 = vmatprep.subr.mxu0 0.0
    %6072 = vmatpush1.msra.mxu0 0.0
    %6073 = vmatprep.subr.mxu0 0.0
    %6074 = vmatpush1.msra.mxu0 0.0
    %6075 = vmatprep.subr.mxu0 0.0
    %6076 = vmatpush1.msra.mxu0 0.0
    %6077 = vmatprep.subr.mxu0 0.0
    %6078 = vmatpush1.msra.mxu0 0.0
    %6079 = vmatprep.subr.mxu0 0.0
    %6080 = vmatpush1.msra.mxu0 0.0
    %6081 = vmatprep.subr.mxu0 0.0
    %6082 = vmatpush1.msra.mxu0 0.0
    %6083 = vmatprep.subr.mxu0 0.0
    %6084 = vmatpush1.msra.mxu0 0.0
    %6085 = vmatprep.subr.mxu0 0.0
    %6086 = vmatpush1.msra.mxu0 0.0
    %6087 = vmatprep.subr.mxu0 0.0
    %6088 = vmatpush1.msra.mxu0 0.0
    %6089 = vmatprep.subr.mxu0 0.0
    %6090 = vmatpush1.msra.mxu0 0.0
    %6091 = vmatprep.subr.mxu0 0.0
    %6092 = vmatpush1.msra.mxu0 0.0
    %6093 = vmatprep.subr.mxu0 0.0
    %6094 = vmatpush1.msra.mxu0 0.0
    %6095 = vmatprep.subr.mxu0 0.0
    %6096 = vmatpush1.msra.mxu0 0.0
    %6097 = vmatprep.subr.mxu0 0.0
    %6098 = vmatpush1.msra.mxu0 0.0
    %6099 = vmatprep.subr.mxu0 0.0
    %6100 = vmatpush1.msra.mxu0 0.0
    %6101 = vmatprep.mubr.f32.mxu0 0.0
    %6102 = vmatmul.mubr.f32.gmra.mrb[0].mxu0 %v6035
    %v6103 = vpop.f32.mrb[0].mxu0
    %v6104 = vadd.f32 0.0, %v6103
    %v6105 = vpop.f32.mrb[0].mxu0
    %v6106 = vadd.f32 0.0, %v6105
    %6107 = vdwg.mxu0
    %v6108 = vlaneseq
    %v6109 = vshrl.u32 %v6108, 7
    %v6110 = vsub.s32 0, %v6109
    %v6111 = vrot.slane %v6104, %v6110
    %v6112 = vlaneseq
    %v6113 = vshrl.u32 %v6112, 7
    %v6114 = vsub.s32 0, %v6113
    %v6115 = vrot.slane %v6106, %v6114
    %v6116 = vsub.f32 %v5822, %v6111
    %v6117 = vsub.f32 %v5823, %v6115
    %v6118 = vsub.f32 %v5824, %v6111
    %v6119 = vsub.f32 %v5825, %v6115
    %v6120 = vsub.f32 %v5826, %v6111
    %v6121 = vsub.f32 %v5827, %v6115
    %v6122 = vsub.f32 %v5828, %v6111
    %v6123 = vsub.f32 %v5829, %v6115
    %v6124 = vsub.f32 %v5830, %v6111
    %v6125 = vsub.f32 %v5831, %v6115
    %v6126 = vsub.f32 %v5832, %v6111
    %v6127 = vsub.f32 %v5833, %v6115
    %v6128 = vsub.f32 %v5834, %v6111
    %v6129 = vsub.f32 %v5835, %v6115
    %v6130 = vsub.f32 %v5836, %v6111
    %v6131 = vsub.f32 %v5837, %v6115
    %v6132 = vsub.f32 %v5838, %v6111
    %v6133 = vsub.f32 %v5839, %v6115
    %v6134 = vmul.f32 %v6116, %v6116
    %v6135 = vmul.f32 %v6117, %v6117
    %v6136 = vmul.f32 %v6118, %v6118
    %v6137 = vmul.f32 %v6119, %v6119
    %v6138 = vmul.f32 %v6120, %v6120
    %v6139 = vmul.f32 %v6121, %v6121
    %v6140 = vmul.f32 %v6122, %v6122
    %v6141 = vmul.f32 %v6123, %v6123
    %v6142 = vmul.f32 %v6124, %v6124
    %v6143 = vmul.f32 %v6125, %v6125
    %v6144 = vmul.f32 %v6126, %v6126
    %v6145 = vmul.f32 %v6127, %v6127
    %v6146 = vmul.f32 %v6128, %v6128
    %v6147 = vmul.f32 %v6129, %v6129
    %v6148 = vmul.f32 %v6130, %v6130
    %v6149 = vmul.f32 %v6131, %v6131
    %v6150 = vmul.f32 %v6132, %v6132
    %v6151 = vmul.f32 %v6133, %v6133
    %v6153 = vsel %vm5884, %v6150, 0
    %v6156 = vsel %vm5884, %v6151, 0
    %6158 = vmatprep.subr.mxu0 %v6135
    %6159 = vmatpush1.msra.mxu0 %v6134
    %6160 = vmatprep.subr.mxu0 %v6137
    %6161 = vmatpush1.msra.mxu0 %v6136
    %6162 = vmatprep.subr.mxu0 %v6139
    %6163 = vmatpush1.msra.mxu0 %v6138
    %6164 = vmatprep.subr.mxu0 %v6141
    %6165 = vmatpush1.msra.mxu0 %v6140
    %6166 = vmatprep.subr.mxu0 %v6143
    %6167 = vmatpush1.msra.mxu0 %v6142
    %6168 = vmatprep.subr.mxu0 %v6145
    %6169 = vmatpush1.msra.mxu0 %v6144
    %6170 = vmatprep.subr.mxu0 %v6147
    %6171 = vmatpush1.msra.mxu0 %v6146
    %6172 = vmatprep.subr.mxu0 %v6149
    %6173 = vmatpush1.msra.mxu0 %v6148
    %6174 = vmatprep.subr.mxu0 %v6156
    %6175 = vmatpush1.msra.mxu0 %v6153
    %6176 = vmatprep.subr.mxu0 0.0
    %6177 = vmatpush1.msra.mxu0 0.0
    %6178 = vmatprep.subr.mxu0 0.0
    %6179 = vmatpush1.msra.mxu0 0.0
    %6180 = vmatprep.subr.mxu0 0.0
    %6181 = vmatpush1.msra.mxu0 0.0
    %6182 = vmatprep.subr.mxu0 0.0
    %6183 = vmatpush1.msra.mxu0 0.0
    %6184 = vmatprep.subr.mxu0 0.0
    %6185 = vmatpush1.msra.mxu0 0.0
    %6186 = vmatprep.subr.mxu0 0.0
    %6187 = vmatpush1.msra.mxu0 0.0
    %6188 = vmatprep.subr.mxu0 0.0
    %6189 = vmatpush1.msra.mxu0 0.0
    %6190 = vmatprep.subr.mxu0 0.0
    %6191 = vmatpush1.msra.mxu0 0.0
    %6192 = vmatprep.subr.mxu0 0.0
    %6193 = vmatpush1.msra.mxu0 0.0
    %6194 = vmatprep.subr.mxu0 0.0
    %6195 = vmatpush1.msra.mxu0 0.0
    %6196 = vmatprep.subr.mxu0 0.0
    %6197 = vmatpush1.msra.mxu0 0.0
    %6198 = vmatprep.subr.mxu0 0.0
    %6199 = vmatpush1.msra.mxu0 0.0
    %6200 = vmatprep.subr.mxu0 0.0
    %6201 = vmatpush1.msra.mxu0 0.0
    %6202 = vmatprep.subr.mxu0 0.0
    %6203 = vmatpush1.msra.mxu0 0.0
    %6204 = vmatprep.subr.mxu0 0.0
    %6205 = vmatpush1.msra.mxu0 0.0
    %6206 = vmatprep.subr.mxu0 0.0
    %6207 = vmatpush1.msra.mxu0 0.0
    %6208 = vmatprep.subr.mxu0 0.0
    %6209 = vmatpush1.msra.mxu0 0.0
    %6210 = vmatprep.subr.mxu0 0.0
    %6211 = vmatpush1.msra.mxu0 0.0
    %6212 = vmatprep.subr.mxu0 0.0
    %6213 = vmatpush1.msra.mxu0 0.0
    %6214 = vmatprep.subr.mxu0 0.0
    %6215 = vmatpush1.msra.mxu0 0.0
    %6216 = vmatprep.subr.mxu0 0.0
    %6217 = vmatpush1.msra.mxu0 0.0
    %6218 = vmatprep.subr.mxu0 0.0
    %6219 = vmatpush1.msra.mxu0 0.0
    %6220 = vmatprep.subr.mxu0 0.0
    %6221 = vmatpush1.msra.mxu0 0.0
    %6222 = vmatprep.mubr.f32.mxu0 0.0
    %6223 = vmatmul.mubr.f32.gmra.mrb[0].mxu0 %v5882
    %v6224 = vpop.f32.mrb[0].mxu0
    %v6225 = vadd.f32 0.0, %v6224
    %v6226 = vpop.f32.mrb[0].mxu0
    %v6227 = vadd.f32 0.0, %v6226
    %6228 = vdwg.mxu0
    %6229 = vmatprep.subr.mxu0 0.0
    %6230 = vmatpush1.msra.mxu0 %v5841
    %6231 = vmatprep.subr.mxu0 0.0
    %6232 = vmatpush1.msra.mxu0 %v5842
    %6233 = vmatprep.subr.mxu0 0.0
    %6234 = vmatpush1.msra.mxu0 %v5843
    %6235 = vmatprep.subr.mxu0 0.0
    %6236 = vmatpush1.msra.mxu0 %v5844
    %6237 = vmatprep.subr.mxu0 0.0
    %6238 = vmatpush1.msra.mxu0 %v5845
    %6239 = vmatprep.subr.mxu0 0.0
    %6240 = vmatpush1.msra.mxu0 %v5846
    %6241 = vmatprep.subr.mxu0 0.0
    %6242 = vmatpush1.msra.mxu0 %v5847
    %6243 = vmatprep.subr.mxu0 0.0
    %6244 = vmatpush1.msra.mxu0 %v5848
    %6245 = vmatprep.subr.mxu0 0.0
    %6246 = vmatpush1.msra.mxu0 %v5849
    %6247 = vmatprep.subr.mxu0 0.0
    %6248 = vmatpush1.msra.mxu0 %v5850
    %6249 = vmatprep.subr.mxu0 0.0
    %6250 = vmatpush1.msra.mxu0 %v5851
    %6251 = vmatprep.subr.mxu0 0.0
    %6252 = vmatpush1.msra.mxu0 %v5852
    %6253 = vmatprep.subr.mxu0 0.0
    %6254 = vmatpush1.msra.mxu0 %v5853
    %6255 = vmatprep.subr.mxu0 0.0
    %6256 = vmatpush1.msra.mxu0 %v5854
    %6257 = vmatprep.subr.mxu0 0.0
    %6258 = vmatpush1.msra.mxu0 %v5855
    %6259 = vmatprep.subr.mxu0 0.0
    %6260 = vmatpush1.msra.mxu0 %v5856
    %6261 = vmatprep.subr.mxu0 0.0
    %6262 = vmatpush1.msra.mxu0 %v5857
    %6263 = vmatprep.subr.mxu0 0.0
    %6264 = vmatpush1.msra.mxu0 %v5858
    %6265 = vmatprep.subr.mxu0 0.0
    %6266 = vmatpush1.msra.mxu0 %v5859
    %6267 = vmatprep.subr.mxu0 0.0
    %6268 = vmatpush1.msra.mxu0 %v5860
    %6269 = vmatprep.subr.mxu0 0.0
    %6270 = vmatpush1.msra.mxu0 %v5861
    %6271 = vmatprep.subr.mxu0 0.0
    %6272 = vmatpush1.msra.mxu0 %v5862
    %6273 = vmatprep.subr.mxu0 0.0
    %6274 = vmatpush1.msra.mxu0 %v5863
    %6275 = vmatprep.subr.mxu0 0.0
    %6276 = vmatpush1.msra.mxu0 %v5864
    %6277 = vmatprep.subr.mxu0 0.0
    %6278 = vmatpush1.msra.mxu0 %v5865
    %6279 = vmatprep.subr.mxu0 0.0
    %6280 = vmatpush1.msra.mxu0 %v5866
    %6281 = vmatprep.subr.mxu0 0.0
    %6282 = vmatpush1.msra.mxu0 %v5867
    %6283 = vmatprep.subr.mxu0 0.0
    %6284 = vmatpush1.msra.mxu0 %v5868
    %6285 = vmatprep.subr.mxu0 0.0
    %6286 = vmatpush1.msra.mxu0 %v5869
    %6287 = vmatprep.subr.mxu0 0.0
    %6288 = vmatpush1.msra.mxu0 %v5870
    %6289 = vmatprep.subr.mxu0 0.0
    %6290 = vmatpush1.msra.mxu0 %v5871
    %6291 = vmatprep.subr.mxu0 0.0
    %6292 = vmatpush1.msra.mxu0 %v5872
    %6293 = vmatprep.mubr.f32.mxu0 %v6227
    %6294 = vmatmul.mubr.f32.gmra.mrb[0].mxu0 %v6225
    %v6295 = vpop.f32.mrb[0].mxu0
    %v6296 = vadd.f32 0.0, %v6295
    %v6297 = vpop.f32.mrb[0].mxu0
    %6298 = vdwg.mxu0
    %v6299 = vmul.f32 %v6296, 0.001953125
    %v6300 = vadd.f32 %v6299, 1e-05
    %v6301 = vrsqrt.pop %v6300
    %v6303 = vsel %vm6033, %v6301, 0
    %6305 = vmatprep.subr.mxu0 %v5874
    %6306 = vmatpush1.msra.mxu0 %v5873
    %6307 = vmatprep.subr.mxu0 %v5876
    %6308 = vmatpush1.msra.mxu0 %v5875
    %6309 = vmatprep.subr.mxu0 0.0
    %6310 = vmatpush1.msra.mxu0 0.0
    %6311 = vmatprep.subr.mxu0 0.0
    %6312 = vmatpush1.msra.mxu0 0.0
    %6313 = vmatprep.subr.mxu0 0.0
    %6314 = vmatpush1.msra.mxu0 0.0
    %6315 = vmatprep.subr.mxu0 0.0
    %6316 = vmatpush1.msra.mxu0 0.0
    %6317 = vmatprep.subr.mxu0 0.0
    %6318 = vmatpush1.msra.mxu0 0.0
    %6319 = vmatprep.subr.mxu0 0.0
    %6320 = vmatpush1.msra.mxu0 0.0
    %6321 = vmatprep.subr.mxu0 0.0
    %6322 = vmatpush1.msra.mxu0 0.0
    %6323 = vmatprep.subr.mxu0 0.0
    %6324 = vmatpush1.msra.mxu0 0.0
    %6325 = vmatprep.subr.mxu0 0.0
    %6326 = vmatpush1.msra.mxu0 0.0
    %6327 = vmatprep.subr.mxu0 0.0
    %6328 = vmatpush1.msra.mxu0 0.0
    %6329 = vmatprep.subr.mxu0 0.0
    %6330 = vmatpush1.msra.mxu0 0.0
    %6331 = vmatprep.subr.mxu0 0.0
    %6332 = vmatpush1.msra.mxu0 0.0
    %6333 = vmatprep.subr.mxu0 0.0
    %6334 = vmatpush1.msra.mxu0 0.0
    %6335 = vmatprep.subr.mxu0 0.0
    %6336 = vmatpush1.msra.mxu0 0.0
    %6337 = vmatprep.subr.mxu0 0.0
    %6338 = vmatpush1.msra.mxu0 0.0
    %6339 = vmatprep.subr.mxu0 0.0
    %6340 = vmatpush1.msra.mxu0 0.0
    %6341 = vmatprep.subr.mxu0 0.0
    %6342 = vmatpush1.msra.mxu0 0.0
    %6343 = vmatprep.subr.mxu0 0.0
    %6344 = vmatpush1.msra.mxu0 0.0
    %6345 = vmatprep.subr.mxu0 0.0
    %6346 = vmatpush1.msra.mxu0 0.0
    %6347 = vmatprep.subr.mxu0 0.0
    %6348 = vmatpush1.msra.mxu0 0.0
    %6349 = vmatprep.subr.mxu0 0.0
    %6350 = vmatpush1.msra.mxu0 0.0
    %6351 = vmatprep.subr.mxu0 0.0
    %6352 = vmatpush1.msra.mxu0 0.0
    %6353 = vmatprep.subr.mxu0 0.0
    %6354 = vmatpush1.msra.mxu0 0.0
    %6355 = vmatprep.subr.mxu0 0.0
    %6356 = vmatpush1.msra.mxu0 0.0
    %6357 = vmatprep.subr.mxu0 0.0
    %6358 = vmatpush1.msra.mxu0 0.0
    %6359 = vmatprep.subr.mxu0 0.0
    %6360 = vmatpush1.msra.mxu0 0.0
    %6361 = vmatprep.subr.mxu0 0.0
    %6362 = vmatpush1.msra.mxu0 0.0
    %6363 = vmatprep.subr.mxu0 0.0
    %6364 = vmatpush1.msra.mxu0 0.0
    %6365 = vmatprep.subr.mxu0 0.0
    %6366 = vmatpush1.msra.mxu0 0.0
    %6367 = vmatprep.subr.mxu0 0.0
    %6368 = vmatpush1.msra.mxu0 0.0
    %6369 = vmatprep.mubr.f32.mxu0 0.0
    %6370 = vmatmul.mubr.f32.gmra.mrb[0].mxu0 %v6303
    %v6371 = vpop.f32.mrb[0].mxu0
    %v6372 = vadd.f32 0.0, %v6371
    %v6373 = vpop.f32.mrb[0].mxu0
    %v6374 = vadd.f32 0.0, %v6373
    %6375 = vdwg.mxu0
    %v6378 = vcombine.low %v6372, %v6374
    %v6380 = vunpack.c.l.s4 1966171168
    %v6381 = vunpack.c.0.s8 %v6380
    %v6382 = vlaneseq
    %v6383 = vshrl.u32 %v6382, 7
    %v6384 = vsub.s32 %v6381, %v6383
    %v6385 = vrot.slane %v6378, %v6384
    %v6387 = vunpack.c.l.s4 1966171168
    %v6388 = vunpack.c.0.s8 %v6387
    %v6389 = vlaneseq
    %v6390 = vshrl.u32 %v6389, 7
    %v6391 = vsub.s32 %v6388, %v6390
    %v6392 = vrot.slane %v6385, %v6391
    %v6394 = vmul.f32 %v5877, %v6392
    %v6396 = vlaneseq
    %v6397 = vshrl.u32 %v6396, 7
    %v6398 = vsub.s32 0, %v6397
    %v6399 = vrot.slane %v6394, %v6398
    %v6400 = vlaneseq
    %v6401 = vshrl.u32 %v6400, 7
    %v6402 = vsub.s32 1, %v6401
    %v6403 = vrot.slane %v6394, %v6402
    %v6406 = vmul.f32 %v6116, %v6399
    %v6407 = vmul.f32 %v6117, %v6403
    %v6408 = vmul.f32 %v6118, %v6399
    %v6409 = vmul.f32 %v6119, %v6403
    %v6410 = vmul.f32 %v6120, %v6399
    %v6411 = vmul.f32 %v6121, %v6403
    %v6412 = vmul.f32 %v6122, %v6399
    %v6413 = vmul.f32 %v6123, %v6403
    %v6414 = vmul.f32 %v6124, %v6399
    %v6415 = vmul.f32 %v6125, %v6403
    %v6416 = vmul.f32 %v6126, %v6399
    %v6417 = vmul.f32 %v6127, %v6403
    %v6418 = vmul.f32 %v6128, %v6399
    %v6419 = vmul.f32 %v6129, %v6403
    %v6420 = vmul.f32 %v6130, %v6399
    %v6421 = vmul.f32 %v6131, %v6403
    %v6422 = vmul.f32 %v6132, %v6399
    %v6423 = vmul.f32 %v6133, %v6403
    %v6425 = vlaneseq
    %v6426 = vshrl.u32 %v6425, 7
    %v6427 = vsub.s32 0, %v6426
    %v6428 = vrot.slane %v5879, %v6427
    %v6429 = vlaneseq
    %v6430 = vshrl.u32 %v6429, 7
    %v6431 = vsub.s32 1, %v6430
    %v6432 = vrot.slane %v5879, %v6431
    %v6435 = vadd.f32 %v6406, %v6428
    %v6436 = vadd.f32 %v6407, %v6432
    %v6437 = vadd.f32 %v6408, %v6428
    %v6438 = vadd.f32 %v6409, %v6432
    %v6439 = vadd.f32 %v6410, %v6428
    %v6440 = vadd.f32 %v6411, %v6432
    %v6441 = vadd.f32 %v6412, %v6428
    %v6442 = vadd.f32 %v6413, %v6432
    %v6443 = vadd.f32 %v6414, %v6428
    %v6444 = vadd.f32 %v6415, %v6432
    %v6445 = vadd.f32 %v6416, %v6428
    %v6446 = vadd.f32 %v6417, %v6432
    %v6447 = vadd.f32 %v6418, %v6428
    %v6448 = vadd.f32 %v6419, %v6432
    %v6449 = vadd.f32 %v6420, %v6428
    %v6450 = vadd.f32 %v6421, %v6432
    %v6451 = vadd.f32 %v6422, %v6428
    %v6452 = vadd.f32 %v6423, %v6432
    %vm6453 = vcmp.ge.f32.partialorder %v6435, 0.0
    %vm6454 = vcmp.ge.f32.partialorder %v6436, 0.0
    %vm6455 = vcmp.ge.f32.partialorder %v6437, 0.0
    %vm6456 = vcmp.ge.f32.partialorder %v6438, 0.0
    %vm6457 = vcmp.ge.f32.partialorder %v6439, 0.0
    %vm6458 = vcmp.ge.f32.partialorder %v6440, 0.0
    %vm6459 = vcmp.ge.f32.partialorder %v6441, 0.0
    %vm6460 = vcmp.ge.f32.partialorder %v6442, 0.0
    %vm6461 = vcmp.ge.f32.partialorder %v6443, 0.0
    %vm6462 = vcmp.ge.f32.partialorder %v6444, 0.0
    %vm6463 = vcmp.ge.f32.partialorder %v6445, 0.0
    %vm6464 = vcmp.ge.f32.partialorder %v6446, 0.0
    %vm6465 = vcmp.ge.f32.partialorder %v6447, 0.0
    %vm6466 = vcmp.ge.f32.partialorder %v6448, 0.0
    %vm6467 = vcmp.ge.f32.partialorder %v6449, 0.0
    %vm6468 = vcmp.ge.f32.partialorder %v6450, 0.0
    %vm6469 = vcmp.ge.f32.partialorder %v6451, 0.0
    %vm6470 = vcmp.ge.f32.partialorder %v6452, 0.0
    %v6471 = vmul.f32 %v6435, 0.2
    %v6472 = vmul.f32 %v6436, 0.2
    %v6473 = vmul.f32 %v6437, 0.2
    %v6474 = vmul.f32 %v6438, 0.2
    %v6475 = vmul.f32 %v6439, 0.2
    %v6476 = vmul.f32 %v6440, 0.2
    %v6477 = vmul.f32 %v6441, 0.2
    %v6478 = vmul.f32 %v6442, 0.2
    %v6479 = vmul.f32 %v6443, 0.2
    %v6480 = vmul.f32 %v6444, 0.2
    %v6481 = vmul.f32 %v6445, 0.2
    %v6482 = vmul.f32 %v6446, 0.2
    %v6483 = vmul.f32 %v6447, 0.2
    %v6484 = vmul.f32 %v6448, 0.2
    %v6485 = vmul.f32 %v6449, 0.2
    %v6486 = vmul.f32 %v6450, 0.2
    %v6487 = vmul.f32 %v6451, 0.2
    %v6488 = vmul.f32 %v6452, 0.2
    %v6489 = vsel %vm6453, %v6435, %v6471
    %v6490 = vsel %vm6454, %v6436, %v6472
    %v6491 = vsel %vm6455, %v6437, %v6473
    %v6492 = vsel %vm6456, %v6438, %v6474
    %v6493 = vsel %vm6457, %v6439, %v6475
    %v6494 = vsel %vm6458, %v6440, %v6476
    %v6495 = vsel %vm6459, %v6441, %v6477
    %v6496 = vsel %vm6460, %v6442, %v6478
    %v6497 = vsel %vm6461, %v6443, %v6479
    %v6498 = vsel %vm6462, %v6444, %v6480
    %v6499 = vsel %vm6463, %v6445, %v6481
    %v6500 = vsel %vm6464, %v6446, %v6482
    %v6501 = vsel %vm6465, %v6447, %v6483
    %v6502 = vsel %vm6466, %v6448, %v6484
    %v6503 = vsel %vm6467, %v6449, %v6485
    %v6504 = vsel %vm6468, %v6450, %v6486
    %v6505 = vsel %vm6469, %v6451, %v6487
    %v6506 = vsel %vm6470, %v6452, %v6488
    %v6507 = vld [vmem:[#allocation6] sm:$0xf]
    %v6508 = vld [vmem:[#allocation6 + $0x4] sm:$0xf]
    %v6509 = vld [vmem:[#allocation6 + $0x8] sm:$0xf]
    %v6510 = vld [vmem:[#allocation6 + $0xc] sm:$0xf]
    %v6511 = vld [vmem:[#allocation6 + $0x10] sm:$0x3]
    %v6512 = vpack.c.bf16 %v6491, %v6489
    %v6513 = vpack.c.bf16 %v6492, %v6490
    %v6514 = vpack.c.bf16 %v6495, %v6493
    %v6515 = vpack.c.bf16 %v6496, %v6494
    %v6516 = vpack.c.bf16 %v6499, %v6497
    %v6517 = vpack.c.bf16 %v6500, %v6498
    %v6518 = vpack.c.bf16 %v6503, %v6501
    %v6519 = vpack.c.bf16 %v6504, %v6502
    %v6520 = vpack.c.bf16 %v6505, %v6505
    %v6521 = vpack.c.bf16 %v6506, %v6506
    %v6527 = vunpack.c.l.b16 %v6507
    %v6528 = vunpack.c.l.b16 %v6508
    %v6529 = vunpack.c.l.b16 %v6509
    %v6530 = vunpack.c.l.b16 %v6510
    %v6531 = vunpack.c.l.b16 %v6511
    %v6532 = vpack.c.b16 %v6528, %v6527
    %v6533 = vpack.c.b16 %v6530, %v6529
    %v6534 = vpack.c.b16 %v6531, %v6531
    %v6536 = vsel %vm5880, %v6532, 0
    %v6539 = vsel %vm5880, %v6533, 0
    %v6542 = vsel %vm5880, %v6534, 0
    %v6544 = vsel 0, 4294967295, 65535
    %v6545 = vsel %vm5884, %v6544, 0
    %v6547 = vand.u32 %v6520, %v6545
    %v6550 = vand.u32 %v6521, %v6545
    %6552 = vmatprep.subr.bf16.mxu0 %v6513
    %6553 = vmatpush1.bf16.msra.mxu0 %v6512
    %6554 = vmatprep.subr.bf16.mxu0 %v6515
    %6555 = vmatpush1.bf16.msra.mxu0 %v6514
    %6556 = vmatprep.subr.bf16.mxu0 %v6517
    %6557 = vmatpush1.bf16.msra.mxu0 %v6516
    %6558 = vmatprep.subr.bf16.mxu0 %v6519
    %6559 = vmatpush1.bf16.msra.mxu0 %v6518
    %6560 = vmatprep.subr.bf16.mxu0 %v6550
    %6561 = vmatpush1.bf16.msra.mxu0 %v6547
    %6562 = vmatprep.subr.bf16.mxu0 0
    %6563 = vmatpush1.bf16.msra.mxu0 0
    %6564 = vmatprep.subr.bf16.mxu0 0
    %6565 = vmatpush1.bf16.msra.mxu0 0
    %6566 = vmatprep.subr.bf16.mxu0 0
    %6567 = vmatpush1.bf16.msra.mxu0 0
    %6568 = vmatprep.subr.bf16.mxu0 0
    %6569 = vmatpush1.bf16.msra.mxu0 0
    %6570 = vmatprep.subr.bf16.mxu0 0
    %6571 = vmatpush1.bf16.msra.mxu0 0
    %6572 = vmatprep.subr.bf16.mxu0 0
    %6573 = vmatpush1.bf16.msra.mxu0 0
    %6574 = vmatprep.subr.bf16.mxu0 0
    %6575 = vmatpush1.bf16.msra.mxu0 0
    %6576 = vmatprep.subr.bf16.mxu0 0
    %6577 = vmatpush1.bf16.msra.mxu0 0
    %6578 = vmatprep.subr.bf16.mxu0 0
    %6579 = vmatpush1.bf16.msra.mxu0 0
    %6580 = vmatprep.subr.bf16.mxu0 0
    %6581 = vmatpush1.bf16.msra.mxu0 0
    %6582 = vmatprep.subr.bf16.mxu0 0
    %6583 = vmatpush1.bf16.msra.mxu0 0
    %6584 = vmatprep.mubr.bf16.mxu0 0
    %6585 = vmatmul.mubr.bf16.gmra.mrb[0].mxu0 %v6536
    %v6586 = vpop.f32.mrb[0].mxu0
    %v6587 = vadd.f32 0.0, %v6586
    %v6588 = vpop.f32.mrb[0].mxu0
    %v6589 = vadd.f32 0.0, %v6588
    %v6590 = vpop.f32.mrb[0].mxu0
    %v6591 = vadd.f32 0.0, %v6590
    %v6592 = vpop.f32.mrb[0].mxu0
    %v6593 = vadd.f32 0.0, %v6592
    %6594 = vmatprep.mubr.bf16.mxu0 0
    %6595 = vmatmul.mubr.bf16.gmra.mrb[0].mxu0 %v6539
    %v6596 = vpop.f32.mrb[0].mxu0
    %v6597 = vadd.f32 0.0, %v6596
    %v6598 = vpop.f32.mrb[0].mxu0
    %v6599 = vadd.f32 0.0, %v6598
    %v6600 = vpop.f32.mrb[0].mxu0
    %v6601 = vadd.f32 0.0, %v6600
    %v6602 = vpop.f32.mrb[0].mxu0
    %v6603 = vadd.f32 0.0, %v6602
    %6604 = vmatprep.mubr.bf16.mxu0 0
    %6605 = vmatmul.mubr.bf16.gmra.mrb[0].mxu0 %v6542
    %v6606 = vpop.f32.mrb[0].mxu0
    %v6607 = vadd.f32 0.0, %v6606
    %v6608 = vpop.f32.mrb[0].mxu0
    %v6609 = vadd.f32 0.0, %v6608
    %v6610 = vpop.f32.mrb[0].mxu0
    %v6611 = vpop.f32.mrb[0].mxu0
    %6612 = vdwg.mxu0
    %v6613 = vpack.c.bf16 %v6591, %v6587
    %v6614 = vpack.c.bf16 %v6593, %v6589
    %v6615 = vpack.c.bf16 %v6601, %v6597
    %v6616 = vpack.c.bf16 %v6603, %v6599
    %v6617 = vpack.c.bf16 %v6607, %v6607
    %v6618 = vpack.c.bf16 %v6609, %v6609
    %v6625 = vunpack.c.l.b16 %v6613
    %v6626 = vunpack.c.l.b16 %v6614
    %v6627 = vunpack.c.h.b16 %v6613
    %v6628 = vunpack.c.h.b16 %v6614
    %v6629 = vunpack.c.l.b16 %v6615
    %v6630 = vunpack.c.l.b16 %v6616
    %v6631 = vunpack.c.h.b16 %v6615
    %v6632 = vunpack.c.h.b16 %v6616
    %v6633 = vunpack.c.l.b16 %v6617
    %v6634 = vunpack.c.l.b16 %v6618
    %v6635 = vpack.c.b16 %v6626, %v6625
    %v6636 = vpack.c.b16 %v6628, %v6627
    %v6637 = vpack.c.b16 %v6630, %v6629
    %v6638 = vpack.c.b16 %v6632, %v6631
    %v6639 = vpack.c.b16 %v6634, %v6633
    %6645 = vst [vmem:[#allocation3] sm:$0xff] %v6635
    %6646 = vst [vmem:[#allocation3 + $0x8] sm:$0xff] %v6636
    %6647 = vst [vmem:[#allocation3 + $0x10] sm:$0xff] %v6637
    %6648 = vst [vmem:[#allocation3 + $0x18] sm:$0xff] %v6638
    %6649 = vst [vmem:[#allocation3 + $0x20] sm:$0x33] %v6639
    %v6650 = vld [vmem:[#allocation3] sm:$0xff]
    %v6651 = vld [vmem:[#allocation3 + $0x8] sm:$0xff]
    %v6652 = vld [vmem:[#allocation3 + $0x10] sm:$0xff]
    %v6653 = vld [vmem:[#allocation3 + $0x18] sm:$0xff]
    %v6654 = vld [vmem:[#allocation3 + $0x20] sm:$0x11]
    %v6655 = vld [vmem:[%s3] sm:$0xff]
    %v6656 = vld [vmem:[%s3 + $0x8] sm:$0xff]
    %v6657 = vld [vmem:[%s3 + $0x10] sm:$0xff]
    %v6658 = vld [vmem:[%s3 + $0x18] sm:$0xff]
    %v6659 = vld [vmem:[%s3 + $0x20] sm:$0xff]
    %v6660 = vld [vmem:[%s3 + $0x28] sm:$0xff]
    %v6661 = vld [vmem:[%s3 + $0x30] sm:$0xff]
    %v6662 = vld [vmem:[%s3 + $0x38] sm:$0xff]
    %v6663 = vld [vmem:[%s3 + $0x40] sm:$0xff]
    %v6664 = vld [vmem:[%s3 + $0x48] sm:$0xff]
    %v6665 = vld [vmem:[%s3 + $0x50] sm:$0xff]
    %v6666 = vld [vmem:[%s3 + $0x58] sm:$0xff]
    %v6667 = vld [vmem:[%s3 + $0x60] sm:$0xff]
    %v6668 = vld [vmem:[%s3 + $0x68] sm:$0xff]
    %v6669 = vld [vmem:[%s3 + $0x70] sm:$0xff]
    %v6670 = vld [vmem:[%s3 + $0x78] sm:$0xff]
    %v6671 = vld [vmem:[%s3 + $0x80] sm:$0xff]
    %v6672 = vld [vmem:[%s3 + $0x88] sm:$0xff]
    %v6673 = vld [vmem:[%s3 + $0x90] sm:$0xff]
    %v6674 = vld [vmem:[%s3 + $0x98] sm:$0xff]
    %v6675 = vld [vmem:[%s3 + $0xa0] sm:$0xff]
    %v6676 = vld [vmem:[%s3 + $0xa8] sm:$0xff]
    %v6677 = vld [vmem:[%s3 + $0xb0] sm:$0xff]
    %v6678 = vld [vmem:[%s3 + $0xb8] sm:$0xff]
    %v6679 = vld [vmem:[%s3 + $0xc0] sm:$0xff]
    %v6680 = vld [vmem:[%s3 + $0xc8] sm:$0xff]
    %v6681 = vld [vmem:[%s3 + $0xd0] sm:$0xff]
    %v6682 = vld [vmem:[%s3 + $0xd8] sm:$0xff]
    %v6683 = vld [vmem:[%s3 + $0xe0] sm:$0xff]
    %v6684 = vld [vmem:[%s3 + $0xe8] sm:$0xff]
    %v6685 = vld [vmem:[%s3 + $0xf0] sm:$0xff]
    %v6686 = vld [vmem:[%s3 + $0xf8] sm:$0xff]
    %s6687 = scalar_lea.vmem %s3, 256
    %v6688 = vld [vmem:[%s6687] sm:$0xff]
    %v6689 = vld [vmem:[%s6687 + $0x8] sm:$0xff]
    %v6690 = vld [vmem:[%s6687 + $0x10] sm:$0xff]
    %v6691 = vld [vmem:[%s6687 + $0x18] sm:$0xff]
    %v6692 = vld [vmem:[%s6687 + $0x20] sm:$0xff]
    %v6693 = vld [vmem:[%s6687 + $0x28] sm:$0xff]
    %v6694 = vld [vmem:[%s6687 + $0x30] sm:$0xff]
    %v6695 = vld [vmem:[%s6687 + $0x38] sm:$0xff]
    %v6696 = vld [vmem:[%s6687 + $0x40] sm:$0xff]
    %v6697 = vld [vmem:[%s6687 + $0x48] sm:$0xff]
    %v6698 = vld [vmem:[%s6687 + $0x50] sm:$0xff]
    %v6699 = vld [vmem:[%s6687 + $0x58] sm:$0xff]
    %v6700 = vld [vmem:[%s6687 + $0x60] sm:$0xff]
    %v6701 = vld [vmem:[%s6687 + $0x68] sm:$0xff]
    %v6702 = vld [vmem:[%s6687 + $0x70] sm:$0xff]
    %v6703 = vld [vmem:[%s6687 + $0x78] sm:$0xff]
    %v6704 = vld [vmem:[%s6687 + $0x80] sm:$0xff]
    %v6705 = vld [vmem:[%s6687 + $0x88] sm:$0xff]
    %v6706 = vld [vmem:[%s6687 + $0x90] sm:$0xff]
    %v6707 = vld [vmem:[%s6687 + $0x98] sm:$0xff]
    %v6708 = vld [vmem:[%s6687 + $0xa0] sm:$0xff]
    %v6709 = vld [vmem:[%s6687 + $0xa8] sm:$0xff]
    %v6710 = vld [vmem:[%s6687 + $0xb0] sm:$0xff]
    %v6711 = vld [vmem:[%s6687 + $0xb8] sm:$0xff]
    %v6712 = vld [vmem:[%s6687 + $0xc0] sm:$0xff]
    %v6713 = vld [vmem:[%s6687 + $0xc8] sm:$0xff]
    %v6714 = vld [vmem:[%s6687 + $0xd0] sm:$0xff]
    %v6715 = vld [vmem:[%s6687 + $0xd8] sm:$0xff]
    %v6716 = vld [vmem:[%s6687 + $0xe0] sm:$0xff]
    %v6717 = vld [vmem:[%s6687 + $0xe8] sm:$0xff]
    %v6718 = vld [vmem:[%s6687 + $0xf0] sm:$0xff]
    %v6719 = vld [vmem:[%s6687 + $0xf8] sm:$0xff]
    %v6725 = vunpack.c.l.b16 %v6650
    %v6726 = vunpack.c.h.b16 %v6650
    %v6727 = vunpack.c.l.b16 %v6651
    %v6728 = vunpack.c.h.b16 %v6651
    %v6729 = vunpack.c.l.b16 %v6652
    %v6730 = vunpack.c.h.b16 %v6652
    %v6731 = vunpack.c.l.b16 %v6653
    %v6732 = vunpack.c.h.b16 %v6653
    %v6733 = vunpack.c.l.b16 %v6654
    %v6734 = vunpack.c.h.b16 %v6654
    %v6735 = vpack.c.b16 %v6727, %v6725
    %v6736 = vpack.c.b16 %v6728, %v6726
    %v6737 = vpack.c.b16 %v6731, %v6729
    %v6738 = vpack.c.b16 %v6732, %v6730
    %v6739 = vpack.c.b16 %v6733, %v6733
    %v6740 = vpack.c.b16 %v6734, %v6734
    %v6742 = vshrl.u32 %v6735, 16
    %v6744 = vshll.u32 %v6735, 16
    %v6746 = vrot.slane %v6744, 1
    %v6747 = vor.u32 %v6742, %v6746
    %v6749 = vshll.u32 %v6737, 16
    %v6751 = vrot.slane %v6749, 1
    %v6752 = vsel %vm437, %v6747, %v6751
    %v6754 = vshrl.u32 %v6736, 16
    %v6756 = vshll.u32 %v6736, 16
    %v6758 = vrot.slane %v6756, 1
    %v6759 = vor.u32 %v6754, %v6758
    %v6761 = vshll.u32 %v6738, 16
    %v6763 = vrot.slane %v6761, 1
    %v6764 = vsel %vm437, %v6759, %v6763
    %v6765 = vshrl.u32 %v6737, 16
    %v6767 = vor.u32 %v6765, %v6751
    %v6769 = vshll.u32 %v6739, 16
    %v6771 = vrot.slane %v6769, 1
    %v6772 = vsel %vm437, %v6767, %v6771
    %v6773 = vshrl.u32 %v6738, 16
    %v6775 = vor.u32 %v6773, %v6763
    %v6777 = vshll.u32 %v6740, 16
    %v6779 = vrot.slane %v6777, 1
    %v6780 = vsel %vm437, %v6775, %v6779
    %v6781 = vshrl.u32 %v6739, 16
    %v6783 = vshrl.u32 %v6740, 16
    %v6823 = vunpack.c.l.b16 %v6688
    %v6824 = vunpack.c.h.b16 %v6688
    %v6825 = vunpack.c.l.b16 %v6689
    %v6826 = vunpack.c.h.b16 %v6689
    %v6827 = vunpack.c.l.b16 %v6690
    %v6828 = vunpack.c.h.b16 %v6690
    %v6829 = vunpack.c.l.b16 %v6691
    %v6830 = vunpack.c.h.b16 %v6691
    %v6831 = vunpack.c.l.b16 %v6692
    %v6832 = vunpack.c.h.b16 %v6692
    %v6833 = vunpack.c.l.b16 %v6693
    %v6834 = vunpack.c.h.b16 %v6693
    %v6835 = vunpack.c.l.b16 %v6694
    %v6836 = vunpack.c.h.b16 %v6694
    %v6837 = vunpack.c.l.b16 %v6695
    %v6838 = vunpack.c.h.b16 %v6695
    %v6839 = vunpack.c.l.b16 %v6696
    %v6840 = vunpack.c.h.b16 %v6696
    %v6841 = vunpack.c.l.b16 %v6697
    %v6842 = vunpack.c.h.b16 %v6697
    %v6843 = vunpack.c.l.b16 %v6698
    %v6844 = vunpack.c.h.b16 %v6698
    %v6845 = vunpack.c.l.b16 %v6699
    %v6846 = vunpack.c.h.b16 %v6699
    %v6847 = vunpack.c.l.b16 %v6700
    %v6848 = vunpack.c.h.b16 %v6700
    %v6849 = vunpack.c.l.b16 %v6701
    %v6850 = vunpack.c.h.b16 %v6701
    %v6851 = vunpack.c.l.b16 %v6702
    %v6852 = vunpack.c.h.b16 %v6702
    %v6853 = vunpack.c.l.b16 %v6703
    %v6854 = vunpack.c.h.b16 %v6703
    %v6855 = vunpack.c.l.b16 %v6704
    %v6856 = vunpack.c.h.b16 %v6704
    %v6857 = vunpack.c.l.b16 %v6705
    %v6858 = vunpack.c.h.b16 %v6705
    %v6859 = vunpack.c.l.b16 %v6706
    %v6860 = vunpack.c.h.b16 %v6706
    %v6861 = vunpack.c.l.b16 %v6707
    %v6862 = vunpack.c.h.b16 %v6707
    %v6863 = vunpack.c.l.b16 %v6708
    %v6864 = vunpack.c.h.b16 %v6708
    %v6865 = vunpack.c.l.b16 %v6709
    %v6866 = vunpack.c.h.b16 %v6709
    %v6867 = vunpack.c.l.b16 %v6710
    %v6868 = vunpack.c.h.b16 %v6710
    %v6869 = vunpack.c.l.b16 %v6711
    %v6870 = vunpack.c.h.b16 %v6711
    %v6871 = vunpack.c.l.b16 %v6712
    %v6872 = vunpack.c.h.b16 %v6712
    %v6873 = vunpack.c.l.b16 %v6713
    %v6874 = vunpack.c.h.b16 %v6713
    %v6875 = vunpack.c.l.b16 %v6714
    %v6876 = vunpack.c.h.b16 %v6714
    %v6877 = vunpack.c.l.b16 %v6715
    %v6878 = vunpack.c.h.b16 %v6715
    %v6879 = vunpack.c.l.b16 %v6716
    %v6880 = vunpack.c.h.b16 %v6716
    %v6881 = vunpack.c.l.b16 %v6717
    %v6882 = vunpack.c.h.b16 %v6717
    %v6883 = vunpack.c.l.b16 %v6718
    %v6884 = vunpack.c.h.b16 %v6718
    %v6885 = vunpack.c.l.b16 %v6719
    %v6886 = vunpack.c.h.b16 %v6719
    %v6887 = vpack.c.b16 %v6825, %v6823
    %v6888 = vpack.c.b16 %v6826, %v6824
    %v6889 = vpack.c.b16 %v6829, %v6827
    %v6890 = vpack.c.b16 %v6830, %v6828
    %v6891 = vpack.c.b16 %v6833, %v6831
    %v6892 = vpack.c.b16 %v6834, %v6832
    %v6893 = vpack.c.b16 %v6837, %v6835
    %v6894 = vpack.c.b16 %v6838, %v6836
    %v6895 = vpack.c.b16 %v6841, %v6839
    %v6896 = vpack.c.b16 %v6842, %v6840
    %v6897 = vpack.c.b16 %v6845, %v6843
    %v6898 = vpack.c.b16 %v6846, %v6844
    %v6899 = vpack.c.b16 %v6849, %v6847
    %v6900 = vpack.c.b16 %v6850, %v6848
    %v6901 = vpack.c.b16 %v6853, %v6851
    %v6902 = vpack.c.b16 %v6854, %v6852
    %v6903 = vpack.c.b16 %v6857, %v6855
    %v6904 = vpack.c.b16 %v6858, %v6856
    %v6905 = vpack.c.b16 %v6861, %v6859
    %v6906 = vpack.c.b16 %v6862, %v6860
    %v6907 = vpack.c.b16 %v6865, %v6863
    %v6908 = vpack.c.b16 %v6866, %v6864
    %v6909 = vpack.c.b16 %v6869, %v6867
    %v6910 = vpack.c.b16 %v6870, %v6868
    %v6911 = vpack.c.b16 %v6873, %v6871
    %v6912 = vpack.c.b16 %v6874, %v6872
    %v6913 = vpack.c.b16 %v6877, %v6875
    %v6914 = vpack.c.b16 %v6878, %v6876
    %v6915 = vpack.c.b16 %v6881, %v6879
    %v6916 = vpack.c.b16 %v6882, %v6880
    %v6917 = vpack.c.b16 %v6885, %v6883
    %v6918 = vpack.c.b16 %v6886, %v6884
    %6951 = vmatprep.subr.bf16.mxu0 %v6888
    %6952 = vmatpush1.bf16.msra.mxu0 %v6887
    %6953 = vmatprep.subr.bf16.mxu0 %v6890
    %6954 = vmatpush1.bf16.msra.mxu0 %v6889
    %6955 = vmatprep.subr.bf16.mxu0 %v6892
    %6956 = vmatpush1.bf16.msra.mxu0 %v6891
    %6957 = vmatprep.subr.bf16.mxu0 %v6894
    %6958 = vmatpush1.bf16.msra.mxu0 %v6893
    %6959 = vmatprep.subr.bf16.mxu0 %v6896
    %6960 = vmatpush1.bf16.msra.mxu0 %v6895
    %6961 = vmatprep.subr.bf16.mxu0 %v6898
    %6962 = vmatpush1.bf16.msra.mxu0 %v6897
    %6963 = vmatprep.subr.bf16.mxu0 %v6900
    %6964 = vmatpush1.bf16.msra.mxu0 %v6899
    %6965 = vmatprep.subr.bf16.mxu0 %v6902
    %6966 = vmatpush1.bf16.msra.mxu0 %v6901
    %6967 = vmatprep.subr.bf16.mxu0 %v6904
    %6968 = vmatpush1.bf16.msra.mxu0 %v6903
    %6969 = vmatprep.subr.bf16.mxu0 %v6906
    %6970 = vmatpush1.bf16.msra.mxu0 %v6905
    %6971 = vmatprep.subr.bf16.mxu0 %v6908
    %6972 = vmatpush1.bf16.msra.mxu0 %v6907
    %6973 = vmatprep.subr.bf16.mxu0 %v6910
    %6974 = vmatpush1.bf16.msra.mxu0 %v6909
    %6975 = vmatprep.subr.bf16.mxu0 %v6912
    %6976 = vmatpush1.bf16.msra.mxu0 %v6911
    %6977 = vmatprep.subr.bf16.mxu0 %v6914
    %6978 = vmatpush1.bf16.msra.mxu0 %v6913
    %6979 = vmatprep.subr.bf16.mxu0 %v6916
    %6980 = vmatpush1.bf16.msra.mxu0 %v6915
    %6981 = vmatprep.subr.bf16.mxu0 %v6918
    %6982 = vmatpush1.bf16.msra.mxu0 %v6917
    %6983 = vmatprep.mubr.bf16.mxu0 %v6764
    %6984 = vmatmul.mubr.bf16.gmra.mrb[0].mxu0 %v6752
    %v6985 = vpop.f32.mrb[0].mxu0
    %v6986 = vadd.f32 0.0, %v6985
    %v6987 = vpop.f32.mrb[0].mxu0
    %v6988 = vadd.f32 0.0, %v6987
    %v6989 = vpop.f32.mrb[0].mxu0
    %v6990 = vadd.f32 0.0, %v6989
    %v6991 = vpop.f32.mrb[0].mxu0
    %v6992 = vadd.f32 0.0, %v6991
    %6993 = vmatprep.mubr.bf16.mxu0 %v6780
    %6994 = vmatmul.mubr.bf16.gmra.mrb[0].mxu0 %v6772
    %v6995 = vpop.f32.mrb[0].mxu0
    %v6996 = vadd.f32 0.0, %v6995
    %v6997 = vpop.f32.mrb[0].mxu0
    %v6998 = vadd.f32 0.0, %v6997
    %v6999 = vpop.f32.mrb[0].mxu0
    %v7000 = vadd.f32 0.0, %v6999
    %v7001 = vpop.f32.mrb[0].mxu0
    %v7002 = vadd.f32 0.0, %v7001
    %7003 = vmatprep.mubr.bf16.mxu0 %v6783
    %7004 = vmatmul.mubr.bf16.gmra.mrb[0].mxu0 %v6781
    %v7005 = vpop.f32.mrb[0].mxu0
    %v7006 = vadd.f32 0.0, %v7005
    %v7007 = vpop.f32.mrb[0].mxu0
    %v7008 = vadd.f32 0.0, %v7007
    %v7009 = vpop.f32.mrb[0].mxu0
    %v7010 = vpop.f32.mrb[0].mxu0
    %7011 = vdwg.mxu0
    %v7050 = vunpack.c.l.b16 %v6655
    %v7051 = vunpack.c.h.b16 %v6655
    %v7052 = vunpack.c.l.b16 %v6656
    %v7053 = vunpack.c.h.b16 %v6656
    %v7054 = vunpack.c.l.b16 %v6657
    %v7055 = vunpack.c.h.b16 %v6657
    %v7056 = vunpack.c.l.b16 %v6658
    %v7057 = vunpack.c.h.b16 %v6658
    %v7058 = vunpack.c.l.b16 %v6659
    %v7059 = vunpack.c.h.b16 %v6659
    %v7060 = vunpack.c.l.b16 %v6660
    %v7061 = vunpack.c.h.b16 %v6660
    %v7062 = vunpack.c.l.b16 %v6661
    %v7063 = vunpack.c.h.b16 %v6661
    %v7064 = vunpack.c.l.b16 %v6662
    %v7065 = vunpack.c.h.b16 %v6662
    %v7066 = vunpack.c.l.b16 %v6663
    %v7067 = vunpack.c.h.b16 %v6663
    %v7068 = vunpack.c.l.b16 %v6664
    %v7069 = vunpack.c.h.b16 %v6664
    %v7070 = vunpack.c.l.b16 %v6665
    %v7071 = vunpack.c.h.b16 %v6665
    %v7072 = vunpack.c.l.b16 %v6666
    %v7073 = vunpack.c.h.b16 %v6666
    %v7074 = vunpack.c.l.b16 %v6667
    %v7075 = vunpack.c.h.b16 %v6667
    %v7076 = vunpack.c.l.b16 %v6668
    %v7077 = vunpack.c.h.b16 %v6668
    %v7078 = vunpack.c.l.b16 %v6669
    %v7079 = vunpack.c.h.b16 %v6669
    %v7080 = vunpack.c.l.b16 %v6670
    %v7081 = vunpack.c.h.b16 %v6670
    %v7082 = vunpack.c.l.b16 %v6671
    %v7083 = vunpack.c.h.b16 %v6671
    %v7084 = vunpack.c.l.b16 %v6672
    %v7085 = vunpack.c.h.b16 %v6672
    %v7086 = vunpack.c.l.b16 %v6673
    %v7087 = vunpack.c.h.b16 %v6673
    %v7088 = vunpack.c.l.b16 %v6674
    %v7089 = vunpack.c.h.b16 %v6674
    %v7090 = vunpack.c.l.b16 %v6675
    %v7091 = vunpack.c.h.b16 %v6675
    %v7092 = vunpack.c.l.b16 %v6676
    %v7093 = vunpack.c.h.b16 %v6676
    %v7094 = vunpack.c.l.b16 %v6677
    %v7095 = vunpack.c.h.b16 %v6677
    %v7096 = vunpack.c.l.b16 %v6678
    %v7097 = vunpack.c.h.b16 %v6678
    %v7098 = vunpack.c.l.b16 %v6679
    %v7099 = vunpack.c.h.b16 %v6679
    %v7100 = vunpack.c.l.b16 %v6680
    %v7101 = vunpack.c.h.b16 %v6680
    %v7102 = vunpack.c.l.b16 %v6681
    %v7103 = vunpack.c.h.b16 %v6681
    %v7104 = vunpack.c.l.b16 %v6682
    %v7105 = vunpack.c.h.b16 %v6682
    %v7106 = vunpack.c.l.b16 %v6683
    %v7107 = vunpack.c.h.b16 %v6683
    %v7108 = vunpack.c.l.b16 %v6684
    %v7109 = vunpack.c.h.b16 %v6684
    %v7110 = vunpack.c.l.b16 %v6685
    %v7111 = vunpack.c.h.b16 %v6685
    %v7112 = vunpack.c.l.b16 %v6686
    %v7113 = vunpack.c.h.b16 %v6686
    %v7114 = vpack.c.b16 %v7052, %v7050
    %v7115 = vpack.c.b16 %v7053, %v7051
    %v7116 = vpack.c.b16 %v7056, %v7054
    %v7117 = vpack.c.b16 %v7057, %v7055
    %v7118 = vpack.c.b16 %v7060, %v7058
    %v7119 = vpack.c.b16 %v7061, %v7059
    %v7120 = vpack.c.b16 %v7064, %v7062
    %v7121 = vpack.c.b16 %v7065, %v7063
    %v7122 = vpack.c.b16 %v7068, %v7066
    %v7123 = vpack.c.b16 %v7069, %v7067
    %v7124 = vpack.c.b16 %v7072, %v7070
    %v7125 = vpack.c.b16 %v7073, %v7071
    %v7126 = vpack.c.b16 %v7076, %v7074
    %v7127 = vpack.c.b16 %v7077, %v7075
    %v7128 = vpack.c.b16 %v7080, %v7078
    %v7129 = vpack.c.b16 %v7081, %v7079
    %v7130 = vpack.c.b16 %v7084, %v7082
    %v7131 = vpack.c.b16 %v7085, %v7083
    %v7132 = vpack.c.b16 %v7088, %v7086
    %v7133 = vpack.c.b16 %v7089, %v7087
    %v7134 = vpack.c.b16 %v7092, %v7090
    %v7135 = vpack.c.b16 %v7093, %v7091
    %v7136 = vpack.c.b16 %v7096, %v7094
    %v7137 = vpack.c.b16 %v7097, %v7095
    %v7138 = vpack.c.b16 %v7100, %v7098
    %v7139 = vpack.c.b16 %v7101, %v7099
    %v7140 = vpack.c.b16 %v7104, %v7102
    %v7141 = vpack.c.b16 %v7105, %v7103
    %v7142 = vpack.c.b16 %v7108, %v7106
    %v7143 = vpack.c.b16 %v7109, %v7107
    %v7144 = vpack.c.b16 %v7112, %v7110
    %v7145 = vpack.c.b16 %v7113, %v7111
    %7178 = vmatprep.subr.bf16.mxu0 %v7115
    %7179 = vmatpush1.bf16.msra.mxu0 %v7114
    %7180 = vmatprep.subr.bf16.mxu0 %v7117
    %7181 = vmatpush1.bf16.msra.mxu0 %v7116
    %7182 = vmatprep.subr.bf16.mxu0 %v7119
    %7183 = vmatpush1.bf16.msra.mxu0 %v7118
    %7184 = vmatprep.subr.bf16.mxu0 %v7121
    %7185 = vmatpush1.bf16.msra.mxu0 %v7120
    %7186 = vmatprep.subr.bf16.mxu0 %v7123
    %7187 = vmatpush1.bf16.msra.mxu0 %v7122
    %7188 = vmatprep.subr.bf16.mxu0 %v7125
    %7189 = vmatpush1.bf16.msra.mxu0 %v7124
    %7190 = vmatprep.subr.bf16.mxu0 %v7127
    %7191 = vmatpush1.bf16.msra.mxu0 %v7126
    %7192 = vmatprep.subr.bf16.mxu0 %v7129
    %7193 = vmatpush1.bf16.msra.mxu0 %v7128
    %7194 = vmatprep.subr.bf16.mxu0 %v7131
    %7195 = vmatpush1.bf16.msra.mxu0 %v7130
    %7196 = vmatprep.subr.bf16.mxu0 %v7133
    %7197 = vmatpush1.bf16.msra.mxu0 %v7132
    %7198 = vmatprep.subr.bf16.mxu0 %v7135
    %7199 = vmatpush1.bf16.msra.mxu0 %v7134
    %7200 = vmatprep.subr.bf16.mxu0 %v7137
    %7201 = vmatpush1.bf16.msra.mxu0 %v7136
    %7202 = vmatprep.subr.bf16.mxu0 %v7139
    %7203 = vmatpush1.bf16.msra.mxu0 %v7138
    %7204 = vmatprep.subr.bf16.mxu0 %v7141
    %7205 = vmatpush1.bf16.msra.mxu0 %v7140
    %7206 = vmatprep.subr.bf16.mxu0 %v7143
    %7207 = vmatpush1.bf16.msra.mxu0 %v7142
    %7208 = vmatprep.subr.bf16.mxu0 %v7145
    %7209 = vmatpush1.bf16.msra.mxu0 %v7144
    %7210 = vmatprep.mubr.bf16.mxu0 %v6736
    %7211 = vmatmul.mubr.bf16.gmra.mrb[0].mxu0 %v6735
    %v7212 = vpop.f32.mrb[0].mxu0
    %v7213 = vadd.f32 %v6986, %v7212
    %v7214 = vpop.f32.mrb[0].mxu0
    %v7215 = vadd.f32 %v6988, %v7214
    %v7216 = vpop.f32.mrb[0].mxu0
    %v7217 = vadd.f32 %v6990, %v7216
    %v7218 = vpop.f32.mrb[0].mxu0
    %v7219 = vadd.f32 %v6992, %v7218
    %7220 = vmatprep.mubr.bf16.mxu0 %v6738
    %7221 = vmatmul.mubr.bf16.gmra.mrb[0].mxu0 %v6737
    %v7222 = vpop.f32.mrb[0].mxu0
    %v7223 = vadd.f32 %v6996, %v7222
    %v7224 = vpop.f32.mrb[0].mxu0
    %v7225 = vadd.f32 %v6998, %v7224
    %v7226 = vpop.f32.mrb[0].mxu0
    %v7227 = vadd.f32 %v7000, %v7226
    %v7228 = vpop.f32.mrb[0].mxu0
    %v7229 = vadd.f32 %v7002, %v7228
    %7230 = vmatprep.mubr.bf16.mxu0 %v6740
    %7231 = vmatmul.mubr.bf16.gmra.mrb[0].mxu0 %v6739
    %v7232 = vpop.f32.mrb[0].mxu0
    %v7233 = vadd.f32 %v7006, %v7232
    %v7234 = vpop.f32.mrb[0].mxu0
    %v7235 = vadd.f32 %v7008, %v7234
    %v7236 = vpop.f32.mrb[0].mxu0
    %v7237 = vpop.f32.mrb[0].mxu0
    %7238 = vdwg.mxu0
    %v7239 = vld [vmem:[#allocation3] sm:$0xee]
    %v7240 = vld [vmem:[#allocation3 + $0x20] sm:$0x33]
    %s7241 = scalar_lea.vmem %s3, 512
    %v7242 = vld [vmem:[%s7241] sm:$0xff]
    %v7243 = vld [vmem:[%s7241 + $0x8] sm:$0xff]
    %v7244 = vld [vmem:[%s7241 + $0x10] sm:$0xff]
    %v7245 = vld [vmem:[%s7241 + $0x18] sm:$0xff]
    %v7246 = vld [vmem:[%s7241 + $0x20] sm:$0xff]
    %v7247 = vld [vmem:[%s7241 + $0x28] sm:$0xff]
    %v7248 = vld [vmem:[%s7241 + $0x30] sm:$0xff]
    %v7249 = vld [vmem:[%s7241 + $0x38] sm:$0xff]
    %v7250 = vld [vmem:[%s7241 + $0x40] sm:$0xff]
    %v7251 = vld [vmem:[%s7241 + $0x48] sm:$0xff]
    %v7252 = vld [vmem:[%s7241 + $0x50] sm:$0xff]
    %v7253 = vld [vmem:[%s7241 + $0x58] sm:$0xff]
    %v7254 = vld [vmem:[%s7241 + $0x60] sm:$0xff]
    %v7255 = vld [vmem:[%s7241 + $0x68] sm:$0xff]
    %v7256 = vld [vmem:[%s7241 + $0x70] sm:$0xff]
    %v7257 = vld [vmem:[%s7241 + $0x78] sm:$0xff]
    %v7258 = vld [vmem:[%s7241 + $0x80] sm:$0xff]
    %v7259 = vld [vmem:[%s7241 + $0x88] sm:$0xff]
    %v7260 = vld [vmem:[%s7241 + $0x90] sm:$0xff]
    %v7261 = vld [vmem:[%s7241 + $0x98] sm:$0xff]
    %v7262 = vld [vmem:[%s7241 + $0xa0] sm:$0xff]
    %v7263 = vld [vmem:[%s7241 + $0xa8] sm:$0xff]
    %v7264 = vld [vmem:[%s7241 + $0xb0] sm:$0xff]
    %v7265 = vld [vmem:[%s7241 + $0xb8] sm:$0xff]
    %v7266 = vld [vmem:[%s7241 + $0xc0] sm:$0xff]
    %v7267 = vld [vmem:[%s7241 + $0xc8] sm:$0xff]
    %v7268 = vld [vmem:[%s7241 + $0xd0] sm:$0xff]
    %v7269 = vld [vmem:[%s7241 + $0xd8] sm:$0xff]
    %v7270 = vld [vmem:[%s7241 + $0xe0] sm:$0xff]
    %v7271 = vld [vmem:[%s7241 + $0xe8] sm:$0xff]
    %v7272 = vld [vmem:[%s7241 + $0xf0] sm:$0xff]
    %v7273 = vld [vmem:[%s7241 + $0xf8] sm:$0xff]
    %v7276 = vunpack.c.l.b16 %v7239
    %v7277 = vunpack.c.h.b16 %v7239
    %v7278 = vunpack.c.l.b16 %v7240
    %v7279 = vunpack.c.h.b16 %v7240
    %v7280 = vpack.c.b16 %v6727, %v7276
    %v7281 = vpack.c.b16 %v6728, %v7277
    %v7282 = vpack.c.b16 %v7278, %v7278
    %v7283 = vpack.c.b16 %v7279, %v7279
    %v7284 = vrot.slane %v7280, 1
    %v7285 = vrot.slane %v6737, 1
    %v7286 = vsel %vm1866, %v7284, %v7285
    %v7287 = vrot.slane %v7281, 1
    %v7288 = vrot.slane %v6738, 1
    %v7289 = vsel %vm1866, %v7287, %v7288
    %v7290 = vrot.slane %v7282, 1
    %v7291 = vsel %vm1866, %v7285, %v7290
    %v7292 = vrot.slane %v7283, 1
    %v7293 = vsel %vm1866, %v7288, %v7292
    %v7332 = vunpack.c.l.b16 %v7242
    %v7333 = vunpack.c.h.b16 %v7242
    %v7334 = vunpack.c.l.b16 %v7243
    %v7335 = vunpack.c.h.b16 %v7243
    %v7336 = vunpack.c.l.b16 %v7244
    %v7337 = vunpack.c.h.b16 %v7244
    %v7338 = vunpack.c.l.b16 %v7245
    %v7339 = vunpack.c.h.b16 %v7245
    %v7340 = vunpack.c.l.b16 %v7246
    %v7341 = vunpack.c.h.b16 %v7246
    %v7342 = vunpack.c.l.b16 %v7247
    %v7343 = vunpack.c.h.b16 %v7247
    %v7344 = vunpack.c.l.b16 %v7248
    %v7345 = vunpack.c.h.b16 %v7248
    %v7346 = vunpack.c.l.b16 %v7249
    %v7347 = vunpack.c.h.b16 %v7249
    %v7348 = vunpack.c.l.b16 %v7250
    %v7349 = vunpack.c.h.b16 %v7250
    %v7350 = vunpack.c.l.b16 %v7251
    %v7351 = vunpack.c.h.b16 %v7251
    %v7352 = vunpack.c.l.b16 %v7252
    %v7353 = vunpack.c.h.b16 %v7252
    %v7354 = vunpack.c.l.b16 %v7253
    %v7355 = vunpack.c.h.b16 %v7253
    %v7356 = vunpack.c.l.b16 %v7254
    %v7357 = vunpack.c.h.b16 %v7254
    %v7358 = vunpack.c.l.b16 %v7255
    %v7359 = vunpack.c.h.b16 %v7255
    %v7360 = vunpack.c.l.b16 %v7256
    %v7361 = vunpack.c.h.b16 %v7256
    %v7362 = vunpack.c.l.b16 %v7257
    %v7363 = vunpack.c.h.b16 %v7257
    %v7364 = vunpack.c.l.b16 %v7258
    %v7365 = vunpack.c.h.b16 %v7258
    %v7366 = vunpack.c.l.b16 %v7259
    %v7367 = vunpack.c.h.b16 %v7259
    %v7368 = vunpack.c.l.b16 %v7260
    %v7369 = vunpack.c.h.b16 %v7260
    %v7370 = vunpack.c.l.b16 %v7261
    %v7371 = vunpack.c.h.b16 %v7261
    %v7372 = vunpack.c.l.b16 %v7262
    %v7373 = vunpack.c.h.b16 %v7262
    %v7374 = vunpack.c.l.b16 %v7263
    %v7375 = vunpack.c.h.b16 %v7263
    %v7376 = vunpack.c.l.b16 %v7264
    %v7377 = vunpack.c.h.b16 %v7264
    %v7378 = vunpack.c.l.b16 %v7265
    %v7379 = vunpack.c.h.b16 %v7265
    %v7380 = vunpack.c.l.b16 %v7266
    %v7381 = vunpack.c.h.b16 %v7266
    %v7382 = vunpack.c.l.b16 %v7267
    %v7383 = vunpack.c.h.b16 %v7267
    %v7384 = vunpack.c.l.b16 %v7268
    %v7385 = vunpack.c.h.b16 %v7268
    %v7386 = vunpack.c.l.b16 %v7269
    %v7387 = vunpack.c.h.b16 %v7269
    %v7388 = vunpack.c.l.b16 %v7270
    %v7389 = vunpack.c.h.b16 %v7270
    %v7390 = vunpack.c.l.b16 %v7271
    %v7391 = vunpack.c.h.b16 %v7271
    %v7392 = vunpack.c.l.b16 %v7272
    %v7393 = vunpack.c.h.b16 %v7272
    %v7394 = vunpack.c.l.b16 %v7273
    %v7395 = vunpack.c.h.b16 %v7273
    %v7396 = vpack.c.b16 %v7334, %v7332
    %v7397 = vpack.c.b16 %v7335, %v7333
    %v7398 = vpack.c.b16 %v7338, %v7336
    %v7399 = vpack.c.b16 %v7339, %v7337
    %v7400 = vpack.c.b16 %v7342, %v7340
    %v7401 = vpack.c.b16 %v7343, %v7341
    %v7402 = vpack.c.b16 %v7346, %v7344
    %v7403 = vpack.c.b16 %v7347, %v7345
    %v7404 = vpack.c.b16 %v7350, %v7348
    %v7405 = vpack.c.b16 %v7351, %v7349
    %v7406 = vpack.c.b16 %v7354, %v7352
    %v7407 = vpack.c.b16 %v7355, %v7353
    %v7408 = vpack.c.b16 %v7358, %v7356
    %v7409 = vpack.c.b16 %v7359, %v7357
    %v7410 = vpack.c.b16 %v7362, %v7360
    %v7411 = vpack.c.b16 %v7363, %v7361
    %v7412 = vpack.c.b16 %v7366, %v7364
    %v7413 = vpack.c.b16 %v7367, %v7365
    %v7414 = vpack.c.b16 %v7370, %v7368
    %v7415 = vpack.c.b16 %v7371, %v7369
    %v7416 = vpack.c.b16 %v7374, %v7372
    %v7417 = vpack.c.b16 %v7375, %v7373
    %v7418 = vpack.c.b16 %v7378, %v7376
    %v7419 = vpack.c.b16 %v7379, %v7377
    %v7420 = vpack.c.b16 %v7382, %v7380
    %v7421 = vpack.c.b16 %v7383, %v7381
    %v7422 = vpack.c.b16 %v7386, %v7384
    %v7423 = vpack.c.b16 %v7387, %v7385
    %v7424 = vpack.c.b16 %v7390, %v7388
    %v7425 = vpack.c.b16 %v7391, %v7389
    %v7426 = vpack.c.b16 %v7394, %v7392
    %v7427 = vpack.c.b16 %v7395, %v7393
    %7460 = vmatprep.subr.bf16.mxu0 %v7397
    %7461 = vmatpush1.bf16.msra.mxu0 %v7396
    %7462 = vmatprep.subr.bf16.mxu0 %v7399
    %7463 = vmatpush1.bf16.msra.mxu0 %v7398
    %7464 = vmatprep.subr.bf16.mxu0 %v7401
    %7465 = vmatpush1.bf16.msra.mxu0 %v7400
    %7466 = vmatprep.subr.bf16.mxu0 %v7403
    %7467 = vmatpush1.bf16.msra.mxu0 %v7402
    %7468 = vmatprep.subr.bf16.mxu0 %v7405
    %7469 = vmatpush1.bf16.msra.mxu0 %v7404
    %7470 = vmatprep.subr.bf16.mxu0 %v7407
    %7471 = vmatpush1.bf16.msra.mxu0 %v7406
    %7472 = vmatprep.subr.bf16.mxu0 %v7409
    %7473 = vmatpush1.bf16.msra.mxu0 %v7408
    %7474 = vmatprep.subr.bf16.mxu0 %v7411
    %7475 = vmatpush1.bf16.msra.mxu0 %v7410
    %7476 = vmatprep.subr.bf16.mxu0 %v7413
    %7477 = vmatpush1.bf16.msra.mxu0 %v7412
    %7478 = vmatprep.subr.bf16.mxu0 %v7415
    %7479 = vmatpush1.bf16.msra.mxu0 %v7414
    %7480 = vmatprep.subr.bf16.mxu0 %v7417
    %7481 = vmatpush1.bf16.msra.mxu0 %v7416
    %7482 = vmatprep.subr.bf16.mxu0 %v7419
    %7483 = vmatpush1.bf16.msra.mxu0 %v7418
    %7484 = vmatprep.subr.bf16.mxu0 %v7421
    %7485 = vmatpush1.bf16.msra.mxu0 %v7420
    %7486 = vmatprep.subr.bf16.mxu0 %v7423
    %7487 = vmatpush1.bf16.msra.mxu0 %v7422
    %7488 = vmatprep.subr.bf16.mxu0 %v7425
    %7489 = vmatpush1.bf16.msra.mxu0 %v7424
    %7490 = vmatprep.subr.bf16.mxu0 %v7427
    %7491 = vmatpush1.bf16.msra.mxu0 %v7426
    %7492 = vmatprep.mubr.bf16.mxu0 %v7289
    %7493 = vmatmul.mubr.bf16.gmra.mrb[0].mxu0 %v7286
    %v7494 = vpop.f32.mrb[0].mxu0
    %v7495 = vadd.f32 0.0, %v7494
    %v7496 = vpop.f32.mrb[0].mxu0
    %v7497 = vadd.f32 0.0, %v7496
    %v7498 = vpop.f32.mrb[0].mxu0
    %v7499 = vadd.f32 0.0, %v7498
    %v7500 = vpop.f32.mrb[0].mxu0
    %v7501 = vadd.f32 0.0, %v7500
    %7502 = vmatprep.mubr.bf16.mxu0 %v7293
    %7503 = vmatmul.mubr.bf16.gmra.mrb[0].mxu0 %v7291
    %v7504 = vpop.f32.mrb[0].mxu0
    %v7505 = vadd.f32 0.0, %v7504
    %v7506 = vpop.f32.mrb[0].mxu0
    %v7507 = vadd.f32 0.0, %v7506
    %v7508 = vpop.f32.mrb[0].mxu0
    %v7509 = vadd.f32 0.0, %v7508
    %v7510 = vpop.f32.mrb[0].mxu0
    %v7511 = vadd.f32 0.0, %v7510
    %7512 = vmatprep.mubr.bf16.mxu0 %v7292
    %7513 = vmatmul.mubr.bf16.gmra.mrb[0].mxu0 %v7290
    %v7514 = vpop.f32.mrb[0].mxu0
    %v7515 = vadd.f32 0.0, %v7514
    %v7516 = vpop.f32.mrb[0].mxu0
    %v7517 = vadd.f32 0.0, %v7516
    %v7518 = vpop.f32.mrb[0].mxu0
    %v7519 = vpop.f32.mrb[0].mxu0
    %7520 = vdwg.mxu0
    %v7521 = vadd.f32 %v7213, %v7495
    %v7522 = vadd.f32 %v7215, %v7497
    %v7523 = vadd.f32 %v7217, %v7499
    %v7524 = vadd.f32 %v7219, %v7501
    %v7525 = vadd.f32 %v7223, %v7505
    %v7526 = vadd.f32 %v7225, %v7507
    %v7527 = vadd.f32 %v7227, %v7509
    %v7528 = vadd.f32 %v7229, %v7511
    %v7529 = vadd.f32 %v7233, %v7515
    %v7530 = vadd.f32 %v7235, %v7517
    %s7531 = scalar_lea.vmem %s3, 768
    %v7532 = vld [vmem:[%s7531] sm:$0xff]
    %v7533 = vld [vmem:[%s7531 + $0x8] sm:$0xff]
    %v7534 = vld [vmem:[%s7531 + $0x10] sm:$0xff]
    %v7535 = vld [vmem:[%s7531 + $0x18] sm:$0xff]
    %v7536 = vld [vmem:[%s7531 + $0x20] sm:$0xff]
    %v7537 = vld [vmem:[%s7531 + $0x28] sm:$0xff]
    %v7538 = vld [vmem:[%s7531 + $0x30] sm:$0xff]
    %v7539 = vld [vmem:[%s7531 + $0x38] sm:$0xff]
    %v7540 = vld [vmem:[%s7531 + $0x40] sm:$0xff]
    %v7541 = vld [vmem:[%s7531 + $0x48] sm:$0xff]
    %v7542 = vld [vmem:[%s7531 + $0x50] sm:$0xff]
    %v7543 = vld [vmem:[%s7531 + $0x58] sm:$0xff]
    %v7544 = vld [vmem:[%s7531 + $0x60] sm:$0xff]
    %v7545 = vld [vmem:[%s7531 + $0x68] sm:$0xff]
    %v7546 = vld [vmem:[%s7531 + $0x70] sm:$0xff]
    %v7547 = vld [vmem:[%s7531 + $0x78] sm:$0xff]
    %v7548 = vld [vmem:[%s7531 + $0x80] sm:$0xff]
    %v7549 = vld [vmem:[%s7531 + $0x88] sm:$0xff]
    %v7550 = vld [vmem:[%s7531 + $0x90] sm:$0xff]
    %v7551 = vld [vmem:[%s7531 + $0x98] sm:$0xff]
    %v7552 = vld [vmem:[%s7531 + $0xa0] sm:$0xff]
    %v7553 = vld [vmem:[%s7531 + $0xa8] sm:$0xff]
    %v7554 = vld [vmem:[%s7531 + $0xb0] sm:$0xff]
    %v7555 = vld [vmem:[%s7531 + $0xb8] sm:$0xff]
    %v7556 = vld [vmem:[%s7531 + $0xc0] sm:$0xff]
    %v7557 = vld [vmem:[%s7531 + $0xc8] sm:$0xff]
    %v7558 = vld [vmem:[%s7531 + $0xd0] sm:$0xff]
    %v7559 = vld [vmem:[%s7531 + $0xd8] sm:$0xff]
    %v7560 = vld [vmem:[%s7531 + $0xe0] sm:$0xff]
    %v7561 = vld [vmem:[%s7531 + $0xe8] sm:$0xff]
    %v7562 = vld [vmem:[%s7531 + $0xf0] sm:$0xff]
    %v7563 = vld [vmem:[%s7531 + $0xf8] sm:$0xff]
    %v7565 = vshrl.u32 %v7280, 16
    %v7567 = vrot.slane %v7565, 1
    %v7568 = vshll.u32 %v7280, 16
    %v7570 = vrot.slane %v7568, 2
    %v7571 = vor.u32 %v7567, %v7570
    %v7572 = vrot.slane %v6765, 1
    %v7573 = vrot.slane %v6749, 2
    %v7574 = vor.u32 %v7572, %v7573
    %v7575 = vsel %vm2583, %v7571, %v7574
    %v7577 = vshrl.u32 %v7281, 16
    %v7579 = vrot.slane %v7577, 1
    %v7580 = vshll.u32 %v7281, 16
    %v7582 = vrot.slane %v7580, 2
    %v7583 = vor.u32 %v7579, %v7582
    %v7584 = vrot.slane %v6773, 1
    %v7585 = vrot.slane %v6761, 2
    %v7586 = vor.u32 %v7584, %v7585
    %v7587 = vsel %vm2583, %v7583, %v7586
    %v7589 = vshrl.u32 %v7282, 16
    %v7591 = vrot.slane %v7589, 1
    %v7592 = vshll.u32 %v7282, 16
    %v7594 = vrot.slane %v7592, 2
    %v7595 = vor.u32 %v7591, %v7594
    %v7596 = vsel %vm2583, %v7574, %v7595
    %v7598 = vshrl.u32 %v7283, 16
    %v7600 = vrot.slane %v7598, 1
    %v7601 = vshll.u32 %v7283, 16
    %v7603 = vrot.slane %v7601, 2
    %v7604 = vor.u32 %v7600, %v7603
    %v7605 = vsel %vm2583, %v7586, %v7604
    %v7644 = vunpack.c.l.b16 %v7532
    %v7645 = vunpack.c.h.b16 %v7532
    %v7646 = vunpack.c.l.b16 %v7533
    %v7647 = vunpack.c.h.b16 %v7533
    %v7648 = vunpack.c.l.b16 %v7534
    %v7649 = vunpack.c.h.b16 %v7534
    %v7650 = vunpack.c.l.b16 %v7535
    %v7651 = vunpack.c.h.b16 %v7535
    %v7652 = vunpack.c.l.b16 %v7536
    %v7653 = vunpack.c.h.b16 %v7536
    %v7654 = vunpack.c.l.b16 %v7537
    %v7655 = vunpack.c.h.b16 %v7537
    %v7656 = vunpack.c.l.b16 %v7538
    %v7657 = vunpack.c.h.b16 %v7538
    %v7658 = vunpack.c.l.b16 %v7539
    %v7659 = vunpack.c.h.b16 %v7539
    %v7660 = vunpack.c.l.b16 %v7540
    %v7661 = vunpack.c.h.b16 %v7540
    %v7662 = vunpack.c.l.b16 %v7541
    %v7663 = vunpack.c.h.b16 %v7541
    %v7664 = vunpack.c.l.b16 %v7542
    %v7665 = vunpack.c.h.b16 %v7542
    %v7666 = vunpack.c.l.b16 %v7543
    %v7667 = vunpack.c.h.b16 %v7543
    %v7668 = vunpack.c.l.b16 %v7544
    %v7669 = vunpack.c.h.b16 %v7544
    %v7670 = vunpack.c.l.b16 %v7545
    %v7671 = vunpack.c.h.b16 %v7545
    %v7672 = vunpack.c.l.b16 %v7546
    %v7673 = vunpack.c.h.b16 %v7546
    %v7674 = vunpack.c.l.b16 %v7547
    %v7675 = vunpack.c.h.b16 %v7547
    %v7676 = vunpack.c.l.b16 %v7548
    %v7677 = vunpack.c.h.b16 %v7548
    %v7678 = vunpack.c.l.b16 %v7549
    %v7679 = vunpack.c.h.b16 %v7549
    %v7680 = vunpack.c.l.b16 %v7550
    %v7681 = vunpack.c.h.b16 %v7550
    %v7682 = vunpack.c.l.b16 %v7551
    %v7683 = vunpack.c.h.b16 %v7551
    %v7684 = vunpack.c.l.b16 %v7552
    %v7685 = vunpack.c.h.b16 %v7552
    %v7686 = vunpack.c.l.b16 %v7553
    %v7687 = vunpack.c.h.b16 %v7553
    %v7688 = vunpack.c.l.b16 %v7554
    %v7689 = vunpack.c.h.b16 %v7554
    %v7690 = vunpack.c.l.b16 %v7555
    %v7691 = vunpack.c.h.b16 %v7555
    %v7692 = vunpack.c.l.b16 %v7556
    %v7693 = vunpack.c.h.b16 %v7556
    %v7694 = vunpack.c.l.b16 %v7557
    %v7695 = vunpack.c.h.b16 %v7557
    %v7696 = vunpack.c.l.b16 %v7558
    %v7697 = vunpack.c.h.b16 %v7558
    %v7698 = vunpack.c.l.b16 %v7559
    %v7699 = vunpack.c.h.b16 %v7559
    %v7700 = vunpack.c.l.b16 %v7560
    %v7701 = vunpack.c.h.b16 %v7560
    %v7702 = vunpack.c.l.b16 %v7561
    %v7703 = vunpack.c.h.b16 %v7561
    %v7704 = vunpack.c.l.b16 %v7562
    %v7705 = vunpack.c.h.b16 %v7562
    %v7706 = vunpack.c.l.b16 %v7563
    %v7707 = vunpack.c.h.b16 %v7563
    %v7708 = vpack.c.b16 %v7646, %v7644
    %v7709 = vpack.c.b16 %v7647, %v7645
    %v7710 = vpack.c.b16 %v7650, %v7648
    %v7711 = vpack.c.b16 %v7651, %v7649
    %v7712 = vpack.c.b16 %v7654, %v7652
    %v7713 = vpack.c.b16 %v7655, %v7653
    %v7714 = vpack.c.b16 %v7658, %v7656
    %v7715 = vpack.c.b16 %v7659, %v7657
    %v7716 = vpack.c.b16 %v7662, %v7660
    %v7717 = vpack.c.b16 %v7663, %v7661
    %v7718 = vpack.c.b16 %v7666, %v7664
    %v7719 = vpack.c.b16 %v7667, %v7665
    %v7720 = vpack.c.b16 %v7670, %v7668
    %v7721 = vpack.c.b16 %v7671, %v7669
    %v7722 = vpack.c.b16 %v7674, %v7672
    %v7723 = vpack.c.b16 %v7675, %v7673
    %v7724 = vpack.c.b16 %v7678, %v7676
    %v7725 = vpack.c.b16 %v7679, %v7677
    %v7726 = vpack.c.b16 %v7682, %v7680
    %v7727 = vpack.c.b16 %v7683, %v7681
    %v7728 = vpack.c.b16 %v7686, %v7684
    %v7729 = vpack.c.b16 %v7687, %v7685
    %v7730 = vpack.c.b16 %v7690, %v7688
    %v7731 = vpack.c.b16 %v7691, %v7689
    %v7732 = vpack.c.b16 %v7694, %v7692
    %v7733 = vpack.c.b16 %v7695, %v7693
    %v7734 = vpack.c.b16 %v7698, %v7696
    %v7735 = vpack.c.b16 %v7699, %v7697
    %v7736 = vpack.c.b16 %v7702, %v7700
    %v7737 = vpack.c.b16 %v7703, %v7701
    %v7738 = vpack.c.b16 %v7706, %v7704
    %v7739 = vpack.c.b16 %v7707, %v7705
    %7772 = vmatprep.subr.bf16.mxu0 %v7709
    %7773 = vmatpush1.bf16.msra.mxu0 %v7708
    %7774 = vmatprep.subr.bf16.mxu0 %v7711
    %7775 = vmatpush1.bf16.msra.mxu0 %v7710
    %7776 = vmatprep.subr.bf16.mxu0 %v7713
    %7777 = vmatpush1.bf16.msra.mxu0 %v7712
    %7778 = vmatprep.subr.bf16.mxu0 %v7715
    %7779 = vmatpush1.bf16.msra.mxu0 %v7714
    %7780 = vmatprep.subr.bf16.mxu0 %v7717
    %7781 = vmatpush1.bf16.msra.mxu0 %v7716
    %7782 = vmatprep.subr.bf16.mxu0 %v7719
    %7783 = vmatpush1.bf16.msra.mxu0 %v7718
    %7784 = vmatprep.subr.bf16.mxu0 %v7721
    %7785 = vmatpush1.bf16.msra.mxu0 %v7720
    %7786 = vmatprep.subr.bf16.mxu0 %v7723
    %7787 = vmatpush1.bf16.msra.mxu0 %v7722
    %7788 = vmatprep.subr.bf16.mxu0 %v7725
    %7789 = vmatpush1.bf16.msra.mxu0 %v7724
    %7790 = vmatprep.subr.bf16.mxu0 %v7727
    %7791 = vmatpush1.bf16.msra.mxu0 %v7726
    %7792 = vmatprep.subr.bf16.mxu0 %v7729
    %7793 = vmatpush1.bf16.msra.mxu0 %v7728
    %7794 = vmatprep.subr.bf16.mxu0 %v7731
    %7795 = vmatpush1.bf16.msra.mxu0 %v7730
    %7796 = vmatprep.subr.bf16.mxu0 %v7733
    %7797 = vmatpush1.bf16.msra.mxu0 %v7732
    %7798 = vmatprep.subr.bf16.mxu0 %v7735
    %7799 = vmatpush1.bf16.msra.mxu0 %v7734
    %7800 = vmatprep.subr.bf16.mxu0 %v7737
    %7801 = vmatpush1.bf16.msra.mxu0 %v7736
    %7802 = vmatprep.subr.bf16.mxu0 %v7739
    %7803 = vmatpush1.bf16.msra.mxu0 %v7738
    %7804 = vmatprep.mubr.bf16.mxu0 %v7587
    %7805 = vmatmul.mubr.bf16.gmra.mrb[0].mxu0 %v7575
    %v7806 = vpop.f32.mrb[0].mxu0
    %v7807 = vadd.f32 0.0, %v7806
    %v7808 = vpop.f32.mrb[0].mxu0
    %v7809 = vadd.f32 0.0, %v7808
    %v7810 = vpop.f32.mrb[0].mxu0
    %v7811 = vadd.f32 0.0, %v7810
    %v7812 = vpop.f32.mrb[0].mxu0
    %v7813 = vadd.f32 0.0, %v7812
    %7814 = vmatprep.mubr.bf16.mxu0 %v7605
    %7815 = vmatmul.mubr.bf16.gmra.mrb[0].mxu0 %v7596
    %v7816 = vpop.f32.mrb[0].mxu0
    %v7817 = vadd.f32 0.0, %v7816
    %v7818 = vpop.f32.mrb[0].mxu0
    %v7819 = vadd.f32 0.0, %v7818
    %v7820 = vpop.f32.mrb[0].mxu0
    %v7821 = vadd.f32 0.0, %v7820
    %v7822 = vpop.f32.mrb[0].mxu0
    %v7823 = vadd.f32 0.0, %v7822
    %7824 = vmatprep.mubr.bf16.mxu0 %v7600
    %7825 = vmatmul.mubr.bf16.gmra.mrb[0].mxu0 %v7591
    %v7826 = vpop.f32.mrb[0].mxu0
    %v7827 = vadd.f32 0.0, %v7826
    %v7828 = vpop.f32.mrb[0].mxu0
    %v7829 = vadd.f32 0.0, %v7828
    %v7830 = vpop.f32.mrb[0].mxu0
    %v7831 = vpop.f32.mrb[0].mxu0
    %7832 = vdwg.mxu0
    %v7833 = vadd.f32 %v7521, %v7807
    %v7834 = vadd.f32 %v7522, %v7809
    %v7835 = vadd.f32 %v7523, %v7811
    %v7836 = vadd.f32 %v7524, %v7813
    %v7837 = vadd.f32 %v7525, %v7817
    %v7838 = vadd.f32 %v7526, %v7819
    %v7839 = vadd.f32 %v7527, %v7821
    %v7840 = vadd.f32 %v7528, %v7823
    %v7841 = vadd.f32 %v7529, %v7827
    %v7842 = vadd.f32 %v7530, %v7829
    %v7843 = vld [vmem:[#allocation11 + $0x1] sm:$0x1]
    %v7844 = vld [vmem:[%s14] sm:$0xff]
    %v7845 = vld [vmem:[%s14 + $0x8] sm:$0xff]
    %v7846 = vld [vmem:[%s14 + $0x10] sm:$0xff]
    %v7847 = vld [vmem:[%s14 + $0x18] sm:$0xff]
    %v7848 = vld [vmem:[%s14 + $0x20] sm:$0xff]
    %v7849 = vld [vmem:[%s14 + $0x28] sm:$0xff]
    %v7850 = vld [vmem:[%s14 + $0x30] sm:$0xff]
    %v7851 = vld [vmem:[%s14 + $0x38] sm:$0xff]
    %v7852 = vld [vmem:[%s14 + $0x40] sm:$0xff]
    %v7853 = vld [vmem:[%s14 + $0x48] sm:$0xff]
    %v7854 = vld [vmem:[%s14 + $0x50] sm:$0xff]
    %v7855 = vld [vmem:[%s14 + $0x58] sm:$0xff]
    %v7856 = vld [vmem:[%s14 + $0x60] sm:$0xff]
    %v7857 = vld [vmem:[%s14 + $0x68] sm:$0xff]
    %v7858 = vld [vmem:[%s14 + $0x70] sm:$0xff]
    %v7859 = vld [vmem:[%s14 + $0x78] sm:$0xff]
    %v7860 = vld [vmem:[%s14 + $0x80] sm:$0xff]
    %v7861 = vld [vmem:[%s14 + $0x88] sm:$0xff]
    %v7862 = vld [vmem:[%s14 + $0x90] sm:$0xff]
    %v7863 = vld [vmem:[%s14 + $0x98] sm:$0xff]
    %v7864 = vld [vmem:[%s14 + $0xa0] sm:$0xff]
    %v7865 = vld [vmem:[%s14 + $0xa8] sm:$0xff]
    %v7866 = vld [vmem:[%s14 + $0xb0] sm:$0xff]
    %v7867 = vld [vmem:[%s14 + $0xb8] sm:$0xff]
    %v7868 = vld [vmem:[%s14 + $0xc0] sm:$0xff]
    %v7869 = vld [vmem:[%s14 + $0xc8] sm:$0xff]
    %v7870 = vld [vmem:[%s14 + $0xd0] sm:$0xff]
    %v7871 = vld [vmem:[%s14 + $0xd8] sm:$0xff]
    %v7872 = vld [vmem:[%s14 + $0xe0] sm:$0xff]
    %v7873 = vld [vmem:[%s14 + $0xe8] sm:$0xff]
    %v7874 = vld [vmem:[%s14 + $0xf0] sm:$0xff]
    %v7875 = vld [vmem:[%s14 + $0xf8] sm:$0xff]
    %v7876 = vld [vmem:[#allocation14] sm:$0xff]
    %v7877 = vld [vmem:[#allocation14 + $0x8] sm:$0xff]
    %v7878 = vld [vmem:[#allocation14 + $0x10] sm:$0xff]
    %v7879 = vld [vmem:[#allocation14 + $0x18] sm:$0xff]
    %v7880 = vld [vmem:[#allocation14 + $0x20] sm:$0xff]
    %v7881 = vld [vmem:[#allocation14 + $0x28] sm:$0xff]
    %v7882 = vld [vmem:[#allocation14 + $0x30] sm:$0xff]
    %v7883 = vld [vmem:[#allocation14 + $0x38] sm:$0xff]
    %s7884 = scalar_lea.vmem [#allocation13], 2
    %v7885 = vld [vmem:[%s7884] ss:$8 sm:$0x3]
    %s7886 = scalar_lea.vmem [#allocation13], 3
    %v7887 = vld [vmem:[%s7886] ss:$8 sm:$0x3]
    %vm7888 = vcmask 269312
    %v7890 = vsel %vm7888, %v7843, 0
    %v7893 = vsel %vm5884, %v7841, 0
    %v7896 = vsel %vm5884, %v7842, 0
    %7898 = vmatprep.subr.mxu0 %v7834
    %7899 = vmatpush1.msra.mxu0 %v7833
    %7900 = vmatprep.subr.mxu0 %v7836
    %7901 = vmatpush1.msra.mxu0 %v7835
    %7902 = vmatprep.subr.mxu0 %v7838
    %7903 = vmatpush1.msra.mxu0 %v7837
    %7904 = vmatprep.subr.mxu0 %v7840
    %7905 = vmatpush1.msra.mxu0 %v7839
    %7906 = vmatprep.subr.mxu0 %v7896
    %7907 = vmatpush1.msra.mxu0 %v7893
    %7908 = vmatprep.subr.mxu0 0.0
    %7909 = vmatpush1.msra.mxu0 0.0
    %7910 = vmatprep.subr.mxu0 0.0
    %7911 = vmatpush1.msra.mxu0 0.0
    %7912 = vmatprep.subr.mxu0 0.0
    %7913 = vmatpush1.msra.mxu0 0.0
    %7914 = vmatprep.subr.mxu0 0.0
    %7915 = vmatpush1.msra.mxu0 0.0
    %7916 = vmatprep.subr.mxu0 0.0
    %7917 = vmatpush1.msra.mxu0 0.0
    %7918 = vmatprep.subr.mxu0 0.0
    %7919 = vmatpush1.msra.mxu0 0.0
    %7920 = vmatprep.subr.mxu0 0.0
    %7921 = vmatpush1.msra.mxu0 0.0
    %7922 = vmatprep.subr.mxu0 0.0
    %7923 = vmatpush1.msra.mxu0 0.0
    %7924 = vmatprep.subr.mxu0 0.0
    %7925 = vmatpush1.msra.mxu0 0.0
    %7926 = vmatprep.subr.mxu0 0.0
    %7927 = vmatpush1.msra.mxu0 0.0
    %7928 = vmatprep.subr.mxu0 0.0
    %7929 = vmatpush1.msra.mxu0 0.0
    %7930 = vmatprep.subr.mxu0 0.0
    %7931 = vmatpush1.msra.mxu0 0.0
    %7932 = vmatprep.subr.mxu0 0.0
    %7933 = vmatpush1.msra.mxu0 0.0
    %7934 = vmatprep.subr.mxu0 0.0
    %7935 = vmatpush1.msra.mxu0 0.0
    %7936 = vmatprep.subr.mxu0 0.0
    %7937 = vmatpush1.msra.mxu0 0.0
    %7938 = vmatprep.subr.mxu0 0.0
    %7939 = vmatpush1.msra.mxu0 0.0
    %7940 = vmatprep.subr.mxu0 0.0
    %7941 = vmatpush1.msra.mxu0 0.0
    %7942 = vmatprep.subr.mxu0 0.0
    %7943 = vmatpush1.msra.mxu0 0.0
    %7944 = vmatprep.subr.mxu0 0.0
    %7945 = vmatpush1.msra.mxu0 0.0
    %7946 = vmatprep.subr.mxu0 0.0
    %7947 = vmatpush1.msra.mxu0 0.0
    %7948 = vmatprep.subr.mxu0 0.0
    %7949 = vmatpush1.msra.mxu0 0.0
    %7950 = vmatprep.subr.mxu0 0.0
    %7951 = vmatpush1.msra.mxu0 0.0
    %7952 = vmatprep.subr.mxu0 0.0
    %7953 = vmatpush1.msra.mxu0 0.0
    %7954 = vmatprep.subr.mxu0 0.0
    %7955 = vmatpush1.msra.mxu0 0.0
    %7956 = vmatprep.subr.mxu0 0.0
    %7957 = vmatpush1.msra.mxu0 0.0
    %7958 = vmatprep.subr.mxu0 0.0
    %7959 = vmatpush1.msra.mxu0 0.0
    %7960 = vmatprep.subr.mxu0 0.0
    %7961 = vmatpush1.msra.mxu0 0.0
    %7962 = vmatprep.mubr.f32.mxu0 0.0
    %7963 = vmatmul.mubr.f32.gmra.mrb[0].mxu0 %v7890
    %v7964 = vpop.f32.mrb[0].mxu0
    %v7965 = vadd.f32 0.0, %v7964
    %v7966 = vpop.f32.mrb[0].mxu0
    %v7967 = vadd.f32 0.0, %v7966
    %7968 = vdwg.mxu0
    %7969 = vmatprep.subr.mxu0 0.0
    %7970 = vmatpush1.msra.mxu0 %v7844
    %7971 = vmatprep.subr.mxu0 0.0
    %7972 = vmatpush1.msra.mxu0 %v7845
    %7973 = vmatprep.subr.mxu0 0.0
    %7974 = vmatpush1.msra.mxu0 %v7846
    %7975 = vmatprep.subr.mxu0 0.0
    %7976 = vmatpush1.msra.mxu0 %v7847
    %7977 = vmatprep.subr.mxu0 0.0
    %7978 = vmatpush1.msra.mxu0 %v7848
    %7979 = vmatprep.subr.mxu0 0.0
    %7980 = vmatpush1.msra.mxu0 %v7849
    %7981 = vmatprep.subr.mxu0 0.0
    %7982 = vmatpush1.msra.mxu0 %v7850
    %7983 = vmatprep.subr.mxu0 0.0
    %7984 = vmatpush1.msra.mxu0 %v7851
    %7985 = vmatprep.subr.mxu0 0.0
    %7986 = vmatpush1.msra.mxu0 %v7852
    %7987 = vmatprep.subr.mxu0 0.0
    %7988 = vmatpush1.msra.mxu0 %v7853
    %7989 = vmatprep.subr.mxu0 0.0
    %7990 = vmatpush1.msra.mxu0 %v7854
    %7991 = vmatprep.subr.mxu0 0.0
    %7992 = vmatpush1.msra.mxu0 %v7855
    %7993 = vmatprep.subr.mxu0 0.0
    %7994 = vmatpush1.msra.mxu0 %v7856
    %7995 = vmatprep.subr.mxu0 0.0
    %7996 = vmatpush1.msra.mxu0 %v7857
    %7997 = vmatprep.subr.mxu0 0.0
    %7998 = vmatpush1.msra.mxu0 %v7858
    %7999 = vmatprep.subr.mxu0 0.0
    %8000 = vmatpush1.msra.mxu0 %v7859
    %8001 = vmatprep.subr.mxu0 0.0
    %8002 = vmatpush1.msra.mxu0 %v7860
    %8003 = vmatprep.subr.mxu0 0.0
    %8004 = vmatpush1.msra.mxu0 %v7861
    %8005 = vmatprep.subr.mxu0 0.0
    %8006 = vmatpush1.msra.mxu0 %v7862
    %8007 = vmatprep.subr.mxu0 0.0
    %8008 = vmatpush1.msra.mxu0 %v7863
    %8009 = vmatprep.subr.mxu0 0.0
    %8010 = vmatpush1.msra.mxu0 %v7864
    %8011 = vmatprep.subr.mxu0 0.0
    %8012 = vmatpush1.msra.mxu0 %v7865
    %8013 = vmatprep.subr.mxu0 0.0
    %8014 = vmatpush1.msra.mxu0 %v7866
    %8015 = vmatprep.subr.mxu0 0.0
    %8016 = vmatpush1.msra.mxu0 %v7867
    %8017 = vmatprep.subr.mxu0 0.0
    %8018 = vmatpush1.msra.mxu0 %v7868
    %8019 = vmatprep.subr.mxu0 0.0
    %8020 = vmatpush1.msra.mxu0 %v7869
    %8021 = vmatprep.subr.mxu0 0.0
    %8022 = vmatpush1.msra.mxu0 %v7870
    %8023 = vmatprep.subr.mxu0 0.0
    %8024 = vmatpush1.msra.mxu0 %v7871
    %8025 = vmatprep.subr.mxu0 0.0
    %8026 = vmatpush1.msra.mxu0 %v7872
    %8027 = vmatprep.subr.mxu0 0.0
    %8028 = vmatpush1.msra.mxu0 %v7873
    %8029 = vmatprep.subr.mxu0 0.0
    %8030 = vmatpush1.msra.mxu0 %v7874
    %8031 = vmatprep.subr.mxu0 0.0
    %8032 = vmatpush1.msra.mxu0 %v7875
    %8033 = vmatprep.mubr.f32.mxu0 %v7967
    %8034 = vmatmul.mubr.f32.gmra.mrb[0].mxu0 %v7965
    %v8035 = vpop.f32.mrb[0].mxu0
    %v8036 = vadd.f32 0.0, %v8035
    %v8037 = vpop.f32.mrb[0].mxu0
    %8038 = vdwg.mxu0
    %v8039 = vmul.f32 %v8036, 0.0078125
    %v8041 = vsel %vm942, %v8039, 0
    %8043 = vmatprep.subr.mxu0 %v7877
    %8044 = vmatpush1.msra.mxu0 %v7876
    %8045 = vmatprep.subr.mxu0 %v7879
    %8046 = vmatpush1.msra.mxu0 %v7878
    %8047 = vmatprep.subr.mxu0 %v7881
    %8048 = vmatpush1.msra.mxu0 %v7880
    %8049 = vmatprep.subr.mxu0 %v7883
    %8050 = vmatpush1.msra.mxu0 %v7882
    %8051 = vmatprep.subr.mxu0 0.0
    %8052 = vmatpush1.msra.mxu0 0.0
    %8053 = vmatprep.subr.mxu0 0.0
    %8054 = vmatpush1.msra.mxu0 0.0
    %8055 = vmatprep.subr.mxu0 0.0
    %8056 = vmatpush1.msra.mxu0 0.0
    %8057 = vmatprep.subr.mxu0 0.0
    %8058 = vmatpush1.msra.mxu0 0.0
    %8059 = vmatprep.subr.mxu0 0.0
    %8060 = vmatpush1.msra.mxu0 0.0
    %8061 = vmatprep.subr.mxu0 0.0
    %8062 = vmatpush1.msra.mxu0 0.0
    %8063 = vmatprep.subr.mxu0 0.0
    %8064 = vmatpush1.msra.mxu0 0.0
    %8065 = vmatprep.subr.mxu0 0.0
    %8066 = vmatpush1.msra.mxu0 0.0
    %8067 = vmatprep.subr.mxu0 0.0
    %8068 = vmatpush1.msra.mxu0 0.0
    %8069 = vmatprep.subr.mxu0 0.0
    %8070 = vmatpush1.msra.mxu0 0.0
    %8071 = vmatprep.subr.mxu0 0.0
    %8072 = vmatpush1.msra.mxu0 0.0
    %8073 = vmatprep.subr.mxu0 0.0
    %8074 = vmatpush1.msra.mxu0 0.0
    %8075 = vmatprep.subr.mxu0 0.0
    %8076 = vmatpush1.msra.mxu0 0.0
    %8077 = vmatprep.subr.mxu0 0.0
    %8078 = vmatpush1.msra.mxu0 0.0
    %8079 = vmatprep.subr.mxu0 0.0
    %8080 = vmatpush1.msra.mxu0 0.0
    %8081 = vmatprep.subr.mxu0 0.0
    %8082 = vmatpush1.msra.mxu0 0.0
    %8083 = vmatprep.subr.mxu0 0.0
    %8084 = vmatpush1.msra.mxu0 0.0
    %8085 = vmatprep.subr.mxu0 0.0
    %8086 = vmatpush1.msra.mxu0 0.0
    %8087 = vmatprep.subr.mxu0 0.0
    %8088 = vmatpush1.msra.mxu0 0.0
    %8089 = vmatprep.subr.mxu0 0.0
    %8090 = vmatpush1.msra.mxu0 0.0
    %8091 = vmatprep.subr.mxu0 0.0
    %8092 = vmatpush1.msra.mxu0 0.0
    %8093 = vmatprep.subr.mxu0 0.0
    %8094 = vmatpush1.msra.mxu0 0.0
    %8095 = vmatprep.subr.mxu0 0.0
    %8096 = vmatpush1.msra.mxu0 0.0
    %8097 = vmatprep.subr.mxu0 0.0
    %8098 = vmatpush1.msra.mxu0 0.0
    %8099 = vmatprep.subr.mxu0 0.0
    %8100 = vmatpush1.msra.mxu0 0.0
    %8101 = vmatprep.subr.mxu0 0.0
    %8102 = vmatpush1.msra.mxu0 0.0
    %8103 = vmatprep.subr.mxu0 0.0
    %8104 = vmatpush1.msra.mxu0 0.0
    %8105 = vmatprep.subr.mxu0 0.0
    %8106 = vmatpush1.msra.mxu0 0.0
    %8107 = vmatprep.mubr.f32.mxu0 0.0
    %8108 = vmatmul.mubr.f32.gmra.mrb[0].mxu0 %v8041
    %v8109 = vpop.f32.mrb[0].mxu0
    %v8110 = vadd.f32 0.0, %v8109
    %v8111 = vpop.f32.mrb[0].mxu0
    %v8112 = vadd.f32 0.0, %v8111
    %8113 = vdwg.mxu0
    %v8114 = vlaneseq
    %v8115 = vshrl.u32 %v8114, 7
    %v8116 = vsub.s32 0, %v8115
    %v8117 = vrot.slane %v8110, %v8116
    %v8118 = vlaneseq
    %v8119 = vshrl.u32 %v8118, 7
    %v8120 = vsub.s32 0, %v8119
    %v8121 = vrot.slane %v8112, %v8120
    %v8122 = vsub.f32 %v7833, %v8117
    %v8123 = vsub.f32 %v7834, %v8121
    %v8124 = vsub.f32 %v7835, %v8117
    %v8125 = vsub.f32 %v7836, %v8121
    %v8126 = vsub.f32 %v7837, %v8117
    %v8127 = vsub.f32 %v7838, %v8121
    %v8128 = vsub.f32 %v7839, %v8117
    %v8129 = vsub.f32 %v7840, %v8121
    %v8130 = vsub.f32 %v7841, %v8117
    %v8131 = vsub.f32 %v7842, %v8121
    %v8132 = vmul.f32 %v8122, %v8122
    %v8133 = vmul.f32 %v8123, %v8123
    %v8134 = vmul.f32 %v8124, %v8124
    %v8135 = vmul.f32 %v8125, %v8125
    %v8136 = vmul.f32 %v8126, %v8126
    %v8137 = vmul.f32 %v8127, %v8127
    %v8138 = vmul.f32 %v8128, %v8128
    %v8139 = vmul.f32 %v8129, %v8129
    %v8140 = vmul.f32 %v8130, %v8130
    %v8141 = vmul.f32 %v8131, %v8131
    %v8143 = vsel %vm5884, %v8140, 0
    %v8146 = vsel %vm5884, %v8141, 0
    %8148 = vmatprep.subr.mxu0 %v8133
    %8149 = vmatpush1.msra.mxu0 %v8132
    %8150 = vmatprep.subr.mxu0 %v8135
    %8151 = vmatpush1.msra.mxu0 %v8134
    %8152 = vmatprep.subr.mxu0 %v8137
    %8153 = vmatpush1.msra.mxu0 %v8136
    %8154 = vmatprep.subr.mxu0 %v8139
    %8155 = vmatpush1.msra.mxu0 %v8138
    %8156 = vmatprep.subr.mxu0 %v8146
    %8157 = vmatpush1.msra.mxu0 %v8143
    %8158 = vmatprep.subr.mxu0 0.0
    %8159 = vmatpush1.msra.mxu0 0.0
    %8160 = vmatprep.subr.mxu0 0.0
    %8161 = vmatpush1.msra.mxu0 0.0
    %8162 = vmatprep.subr.mxu0 0.0
    %8163 = vmatpush1.msra.mxu0 0.0
    %8164 = vmatprep.subr.mxu0 0.0
    %8165 = vmatpush1.msra.mxu0 0.0
    %8166 = vmatprep.subr.mxu0 0.0
    %8167 = vmatpush1.msra.mxu0 0.0
    %8168 = vmatprep.subr.mxu0 0.0
    %8169 = vmatpush1.msra.mxu0 0.0
    %8170 = vmatprep.subr.mxu0 0.0
    %8171 = vmatpush1.msra.mxu0 0.0
    %8172 = vmatprep.subr.mxu0 0.0
    %8173 = vmatpush1.msra.mxu0 0.0
    %8174 = vmatprep.subr.mxu0 0.0
    %8175 = vmatpush1.msra.mxu0 0.0
    %8176 = vmatprep.subr.mxu0 0.0
    %8177 = vmatpush1.msra.mxu0 0.0
    %8178 = vmatprep.subr.mxu0 0.0
    %8179 = vmatpush1.msra.mxu0 0.0
    %8180 = vmatprep.subr.mxu0 0.0
    %8181 = vmatpush1.msra.mxu0 0.0
    %8182 = vmatprep.subr.mxu0 0.0
    %8183 = vmatpush1.msra.mxu0 0.0
    %8184 = vmatprep.subr.mxu0 0.0
    %8185 = vmatpush1.msra.mxu0 0.0
    %8186 = vmatprep.subr.mxu0 0.0
    %8187 = vmatpush1.msra.mxu0 0.0
    %8188 = vmatprep.subr.mxu0 0.0
    %8189 = vmatpush1.msra.mxu0 0.0
    %8190 = vmatprep.subr.mxu0 0.0
    %8191 = vmatpush1.msra.mxu0 0.0
    %8192 = vmatprep.subr.mxu0 0.0
    %8193 = vmatpush1.msra.mxu0 0.0
    %8194 = vmatprep.subr.mxu0 0.0
    %8195 = vmatpush1.msra.mxu0 0.0
    %8196 = vmatprep.subr.mxu0 0.0
    %8197 = vmatpush1.msra.mxu0 0.0
    %8198 = vmatprep.subr.mxu0 0.0
    %8199 = vmatpush1.msra.mxu0 0.0
    %8200 = vmatprep.subr.mxu0 0.0
    %8201 = vmatpush1.msra.mxu0 0.0
    %8202 = vmatprep.subr.mxu0 0.0
    %8203 = vmatpush1.msra.mxu0 0.0
    %8204 = vmatprep.subr.mxu0 0.0
    %8205 = vmatpush1.msra.mxu0 0.0
    %8206 = vmatprep.subr.mxu0 0.0
    %8207 = vmatpush1.msra.mxu0 0.0
    %8208 = vmatprep.subr.mxu0 0.0
    %8209 = vmatpush1.msra.mxu0 0.0
    %8210 = vmatprep.subr.mxu0 0.0
    %8211 = vmatpush1.msra.mxu0 0.0
    %8212 = vmatprep.mubr.f32.mxu0 0.0
    %8213 = vmatmul.mubr.f32.gmra.mrb[0].mxu0 %v7890
    %v8214 = vpop.f32.mrb[0].mxu0
    %v8215 = vadd.f32 0.0, %v8214
    %v8216 = vpop.f32.mrb[0].mxu0
    %v8217 = vadd.f32 0.0, %v8216
    %8218 = vdwg.mxu0
    %8219 = vmatprep.subr.mxu0 0.0
    %8220 = vmatpush1.msra.mxu0 %v7844
    %8221 = vmatprep.subr.mxu0 0.0
    %8222 = vmatpush1.msra.mxu0 %v7845
    %8223 = vmatprep.subr.mxu0 0.0
    %8224 = vmatpush1.msra.mxu0 %v7846
    %8225 = vmatprep.subr.mxu0 0.0
    %8226 = vmatpush1.msra.mxu0 %v7847
    %8227 = vmatprep.subr.mxu0 0.0
    %8228 = vmatpush1.msra.mxu0 %v7848
    %8229 = vmatprep.subr.mxu0 0.0
    %8230 = vmatpush1.msra.mxu0 %v7849
    %8231 = vmatprep.subr.mxu0 0.0
    %8232 = vmatpush1.msra.mxu0 %v7850
    %8233 = vmatprep.subr.mxu0 0.0
    %8234 = vmatpush1.msra.mxu0 %v7851
    %8235 = vmatprep.subr.mxu0 0.0
    %8236 = vmatpush1.msra.mxu0 %v7852
    %8237 = vmatprep.subr.mxu0 0.0
    %8238 = vmatpush1.msra.mxu0 %v7853
    %8239 = vmatprep.subr.mxu0 0.0
    %8240 = vmatpush1.msra.mxu0 %v7854
    %8241 = vmatprep.subr.mxu0 0.0
    %8242 = vmatpush1.msra.mxu0 %v7855
    %8243 = vmatprep.subr.mxu0 0.0
    %8244 = vmatpush1.msra.mxu0 %v7856
    %8245 = vmatprep.subr.mxu0 0.0
    %8246 = vmatpush1.msra.mxu0 %v7857
    %8247 = vmatprep.subr.mxu0 0.0
    %8248 = vmatpush1.msra.mxu0 %v7858
    %8249 = vmatprep.subr.mxu0 0.0
    %8250 = vmatpush1.msra.mxu0 %v7859
    %8251 = vmatprep.subr.mxu0 0.0
    %8252 = vmatpush1.msra.mxu0 %v7860
    %8253 = vmatprep.subr.mxu0 0.0
    %8254 = vmatpush1.msra.mxu0 %v7861
    %8255 = vmatprep.subr.mxu0 0.0
    %8256 = vmatpush1.msra.mxu0 %v7862
    %8257 = vmatprep.subr.mxu0 0.0
    %8258 = vmatpush1.msra.mxu0 %v7863
    %8259 = vmatprep.subr.mxu0 0.0
    %8260 = vmatpush1.msra.mxu0 %v7864
    %8261 = vmatprep.subr.mxu0 0.0
    %8262 = vmatpush1.msra.mxu0 %v7865
    %8263 = vmatprep.subr.mxu0 0.0
    %8264 = vmatpush1.msra.mxu0 %v7866
    %8265 = vmatprep.subr.mxu0 0.0
    %8266 = vmatpush1.msra.mxu0 %v7867
    %8267 = vmatprep.subr.mxu0 0.0
    %8268 = vmatpush1.msra.mxu0 %v7868
    %8269 = vmatprep.subr.mxu0 0.0
    %8270 = vmatpush1.msra.mxu0 %v7869
    %8271 = vmatprep.subr.mxu0 0.0
    %8272 = vmatpush1.msra.mxu0 %v7870
    %8273 = vmatprep.subr.mxu0 0.0
    %8274 = vmatpush1.msra.mxu0 %v7871
    %8275 = vmatprep.subr.mxu0 0.0
    %8276 = vmatpush1.msra.mxu0 %v7872
    %8277 = vmatprep.subr.mxu0 0.0
    %8278 = vmatpush1.msra.mxu0 %v7873
    %8279 = vmatprep.subr.mxu0 0.0
    %8280 = vmatpush1.msra.mxu0 %v7874
    %8281 = vmatprep.subr.mxu0 0.0
    %8282 = vmatpush1.msra.mxu0 %v7875
    %8283 = vmatprep.mubr.f32.mxu0 %v8217
    %8284 = vmatmul.mubr.f32.gmra.mrb[0].mxu0 %v8215
    %v8285 = vpop.f32.mrb[0].mxu0
    %v8286 = vadd.f32 0.0, %v8285
    %v8287 = vpop.f32.mrb[0].mxu0
    %8288 = vdwg.mxu0
    %v8289 = vmul.f32 %v8286, 0.0078125
    %v8290 = vadd.f32 %v8289, 1e-05
    %v8291 = vrsqrt.pop %v8290
    %v8293 = vsel %vm942, %v8291, 0
    %8295 = vmatprep.subr.mxu0 %v7877
    %8296 = vmatpush1.msra.mxu0 %v7876
    %8297 = vmatprep.subr.mxu0 %v7879
    %8298 = vmatpush1.msra.mxu0 %v7878
    %8299 = vmatprep.subr.mxu0 %v7881
    %8300 = vmatpush1.msra.mxu0 %v7880
    %8301 = vmatprep.subr.mxu0 %v7883
    %8302 = vmatpush1.msra.mxu0 %v7882
    %8303 = vmatprep.subr.mxu0 0.0
    %8304 = vmatpush1.msra.mxu0 0.0
    %8305 = vmatprep.subr.mxu0 0.0
    %8306 = vmatpush1.msra.mxu0 0.0
    %8307 = vmatprep.subr.mxu0 0.0
    %8308 = vmatpush1.msra.mxu0 0.0
    %8309 = vmatprep.subr.mxu0 0.0
    %8310 = vmatpush1.msra.mxu0 0.0
    %8311 = vmatprep.subr.mxu0 0.0
    %8312 = vmatpush1.msra.mxu0 0.0
    %8313 = vmatprep.subr.mxu0 0.0
    %8314 = vmatpush1.msra.mxu0 0.0
    %8315 = vmatprep.subr.mxu0 0.0
    %8316 = vmatpush1.msra.mxu0 0.0
    %8317 = vmatprep.subr.mxu0 0.0
    %8318 = vmatpush1.msra.mxu0 0.0
    %8319 = vmatprep.subr.mxu0 0.0
    %8320 = vmatpush1.msra.mxu0 0.0
    %8321 = vmatprep.subr.mxu0 0.0
    %8322 = vmatpush1.msra.mxu0 0.0
    %8323 = vmatprep.subr.mxu0 0.0
    %8324 = vmatpush1.msra.mxu0 0.0
    %8325 = vmatprep.subr.mxu0 0.0
    %8326 = vmatpush1.msra.mxu0 0.0
    %8327 = vmatprep.subr.mxu0 0.0
    %8328 = vmatpush1.msra.mxu0 0.0
    %8329 = vmatprep.subr.mxu0 0.0
    %8330 = vmatpush1.msra.mxu0 0.0
    %8331 = vmatprep.subr.mxu0 0.0
    %8332 = vmatpush1.msra.mxu0 0.0
    %8333 = vmatprep.subr.mxu0 0.0
    %8334 = vmatpush1.msra.mxu0 0.0
    %8335 = vmatprep.subr.mxu0 0.0
    %8336 = vmatpush1.msra.mxu0 0.0
    %8337 = vmatprep.subr.mxu0 0.0
    %8338 = vmatpush1.msra.mxu0 0.0
    %8339 = vmatprep.subr.mxu0 0.0
    %8340 = vmatpush1.msra.mxu0 0.0
    %8341 = vmatprep.subr.mxu0 0.0
    %8342 = vmatpush1.msra.mxu0 0.0
    %8343 = vmatprep.subr.mxu0 0.0
    %8344 = vmatpush1.msra.mxu0 0.0
    %8345 = vmatprep.subr.mxu0 0.0
    %8346 = vmatpush1.msra.mxu0 0.0
    %8347 = vmatprep.subr.mxu0 0.0
    %8348 = vmatpush1.msra.mxu0 0.0
    %8349 = vmatprep.subr.mxu0 0.0
    %8350 = vmatpush1.msra.mxu0 0.0
    %8351 = vmatprep.subr.mxu0 0.0
    %8352 = vmatpush1.msra.mxu0 0.0
    %8353 = vmatprep.subr.mxu0 0.0
    %8354 = vmatpush1.msra.mxu0 0.0
    %8355 = vmatprep.subr.mxu0 0.0
    %8356 = vmatpush1.msra.mxu0 0.0
    %8357 = vmatprep.subr.mxu0 0.0
    %8358 = vmatpush1.msra.mxu0 0.0
    %8359 = vmatprep.mubr.f32.mxu0 0.0
    %8360 = vmatmul.mubr.f32.gmra.mrb[0].mxu0 %v8293
    %v8361 = vpop.f32.mrb[0].mxu0
    %v8362 = vadd.f32 0.0, %v8361
    %v8363 = vpop.f32.mrb[0].mxu0
    %v8364 = vadd.f32 0.0, %v8363
    %8365 = vdwg.mxu0
    %v8368 = vcombine.low %v8362, %v8364
    %v8370 = vunpack.c.l.s4 1966171168
    %v8371 = vunpack.c.0.s8 %v8370
    %v8372 = vlaneseq
    %v8373 = vshrl.u32 %v8372, 7
    %v8374 = vsub.s32 %v8371, %v8373
    %v8375 = vrot.slane %v8368, %v8374
    %v8377 = vunpack.c.l.s4 1966171168
    %v8378 = vunpack.c.0.s8 %v8377
    %v8379 = vlaneseq
    %v8380 = vshrl.u32 %v8379, 7
    %v8381 = vsub.s32 %v8378, %v8380
    %v8382 = vrot.slane %v8375, %v8381
    %v8384 = vmul.f32 %v7885, %v8382
    %v8386 = vlaneseq
    %v8387 = vshrl.u32 %v8386, 7
    %v8388 = vsub.s32 0, %v8387
    %v8389 = vrot.slane %v8384, %v8388
    %v8390 = vlaneseq
    %v8391 = vshrl.u32 %v8390, 7
    %v8392 = vsub.s32 1, %v8391
    %v8393 = vrot.slane %v8384, %v8392
    %v8396 = vmul.f32 %v8122, %v8389
    %v8397 = vmul.f32 %v8123, %v8393
    %v8398 = vmul.f32 %v8124, %v8389
    %v8399 = vmul.f32 %v8125, %v8393
    %v8400 = vmul.f32 %v8126, %v8389
    %v8401 = vmul.f32 %v8127, %v8393
    %v8402 = vmul.f32 %v8128, %v8389
    %v8403 = vmul.f32 %v8129, %v8393
    %v8404 = vmul.f32 %v8130, %v8389
    %v8405 = vmul.f32 %v8131, %v8393
    %v8407 = vlaneseq
    %v8408 = vshrl.u32 %v8407, 7
    %v8409 = vsub.s32 0, %v8408
    %v8410 = vrot.slane %v7887, %v8409
    %v8411 = vlaneseq
    %v8412 = vshrl.u32 %v8411, 7
    %v8413 = vsub.s32 1, %v8412
    %v8414 = vrot.slane %v7887, %v8413
    %v8417 = vadd.f32 %v8396, %v8410
    %v8418 = vadd.f32 %v8397, %v8414
    %v8419 = vadd.f32 %v8398, %v8410
    %v8420 = vadd.f32 %v8399, %v8414
    %v8421 = vadd.f32 %v8400, %v8410
    %v8422 = vadd.f32 %v8401, %v8414
    %v8423 = vadd.f32 %v8402, %v8410
    %v8424 = vadd.f32 %v8403, %v8414
    %v8425 = vadd.f32 %v8404, %v8410
    %v8426 = vadd.f32 %v8405, %v8414
    %vm8427 = vcmp.ge.f32.partialorder %v8417, 0.0
    %vm8428 = vcmp.ge.f32.partialorder %v8418, 0.0
    %vm8429 = vcmp.ge.f32.partialorder %v8419, 0.0
    %vm8430 = vcmp.ge.f32.partialorder %v8420, 0.0
    %vm8431 = vcmp.ge.f32.partialorder %v8421, 0.0
    %vm8432 = vcmp.ge.f32.partialorder %v8422, 0.0
    %vm8433 = vcmp.ge.f32.partialorder %v8423, 0.0
    %vm8434 = vcmp.ge.f32.partialorder %v8424, 0.0
    %vm8435 = vcmp.ge.f32.partialorder %v8425, 0.0
    %vm8436 = vcmp.ge.f32.partialorder %v8426, 0.0
    %v8437 = vmul.f32 %v8417, 0.2
    %v8438 = vmul.f32 %v8418, 0.2
    %v8439 = vmul.f32 %v8419, 0.2
    %v8440 = vmul.f32 %v8420, 0.2
    %v8441 = vmul.f32 %v8421, 0.2
    %v8442 = vmul.f32 %v8422, 0.2
    %v8443 = vmul.f32 %v8423, 0.2
    %v8444 = vmul.f32 %v8424, 0.2
    %v8445 = vmul.f32 %v8425, 0.2
    %v8446 = vmul.f32 %v8426, 0.2
    %v8447 = vsel %vm8427, %v8417, %v8437
    %v8448 = vsel %vm8428, %v8418, %v8438
    %v8449 = vsel %vm8429, %v8419, %v8439
    %v8450 = vsel %vm8430, %v8420, %v8440
    %v8451 = vsel %vm8431, %v8421, %v8441
    %v8452 = vsel %vm8432, %v8422, %v8442
    %v8453 = vsel %vm8433, %v8423, %v8443
    %v8454 = vsel %vm8434, %v8424, %v8444
    %v8455 = vsel %vm8435, %v8425, %v8445
    %v8456 = vsel %vm8436, %v8426, %v8446
    %v8457 = vld [vmem:[%s8] sm:$0xf]
    %v8458 = vld [vmem:[%s8 + $0x4] sm:$0xf]
    %v8459 = vld [vmem:[%s8 + $0x8] sm:$0x3]
    %v8460 = vpack.c.bf16 %v8449, %v8447
    %v8461 = vpack.c.bf16 %v8450, %v8448
    %v8462 = vpack.c.bf16 %v8453, %v8451
    %v8463 = vpack.c.bf16 %v8454, %v8452
    %v8464 = vpack.c.bf16 %v8455, %v8455
    %v8465 = vpack.c.bf16 %v8456, %v8456
    %v8469 = vunpack.c.l.b16 %v8457
    %v8470 = vunpack.c.l.b16 %v8458
    %v8471 = vunpack.c.l.b16 %v8459
    %v8472 = vpack.c.b16 %v8470, %v8469
    %v8473 = vpack.c.b16 %v8471, %v8471
    %v8475 = vsel %vm7888, %v8472, 0
    %v8478 = vsel %vm7888, %v8473, 0
    %v8481 = vand.u32 %v8464, %v6545
    %v8484 = vand.u32 %v8465, %v6545
    %8486 = vmatprep.subr.bf16.mxu0 %v8461
    %8487 = vmatpush1.bf16.msra.mxu0 %v8460
    %8488 = vmatprep.subr.bf16.mxu0 %v8463
    %8489 = vmatpush1.bf16.msra.mxu0 %v8462
    %8490 = vmatprep.subr.bf16.mxu0 %v8484
    %8491 = vmatpush1.bf16.msra.mxu0 %v8481
    %8492 = vmatprep.subr.bf16.mxu0 0
    %8493 = vmatpush1.bf16.msra.mxu0 0
    %8494 = vmatprep.subr.bf16.mxu0 0
    %8495 = vmatpush1.bf16.msra.mxu0 0
    %8496 = vmatprep.subr.bf16.mxu0 0
    %8497 = vmatpush1.bf16.msra.mxu0 0
    %8498 = vmatprep.subr.bf16.mxu0 0
    %8499 = vmatpush1.bf16.msra.mxu0 0
    %8500 = vmatprep.subr.bf16.mxu0 0
    %8501 = vmatpush1.bf16.msra.mxu0 0
    %8502 = vmatprep.subr.bf16.mxu0 0
    %8503 = vmatpush1.bf16.msra.mxu0 0
    %8504 = vmatprep.subr.bf16.mxu0 0
    %8505 = vmatpush1.bf16.msra.mxu0 0
    %8506 = vmatprep.subr.bf16.mxu0 0
    %8507 = vmatpush1.bf16.msra.mxu0 0
    %8508 = vmatprep.subr.bf16.mxu0 0
    %8509 = vmatpush1.bf16.msra.mxu0 0
    %8510 = vmatprep.subr.bf16.mxu0 0
    %8511 = vmatpush1.bf16.msra.mxu0 0
    %8512 = vmatprep.subr.bf16.mxu0 0
    %8513 = vmatpush1.bf16.msra.mxu0 0
    %8514 = vmatprep.subr.bf16.mxu0 0
    %8515 = vmatpush1.bf16.msra.mxu0 0
    %8516 = vmatprep.subr.bf16.mxu0 0
    %8517 = vmatpush1.bf16.msra.mxu0 0
    %8518 = vmatprep.mubr.bf16.mxu0 0
    %8519 = vmatmul.mubr.bf16.gmra.mrb[0].mxu0 %v8475
    %v8520 = vpop.f32.mrb[0].mxu0
    %v8521 = vadd.f32 0.0, %v8520
    %v8522 = vpop.f32.mrb[0].mxu0
    %v8523 = vadd.f32 0.0, %v8522
    %v8524 = vpop.f32.mrb[0].mxu0
    %v8525 = vadd.f32 0.0, %v8524
    %v8526 = vpop.f32.mrb[0].mxu0
    %v8527 = vadd.f32 0.0, %v8526
    %8528 = vmatprep.mubr.bf16.mxu0 0
    %8529 = vmatmul.mubr.bf16.gmra.mrb[0].mxu0 %v8478
    %v8530 = vpop.f32.mrb[0].mxu0
    %v8531 = vadd.f32 0.0, %v8530
    %v8532 = vpop.f32.mrb[0].mxu0
    %v8533 = vadd.f32 0.0, %v8532
    %v8534 = vpop.f32.mrb[0].mxu0
    %v8535 = vpop.f32.mrb[0].mxu0
    %8536 = vdwg.mxu0
    %v8537 = vpack.c.bf16 %v8525, %v8521
    %v8538 = vpack.c.bf16 %v8527, %v8523
    %v8539 = vpack.c.bf16 %v8531, %v8531
    %v8540 = vpack.c.bf16 %v8533, %v8533
    %v8545 = vunpack.c.l.b16 %v8537
    %v8546 = vunpack.c.l.b16 %v8538
    %v8547 = vunpack.c.h.b16 %v8537
    %v8548 = vunpack.c.h.b16 %v8538
    %v8549 = vunpack.c.l.b16 %v8539
    %v8550 = vunpack.c.l.b16 %v8540
    %v8551 = vpack.c.b16 %v8546, %v8545
    %v8552 = vpack.c.b16 %v8548, %v8547
    %v8553 = vpack.c.b16 %v8550, %v8549
    %8557 = vst [vmem:[#allocation4] sm:$0xff] %v8551
    %8558 = vst [vmem:[#allocation4 + $0x8] sm:$0xff] %v8552
    %8559 = vst [vmem:[#allocation4 + $0x10] sm:$0x33] %v8553
    %v8560 = vld [vmem:[#allocation4] sm:$0xff]
    %v8561 = vld [vmem:[#allocation4 + $0x8] sm:$0xff]
    %v8562 = vld [vmem:[#allocation4 + $0x10] sm:$0x11]
    %v8563 = vld [vmem:[%s4] sm:$0xff]
    %v8564 = vld [vmem:[%s4 + $0x8] sm:$0xff]
    %v8565 = vld [vmem:[%s4 + $0x10] sm:$0xff]
    %v8566 = vld [vmem:[%s4 + $0x18] sm:$0xff]
    %v8567 = vld [vmem:[%s4 + $0x20] sm:$0xff]
    %v8568 = vld [vmem:[%s4 + $0x28] sm:$0xff]
    %v8569 = vld [vmem:[%s4 + $0x30] sm:$0xff]
    %v8570 = vld [vmem:[%s4 + $0x38] sm:$0xff]
    %v8571 = vld [vmem:[%s4 + $0x40] sm:$0xff]
    %v8572 = vld [vmem:[%s4 + $0x48] sm:$0xff]
    %v8573 = vld [vmem:[%s4 + $0x50] sm:$0xff]
    %v8574 = vld [vmem:[%s4 + $0x58] sm:$0xff]
    %v8575 = vld [vmem:[%s4 + $0x60] sm:$0xff]
    %v8576 = vld [vmem:[%s4 + $0x68] sm:$0xff]
    %v8577 = vld [vmem:[%s4 + $0x70] sm:$0xff]
    %v8578 = vld [vmem:[%s4 + $0x78] sm:$0xff]
    %v8579 = vld [vmem:[%s4 + $0x80] sm:$0xff]
    %v8580 = vld [vmem:[%s4 + $0x88] sm:$0xff]
    %v8581 = vld [vmem:[%s4 + $0x90] sm:$0xff]
    %v8582 = vld [vmem:[%s4 + $0x98] sm:$0xff]
    %v8583 = vld [vmem:[%s4 + $0xa0] sm:$0xff]
    %v8584 = vld [vmem:[%s4 + $0xa8] sm:$0xff]
    %v8585 = vld [vmem:[%s4 + $0xb0] sm:$0xff]
    %v8586 = vld [vmem:[%s4 + $0xb8] sm:$0xff]
    %v8587 = vld [vmem:[%s4 + $0xc0] sm:$0xff]
    %v8588 = vld [vmem:[%s4 + $0xc8] sm:$0xff]
    %v8589 = vld [vmem:[%s4 + $0xd0] sm:$0xff]
    %v8590 = vld [vmem:[%s4 + $0xd8] sm:$0xff]
    %v8591 = vld [vmem:[%s4 + $0xe0] sm:$0xff]
    %v8592 = vld [vmem:[%s4 + $0xe8] sm:$0xff]
    %v8593 = vld [vmem:[%s4 + $0xf0] sm:$0xff]
    %v8594 = vld [vmem:[%s4 + $0xf8] sm:$0xff]
    %s8595 = scalar_lea.vmem %s4, 256
    %v8596 = vld [vmem:[%s8595] sm:$0xff]
    %v8597 = vld [vmem:[%s8595 + $0x8] sm:$0xff]
    %v8598 = vld [vmem:[%s8595 + $0x10] sm:$0xff]
    %v8599 = vld [vmem:[%s8595 + $0x18] sm:$0xff]
    %v8600 = vld [vmem:[%s8595 + $0x20] sm:$0xff]
    %v8601 = vld [vmem:[%s8595 + $0x28] sm:$0xff]
    %v8602 = vld [vmem:[%s8595 + $0x30] sm:$0xff]
    %v8603 = vld [vmem:[%s8595 + $0x38] sm:$0xff]
    %v8604 = vld [vmem:[%s8595 + $0x40] sm:$0xff]
    %v8605 = vld [vmem:[%s8595 + $0x48] sm:$0xff]
    %v8606 = vld [vmem:[%s8595 + $0x50] sm:$0xff]
    %v8607 = vld [vmem:[%s8595 + $0x58] sm:$0xff]
    %v8608 = vld [vmem:[%s8595 + $0x60] sm:$0xff]
    %v8609 = vld [vmem:[%s8595 + $0x68] sm:$0xff]
    %v8610 = vld [vmem:[%s8595 + $0x70] sm:$0xff]
    %v8611 = vld [vmem:[%s8595 + $0x78] sm:$0xff]
    %v8612 = vld [vmem:[%s8595 + $0x80] sm:$0xff]
    %v8613 = vld [vmem:[%s8595 + $0x88] sm:$0xff]
    %v8614 = vld [vmem:[%s8595 + $0x90] sm:$0xff]
    %v8615 = vld [vmem:[%s8595 + $0x98] sm:$0xff]
    %v8616 = vld [vmem:[%s8595 + $0xa0] sm:$0xff]
    %v8617 = vld [vmem:[%s8595 + $0xa8] sm:$0xff]
    %v8618 = vld [vmem:[%s8595 + $0xb0] sm:$0xff]
    %v8619 = vld [vmem:[%s8595 + $0xb8] sm:$0xff]
    %v8620 = vld [vmem:[%s8595 + $0xc0] sm:$0xff]
    %v8621 = vld [vmem:[%s8595 + $0xc8] sm:$0xff]
    %v8622 = vld [vmem:[%s8595 + $0xd0] sm:$0xff]
    %v8623 = vld [vmem:[%s8595 + $0xd8] sm:$0xff]
    %v8624 = vld [vmem:[%s8595 + $0xe0] sm:$0xff]
    %v8625 = vld [vmem:[%s8595 + $0xe8] sm:$0xff]
    %v8626 = vld [vmem:[%s8595 + $0xf0] sm:$0xff]
    %v8627 = vld [vmem:[%s8595 + $0xf8] sm:$0xff]
    %v8631 = vunpack.c.l.b16 %v8560
    %v8632 = vunpack.c.h.b16 %v8560
    %v8633 = vunpack.c.l.b16 %v8561
    %v8634 = vunpack.c.h.b16 %v8561
    %v8635 = vunpack.c.l.b16 %v8562
    %v8636 = vunpack.c.h.b16 %v8562
    %v8637 = vpack.c.b16 %v8633, %v8631
    %v8638 = vpack.c.b16 %v8634, %v8632
    %v8639 = vpack.c.b16 %v8635, %v8635
    %v8640 = vpack.c.b16 %v8636, %v8636
    %v8642 = vshrl.u32 %v8637, 16
    %v8644 = vshll.u32 %v8637, 16
    %v8646 = vrot.slane %v8644, 1
    %v8647 = vor.u32 %v8642, %v8646
    %v8649 = vshll.u32 %v8639, 16
    %v8651 = vrot.slane %v8649, 1
    %v8652 = vsel %vm437, %v8647, %v8651
    %v8654 = vshrl.u32 %v8638, 16
    %v8656 = vshll.u32 %v8638, 16
    %v8658 = vrot.slane %v8656, 1
    %v8659 = vor.u32 %v8654, %v8658
    %v8661 = vshll.u32 %v8640, 16
    %v8663 = vrot.slane %v8661, 1
    %v8664 = vsel %vm437, %v8659, %v8663
    %v8665 = vshrl.u32 %v8639, 16
    %v8667 = vshrl.u32 %v8640, 16
    %v8705 = vunpack.c.l.b16 %v8596
    %v8706 = vunpack.c.h.b16 %v8596
    %v8707 = vunpack.c.l.b16 %v8597
    %v8708 = vunpack.c.h.b16 %v8597
    %v8709 = vunpack.c.l.b16 %v8598
    %v8710 = vunpack.c.h.b16 %v8598
    %v8711 = vunpack.c.l.b16 %v8599
    %v8712 = vunpack.c.h.b16 %v8599
    %v8713 = vunpack.c.l.b16 %v8600
    %v8714 = vunpack.c.h.b16 %v8600
    %v8715 = vunpack.c.l.b16 %v8601
    %v8716 = vunpack.c.h.b16 %v8601
    %v8717 = vunpack.c.l.b16 %v8602
    %v8718 = vunpack.c.h.b16 %v8602
    %v8719 = vunpack.c.l.b16 %v8603
    %v8720 = vunpack.c.h.b16 %v8603
    %v8721 = vunpack.c.l.b16 %v8604
    %v8722 = vunpack.c.h.b16 %v8604
    %v8723 = vunpack.c.l.b16 %v8605
    %v8724 = vunpack.c.h.b16 %v8605
    %v8725 = vunpack.c.l.b16 %v8606
    %v8726 = vunpack.c.h.b16 %v8606
    %v8727 = vunpack.c.l.b16 %v8607
    %v8728 = vunpack.c.h.b16 %v8607
    %v8729 = vunpack.c.l.b16 %v8608
    %v8730 = vunpack.c.h.b16 %v8608
    %v8731 = vunpack.c.l.b16 %v8609
    %v8732 = vunpack.c.h.b16 %v8609
    %v8733 = vunpack.c.l.b16 %v8610
    %v8734 = vunpack.c.h.b16 %v8610
    %v8735 = vunpack.c.l.b16 %v8611
    %v8736 = vunpack.c.h.b16 %v8611
    %v8737 = vunpack.c.l.b16 %v8612
    %v8738 = vunpack.c.h.b16 %v8612
    %v8739 = vunpack.c.l.b16 %v8613
    %v8740 = vunpack.c.h.b16 %v8613
    %v8741 = vunpack.c.l.b16 %v8614
    %v8742 = vunpack.c.h.b16 %v8614
    %v8743 = vunpack.c.l.b16 %v8615
    %v8744 = vunpack.c.h.b16 %v8615
    %v8745 = vunpack.c.l.b16 %v8616
    %v8746 = vunpack.c.h.b16 %v8616
    %v8747 = vunpack.c.l.b16 %v8617
    %v8748 = vunpack.c.h.b16 %v8617
    %v8749 = vunpack.c.l.b16 %v8618
    %v8750 = vunpack.c.h.b16 %v8618
    %v8751 = vunpack.c.l.b16 %v8619
    %v8752 = vunpack.c.h.b16 %v8619
    %v8753 = vunpack.c.l.b16 %v8620
    %v8754 = vunpack.c.h.b16 %v8620
    %v8755 = vunpack.c.l.b16 %v8621
    %v8756 = vunpack.c.h.b16 %v8621
    %v8757 = vunpack.c.l.b16 %v8622
    %v8758 = vunpack.c.h.b16 %v8622
    %v8759 = vunpack.c.l.b16 %v8623
    %v8760 = vunpack.c.h.b16 %v8623
    %v8761 = vunpack.c.l.b16 %v8624
    %v8762 = vunpack.c.h.b16 %v8624
    %v8763 = vunpack.c.l.b16 %v8625
    %v8764 = vunpack.c.h.b16 %v8625
    %v8765 = vunpack.c.l.b16 %v8626
    %v8766 = vunpack.c.h.b16 %v8626
    %v8767 = vunpack.c.l.b16 %v8627
    %v8768 = vunpack.c.h.b16 %v8627
    %v8769 = vpack.c.b16 %v8707, %v8705
    %v8770 = vpack.c.b16 %v8708, %v8706
    %v8771 = vpack.c.b16 %v8711, %v8709
    %v8772 = vpack.c.b16 %v8712, %v8710
    %v8773 = vpack.c.b16 %v8715, %v8713
    %v8774 = vpack.c.b16 %v8716, %v8714
    %v8775 = vpack.c.b16 %v8719, %v8717
    %v8776 = vpack.c.b16 %v8720, %v8718
    %v8777 = vpack.c.b16 %v8723, %v8721
    %v8778 = vpack.c.b16 %v8724, %v8722
    %v8779 = vpack.c.b16 %v8727, %v8725
    %v8780 = vpack.c.b16 %v8728, %v8726
    %v8781 = vpack.c.b16 %v8731, %v8729
    %v8782 = vpack.c.b16 %v8732, %v8730
    %v8783 = vpack.c.b16 %v8735, %v8733
    %v8784 = vpack.c.b16 %v8736, %v8734
    %v8785 = vpack.c.b16 %v8739, %v8737
    %v8786 = vpack.c.b16 %v8740, %v8738
    %v8787 = vpack.c.b16 %v8743, %v8741
    %v8788 = vpack.c.b16 %v8744, %v8742
    %v8789 = vpack.c.b16 %v8747, %v8745
    %v8790 = vpack.c.b16 %v8748, %v8746
    %v8791 = vpack.c.b16 %v8751, %v8749
    %v8792 = vpack.c.b16 %v8752, %v8750
    %v8793 = vpack.c.b16 %v8755, %v8753
    %v8794 = vpack.c.b16 %v8756, %v8754
    %v8795 = vpack.c.b16 %v8759, %v8757
    %v8796 = vpack.c.b16 %v8760, %v8758
    %v8797 = vpack.c.b16 %v8763, %v8761
    %v8798 = vpack.c.b16 %v8764, %v8762
    %v8799 = vpack.c.b16 %v8767, %v8765
    %v8800 = vpack.c.b16 %v8768, %v8766
    %8833 = vmatprep.subr.bf16.mxu0 %v8770
    %8834 = vmatpush1.bf16.msra.mxu0 %v8769
    %8835 = vmatprep.subr.bf16.mxu0 %v8772
    %8836 = vmatpush1.bf16.msra.mxu0 %v8771
    %8837 = vmatprep.subr.bf16.mxu0 %v8774
    %8838 = vmatpush1.bf16.msra.mxu0 %v8773
    %8839 = vmatprep.subr.bf16.mxu0 %v8776
    %8840 = vmatpush1.bf16.msra.mxu0 %v8775
    %8841 = vmatprep.subr.bf16.mxu0 %v8778
    %8842 = vmatpush1.bf16.msra.mxu0 %v8777
    %8843 = vmatprep.subr.bf16.mxu0 %v8780
    %8844 = vmatpush1.bf16.msra.mxu0 %v8779
    %8845 = vmatprep.subr.bf16.mxu0 %v8782
    %8846 = vmatpush1.bf16.msra.mxu0 %v8781
    %8847 = vmatprep.subr.bf16.mxu0 %v8784
    %8848 = vmatpush1.bf16.msra.mxu0 %v8783
    %8849 = vmatprep.subr.bf16.mxu0 %v8786
    %8850 = vmatpush1.bf16.msra.mxu0 %v8785
    %8851 = vmatprep.subr.bf16.mxu0 %v8788
    %8852 = vmatpush1.bf16.msra.mxu0 %v8787
    %8853 = vmatprep.subr.bf16.mxu0 %v8790
    %8854 = vmatpush1.bf16.msra.mxu0 %v8789
    %8855 = vmatprep.subr.bf16.mxu0 %v8792
    %8856 = vmatpush1.bf16.msra.mxu0 %v8791
    %8857 = vmatprep.subr.bf16.mxu0 %v8794
    %8858 = vmatpush1.bf16.msra.mxu0 %v8793
    %8859 = vmatprep.subr.bf16.mxu0 %v8796
    %8860 = vmatpush1.bf16.msra.mxu0 %v8795
    %8861 = vmatprep.subr.bf16.mxu0 %v8798
    %8862 = vmatpush1.bf16.msra.mxu0 %v8797
    %8863 = vmatprep.subr.bf16.mxu0 %v8800
    %8864 = vmatpush1.bf16.msra.mxu0 %v8799
    %8865 = vmatprep.mubr.bf16.mxu0 %v8664
    %8866 = vmatmul.mubr.bf16.gmra.mrb[0].mxu0 %v8652
    %v8867 = vpop.f32.mrb[0].mxu0
    %v8868 = vadd.f32 0.0, %v8867
    %v8869 = vpop.f32.mrb[0].mxu0
    %v8870 = vadd.f32 0.0, %v8869
    %v8871 = vpop.f32.mrb[0].mxu0
    %v8872 = vadd.f32 0.0, %v8871
    %v8873 = vpop.f32.mrb[0].mxu0
    %v8874 = vadd.f32 0.0, %v8873
    %8875 = vmatprep.mubr.bf16.mxu0 %v8667
    %8876 = vmatmul.mubr.bf16.gmra.mrb[0].mxu0 %v8665
    %v8877 = vpop.f32.mrb[0].mxu0
    %v8878 = vadd.f32 0.0, %v8877
    %v8879 = vpop.f32.mrb[0].mxu0
    %v8880 = vadd.f32 0.0, %v8879
    %v8881 = vpop.f32.mrb[0].mxu0
    %v8882 = vpop.f32.mrb[0].mxu0
    %8883 = vdwg.mxu0
    %v8920 = vunpack.c.l.b16 %v8563
    %v8921 = vunpack.c.h.b16 %v8563
    %v8922 = vunpack.c.l.b16 %v8564
    %v8923 = vunpack.c.h.b16 %v8564
    %v8924 = vunpack.c.l.b16 %v8565
    %v8925 = vunpack.c.h.b16 %v8565
    %v8926 = vunpack.c.l.b16 %v8566
    %v8927 = vunpack.c.h.b16 %v8566
    %v8928 = vunpack.c.l.b16 %v8567
    %v8929 = vunpack.c.h.b16 %v8567
    %v8930 = vunpack.c.l.b16 %v8568
    %v8931 = vunpack.c.h.b16 %v8568
    %v8932 = vunpack.c.l.b16 %v8569
    %v8933 = vunpack.c.h.b16 %v8569
    %v8934 = vunpack.c.l.b16 %v8570
    %v8935 = vunpack.c.h.b16 %v8570
    %v8936 = vunpack.c.l.b16 %v8571
    %v8937 = vunpack.c.h.b16 %v8571
    %v8938 = vunpack.c.l.b16 %v8572
    %v8939 = vunpack.c.h.b16 %v8572
    %v8940 = vunpack.c.l.b16 %v8573
    %v8941 = vunpack.c.h.b16 %v8573
    %v8942 = vunpack.c.l.b16 %v8574
    %v8943 = vunpack.c.h.b16 %v8574
    %v8944 = vunpack.c.l.b16 %v8575
    %v8945 = vunpack.c.h.b16 %v8575
    %v8946 = vunpack.c.l.b16 %v8576
    %v8947 = vunpack.c.h.b16 %v8576
    %v8948 = vunpack.c.l.b16 %v8577
    %v8949 = vunpack.c.h.b16 %v8577
    %v8950 = vunpack.c.l.b16 %v8578
    %v8951 = vunpack.c.h.b16 %v8578
    %v8952 = vunpack.c.l.b16 %v8579
    %v8953 = vunpack.c.h.b16 %v8579
    %v8954 = vunpack.c.l.b16 %v8580
    %v8955 = vunpack.c.h.b16 %v8580
    %v8956 = vunpack.c.l.b16 %v8581
    %v8957 = vunpack.c.h.b16 %v8581
    %v8958 = vunpack.c.l.b16 %v8582
    %v8959 = vunpack.c.h.b16 %v8582
    %v8960 = vunpack.c.l.b16 %v8583
    %v8961 = vunpack.c.h.b16 %v8583
    %v8962 = vunpack.c.l.b16 %v8584
    %v8963 = vunpack.c.h.b16 %v8584
    %v8964 = vunpack.c.l.b16 %v8585
    %v8965 = vunpack.c.h.b16 %v8585
    %v8966 = vunpack.c.l.b16 %v8586
    %v8967 = vunpack.c.h.b16 %v8586
    %v8968 = vunpack.c.l.b16 %v8587
    %v8969 = vunpack.c.h.b16 %v8587
    %v8970 = vunpack.c.l.b16 %v8588
    %v8971 = vunpack.c.h.b16 %v8588
    %v8972 = vunpack.c.l.b16 %v8589
    %v8973 = vunpack.c.h.b16 %v8589
    %v8974 = vunpack.c.l.b16 %v8590
    %v8975 = vunpack.c.h.b16 %v8590
    %v8976 = vunpack.c.l.b16 %v8591
    %v8977 = vunpack.c.h.b16 %v8591
    %v8978 = vunpack.c.l.b16 %v8592
    %v8979 = vunpack.c.h.b16 %v8592
    %v8980 = vunpack.c.l.b16 %v8593
    %v8981 = vunpack.c.h.b16 %v8593
    %v8982 = vunpack.c.l.b16 %v8594
    %v8983 = vunpack.c.h.b16 %v8594
    %v8984 = vpack.c.b16 %v8922, %v8920
    %v8985 = vpack.c.b16 %v8923, %v8921
    %v8986 = vpack.c.b16 %v8926, %v8924
    %v8987 = vpack.c.b16 %v8927, %v8925
    %v8988 = vpack.c.b16 %v8930, %v8928
    %v8989 = vpack.c.b16 %v8931, %v8929
    %v8990 = vpack.c.b16 %v8934, %v8932
    %v8991 = vpack.c.b16 %v8935, %v8933
    %v8992 = vpack.c.b16 %v8938, %v8936
    %v8993 = vpack.c.b16 %v8939, %v8937
    %v8994 = vpack.c.b16 %v8942, %v8940
    %v8995 = vpack.c.b16 %v8943, %v8941
    %v8996 = vpack.c.b16 %v8946, %v8944
    %v8997 = vpack.c.b16 %v8947, %v8945
    %v8998 = vpack.c.b16 %v8950, %v8948
    %v8999 = vpack.c.b16 %v8951, %v8949
    %v9000 = vpack.c.b16 %v8954, %v8952
    %v9001 = vpack.c.b16 %v8955, %v8953
    %v9002 = vpack.c.b16 %v8958, %v8956
    %v9003 = vpack.c.b16 %v8959, %v8957
    %v9004 = vpack.c.b16 %v8962, %v8960
    %v9005 = vpack.c.b16 %v8963, %v8961
    %v9006 = vpack.c.b16 %v8966, %v8964
    %v9007 = vpack.c.b16 %v8967, %v8965
    %v9008 = vpack.c.b16 %v8970, %v8968
    %v9009 = vpack.c.b16 %v8971, %v8969
    %v9010 = vpack.c.b16 %v8974, %v8972
    %v9011 = vpack.c.b16 %v8975, %v8973
    %v9012 = vpack.c.b16 %v8978, %v8976
    %v9013 = vpack.c.b16 %v8979, %v8977
    %v9014 = vpack.c.b16 %v8982, %v8980
    %v9015 = vpack.c.b16 %v8983, %v8981
    %9048 = vmatprep.subr.bf16.mxu0 %v8985
    %9049 = vmatpush1.bf16.msra.mxu0 %v8984
    %9050 = vmatprep.subr.bf16.mxu0 %v8987
    %9051 = vmatpush1.bf16.msra.mxu0 %v8986
    %9052 = vmatprep.subr.bf16.mxu0 %v8989
    %9053 = vmatpush1.bf16.msra.mxu0 %v8988
    %9054 = vmatprep.subr.bf16.mxu0 %v8991
    %9055 = vmatpush1.bf16.msra.mxu0 %v8990
    %9056 = vmatprep.subr.bf16.mxu0 %v8993
    %9057 = vmatpush1.bf16.msra.mxu0 %v8992
    %9058 = vmatprep.subr.bf16.mxu0 %v8995
    %9059 = vmatpush1.bf16.msra.mxu0 %v8994
    %9060 = vmatprep.subr.bf16.mxu0 %v8997
    %9061 = vmatpush1.bf16.msra.mxu0 %v8996
    %9062 = vmatprep.subr.bf16.mxu0 %v8999
    %9063 = vmatpush1.bf16.msra.mxu0 %v8998
    %9064 = vmatprep.subr.bf16.mxu0 %v9001
    %9065 = vmatpush1.bf16.msra.mxu0 %v9000
    %9066 = vmatprep.subr.bf16.mxu0 %v9003
    %9067 = vmatpush1.bf16.msra.mxu0 %v9002
    %9068 = vmatprep.subr.bf16.mxu0 %v9005
    %9069 = vmatpush1.bf16.msra.mxu0 %v9004
    %9070 = vmatprep.subr.bf16.mxu0 %v9007
    %9071 = vmatpush1.bf16.msra.mxu0 %v9006
    %9072 = vmatprep.subr.bf16.mxu0 %v9009
    %9073 = vmatpush1.bf16.msra.mxu0 %v9008
    %9074 = vmatprep.subr.bf16.mxu0 %v9011
    %9075 = vmatpush1.bf16.msra.mxu0 %v9010
    %9076 = vmatprep.subr.bf16.mxu0 %v9013
    %9077 = vmatpush1.bf16.msra.mxu0 %v9012
    %9078 = vmatprep.subr.bf16.mxu0 %v9015
    %9079 = vmatpush1.bf16.msra.mxu0 %v9014
    %9080 = vmatprep.mubr.bf16.mxu0 %v8638
    %9081 = vmatmul.mubr.bf16.gmra.mrb[0].mxu0 %v8637
    %v9082 = vpop.f32.mrb[0].mxu0
    %v9083 = vadd.f32 %v8868, %v9082
    %v9084 = vpop.f32.mrb[0].mxu0
    %v9085 = vadd.f32 %v8870, %v9084
    %v9086 = vpop.f32.mrb[0].mxu0
    %v9087 = vadd.f32 %v8872, %v9086
    %v9088 = vpop.f32.mrb[0].mxu0
    %v9089 = vadd.f32 %v8874, %v9088
    %9090 = vmatprep.mubr.bf16.mxu0 %v8640
    %9091 = vmatmul.mubr.bf16.gmra.mrb[0].mxu0 %v8639
    %v9092 = vpop.f32.mrb[0].mxu0
    %v9093 = vadd.f32 %v8878, %v9092
    %v9094 = vpop.f32.mrb[0].mxu0
    %v9095 = vadd.f32 %v8880, %v9094
    %v9096 = vpop.f32.mrb[0].mxu0
    %v9097 = vpop.f32.mrb[0].mxu0
    %9098 = vdwg.mxu0
    %v9099 = vld [vmem:[#allocation4] sm:$0xee]
    %v9100 = vld [vmem:[#allocation4 + $0x10] sm:$0x33]
    %s9101 = scalar_lea.vmem %s4, 512
    %v9102 = vld [vmem:[%s9101] sm:$0xff]
    %v9103 = vld [vmem:[%s9101 + $0x8] sm:$0xff]
    %v9104 = vld [vmem:[%s9101 + $0x10] sm:$0xff]
    %v9105 = vld [vmem:[%s9101 + $0x18] sm:$0xff]
    %v9106 = vld [vmem:[%s9101 + $0x20] sm:$0xff]
    %v9107 = vld [vmem:[%s9101 + $0x28] sm:$0xff]
    %v9108 = vld [vmem:[%s9101 + $0x30] sm:$0xff]
    %v9109 = vld [vmem:[%s9101 + $0x38] sm:$0xff]
    %v9110 = vld [vmem:[%s9101 + $0x40] sm:$0xff]
    %v9111 = vld [vmem:[%s9101 + $0x48] sm:$0xff]
    %v9112 = vld [vmem:[%s9101 + $0x50] sm:$0xff]
    %v9113 = vld [vmem:[%s9101 + $0x58] sm:$0xff]
    %v9114 = vld [vmem:[%s9101 + $0x60] sm:$0xff]
    %v9115 = vld [vmem:[%s9101 + $0x68] sm:$0xff]
    %v9116 = vld [vmem:[%s9101 + $0x70] sm:$0xff]
    %v9117 = vld [vmem:[%s9101 + $0x78] sm:$0xff]
    %v9118 = vld [vmem:[%s9101 + $0x80] sm:$0xff]
    %v9119 = vld [vmem:[%s9101 + $0x88] sm:$0xff]
    %v9120 = vld [vmem:[%s9101 + $0x90] sm:$0xff]
    %v9121 = vld [vmem:[%s9101 + $0x98] sm:$0xff]
    %v9122 = vld [vmem:[%s9101 + $0xa0] sm:$0xff]
    %v9123 = vld [vmem:[%s9101 + $0xa8] sm:$0xff]
    %v9124 = vld [vmem:[%s9101 + $0xb0] sm:$0xff]
    %v9125 = vld [vmem:[%s9101 + $0xb8] sm:$0xff]
    %v9126 = vld [vmem:[%s9101 + $0xc0] sm:$0xff]
    %v9127 = vld [vmem:[%s9101 + $0xc8] sm:$0xff]
    %v9128 = vld [vmem:[%s9101 + $0xd0] sm:$0xff]
    %v9129 = vld [vmem:[%s9101 + $0xd8] sm:$0xff]
    %v9130 = vld [vmem:[%s9101 + $0xe0] sm:$0xff]
    %v9131 = vld [vmem:[%s9101 + $0xe8] sm:$0xff]
    %v9132 = vld [vmem:[%s9101 + $0xf0] sm:$0xff]
    %v9133 = vld [vmem:[%s9101 + $0xf8] sm:$0xff]
    %v9136 = vunpack.c.l.b16 %v9099
    %v9137 = vunpack.c.h.b16 %v9099
    %v9138 = vunpack.c.l.b16 %v9100
    %v9139 = vunpack.c.h.b16 %v9100
    %v9140 = vpack.c.b16 %v8633, %v9136
    %v9141 = vpack.c.b16 %v8634, %v9137
    %v9142 = vpack.c.b16 %v9138, %v9138
    %v9143 = vpack.c.b16 %v9139, %v9139
    %v9144 = vrot.slane %v9140, 1
    %v9145 = vrot.slane %v9142, 1
    %v9146 = vsel %vm1866, %v9144, %v9145
    %v9147 = vrot.slane %v9141, 1
    %v9148 = vrot.slane %v9143, 1
    %v9149 = vsel %vm1866, %v9147, %v9148
    %v9186 = vunpack.c.l.b16 %v9102
    %v9187 = vunpack.c.h.b16 %v9102
    %v9188 = vunpack.c.l.b16 %v9103
    %v9189 = vunpack.c.h.b16 %v9103
    %v9190 = vunpack.c.l.b16 %v9104
    %v9191 = vunpack.c.h.b16 %v9104
    %v9192 = vunpack.c.l.b16 %v9105
    %v9193 = vunpack.c.h.b16 %v9105
    %v9194 = vunpack.c.l.b16 %v9106
    %v9195 = vunpack.c.h.b16 %v9106
    %v9196 = vunpack.c.l.b16 %v9107
    %v9197 = vunpack.c.h.b16 %v9107
    %v9198 = vunpack.c.l.b16 %v9108
    %v9199 = vunpack.c.h.b16 %v9108
    %v9200 = vunpack.c.l.b16 %v9109
    %v9201 = vunpack.c.h.b16 %v9109
    %v9202 = vunpack.c.l.b16 %v9110
    %v9203 = vunpack.c.h.b16 %v9110
    %v9204 = vunpack.c.l.b16 %v9111
    %v9205 = vunpack.c.h.b16 %v9111
    %v9206 = vunpack.c.l.b16 %v9112
    %v9207 = vunpack.c.h.b16 %v9112
    %v9208 = vunpack.c.l.b16 %v9113
    %v9209 = vunpack.c.h.b16 %v9113
    %v9210 = vunpack.c.l.b16 %v9114
    %v9211 = vunpack.c.h.b16 %v9114
    %v9212 = vunpack.c.l.b16 %v9115
    %v9213 = vunpack.c.h.b16 %v9115
    %v9214 = vunpack.c.l.b16 %v9116
    %v9215 = vunpack.c.h.b16 %v9116
    %v9216 = vunpack.c.l.b16 %v9117
    %v9217 = vunpack.c.h.b16 %v9117
    %v9218 = vunpack.c.l.b16 %v9118
    %v9219 = vunpack.c.h.b16 %v9118
    %v9220 = vunpack.c.l.b16 %v9119
    %v9221 = vunpack.c.h.b16 %v9119
    %v9222 = vunpack.c.l.b16 %v9120
    %v9223 = vunpack.c.h.b16 %v9120
    %v9224 = vunpack.c.l.b16 %v9121
    %v9225 = vunpack.c.h.b16 %v9121
    %v9226 = vunpack.c.l.b16 %v9122
    %v9227 = vunpack.c.h.b16 %v9122
    %v9228 = vunpack.c.l.b16 %v9123
    %v9229 = vunpack.c.h.b16 %v9123
    %v9230 = vunpack.c.l.b16 %v9124
    %v9231 = vunpack.c.h.b16 %v9124
    %v9232 = vunpack.c.l.b16 %v9125
    %v9233 = vunpack.c.h.b16 %v9125
    %v9234 = vunpack.c.l.b16 %v9126
    %v9235 = vunpack.c.h.b16 %v9126
    %v9236 = vunpack.c.l.b16 %v9127
    %v9237 = vunpack.c.h.b16 %v9127
    %v9238 = vunpack.c.l.b16 %v9128
    %v9239 = vunpack.c.h.b16 %v9128
    %v9240 = vunpack.c.l.b16 %v9129
    %v9241 = vunpack.c.h.b16 %v9129
    %v9242 = vunpack.c.l.b16 %v9130
    %v9243 = vunpack.c.h.b16 %v9130
    %v9244 = vunpack.c.l.b16 %v9131
    %v9245 = vunpack.c.h.b16 %v9131
    %v9246 = vunpack.c.l.b16 %v9132
    %v9247 = vunpack.c.h.b16 %v9132
    %v9248 = vunpack.c.l.b16 %v9133
    %v9249 = vunpack.c.h.b16 %v9133
    %v9250 = vpack.c.b16 %v9188, %v9186
    %v9251 = vpack.c.b16 %v9189, %v9187
    %v9252 = vpack.c.b16 %v9192, %v9190
    %v9253 = vpack.c.b16 %v9193, %v9191
    %v9254 = vpack.c.b16 %v9196, %v9194
    %v9255 = vpack.c.b16 %v9197, %v9195
    %v9256 = vpack.c.b16 %v9200, %v9198
    %v9257 = vpack.c.b16 %v9201, %v9199
    %v9258 = vpack.c.b16 %v9204, %v9202
    %v9259 = vpack.c.b16 %v9205, %v9203
    %v9260 = vpack.c.b16 %v9208, %v9206
    %v9261 = vpack.c.b16 %v9209, %v9207
    %v9262 = vpack.c.b16 %v9212, %v9210
    %v9263 = vpack.c.b16 %v9213, %v9211
    %v9264 = vpack.c.b16 %v9216, %v9214
    %v9265 = vpack.c.b16 %v9217, %v9215
    %v9266 = vpack.c.b16 %v9220, %v9218
    %v9267 = vpack.c.b16 %v9221, %v9219
    %v9268 = vpack.c.b16 %v9224, %v9222
    %v9269 = vpack.c.b16 %v9225, %v9223
    %v9270 = vpack.c.b16 %v9228, %v9226
    %v9271 = vpack.c.b16 %v9229, %v9227
    %v9272 = vpack.c.b16 %v9232, %v9230
    %v9273 = vpack.c.b16 %v9233, %v9231
    %v9274 = vpack.c.b16 %v9236, %v9234
    %v9275 = vpack.c.b16 %v9237, %v9235
    %v9276 = vpack.c.b16 %v9240, %v9238
    %v9277 = vpack.c.b16 %v9241, %v9239
    %v9278 = vpack.c.b16 %v9244, %v9242
    %v9279 = vpack.c.b16 %v9245, %v9243
    %v9280 = vpack.c.b16 %v9248, %v9246
    %v9281 = vpack.c.b16 %v9249, %v9247
    %9314 = vmatprep.subr.bf16.mxu0 %v9251
    %9315 = vmatpush1.bf16.msra.mxu0 %v9250
    %9316 = vmatprep.subr.bf16.mxu0 %v9253
    %9317 = vmatpush1.bf16.msra.mxu0 %v9252
    %9318 = vmatprep.subr.bf16.mxu0 %v9255
    %9319 = vmatpush1.bf16.msra.mxu0 %v9254
    %9320 = vmatprep.subr.bf16.mxu0 %v9257
    %9321 = vmatpush1.bf16.msra.mxu0 %v9256
    %9322 = vmatprep.subr.bf16.mxu0 %v9259
    %9323 = vmatpush1.bf16.msra.mxu0 %v9258
    %9324 = vmatprep.subr.bf16.mxu0 %v9261
    %9325 = vmatpush1.bf16.msra.mxu0 %v9260
    %9326 = vmatprep.subr.bf16.mxu0 %v9263
    %9327 = vmatpush1.bf16.msra.mxu0 %v9262
    %9328 = vmatprep.subr.bf16.mxu0 %v9265
    %9329 = vmatpush1.bf16.msra.mxu0 %v9264
    %9330 = vmatprep.subr.bf16.mxu0 %v9267
    %9331 = vmatpush1.bf16.msra.mxu0 %v9266
    %9332 = vmatprep.subr.bf16.mxu0 %v9269
    %9333 = vmatpush1.bf16.msra.mxu0 %v9268
    %9334 = vmatprep.subr.bf16.mxu0 %v9271
    %9335 = vmatpush1.bf16.msra.mxu0 %v9270
    %9336 = vmatprep.subr.bf16.mxu0 %v9273
    %9337 = vmatpush1.bf16.msra.mxu0 %v9272
    %9338 = vmatprep.subr.bf16.mxu0 %v9275
    %9339 = vmatpush1.bf16.msra.mxu0 %v9274
    %9340 = vmatprep.subr.bf16.mxu0 %v9277
    %9341 = vmatpush1.bf16.msra.mxu0 %v9276
    %9342 = vmatprep.subr.bf16.mxu0 %v9279
    %9343 = vmatpush1.bf16.msra.mxu0 %v9278
    %9344 = vmatprep.subr.bf16.mxu0 %v9281
    %9345 = vmatpush1.bf16.msra.mxu0 %v9280
    %9346 = vmatprep.mubr.bf16.mxu0 %v9149
    %9347 = vmatmul.mubr.bf16.gmra.mrb[0].mxu0 %v9146
    %v9348 = vpop.f32.mrb[0].mxu0
    %v9349 = vadd.f32 0.0, %v9348
    %v9350 = vpop.f32.mrb[0].mxu0
    %v9351 = vadd.f32 0.0, %v9350
    %v9352 = vpop.f32.mrb[0].mxu0
    %v9353 = vadd.f32 0.0, %v9352
    %v9354 = vpop.f32.mrb[0].mxu0
    %v9355 = vadd.f32 0.0, %v9354
    %9356 = vmatprep.mubr.bf16.mxu0 %v9148
    %9357 = vmatmul.mubr.bf16.gmra.mrb[0].mxu0 %v9145
    %v9358 = vpop.f32.mrb[0].mxu0
    %v9359 = vadd.f32 0.0, %v9358
    %v9360 = vpop.f32.mrb[0].mxu0
    %v9361 = vadd.f32 0.0, %v9360
    %v9362 = vpop.f32.mrb[0].mxu0
    %v9363 = vpop.f32.mrb[0].mxu0
    %9364 = vdwg.mxu0
    %v9365 = vadd.f32 %v9083, %v9349
    %v9366 = vadd.f32 %v9085, %v9351
    %v9367 = vadd.f32 %v9087, %v9353
    %v9368 = vadd.f32 %v9089, %v9355
    %v9369 = vadd.f32 %v9093, %v9359
    %v9370 = vadd.f32 %v9095, %v9361
    %s9371 = scalar_lea.vmem %s4, 768
    %v9372 = vld [vmem:[%s9371] sm:$0xff]
    %v9373 = vld [vmem:[%s9371 + $0x8] sm:$0xff]
    %v9374 = vld [vmem:[%s9371 + $0x10] sm:$0xff]
    %v9375 = vld [vmem:[%s9371 + $0x18] sm:$0xff]
    %v9376 = vld [vmem:[%s9371 + $0x20] sm:$0xff]
    %v9377 = vld [vmem:[%s9371 + $0x28] sm:$0xff]
    %v9378 = vld [vmem:[%s9371 + $0x30] sm:$0xff]
    %v9379 = vld [vmem:[%s9371 + $0x38] sm:$0xff]
    %v9380 = vld [vmem:[%s9371 + $0x40] sm:$0xff]
    %v9381 = vld [vmem:[%s9371 + $0x48] sm:$0xff]
    %v9382 = vld [vmem:[%s9371 + $0x50] sm:$0xff]
    %v9383 = vld [vmem:[%s9371 + $0x58] sm:$0xff]
    %v9384 = vld [vmem:[%s9371 + $0x60] sm:$0xff]
    %v9385 = vld [vmem:[%s9371 + $0x68] sm:$0xff]
    %v9386 = vld [vmem:[%s9371 + $0x70] sm:$0xff]
    %v9387 = vld [vmem:[%s9371 + $0x78] sm:$0xff]
    %v9388 = vld [vmem:[%s9371 + $0x80] sm:$0xff]
    %v9389 = vld [vmem:[%s9371 + $0x88] sm:$0xff]
    %v9390 = vld [vmem:[%s9371 + $0x90] sm:$0xff]
    %v9391 = vld [vmem:[%s9371 + $0x98] sm:$0xff]
    %v9392 = vld [vmem:[%s9371 + $0xa0] sm:$0xff]
    %v9393 = vld [vmem:[%s9371 + $0xa8] sm:$0xff]
    %v9394 = vld [vmem:[%s9371 + $0xb0] sm:$0xff]
    %v9395 = vld [vmem:[%s9371 + $0xb8] sm:$0xff]
    %v9396 = vld [vmem:[%s9371 + $0xc0] sm:$0xff]
    %v9397 = vld [vmem:[%s9371 + $0xc8] sm:$0xff]
    %v9398 = vld [vmem:[%s9371 + $0xd0] sm:$0xff]
    %v9399 = vld [vmem:[%s9371 + $0xd8] sm:$0xff]
    %v9400 = vld [vmem:[%s9371 + $0xe0] sm:$0xff]
    %v9401 = vld [vmem:[%s9371 + $0xe8] sm:$0xff]
    %v9402 = vld [vmem:[%s9371 + $0xf0] sm:$0xff]
    %v9403 = vld [vmem:[%s9371 + $0xf8] sm:$0xff]
    %v9405 = vshrl.u32 %v9140, 16
    %v9407 = vrot.slane %v9405, 1
    %v9408 = vshll.u32 %v9140, 16
    %v9410 = vrot.slane %v9408, 2
    %v9411 = vor.u32 %v9407, %v9410
    %v9413 = vshrl.u32 %v9142, 16
    %v9415 = vrot.slane %v9413, 1
    %v9416 = vshll.u32 %v9142, 16
    %v9418 = vrot.slane %v9416, 2
    %v9419 = vor.u32 %v9415, %v9418
    %v9420 = vsel %vm2583, %v9411, %v9419
    %v9422 = vshrl.u32 %v9141, 16
    %v9424 = vrot.slane %v9422, 1
    %v9425 = vshll.u32 %v9141, 16
    %v9427 = vrot.slane %v9425, 2
    %v9428 = vor.u32 %v9424, %v9427
    %v9430 = vshrl.u32 %v9143, 16
    %v9432 = vrot.slane %v9430, 1
    %v9433 = vshll.u32 %v9143, 16
    %v9435 = vrot.slane %v9433, 2
    %v9436 = vor.u32 %v9432, %v9435
    %v9437 = vsel %vm2583, %v9428, %v9436
    %v9474 = vunpack.c.l.b16 %v9372
    %v9475 = vunpack.c.h.b16 %v9372
    %v9476 = vunpack.c.l.b16 %v9373
    %v9477 = vunpack.c.h.b16 %v9373
    %v9478 = vunpack.c.l.b16 %v9374
    %v9479 = vunpack.c.h.b16 %v9374
    %v9480 = vunpack.c.l.b16 %v9375
    %v9481 = vunpack.c.h.b16 %v9375
    %v9482 = vunpack.c.l.b16 %v9376
    %v9483 = vunpack.c.h.b16 %v9376
    %v9484 = vunpack.c.l.b16 %v9377
    %v9485 = vunpack.c.h.b16 %v9377
    %v9486 = vunpack.c.l.b16 %v9378
    %v9487 = vunpack.c.h.b16 %v9378
    %v9488 = vunpack.c.l.b16 %v9379
    %v9489 = vunpack.c.h.b16 %v9379
    %v9490 = vunpack.c.l.b16 %v9380
    %v9491 = vunpack.c.h.b16 %v9380
    %v9492 = vunpack.c.l.b16 %v9381
    %v9493 = vunpack.c.h.b16 %v9381
    %v9494 = vunpack.c.l.b16 %v9382
    %v9495 = vunpack.c.h.b16 %v9382
    %v9496 = vunpack.c.l.b16 %v9383
    %v9497 = vunpack.c.h.b16 %v9383
    %v9498 = vunpack.c.l.b16 %v9384
    %v9499 = vunpack.c.h.b16 %v9384
    %v9500 = vunpack.c.l.b16 %v9385
    %v9501 = vunpack.c.h.b16 %v9385
    %v9502 = vunpack.c.l.b16 %v9386
    %v9503 = vunpack.c.h.b16 %v9386
    %v9504 = vunpack.c.l.b16 %v9387
    %v9505 = vunpack.c.h.b16 %v9387
    %v9506 = vunpack.c.l.b16 %v9388
    %v9507 = vunpack.c.h.b16 %v9388
    %v9508 = vunpack.c.l.b16 %v9389
    %v9509 = vunpack.c.h.b16 %v9389
    %v9510 = vunpack.c.l.b16 %v9390
    %v9511 = vunpack.c.h.b16 %v9390
    %v9512 = vunpack.c.l.b16 %v9391
    %v9513 = vunpack.c.h.b16 %v9391
    %v9514 = vunpack.c.l.b16 %v9392
    %v9515 = vunpack.c.h.b16 %v9392
    %v9516 = vunpack.c.l.b16 %v9393
    %v9517 = vunpack.c.h.b16 %v9393
    %v9518 = vunpack.c.l.b16 %v9394
    %v9519 = vunpack.c.h.b16 %v9394
    %v9520 = vunpack.c.l.b16 %v9395
    %v9521 = vunpack.c.h.b16 %v9395
    %v9522 = vunpack.c.l.b16 %v9396
    %v9523 = vunpack.c.h.b16 %v9396
    %v9524 = vunpack.c.l.b16 %v9397
    %v9525 = vunpack.c.h.b16 %v9397
    %v9526 = vunpack.c.l.b16 %v9398
    %v9527 = vunpack.c.h.b16 %v9398
    %v9528 = vunpack.c.l.b16 %v9399
    %v9529 = vunpack.c.h.b16 %v9399
    %v9530 = vunpack.c.l.b16 %v9400
    %v9531 = vunpack.c.h.b16 %v9400
    %v9532 = vunpack.c.l.b16 %v9401
    %v9533 = vunpack.c.h.b16 %v9401
    %v9534 = vunpack.c.l.b16 %v9402
    %v9535 = vunpack.c.h.b16 %v9402
    %v9536 = vunpack.c.l.b16 %v9403
    %v9537 = vunpack.c.h.b16 %v9403
    %v9538 = vpack.c.b16 %v9476, %v9474
    %v9539 = vpack.c.b16 %v9477, %v9475
    %v9540 = vpack.c.b16 %v9480, %v9478
    %v9541 = vpack.c.b16 %v9481, %v9479
    %v9542 = vpack.c.b16 %v9484, %v9482
    %v9543 = vpack.c.b16 %v9485, %v9483
    %v9544 = vpack.c.b16 %v9488, %v9486
    %v9545 = vpack.c.b16 %v9489, %v9487
    %v9546 = vpack.c.b16 %v9492, %v9490
    %v9547 = vpack.c.b16 %v9493, %v9491
    %v9548 = vpack.c.b16 %v9496, %v9494
    %v9549 = vpack.c.b16 %v9497, %v9495
    %v9550 = vpack.c.b16 %v9500, %v9498
    %v9551 = vpack.c.b16 %v9501, %v9499
    %v9552 = vpack.c.b16 %v9504, %v9502
    %v9553 = vpack.c.b16 %v9505, %v9503
    %v9554 = vpack.c.b16 %v9508, %v9506
    %v9555 = vpack.c.b16 %v9509, %v9507
    %v9556 = vpack.c.b16 %v9512, %v9510
    %v9557 = vpack.c.b16 %v9513, %v9511
    %v9558 = vpack.c.b16 %v9516, %v9514
    %v9559 = vpack.c.b16 %v9517, %v9515
    %v9560 = vpack.c.b16 %v9520, %v9518
    %v9561 = vpack.c.b16 %v9521, %v9519
    %v9562 = vpack.c.b16 %v9524, %v9522
    %v9563 = vpack.c.b16 %v9525, %v9523
    %v9564 = vpack.c.b16 %v9528, %v9526
    %v9565 = vpack.c.b16 %v9529, %v9527
    %v9566 = vpack.c.b16 %v9532, %v9530
    %v9567 = vpack.c.b16 %v9533, %v9531
    %v9568 = vpack.c.b16 %v9536, %v9534
    %v9569 = vpack.c.b16 %v9537, %v9535
    %9602 = vmatprep.subr.bf16.mxu0 %v9539
    %9603 = vmatpush1.bf16.msra.mxu0 %v9538
    %9604 = vmatprep.subr.bf16.mxu0 %v9541
    %9605 = vmatpush1.bf16.msra.mxu0 %v9540
    %9606 = vmatprep.subr.bf16.mxu0 %v9543
    %9607 = vmatpush1.bf16.msra.mxu0 %v9542
    %9608 = vmatprep.subr.bf16.mxu0 %v9545
    %9609 = vmatpush1.bf16.msra.mxu0 %v9544
    %9610 = vmatprep.subr.bf16.mxu0 %v9547
    %9611 = vmatpush1.bf16.msra.mxu0 %v9546
    %9612 = vmatprep.subr.bf16.mxu0 %v9549
    %9613 = vmatpush1.bf16.msra.mxu0 %v9548
    %9614 = vmatprep.subr.bf16.mxu0 %v9551
    %9615 = vmatpush1.bf16.msra.mxu0 %v9550
    %9616 = vmatprep.subr.bf16.mxu0 %v9553
    %9617 = vmatpush1.bf16.msra.mxu0 %v9552
    %9618 = vmatprep.subr.bf16.mxu0 %v9555
    %9619 = vmatpush1.bf16.msra.mxu0 %v9554
    %9620 = vmatprep.subr.bf16.mxu0 %v9557
    %9621 = vmatpush1.bf16.msra.mxu0 %v9556
    %9622 = vmatprep.subr.bf16.mxu0 %v9559
    %9623 = vmatpush1.bf16.msra.mxu0 %v9558
    %9624 = vmatprep.subr.bf16.mxu0 %v9561
    %9625 = vmatpush1.bf16.msra.mxu0 %v9560
    %9626 = vmatprep.subr.bf16.mxu0 %v9563
    %9627 = vmatpush1.bf16.msra.mxu0 %v9562
    %9628 = vmatprep.subr.bf16.mxu0 %v9565
    %9629 = vmatpush1.bf16.msra.mxu0 %v9564
    %9630 = vmatprep.subr.bf16.mxu0 %v9567
    %9631 = vmatpush1.bf16.msra.mxu0 %v9566
    %9632 = vmatprep.subr.bf16.mxu0 %v9569
    %9633 = vmatpush1.bf16.msra.mxu0 %v9568
    %9634 = vmatprep.mubr.bf16.mxu0 %v9437
    %9635 = vmatmul.mubr.bf16.gmra.mrb[0].mxu0 %v9420
    %v9636 = vpop.f32.mrb[0].mxu0
    %v9637 = vadd.f32 0.0, %v9636
    %v9638 = vpop.f32.mrb[0].mxu0
    %v9639 = vadd.f32 0.0, %v9638
    %v9640 = vpop.f32.mrb[0].mxu0
    %v9641 = vadd.f32 0.0, %v9640
    %v9642 = vpop.f32.mrb[0].mxu0
    %v9643 = vadd.f32 0.0, %v9642
    %9644 = vmatprep.mubr.bf16.mxu0 %v9432
    %9645 = vmatmul.mubr.bf16.gmra.mrb[0].mxu0 %v9415
    %v9646 = vpop.f32.mrb[0].mxu0
    %v9647 = vadd.f32 0.0, %v9646
    %v9648 = vpop.f32.mrb[0].mxu0
    %v9649 = vadd.f32 0.0, %v9648
    %v9650 = vpop.f32.mrb[0].mxu0
    %v9651 = vpop.f32.mrb[0].mxu0
    %9652 = vdwg.mxu0
    %v9653 = vadd.f32 %v9365, %v9637
    %v9654 = vadd.f32 %v9366, %v9639
    %v9655 = vadd.f32 %v9367, %v9641
    %v9656 = vadd.f32 %v9368, %v9643
    %v9657 = vadd.f32 %v9369, %v9647
    %v9658 = vadd.f32 %v9370, %v9649
    %v9659 = vld [vmem:[#allocation11 + $0x2] sm:$0x1]
    %v9660 = vld [vmem:[%s15] sm:$0xff]
    %v9661 = vld [vmem:[%s15 + $0x8] sm:$0xff]
    %v9662 = vld [vmem:[%s15 + $0x10] sm:$0xff]
    %v9663 = vld [vmem:[%s15 + $0x18] sm:$0xff]
    %v9664 = vld [vmem:[%s15 + $0x20] sm:$0xff]
    %v9665 = vld [vmem:[%s15 + $0x28] sm:$0xff]
    %v9666 = vld [vmem:[%s15 + $0x30] sm:$0xff]
    %v9667 = vld [vmem:[%s15 + $0x38] sm:$0xff]
    %v9668 = vld [vmem:[%s15 + $0x40] sm:$0xff]
    %v9669 = vld [vmem:[%s15 + $0x48] sm:$0xff]
    %v9670 = vld [vmem:[%s15 + $0x50] sm:$0xff]
    %v9671 = vld [vmem:[%s15 + $0x58] sm:$0xff]
    %v9672 = vld [vmem:[%s15 + $0x60] sm:$0xff]
    %v9673 = vld [vmem:[%s15 + $0x68] sm:$0xff]
    %v9674 = vld [vmem:[%s15 + $0x70] sm:$0xff]
    %v9675 = vld [vmem:[%s15 + $0x78] sm:$0xff]
    %v9676 = vld [vmem:[%s15 + $0x80] sm:$0xff]
    %v9677 = vld [vmem:[%s15 + $0x88] sm:$0xff]
    %v9678 = vld [vmem:[%s15 + $0x90] sm:$0xff]
    %v9679 = vld [vmem:[%s15 + $0x98] sm:$0xff]
    %v9680 = vld [vmem:[%s15 + $0xa0] sm:$0xff]
    %v9681 = vld [vmem:[%s15 + $0xa8] sm:$0xff]
    %v9682 = vld [vmem:[%s15 + $0xb0] sm:$0xff]
    %v9683 = vld [vmem:[%s15 + $0xb8] sm:$0xff]
    %v9684 = vld [vmem:[%s15 + $0xc0] sm:$0xff]
    %v9685 = vld [vmem:[%s15 + $0xc8] sm:$0xff]
    %v9686 = vld [vmem:[%s15 + $0xd0] sm:$0xff]
    %v9687 = vld [vmem:[%s15 + $0xd8] sm:$0xff]
    %v9688 = vld [vmem:[%s15 + $0xe0] sm:$0xff]
    %v9689 = vld [vmem:[%s15 + $0xe8] sm:$0xff]
    %v9690 = vld [vmem:[%s15 + $0xf0] sm:$0xff]
    %v9691 = vld [vmem:[%s15 + $0xf8] sm:$0xff]
    %v9692 = vld [vmem:[#allocation16] sm:$0xff]
    %v9693 = vld [vmem:[#allocation16 + $0x8] sm:$0xff]
    %v9694 = vld [vmem:[#allocation16 + $0x10] sm:$0xff]
    %v9695 = vld [vmem:[#allocation16 + $0x18] sm:$0xff]
    %v9696 = vld [vmem:[#allocation16 + $0x20] sm:$0xff]
    %v9697 = vld [vmem:[#allocation16 + $0x28] sm:$0xff]
    %v9698 = vld [vmem:[#allocation16 + $0x30] sm:$0xff]
    %v9699 = vld [vmem:[#allocation16 + $0x38] sm:$0xff]
    %v9700 = vld [vmem:[#allocation16 + $0x40] sm:$0xff]
    %v9701 = vld [vmem:[#allocation16 + $0x48] sm:$0xff]
    %v9702 = vld [vmem:[#allocation16 + $0x50] sm:$0xff]
    %v9703 = vld [vmem:[#allocation16 + $0x58] sm:$0xff]
    %v9704 = vld [vmem:[#allocation16 + $0x60] sm:$0xff]
    %v9705 = vld [vmem:[#allocation16 + $0x68] sm:$0xff]
    %v9706 = vld [vmem:[#allocation16 + $0x70] sm:$0xff]
    %v9707 = vld [vmem:[#allocation16 + $0x78] sm:$0xff]
    %s9708 = scalar_lea.vmem [#allocation13], 4
    %v9709 = vld [vmem:[%s9708] ss:$8 sm:$0x3]
    %s9710 = scalar_lea.vmem [#allocation13], 5
    %v9711 = vld [vmem:[%s9710] ss:$8 sm:$0x3]
    %vm9712 = vcmask 138240
    %v9714 = vsel %vm9712, %v9659, 0
    %v9717 = vsel %vm5884, %v9657, 0
    %v9720 = vsel %vm5884, %v9658, 0
    %9722 = vmatprep.subr.mxu0 %v9654
    %9723 = vmatpush1.msra.mxu0 %v9653
    %9724 = vmatprep.subr.mxu0 %v9656
    %9725 = vmatpush1.msra.mxu0 %v9655
    %9726 = vmatprep.subr.mxu0 %v9720
    %9727 = vmatpush1.msra.mxu0 %v9717
    %9728 = vmatprep.subr.mxu0 0.0
    %9729 = vmatpush1.msra.mxu0 0.0
    %9730 = vmatprep.subr.mxu0 0.0
    %9731 = vmatpush1.msra.mxu0 0.0
    %9732 = vmatprep.subr.mxu0 0.0
    %9733 = vmatpush1.msra.mxu0 0.0
    %9734 = vmatprep.subr.mxu0 0.0
    %9735 = vmatpush1.msra.mxu0 0.0
    %9736 = vmatprep.subr.mxu0 0.0
    %9737 = vmatpush1.msra.mxu0 0.0
    %9738 = vmatprep.subr.mxu0 0.0
    %9739 = vmatpush1.msra.mxu0 0.0
    %9740 = vmatprep.subr.mxu0 0.0
    %9741 = vmatpush1.msra.mxu0 0.0
    %9742 = vmatprep.subr.mxu0 0.0
    %9743 = vmatpush1.msra.mxu0 0.0
    %9744 = vmatprep.subr.mxu0 0.0
    %9745 = vmatpush1.msra.mxu0 0.0
    %9746 = vmatprep.subr.mxu0 0.0
    %9747 = vmatpush1.msra.mxu0 0.0
    %9748 = vmatprep.subr.mxu0 0.0
    %9749 = vmatpush1.msra.mxu0 0.0
    %9750 = vmatprep.subr.mxu0 0.0
    %9751 = vmatpush1.msra.mxu0 0.0
    %9752 = vmatprep.subr.mxu0 0.0
    %9753 = vmatpush1.msra.mxu0 0.0
    %9754 = vmatprep.subr.mxu0 0.0
    %9755 = vmatpush1.msra.mxu0 0.0
    %9756 = vmatprep.subr.mxu0 0.0
    %9757 = vmatpush1.msra.mxu0 0.0
    %9758 = vmatprep.subr.mxu0 0.0
    %9759 = vmatpush1.msra.mxu0 0.0
    %9760 = vmatprep.subr.mxu0 0.0
    %9761 = vmatpush1.msra.mxu0 0.0
    %9762 = vmatprep.subr.mxu0 0.0
    %9763 = vmatpush1.msra.mxu0 0.0
    %9764 = vmatprep.subr.mxu0 0.0
    %9765 = vmatpush1.msra.mxu0 0.0
    %9766 = vmatprep.subr.mxu0 0.0
    %9767 = vmatpush1.msra.mxu0 0.0
    %9768 = vmatprep.subr.mxu0 0.0
    %9769 = vmatpush1.msra.mxu0 0.0
    %9770 = vmatprep.subr.mxu0 0.0
    %9771 = vmatpush1.msra.mxu0 0.0
    %9772 = vmatprep.subr.mxu0 0.0
    %9773 = vmatpush1.msra.mxu0 0.0
    %9774 = vmatprep.subr.mxu0 0.0
    %9775 = vmatpush1.msra.mxu0 0.0
    %9776 = vmatprep.subr.mxu0 0.0
    %9777 = vmatpush1.msra.mxu0 0.0
    %9778 = vmatprep.subr.mxu0 0.0
    %9779 = vmatpush1.msra.mxu0 0.0
    %9780 = vmatprep.subr.mxu0 0.0
    %9781 = vmatpush1.msra.mxu0 0.0
    %9782 = vmatprep.subr.mxu0 0.0
    %9783 = vmatpush1.msra.mxu0 0.0
    %9784 = vmatprep.subr.mxu0 0.0
    %9785 = vmatpush1.msra.mxu0 0.0
    %9786 = vmatprep.mubr.f32.mxu0 0.0
    %9787 = vmatmul.mubr.f32.gmra.mrb[0].mxu0 %v9714
    %v9788 = vpop.f32.mrb[0].mxu0
    %v9789 = vadd.f32 0.0, %v9788
    %v9790 = vpop.f32.mrb[0].mxu0
    %v9791 = vadd.f32 0.0, %v9790
    %9792 = vdwg.mxu0
    %9793 = vmatprep.subr.mxu0 0.0
    %9794 = vmatpush1.msra.mxu0 %v9660
    %9795 = vmatprep.subr.mxu0 0.0
    %9796 = vmatpush1.msra.mxu0 %v9661
    %9797 = vmatprep.subr.mxu0 0.0
    %9798 = vmatpush1.msra.mxu0 %v9662
    %9799 = vmatprep.subr.mxu0 0.0
    %9800 = vmatpush1.msra.mxu0 %v9663
    %9801 = vmatprep.subr.mxu0 0.0
    %9802 = vmatpush1.msra.mxu0 %v9664
    %9803 = vmatprep.subr.mxu0 0.0
    %9804 = vmatpush1.msra.mxu0 %v9665
    %9805 = vmatprep.subr.mxu0 0.0
    %9806 = vmatpush1.msra.mxu0 %v9666
    %9807 = vmatprep.subr.mxu0 0.0
    %9808 = vmatpush1.msra.mxu0 %v9667
    %9809 = vmatprep.subr.mxu0 0.0
    %9810 = vmatpush1.msra.mxu0 %v9668
    %9811 = vmatprep.subr.mxu0 0.0
    %9812 = vmatpush1.msra.mxu0 %v9669
    %9813 = vmatprep.subr.mxu0 0.0
    %9814 = vmatpush1.msra.mxu0 %v9670
    %9815 = vmatprep.subr.mxu0 0.0
    %9816 = vmatpush1.msra.mxu0 %v9671
    %9817 = vmatprep.subr.mxu0 0.0
    %9818 = vmatpush1.msra.mxu0 %v9672
    %9819 = vmatprep.subr.mxu0 0.0
    %9820 = vmatpush1.msra.mxu0 %v9673
    %9821 = vmatprep.subr.mxu0 0.0
    %9822 = vmatpush1.msra.mxu0 %v9674
    %9823 = vmatprep.subr.mxu0 0.0
    %9824 = vmatpush1.msra.mxu0 %v9675
    %9825 = vmatprep.subr.mxu0 0.0
    %9826 = vmatpush1.msra.mxu0 %v9676
    %9827 = vmatprep.subr.mxu0 0.0
    %9828 = vmatpush1.msra.mxu0 %v9677
    %9829 = vmatprep.subr.mxu0 0.0
    %9830 = vmatpush1.msra.mxu0 %v9678
    %9831 = vmatprep.subr.mxu0 0.0
    %9832 = vmatpush1.msra.mxu0 %v9679
    %9833 = vmatprep.subr.mxu0 0.0
    %9834 = vmatpush1.msra.mxu0 %v9680
    %9835 = vmatprep.subr.mxu0 0.0
    %9836 = vmatpush1.msra.mxu0 %v9681
    %9837 = vmatprep.subr.mxu0 0.0
    %9838 = vmatpush1.msra.mxu0 %v9682
    %9839 = vmatprep.subr.mxu0 0.0
    %9840 = vmatpush1.msra.mxu0 %v9683
    %9841 = vmatprep.subr.mxu0 0.0
    %9842 = vmatpush1.msra.mxu0 %v9684
    %9843 = vmatprep.subr.mxu0 0.0
    %9844 = vmatpush1.msra.mxu0 %v9685
    %9845 = vmatprep.subr.mxu0 0.0
    %9846 = vmatpush1.msra.mxu0 %v9686
    %9847 = vmatprep.subr.mxu0 0.0
    %9848 = vmatpush1.msra.mxu0 %v9687
    %9849 = vmatprep.subr.mxu0 0.0
    %9850 = vmatpush1.msra.mxu0 %v9688
    %9851 = vmatprep.subr.mxu0 0.0
    %9852 = vmatpush1.msra.mxu0 %v9689
    %9853 = vmatprep.subr.mxu0 0.0
    %9854 = vmatpush1.msra.mxu0 %v9690
    %9855 = vmatprep.subr.mxu0 0.0
    %9856 = vmatpush1.msra.mxu0 %v9691
    %9857 = vmatprep.mubr.f32.mxu0 %v9791
    %9858 = vmatmul.mubr.f32.gmra.mrb[0].mxu0 %v9789
    %v9859 = vpop.f32.mrb[0].mxu0
    %v9860 = vadd.f32 0.0, %v9859
    %v9861 = vpop.f32.mrb[0].mxu0
    %9862 = vdwg.mxu0
    %v9863 = vmul.f32 %v9860, 0.03125
    %v9865 = vsel %vm4297, %v9863, 0
    %9867 = vmatprep.subr.mxu0 %v9693
    %9868 = vmatpush1.msra.mxu0 %v9692
    %9869 = vmatprep.subr.mxu0 %v9695
    %9870 = vmatpush1.msra.mxu0 %v9694
    %9871 = vmatprep.subr.mxu0 %v9697
    %9872 = vmatpush1.msra.mxu0 %v9696
    %9873 = vmatprep.subr.mxu0 %v9699
    %9874 = vmatpush1.msra.mxu0 %v9698
    %9875 = vmatprep.subr.mxu0 %v9701
    %9876 = vmatpush1.msra.mxu0 %v9700
    %9877 = vmatprep.subr.mxu0 %v9703
    %9878 = vmatpush1.msra.mxu0 %v9702
    %9879 = vmatprep.subr.mxu0 %v9705
    %9880 = vmatpush1.msra.mxu0 %v9704
    %9881 = vmatprep.subr.mxu0 %v9707
    %9882 = vmatpush1.msra.mxu0 %v9706
    %9883 = vmatprep.subr.mxu0 0.0
    %9884 = vmatpush1.msra.mxu0 0.0
    %9885 = vmatprep.subr.mxu0 0.0
    %9886 = vmatpush1.msra.mxu0 0.0
    %9887 = vmatprep.subr.mxu0 0.0
    %9888 = vmatpush1.msra.mxu0 0.0
    %9889 = vmatprep.subr.mxu0 0.0
    %9890 = vmatpush1.msra.mxu0 0.0
    %9891 = vmatprep.subr.mxu0 0.0
    %9892 = vmatpush1.msra.mxu0 0.0
    %9893 = vmatprep.subr.mxu0 0.0
    %9894 = vmatpush1.msra.mxu0 0.0
    %9895 = vmatprep.subr.mxu0 0.0
    %9896 = vmatpush1.msra.mxu0 0.0
    %9897 = vmatprep.subr.mxu0 0.0
    %9898 = vmatpush1.msra.mxu0 0.0
    %9899 = vmatprep.subr.mxu0 0.0
    %9900 = vmatpush1.msra.mxu0 0.0
    %9901 = vmatprep.subr.mxu0 0.0
    %9902 = vmatpush1.msra.mxu0 0.0
    %9903 = vmatprep.subr.mxu0 0.0
    %9904 = vmatpush1.msra.mxu0 0.0
    %9905 = vmatprep.subr.mxu0 0.0
    %9906 = vmatpush1.msra.mxu0 0.0
    %9907 = vmatprep.subr.mxu0 0.0
    %9908 = vmatpush1.msra.mxu0 0.0
    %9909 = vmatprep.subr.mxu0 0.0
    %9910 = vmatpush1.msra.mxu0 0.0
    %9911 = vmatprep.subr.mxu0 0.0
    %9912 = vmatpush1.msra.mxu0 0.0
    %9913 = vmatprep.subr.mxu0 0.0
    %9914 = vmatpush1.msra.mxu0 0.0
    %9915 = vmatprep.subr.mxu0 0.0
    %9916 = vmatpush1.msra.mxu0 0.0
    %9917 = vmatprep.subr.mxu0 0.0
    %9918 = vmatpush1.msra.mxu0 0.0
    %9919 = vmatprep.subr.mxu0 0.0
    %9920 = vmatpush1.msra.mxu0 0.0
    %9921 = vmatprep.subr.mxu0 0.0
    %9922 = vmatpush1.msra.mxu0 0.0
    %9923 = vmatprep.subr.mxu0 0.0
    %9924 = vmatpush1.msra.mxu0 0.0
    %9925 = vmatprep.subr.mxu0 0.0
    %9926 = vmatpush1.msra.mxu0 0.0
    %9927 = vmatprep.subr.mxu0 0.0
    %9928 = vmatpush1.msra.mxu0 0.0
    %9929 = vmatprep.subr.mxu0 0.0
    %9930 = vmatpush1.msra.mxu0 0.0
    %9931 = vmatprep.mubr.f32.mxu0 0.0
    %9932 = vmatmul.mubr.f32.gmra.mrb[0].mxu0 %v9865
    %v9933 = vpop.f32.mrb[0].mxu0
    %v9934 = vadd.f32 0.0, %v9933
    %v9935 = vpop.f32.mrb[0].mxu0
    %v9936 = vadd.f32 0.0, %v9935
    %9937 = vdwg.mxu0
    %v9938 = vlaneseq
    %v9939 = vshrl.u32 %v9938, 7
    %v9940 = vsub.s32 0, %v9939
    %v9941 = vrot.slane %v9934, %v9940
    %v9942 = vlaneseq
    %v9943 = vshrl.u32 %v9942, 7
    %v9944 = vsub.s32 0, %v9943
    %v9945 = vrot.slane %v9936, %v9944
    %v9946 = vsub.f32 %v9653, %v9941
    %v9947 = vsub.f32 %v9654, %v9945
    %v9948 = vsub.f32 %v9655, %v9941
    %v9949 = vsub.f32 %v9656, %v9945
    %v9950 = vsub.f32 %v9657, %v9941
    %v9951 = vsub.f32 %v9658, %v9945
    %v9952 = vmul.f32 %v9946, %v9946
    %v9953 = vmul.f32 %v9947, %v9947
    %v9954 = vmul.f32 %v9948, %v9948
    %v9955 = vmul.f32 %v9949, %v9949
    %v9956 = vmul.f32 %v9950, %v9950
    %v9957 = vmul.f32 %v9951, %v9951
    %v9959 = vsel %vm5884, %v9956, 0
    %v9962 = vsel %vm5884, %v9957, 0
    %9964 = vmatprep.subr.mxu0 %v9953
    %9965 = vmatpush1.msra.mxu0 %v9952
    %9966 = vmatprep.subr.mxu0 %v9955
    %9967 = vmatpush1.msra.mxu0 %v9954
    %9968 = vmatprep.subr.mxu0 %v9962
    %9969 = vmatpush1.msra.mxu0 %v9959
    %9970 = vmatprep.subr.mxu0 0.0
    %9971 = vmatpush1.msra.mxu0 0.0
    %9972 = vmatprep.subr.mxu0 0.0
    %9973 = vmatpush1.msra.mxu0 0.0
    %9974 = vmatprep.subr.mxu0 0.0
    %9975 = vmatpush1.msra.mxu0 0.0
    %9976 = vmatprep.subr.mxu0 0.0
    %9977 = vmatpush1.msra.mxu0 0.0
    %9978 = vmatprep.subr.mxu0 0.0
    %9979 = vmatpush1.msra.mxu0 0.0
    %9980 = vmatprep.subr.mxu0 0.0
    %9981 = vmatpush1.msra.mxu0 0.0
    %9982 = vmatprep.subr.mxu0 0.0
    %9983 = vmatpush1.msra.mxu0 0.0
    %9984 = vmatprep.subr.mxu0 0.0
    %9985 = vmatpush1.msra.mxu0 0.0
    %9986 = vmatprep.subr.mxu0 0.0
    %9987 = vmatpush1.msra.mxu0 0.0
    %9988 = vmatprep.subr.mxu0 0.0
    %9989 = vmatpush1.msra.mxu0 0.0
    %9990 = vmatprep.subr.mxu0 0.0
    %9991 = vmatpush1.msra.mxu0 0.0
    %9992 = vmatprep.subr.mxu0 0.0
    %9993 = vmatpush1.msra.mxu0 0.0
    %9994 = vmatprep.subr.mxu0 0.0
    %9995 = vmatpush1.msra.mxu0 0.0
    %9996 = vmatprep.subr.mxu0 0.0
    %9997 = vmatpush1.msra.mxu0 0.0
    %9998 = vmatprep.subr.mxu0 0.0
    %9999 = vmatpush1.msra.mxu0 0.0
    %10000 = vmatprep.subr.mxu0 0.0
    %10001 = vmatpush1.msra.mxu0 0.0
    %10002 = vmatprep.subr.mxu0 0.0
    %10003 = vmatpush1.msra.mxu0 0.0
    %10004 = vmatprep.subr.mxu0 0.0
    %10005 = vmatpush1.msra.mxu0 0.0
    %10006 = vmatprep.subr.mxu0 0.0
    %10007 = vmatpush1.msra.mxu0 0.0
    %10008 = vmatprep.subr.mxu0 0.0
    %10009 = vmatpush1.msra.mxu0 0.0
    %10010 = vmatprep.subr.mxu0 0.0
    %10011 = vmatpush1.msra.mxu0 0.0
    %10012 = vmatprep.subr.mxu0 0.0
    %10013 = vmatpush1.msra.mxu0 0.0
    %10014 = vmatprep.subr.mxu0 0.0
    %10015 = vmatpush1.msra.mxu0 0.0
    %10016 = vmatprep.subr.mxu0 0.0
    %10017 = vmatpush1.msra.mxu0 0.0
    %10018 = vmatprep.subr.mxu0 0.0
    %10019 = vmatpush1.msra.mxu0 0.0
    %10020 = vmatprep.subr.mxu0 0.0
    %10021 = vmatpush1.msra.mxu0 0.0
    %10022 = vmatprep.subr.mxu0 0.0
    %10023 = vmatpush1.msra.mxu0 0.0
    %10024 = vmatprep.subr.mxu0 0.0
    %10025 = vmatpush1.msra.mxu0 0.0
    %10026 = vmatprep.subr.mxu0 0.0
    %10027 = vmatpush1.msra.mxu0 0.0
    %10028 = vmatprep.mubr.f32.mxu0 0.0
    %10029 = vmatmul.mubr.f32.gmra.mrb[0].mxu0 %v9714
    %v10030 = vpop.f32.mrb[0].mxu0
    %v10031 = vadd.f32 0.0, %v10030
    %v10032 = vpop.f32.mrb[0].mxu0
    %v10033 = vadd.f32 0.0, %v10032
    %10034 = vdwg.mxu0
    %10035 = vmatprep.subr.mxu0 0.0
    %10036 = vmatpush1.msra.mxu0 %v9660
    %10037 = vmatprep.subr.mxu0 0.0
    %10038 = vmatpush1.msra.mxu0 %v9661
    %10039 = vmatprep.subr.mxu0 0.0
    %10040 = vmatpush1.msra.mxu0 %v9662
    %10041 = vmatprep.subr.mxu0 0.0
    %10042 = vmatpush1.msra.mxu0 %v9663
    %10043 = vmatprep.subr.mxu0 0.0
    %10044 = vmatpush1.msra.mxu0 %v9664
    %10045 = vmatprep.subr.mxu0 0.0
    %10046 = vmatpush1.msra.mxu0 %v9665
    %10047 = vmatprep.subr.mxu0 0.0
    %10048 = vmatpush1.msra.mxu0 %v9666
    %10049 = vmatprep.subr.mxu0 0.0
    %10050 = vmatpush1.msra.mxu0 %v9667
    %10051 = vmatprep.subr.mxu0 0.0
    %10052 = vmatpush1.msra.mxu0 %v9668
    %10053 = vmatprep.subr.mxu0 0.0
    %10054 = vmatpush1.msra.mxu0 %v9669
    %10055 = vmatprep.subr.mxu0 0.0
    %10056 = vmatpush1.msra.mxu0 %v9670
    %10057 = vmatprep.subr.mxu0 0.0
    %10058 = vmatpush1.msra.mxu0 %v9671
    %10059 = vmatprep.subr.mxu0 0.0
    %10060 = vmatpush1.msra.mxu0 %v9672
    %10061 = vmatprep.subr.mxu0 0.0
    %10062 = vmatpush1.msra.mxu0 %v9673
    %10063 = vmatprep.subr.mxu0 0.0
    %10064 = vmatpush1.msra.mxu0 %v9674
    %10065 = vmatprep.subr.mxu0 0.0
    %10066 = vmatpush1.msra.mxu0 %v9675
    %10067 = vmatprep.subr.mxu0 0.0
    %10068 = vmatpush1.msra.mxu0 %v9676
    %10069 = vmatprep.subr.mxu0 0.0
    %10070 = vmatpush1.msra.mxu0 %v9677
    %10071 = vmatprep.subr.mxu0 0.0
    %10072 = vmatpush1.msra.mxu0 %v9678
    %10073 = vmatprep.subr.mxu0 0.0
    %10074 = vmatpush1.msra.mxu0 %v9679
    %10075 = vmatprep.subr.mxu0 0.0
    %10076 = vmatpush1.msra.mxu0 %v9680
    %10077 = vmatprep.subr.mxu0 0.0
    %10078 = vmatpush1.msra.mxu0 %v9681
    %10079 = vmatprep.subr.mxu0 0.0
    %10080 = vmatpush1.msra.mxu0 %v9682
    %10081 = vmatprep.subr.mxu0 0.0
    %10082 = vmatpush1.msra.mxu0 %v9683
    %10083 = vmatprep.subr.mxu0 0.0
    %10084 = vmatpush1.msra.mxu0 %v9684
    %10085 = vmatprep.subr.mxu0 0.0
    %10086 = vmatpush1.msra.mxu0 %v9685
    %10087 = vmatprep.subr.mxu0 0.0
    %10088 = vmatpush1.msra.mxu0 %v9686
    %10089 = vmatprep.subr.mxu0 0.0
    %10090 = vmatpush1.msra.mxu0 %v9687
    %10091 = vmatprep.subr.mxu0 0.0
    %10092 = vmatpush1.msra.mxu0 %v9688
    %10093 = vmatprep.subr.mxu0 0.0
    %10094 = vmatpush1.msra.mxu0 %v9689
    %10095 = vmatprep.subr.mxu0 0.0
    %10096 = vmatpush1.msra.mxu0 %v9690
    %10097 = vmatprep.subr.mxu0 0.0
    %10098 = vmatpush1.msra.mxu0 %v9691
    %10099 = vmatprep.mubr.f32.mxu0 %v10033
    %10100 = vmatmul.mubr.f32.gmra.mrb[0].mxu0 %v10031
    %v10101 = vpop.f32.mrb[0].mxu0
    %v10102 = vadd.f32 0.0, %v10101
    %v10103 = vpop.f32.mrb[0].mxu0
    %10104 = vdwg.mxu0
    %v10105 = vmul.f32 %v10102, 0.03125
    %v10106 = vadd.f32 %v10105, 1e-05
    %v10107 = vrsqrt.pop %v10106
    %v10109 = vsel %vm4297, %v10107, 0
    %10111 = vmatprep.subr.mxu0 %v9693
    %10112 = vmatpush1.msra.mxu0 %v9692
    %10113 = vmatprep.subr.mxu0 %v9695
    %10114 = vmatpush1.msra.mxu0 %v9694
    %10115 = vmatprep.subr.mxu0 %v9697
    %10116 = vmatpush1.msra.mxu0 %v9696
    %10117 = vmatprep.subr.mxu0 %v9699
    %10118 = vmatpush1.msra.mxu0 %v9698
    %10119 = vmatprep.subr.mxu0 %v9701
    %10120 = vmatpush1.msra.mxu0 %v9700
    %10121 = vmatprep.subr.mxu0 %v9703
    %10122 = vmatpush1.msra.mxu0 %v9702
    %10123 = vmatprep.subr.mxu0 %v9705
    %10124 = vmatpush1.msra.mxu0 %v9704
    %10125 = vmatprep.subr.mxu0 %v9707
    %10126 = vmatpush1.msra.mxu0 %v9706
    %10127 = vmatprep.subr.mxu0 0.0
    %10128 = vmatpush1.msra.mxu0 0.0
    %10129 = vmatprep.subr.mxu0 0.0
    %10130 = vmatpush1.msra.mxu0 0.0
    %10131 = vmatprep.subr.mxu0 0.0
    %10132 = vmatpush1.msra.mxu0 0.0
    %10133 = vmatprep.subr.mxu0 0.0
    %10134 = vmatpush1.msra.mxu0 0.0
    %10135 = vmatprep.subr.mxu0 0.0
    %10136 = vmatpush1.msra.mxu0 0.0
    %10137 = vmatprep.subr.mxu0 0.0
    %10138 = vmatpush1.msra.mxu0 0.0
    %10139 = vmatprep.subr.mxu0 0.0
    %10140 = vmatpush1.msra.mxu0 0.0
    %10141 = vmatprep.subr.mxu0 0.0
    %10142 = vmatpush1.msra.mxu0 0.0
    %10143 = vmatprep.subr.mxu0 0.0
    %10144 = vmatpush1.msra.mxu0 0.0
    %10145 = vmatprep.subr.mxu0 0.0
    %10146 = vmatpush1.msra.mxu0 0.0
    %10147 = vmatprep.subr.mxu0 0.0
    %10148 = vmatpush1.msra.mxu0 0.0
    %10149 = vmatprep.subr.mxu0 0.0
    %10150 = vmatpush1.msra.mxu0 0.0
    %10151 = vmatprep.subr.mxu0 0.0
    %10152 = vmatpush1.msra.mxu0 0.0
    %10153 = vmatprep.subr.mxu0 0.0
    %10154 = vmatpush1.msra.mxu0 0.0
    %10155 = vmatprep.subr.mxu0 0.0
    %10156 = vmatpush1.msra.mxu0 0.0
    %10157 = vmatprep.subr.mxu0 0.0
    %10158 = vmatpush1.msra.mxu0 0.0
    %10159 = vmatprep.subr.mxu0 0.0
    %10160 = vmatpush1.msra.mxu0 0.0
    %10161 = vmatprep.subr.mxu0 0.0
    %10162 = vmatpush1.msra.mxu0 0.0
    %10163 = vmatprep.subr.mxu0 0.0
    %10164 = vmatpush1.msra.mxu0 0.0
    %10165 = vmatprep.subr.mxu0 0.0
    %10166 = vmatpush1.msra.mxu0 0.0
    %10167 = vmatprep.subr.mxu0 0.0
    %10168 = vmatpush1.msra.mxu0 0.0
    %10169 = vmatprep.subr.mxu0 0.0
    %10170 = vmatpush1.msra.mxu0 0.0
    %10171 = vmatprep.subr.mxu0 0.0
    %10172 = vmatpush1.msra.mxu0 0.0
    %10173 = vmatprep.subr.mxu0 0.0
    %10174 = vmatpush1.msra.mxu0 0.0
    %10175 = vmatprep.mubr.f32.mxu0 0.0
    %10176 = vmatmul.mubr.f32.gmra.mrb[0].mxu0 %v10109
    %v10177 = vpop.f32.mrb[0].mxu0
    %v10178 = vadd.f32 0.0, %v10177
    %v10179 = vpop.f32.mrb[0].mxu0
    %v10180 = vadd.f32 0.0, %v10179
    %10181 = vdwg.mxu0
    %v10184 = vcombine.low %v10178, %v10180
    %v10186 = vunpack.c.l.s4 1966171168
    %v10187 = vunpack.c.0.s8 %v10186
    %v10188 = vlaneseq
    %v10189 = vshrl.u32 %v10188, 7
    %v10190 = vsub.s32 %v10187, %v10189
    %v10191 = vrot.slane %v10184, %v10190
    %v10193 = vunpack.c.l.s4 1966171168
    %v10194 = vunpack.c.0.s8 %v10193
    %v10195 = vlaneseq
    %v10196 = vshrl.u32 %v10195, 7
    %v10197 = vsub.s32 %v10194, %v10196
    %v10198 = vrot.slane %v10191, %v10197
    %v10200 = vmul.f32 %v9709, %v10198
    %v10202 = vlaneseq
    %v10203 = vshrl.u32 %v10202, 7
    %v10204 = vsub.s32 0, %v10203
    %v10205 = vrot.slane %v10200, %v10204
    %v10206 = vlaneseq
    %v10207 = vshrl.u32 %v10206, 7
    %v10208 = vsub.s32 1, %v10207
    %v10209 = vrot.slane %v10200, %v10208
    %v10212 = vmul.f32 %v9946, %v10205
    %v10213 = vmul.f32 %v9947, %v10209
    %v10214 = vmul.f32 %v9948, %v10205
    %v10215 = vmul.f32 %v9949, %v10209
    %v10216 = vmul.f32 %v9950, %v10205
    %v10217 = vmul.f32 %v9951, %v10209
    %v10219 = vlaneseq
    %v10220 = vshrl.u32 %v10219, 7
    %v10221 = vsub.s32 0, %v10220
    %v10222 = vrot.slane %v9711, %v10221
    %v10223 = vlaneseq
    %v10224 = vshrl.u32 %v10223, 7
    %v10225 = vsub.s32 1, %v10224
    %v10226 = vrot.slane %v9711, %v10225
    %v10229 = vadd.f32 %v10212, %v10222
    %v10230 = vadd.f32 %v10213, %v10226
    %v10231 = vadd.f32 %v10214, %v10222
    %v10232 = vadd.f32 %v10215, %v10226
    %v10233 = vadd.f32 %v10216, %v10222
    %v10234 = vadd.f32 %v10217, %v10226
    %vm10235 = vcmp.ge.f32.partialorder %v10229, 0.0
    %vm10236 = vcmp.ge.f32.partialorder %v10230, 0.0
    %vm10237 = vcmp.ge.f32.partialorder %v10231, 0.0
    %vm10238 = vcmp.ge.f32.partialorder %v10232, 0.0
    %vm10239 = vcmp.ge.f32.partialorder %v10233, 0.0
    %vm10240 = vcmp.ge.f32.partialorder %v10234, 0.0
    %v10241 = vmul.f32 %v10229, 0.2
    %v10242 = vmul.f32 %v10230, 0.2
    %v10243 = vmul.f32 %v10231, 0.2
    %v10244 = vmul.f32 %v10232, 0.2
    %v10245 = vmul.f32 %v10233, 0.2
    %v10246 = vmul.f32 %v10234, 0.2
    %v10247 = vsel %vm10235, %v10229, %v10241
    %v10248 = vsel %vm10236, %v10230, %v10242
    %v10249 = vsel %vm10237, %v10231, %v10243
    %v10250 = vsel %vm10238, %v10232, %v10244
    %v10251 = vsel %vm10239, %v10233, %v10245
    %v10252 = vsel %vm10240, %v10234, %v10246
    %v10253 = vld [vmem:[#allocation8] sm:$0xf]
    %v10254 = vpack.c.bf16 %v10249, %v10247
    %v10255 = vpack.c.bf16 %v10250, %v10248
    %v10256 = vpack.c.bf16 %v10251, %v10251
    %v10257 = vpack.c.bf16 %v10252, %v10252
    %v10259 = vsel %vm9712, %v10253, 0
    %v10262 = vand.u32 %v10256, %v6545
    %v10265 = vand.u32 %v10257, %v6545
    %10267 = vmatprep.subr.bf16.mxu0 %v10255
    %10268 = vmatpush1.bf16.msra.mxu0 %v10254
    %10269 = vmatprep.subr.bf16.mxu0 %v10265
    %10270 = vmatpush1.bf16.msra.mxu0 %v10262
    %10271 = vmatprep.subr.bf16.mxu0 0
    %10272 = vmatpush1.bf16.msra.mxu0 0
    %10273 = vmatprep.subr.bf16.mxu0 0
    %10274 = vmatpush1.bf16.msra.mxu0 0
    %10275 = vmatprep.subr.bf16.mxu0 0
    %10276 = vmatpush1.bf16.msra.mxu0 0
    %10277 = vmatprep.subr.bf16.mxu0 0
    %10278 = vmatpush1.bf16.msra.mxu0 0
    %10279 = vmatprep.subr.bf16.mxu0 0
    %10280 = vmatpush1.bf16.msra.mxu0 0
    %10281 = vmatprep.subr.bf16.mxu0 0
    %10282 = vmatpush1.bf16.msra.mxu0 0
    %10283 = vmatprep.subr.bf16.mxu0 0
    %10284 = vmatpush1.bf16.msra.mxu0 0
    %10285 = vmatprep.subr.bf16.mxu0 0
    %10286 = vmatpush1.bf16.msra.mxu0 0
    %10287 = vmatprep.subr.bf16.mxu0 0
    %10288 = vmatpush1.bf16.msra.mxu0 0
    %10289 = vmatprep.subr.bf16.mxu0 0
    %10290 = vmatpush1.bf16.msra.mxu0 0
    %10291 = vmatprep.subr.bf16.mxu0 0
    %10292 = vmatpush1.bf16.msra.mxu0 0
    %10293 = vmatprep.subr.bf16.mxu0 0
    %10294 = vmatpush1.bf16.msra.mxu0 0
    %10295 = vmatprep.subr.bf16.mxu0 0
    %10296 = vmatpush1.bf16.msra.mxu0 0
    %10297 = vmatprep.subr.bf16.mxu0 0
    %10298 = vmatpush1.bf16.msra.mxu0 0
    %10299 = vmatprep.mubr.bf16.mxu0 0
    %10300 = vmatmul.mubr.bf16.gmra.mrb[0].mxu0 %v10259
    %v10301 = vpop.f32.mrb[0].mxu0
    %v10302 = vadd.f32 0.0, %v10301
    %v10303 = vpop.f32.mrb[0].mxu0
    %v10304 = vadd.f32 0.0, %v10303
    %v10305 = vpop.f32.mrb[0].mxu0
    %v10306 = vpop.f32.mrb[0].mxu0
    %10307 = vdwg.mxu0
    %v10308 = vpack.c.bf16 %v10302, %v10302
    %v10309 = vpack.c.bf16 %v10304, %v10304
    %v10312 = vunpack.c.l.b16 %v10308
    %v10313 = vunpack.c.l.b16 %v10309
    %v10314 = vpack.c.b16 %v10313, %v10312
    %10316 = vst [vmem:[#allocation5] sm:$0xff] %v10314
    %v10317 = vld [vmem:[#allocation5] sm:$0x77]
    %v10318 = vld [vmem:[%s5] sm:$0xf]
    %v10319 = vld [vmem:[%s5 + $0x4] sm:$0xf]
    %v10320 = vld [vmem:[%s5 + $0x8] sm:$0xf]
    %v10321 = vld [vmem:[%s5 + $0xc] sm:$0xf]
    %v10322 = vld [vmem:[%s5 + $0x10] sm:$0xf]
    %v10323 = vld [vmem:[%s5 + $0x14] sm:$0xf]
    %v10324 = vld [vmem:[%s5 + $0x18] sm:$0xf]
    %v10325 = vld [vmem:[%s5 + $0x1c] sm:$0xf]
    %v10326 = vld [vmem:[%s5 + $0x20] sm:$0xf]
    %v10327 = vld [vmem:[%s5 + $0x24] sm:$0xf]
    %v10328 = vld [vmem:[%s5 + $0x28] sm:$0xf]
    %v10329 = vld [vmem:[%s5 + $0x2c] sm:$0xf]
    %v10330 = vld [vmem:[%s5 + $0x30] sm:$0xf]
    %v10331 = vld [vmem:[%s5 + $0x34] sm:$0xf]
    %v10332 = vld [vmem:[%s5 + $0x38] sm:$0xf]
    %v10333 = vld [vmem:[%s5 + $0x3c] sm:$0xf]
    %v10334 = vld [vmem:[%s5 + $0x40] sm:$0xf]
    %v10335 = vld [vmem:[%s5 + $0x44] sm:$0xf]
    %v10336 = vld [vmem:[%s5 + $0x48] sm:$0xf]
    %v10337 = vld [vmem:[%s5 + $0x4c] sm:$0xf]
    %v10338 = vld [vmem:[%s5 + $0x50] sm:$0xf]
    %v10339 = vld [vmem:[%s5 + $0x54] sm:$0xf]
    %v10340 = vld [vmem:[%s5 + $0x58] sm:$0xf]
    %v10341 = vld [vmem:[%s5 + $0x5c] sm:$0xf]
    %v10342 = vld [vmem:[%s5 + $0x60] sm:$0xf]
    %v10343 = vld [vmem:[%s5 + $0x64] sm:$0xf]
    %v10344 = vld [vmem:[%s5 + $0x68] sm:$0xf]
    %v10345 = vld [vmem:[%s5 + $0x6c] sm:$0xf]
    %v10346 = vld [vmem:[%s5 + $0x70] sm:$0xf]
    %v10347 = vld [vmem:[%s5 + $0x74] sm:$0xf]
    %v10348 = vld [vmem:[%s5 + $0x78] sm:$0xf]
    %v10349 = vld [vmem:[%s5 + $0x7c] sm:$0xf]
    %s10350 = scalar_lea.vmem %s5, 128
    %v10351 = vld [vmem:[%s10350] sm:$0xf]
    %v10352 = vld [vmem:[%s10350 + $0x4] sm:$0xf]
    %v10353 = vld [vmem:[%s10350 + $0x8] sm:$0xf]
    %v10354 = vld [vmem:[%s10350 + $0xc] sm:$0xf]
    %v10355 = vld [vmem:[%s10350 + $0x10] sm:$0xf]
    %v10356 = vld [vmem:[%s10350 + $0x14] sm:$0xf]
    %v10357 = vld [vmem:[%s10350 + $0x18] sm:$0xf]
    %v10358 = vld [vmem:[%s10350 + $0x1c] sm:$0xf]
    %v10359 = vld [vmem:[%s10350 + $0x20] sm:$0xf]
    %v10360 = vld [vmem:[%s10350 + $0x24] sm:$0xf]
    %v10361 = vld [vmem:[%s10350 + $0x28] sm:$0xf]
    %v10362 = vld [vmem:[%s10350 + $0x2c] sm:$0xf]
    %v10363 = vld [vmem:[%s10350 + $0x30] sm:$0xf]
    %v10364 = vld [vmem:[%s10350 + $0x34] sm:$0xf]
    %v10365 = vld [vmem:[%s10350 + $0x38] sm:$0xf]
    %v10366 = vld [vmem:[%s10350 + $0x3c] sm:$0xf]
    %v10367 = vld [vmem:[%s10350 + $0x40] sm:$0xf]
    %v10368 = vld [vmem:[%s10350 + $0x44] sm:$0xf]
    %v10369 = vld [vmem:[%s10350 + $0x48] sm:$0xf]
    %v10370 = vld [vmem:[%s10350 + $0x4c] sm:$0xf]
    %v10371 = vld [vmem:[%s10350 + $0x50] sm:$0xf]
    %v10372 = vld [vmem:[%s10350 + $0x54] sm:$0xf]
    %v10373 = vld [vmem:[%s10350 + $0x58] sm:$0xf]
    %v10374 = vld [vmem:[%s10350 + $0x5c] sm:$0xf]
    %v10375 = vld [vmem:[%s10350 + $0x60] sm:$0xf]
    %v10376 = vld [vmem:[%s10350 + $0x64] sm:$0xf]
    %v10377 = vld [vmem:[%s10350 + $0x68] sm:$0xf]
    %v10378 = vld [vmem:[%s10350 + $0x6c] sm:$0xf]
    %v10379 = vld [vmem:[%s10350 + $0x70] sm:$0xf]
    %v10380 = vld [vmem:[%s10350 + $0x74] sm:$0xf]
    %v10381 = vld [vmem:[%s10350 + $0x78] sm:$0xf]
    %v10382 = vld [vmem:[%s10350 + $0x7c] sm:$0xf]
    %v10384 = vunpack.c.l.b16 %v10317
    %v10385 = vunpack.c.h.b16 %v10317
    %v10386 = vpack.c.b16 %v10384, %v10384
    %v10387 = vpack.c.b16 %v10385, %v10385
    %v10389 = vshrl.u32 %v10386, 16
    %v10391 = vshll.u32 %v10386, 16
    %v10393 = vrot.slane %v10391, 1
    %v10394 = vor.u32 %v10389, %v10393
    %v10396 = vshrl.u32 %v10387, 16
    %v10398 = vshll.u32 %v10387, 16
    %v10400 = vrot.slane %v10398, 1
    %v10401 = vor.u32 %v10396, %v10400
    %v10436 = vunpack.c.l.b16 %v10351
    %v10437 = vunpack.c.l.b16 %v10352
    %v10438 = vunpack.c.l.b16 %v10353
    %v10439 = vunpack.c.l.b16 %v10354
    %v10440 = vunpack.c.l.b16 %v10355
    %v10441 = vunpack.c.l.b16 %v10356
    %v10442 = vunpack.c.l.b16 %v10357
    %v10443 = vunpack.c.l.b16 %v10358
    %v10444 = vunpack.c.l.b16 %v10359
    %v10445 = vunpack.c.l.b16 %v10360
    %v10446 = vunpack.c.l.b16 %v10361
    %v10447 = vunpack.c.l.b16 %v10362
    %v10448 = vunpack.c.l.b16 %v10363
    %v10449 = vunpack.c.l.b16 %v10364
    %v10450 = vunpack.c.l.b16 %v10365
    %v10451 = vunpack.c.l.b16 %v10366
    %v10452 = vunpack.c.l.b16 %v10367
    %v10453 = vunpack.c.l.b16 %v10368
    %v10454 = vunpack.c.l.b16 %v10369
    %v10455 = vunpack.c.l.b16 %v10370
    %v10456 = vunpack.c.l.b16 %v10371
    %v10457 = vunpack.c.l.b16 %v10372
    %v10458 = vunpack.c.l.b16 %v10373
    %v10459 = vunpack.c.l.b16 %v10374
    %v10460 = vunpack.c.l.b16 %v10375
    %v10461 = vunpack.c.l.b16 %v10376
    %v10462 = vunpack.c.l.b16 %v10377
    %v10463 = vunpack.c.l.b16 %v10378
    %v10464 = vunpack.c.l.b16 %v10379
    %v10465 = vunpack.c.l.b16 %v10380
    %v10466 = vunpack.c.l.b16 %v10381
    %v10467 = vunpack.c.l.b16 %v10382
    %v10468 = vpack.c.b16 %v10437, %v10436
    %v10469 = vpack.c.b16 %v10439, %v10438
    %v10470 = vpack.c.b16 %v10441, %v10440
    %v10471 = vpack.c.b16 %v10443, %v10442
    %v10472 = vpack.c.b16 %v10445, %v10444
    %v10473 = vpack.c.b16 %v10447, %v10446
    %v10474 = vpack.c.b16 %v10449, %v10448
    %v10475 = vpack.c.b16 %v10451, %v10450
    %v10476 = vpack.c.b16 %v10453, %v10452
    %v10477 = vpack.c.b16 %v10455, %v10454
    %v10478 = vpack.c.b16 %v10457, %v10456
    %v10479 = vpack.c.b16 %v10459, %v10458
    %v10480 = vpack.c.b16 %v10461, %v10460
    %v10481 = vpack.c.b16 %v10463, %v10462
    %v10482 = vpack.c.b16 %v10465, %v10464
    %v10483 = vpack.c.b16 %v10467, %v10466
    %10500 = vmatprep.subr.bf16.mxu0 0
    %10501 = vmatpush1.bf16.msra.mxu0 %v10468
    %10502 = vmatprep.subr.bf16.mxu0 0
    %10503 = vmatpush1.bf16.msra.mxu0 %v10469
    %10504 = vmatprep.subr.bf16.mxu0 0
    %10505 = vmatpush1.bf16.msra.mxu0 %v10470
    %10506 = vmatprep.subr.bf16.mxu0 0
    %10507 = vmatpush1.bf16.msra.mxu0 %v10471
    %10508 = vmatprep.subr.bf16.mxu0 0
    %10509 = vmatpush1.bf16.msra.mxu0 %v10472
    %10510 = vmatprep.subr.bf16.mxu0 0
    %10511 = vmatpush1.bf16.msra.mxu0 %v10473
    %10512 = vmatprep.subr.bf16.mxu0 0
    %10513 = vmatpush1.bf16.msra.mxu0 %v10474
    %10514 = vmatprep.subr.bf16.mxu0 0
    %10515 = vmatpush1.bf16.msra.mxu0 %v10475
    %10516 = vmatprep.subr.bf16.mxu0 0
    %10517 = vmatpush1.bf16.msra.mxu0 %v10476
    %10518 = vmatprep.subr.bf16.mxu0 0
    %10519 = vmatpush1.bf16.msra.mxu0 %v10477
    %10520 = vmatprep.subr.bf16.mxu0 0
    %10521 = vmatpush1.bf16.msra.mxu0 %v10478
    %10522 = vmatprep.subr.bf16.mxu0 0
    %10523 = vmatpush1.bf16.msra.mxu0 %v10479
    %10524 = vmatprep.subr.bf16.mxu0 0
    %10525 = vmatpush1.bf16.msra.mxu0 %v10480
    %10526 = vmatprep.subr.bf16.mxu0 0
    %10527 = vmatpush1.bf16.msra.mxu0 %v10481
    %10528 = vmatprep.subr.bf16.mxu0 0
    %10529 = vmatpush1.bf16.msra.mxu0 %v10482
    %10530 = vmatprep.subr.bf16.mxu0 0
    %10531 = vmatpush1.bf16.msra.mxu0 %v10483
    %10532 = vmatprep.mubr.bf16.mxu0 %v10401
    %10533 = vmatmul.mubr.bf16.gmra.mrb[0].mxu0 %v10394
    %v10534 = vpop.f32.mrb[0].mxu0
    %v10535 = vadd.f32 0.0, %v10534
    %v10536 = vpop.f32.mrb[0].mxu0
    %v10537 = vpop.f32.mrb[0].mxu0
    %v10538 = vpop.f32.mrb[0].mxu0
    %10539 = vdwg.mxu0
    %v10574 = vunpack.c.l.b16 %v10318
    %v10575 = vunpack.c.l.b16 %v10319
    %v10576 = vunpack.c.l.b16 %v10320
    %v10577 = vunpack.c.l.b16 %v10321
    %v10578 = vunpack.c.l.b16 %v10322
    %v10579 = vunpack.c.l.b16 %v10323
    %v10580 = vunpack.c.l.b16 %v10324
    %v10581 = vunpack.c.l.b16 %v10325
    %v10582 = vunpack.c.l.b16 %v10326
    %v10583 = vunpack.c.l.b16 %v10327
    %v10584 = vunpack.c.l.b16 %v10328
    %v10585 = vunpack.c.l.b16 %v10329
    %v10586 = vunpack.c.l.b16 %v10330
    %v10587 = vunpack.c.l.b16 %v10331
    %v10588 = vunpack.c.l.b16 %v10332
    %v10589 = vunpack.c.l.b16 %v10333
    %v10590 = vunpack.c.l.b16 %v10334
    %v10591 = vunpack.c.l.b16 %v10335
    %v10592 = vunpack.c.l.b16 %v10336
    %v10593 = vunpack.c.l.b16 %v10337
    %v10594 = vunpack.c.l.b16 %v10338
    %v10595 = vunpack.c.l.b16 %v10339
    %v10596 = vunpack.c.l.b16 %v10340
    %v10597 = vunpack.c.l.b16 %v10341
    %v10598 = vunpack.c.l.b16 %v10342
    %v10599 = vunpack.c.l.b16 %v10343
    %v10600 = vunpack.c.l.b16 %v10344
    %v10601 = vunpack.c.l.b16 %v10345
    %v10602 = vunpack.c.l.b16 %v10346
    %v10603 = vunpack.c.l.b16 %v10347
    %v10604 = vunpack.c.l.b16 %v10348
    %v10605 = vunpack.c.l.b16 %v10349
    %v10606 = vpack.c.b16 %v10575, %v10574
    %v10607 = vpack.c.b16 %v10577, %v10576
    %v10608 = vpack.c.b16 %v10579, %v10578
    %v10609 = vpack.c.b16 %v10581, %v10580
    %v10610 = vpack.c.b16 %v10583, %v10582
    %v10611 = vpack.c.b16 %v10585, %v10584
    %v10612 = vpack.c.b16 %v10587, %v10586
    %v10613 = vpack.c.b16 %v10589, %v10588
    %v10614 = vpack.c.b16 %v10591, %v10590
    %v10615 = vpack.c.b16 %v10593, %v10592
    %v10616 = vpack.c.b16 %v10595, %v10594
    %v10617 = vpack.c.b16 %v10597, %v10596
    %v10618 = vpack.c.b16 %v10599, %v10598
    %v10619 = vpack.c.b16 %v10601, %v10600
    %v10620 = vpack.c.b16 %v10603, %v10602
    %v10621 = vpack.c.b16 %v10605, %v10604
    %10638 = vmatprep.subr.bf16.mxu0 0
    %10639 = vmatpush1.bf16.msra.mxu0 %v10606
    %10640 = vmatprep.subr.bf16.mxu0 0
    %10641 = vmatpush1.bf16.msra.mxu0 %v10607
    %10642 = vmatprep.subr.bf16.mxu0 0
    %10643 = vmatpush1.bf16.msra.mxu0 %v10608
    %10644 = vmatprep.subr.bf16.mxu0 0
    %10645 = vmatpush1.bf16.msra.mxu0 %v10609
    %10646 = vmatprep.subr.bf16.mxu0 0
    %10647 = vmatpush1.bf16.msra.mxu0 %v10610
    %10648 = vmatprep.subr.bf16.mxu0 0
    %10649 = vmatpush1.bf16.msra.mxu0 %v10611
    %10650 = vmatprep.subr.bf16.mxu0 0
    %10651 = vmatpush1.bf16.msra.mxu0 %v10612
    %10652 = vmatprep.subr.bf16.mxu0 0
    %10653 = vmatpush1.bf16.msra.mxu0 %v10613
    %10654 = vmatprep.subr.bf16.mxu0 0
    %10655 = vmatpush1.bf16.msra.mxu0 %v10614
    %10656 = vmatprep.subr.bf16.mxu0 0
    %10657 = vmatpush1.bf16.msra.mxu0 %v10615
    %10658 = vmatprep.subr.bf16.mxu0 0
    %10659 = vmatpush1.bf16.msra.mxu0 %v10616
    %10660 = vmatprep.subr.bf16.mxu0 0
    %10661 = vmatpush1.bf16.msra.mxu0 %v10617
    %10662 = vmatprep.subr.bf16.mxu0 0
    %10663 = vmatpush1.bf16.msra.mxu0 %v10618
    %10664 = vmatprep.subr.bf16.mxu0 0
    %10665 = vmatpush1.bf16.msra.mxu0 %v10619
    %10666 = vmatprep.subr.bf16.mxu0 0
    %10667 = vmatpush1.bf16.msra.mxu0 %v10620
    %10668 = vmatprep.subr.bf16.mxu0 0
    %10669 = vmatpush1.bf16.msra.mxu0 %v10621
    %10670 = vmatprep.mubr.bf16.mxu0 %v10387
    %10671 = vmatmul.mubr.bf16.gmra.mrb[0].mxu0 %v10386
    %v10672 = vpop.f32.mrb[0].mxu0
    %v10673 = vadd.f32 %v10535, %v10672
    %v10674 = vpop.f32.mrb[0].mxu0
    %v10675 = vpop.f32.mrb[0].mxu0
    %v10676 = vpop.f32.mrb[0].mxu0
    %10677 = vdwg.mxu0
    %v10678 = vld [vmem:[#allocation5] sm:$0xee]
    %s10679 = scalar_lea.vmem %s5, 256
    %v10680 = vld [vmem:[%s10679] sm:$0xf]
    %v10681 = vld [vmem:[%s10679 + $0x4] sm:$0xf]
    %v10682 = vld [vmem:[%s10679 + $0x8] sm:$0xf]
    %v10683 = vld [vmem:[%s10679 + $0xc] sm:$0xf]
    %v10684 = vld [vmem:[%s10679 + $0x10] sm:$0xf]
    %v10685 = vld [vmem:[%s10679 + $0x14] sm:$0xf]
    %v10686 = vld [vmem:[%s10679 + $0x18] sm:$0xf]
    %v10687 = vld [vmem:[%s10679 + $0x1c] sm:$0xf]
    %v10688 = vld [vmem:[%s10679 + $0x20] sm:$0xf]
    %v10689 = vld [vmem:[%s10679 + $0x24] sm:$0xf]
    %v10690 = vld [vmem:[%s10679 + $0x28] sm:$0xf]
    %v10691 = vld [vmem:[%s10679 + $0x2c] sm:$0xf]
    %v10692 = vld [vmem:[%s10679 + $0x30] sm:$0xf]
    %v10693 = vld [vmem:[%s10679 + $0x34] sm:$0xf]
    %v10694 = vld [vmem:[%s10679 + $0x38] sm:$0xf]
    %v10695 = vld [vmem:[%s10679 + $0x3c] sm:$0xf]
    %v10696 = vld [vmem:[%s10679 + $0x40] sm:$0xf]
    %v10697 = vld [vmem:[%s10679 + $0x44] sm:$0xf]
    %v10698 = vld [vmem:[%s10679 + $0x48] sm:$0xf]
    %v10699 = vld [vmem:[%s10679 + $0x4c] sm:$0xf]
    %v10700 = vld [vmem:[%s10679 + $0x50] sm:$0xf]
    %v10701 = vld [vmem:[%s10679 + $0x54] sm:$0xf]
    %v10702 = vld [vmem:[%s10679 + $0x58] sm:$0xf]
    %v10703 = vld [vmem:[%s10679 + $0x5c] sm:$0xf]
    %v10704 = vld [vmem:[%s10679 + $0x60] sm:$0xf]
    %v10705 = vld [vmem:[%s10679 + $0x64] sm:$0xf]
    %v10706 = vld [vmem:[%s10679 + $0x68] sm:$0xf]
    %v10707 = vld [vmem:[%s10679 + $0x6c] sm:$0xf]
    %v10708 = vld [vmem:[%s10679 + $0x70] sm:$0xf]
    %v10709 = vld [vmem:[%s10679 + $0x74] sm:$0xf]
    %v10710 = vld [vmem:[%s10679 + $0x78] sm:$0xf]
    %v10711 = vld [vmem:[%s10679 + $0x7c] sm:$0xf]
    %v10713 = vunpack.c.l.b16 %v10678
    %v10714 = vunpack.c.h.b16 %v10678
    %v10715 = vpack.c.b16 %v10713, %v10713
    %v10716 = vpack.c.b16 %v10714, %v10714
    %v10717 = vrot.slane %v10715, 1
    %v10718 = vrot.slane %v10716, 1
    %v10753 = vunpack.c.l.b16 %v10680
    %v10754 = vunpack.c.l.b16 %v10681
    %v10755 = vunpack.c.l.b16 %v10682
    %v10756 = vunpack.c.l.b16 %v10683
    %v10757 = vunpack.c.l.b16 %v10684
    %v10758 = vunpack.c.l.b16 %v10685
    %v10759 = vunpack.c.l.b16 %v10686
    %v10760 = vunpack.c.l.b16 %v10687
    %v10761 = vunpack.c.l.b16 %v10688
    %v10762 = vunpack.c.l.b16 %v10689
    %v10763 = vunpack.c.l.b16 %v10690
    %v10764 = vunpack.c.l.b16 %v10691
    %v10765 = vunpack.c.l.b16 %v10692
    %v10766 = vunpack.c.l.b16 %v10693
    %v10767 = vunpack.c.l.b16 %v10694
    %v10768 = vunpack.c.l.b16 %v10695
    %v10769 = vunpack.c.l.b16 %v10696
    %v10770 = vunpack.c.l.b16 %v10697
    %v10771 = vunpack.c.l.b16 %v10698
    %v10772 = vunpack.c.l.b16 %v10699
    %v10773 = vunpack.c.l.b16 %v10700
    %v10774 = vunpack.c.l.b16 %v10701
    %v10775 = vunpack.c.l.b16 %v10702
    %v10776 = vunpack.c.l.b16 %v10703
    %v10777 = vunpack.c.l.b16 %v10704
    %v10778 = vunpack.c.l.b16 %v10705
    %v10779 = vunpack.c.l.b16 %v10706
    %v10780 = vunpack.c.l.b16 %v10707
    %v10781 = vunpack.c.l.b16 %v10708
    %v10782 = vunpack.c.l.b16 %v10709
    %v10783 = vunpack.c.l.b16 %v10710
    %v10784 = vunpack.c.l.b16 %v10711
    %v10785 = vpack.c.b16 %v10754, %v10753
    %v10786 = vpack.c.b16 %v10756, %v10755
    %v10787 = vpack.c.b16 %v10758, %v10757
    %v10788 = vpack.c.b16 %v10760, %v10759
    %v10789 = vpack.c.b16 %v10762, %v10761
    %v10790 = vpack.c.b16 %v10764, %v10763
    %v10791 = vpack.c.b16 %v10766, %v10765
    %v10792 = vpack.c.b16 %v10768, %v10767
    %v10793 = vpack.c.b16 %v10770, %v10769
    %v10794 = vpack.c.b16 %v10772, %v10771
    %v10795 = vpack.c.b16 %v10774, %v10773
    %v10796 = vpack.c.b16 %v10776, %v10775
    %v10797 = vpack.c.b16 %v10778, %v10777
    %v10798 = vpack.c.b16 %v10780, %v10779
    %v10799 = vpack.c.b16 %v10782, %v10781
    %v10800 = vpack.c.b16 %v10784, %v10783
    %10817 = vmatprep.subr.bf16.mxu0 0
    %10818 = vmatpush1.bf16.msra.mxu0 %v10785
    %10819 = vmatprep.subr.bf16.mxu0 0
    %10820 = vmatpush1.bf16.msra.mxu0 %v10786
    %10821 = vmatprep.subr.bf16.mxu0 0
    %10822 = vmatpush1.bf16.msra.mxu0 %v10787
    %10823 = vmatprep.subr.bf16.mxu0 0
    %10824 = vmatpush1.bf16.msra.mxu0 %v10788
    %10825 = vmatprep.subr.bf16.mxu0 0
    %10826 = vmatpush1.bf16.msra.mxu0 %v10789
    %10827 = vmatprep.subr.bf16.mxu0 0
    %10828 = vmatpush1.bf16.msra.mxu0 %v10790
    %10829 = vmatprep.subr.bf16.mxu0 0
    %10830 = vmatpush1.bf16.msra.mxu0 %v10791
    %10831 = vmatprep.subr.bf16.mxu0 0
    %10832 = vmatpush1.bf16.msra.mxu0 %v10792
    %10833 = vmatprep.subr.bf16.mxu0 0
    %10834 = vmatpush1.bf16.msra.mxu0 %v10793
    %10835 = vmatprep.subr.bf16.mxu0 0
    %10836 = vmatpush1.bf16.msra.mxu0 %v10794
    %10837 = vmatprep.subr.bf16.mxu0 0
    %10838 = vmatpush1.bf16.msra.mxu0 %v10795
    %10839 = vmatprep.subr.bf16.mxu0 0
    %10840 = vmatpush1.bf16.msra.mxu0 %v10796
    %10841 = vmatprep.subr.bf16.mxu0 0
    %10842 = vmatpush1.bf16.msra.mxu0 %v10797
    %10843 = vmatprep.subr.bf16.mxu0 0
    %10844 = vmatpush1.bf16.msra.mxu0 %v10798
    %10845 = vmatprep.subr.bf16.mxu0 0
    %10846 = vmatpush1.bf16.msra.mxu0 %v10799
    %10847 = vmatprep.subr.bf16.mxu0 0
    %10848 = vmatpush1.bf16.msra.mxu0 %v10800
    %10849 = vmatprep.mubr.bf16.mxu0 %v10718
    %10850 = vmatmul.mubr.bf16.gmra.mrb[0].mxu0 %v10717
    %v10851 = vpop.f32.mrb[0].mxu0
    %v10852 = vadd.f32 0.0, %v10851
    %v10853 = vpop.f32.mrb[0].mxu0
    %v10854 = vpop.f32.mrb[0].mxu0
    %v10855 = vpop.f32.mrb[0].mxu0
    %10856 = vdwg.mxu0
    %v10857 = vadd.f32 %v10673, %v10852
    %s10858 = scalar_lea.vmem %s5, 384
    %v10859 = vld [vmem:[%s10858] sm:$0xf]
    %v10860 = vld [vmem:[%s10858 + $0x4] sm:$0xf]
    %v10861 = vld [vmem:[%s10858 + $0x8] sm:$0xf]
    %v10862 = vld [vmem:[%s10858 + $0xc] sm:$0xf]
    %v10863 = vld [vmem:[%s10858 + $0x10] sm:$0xf]
    %v10864 = vld [vmem:[%s10858 + $0x14] sm:$0xf]
    %v10865 = vld [vmem:[%s10858 + $0x18] sm:$0xf]
    %v10866 = vld [vmem:[%s10858 + $0x1c] sm:$0xf]
    %v10867 = vld [vmem:[%s10858 + $0x20] sm:$0xf]
    %v10868 = vld [vmem:[%s10858 + $0x24] sm:$0xf]
    %v10869 = vld [vmem:[%s10858 + $0x28] sm:$0xf]
    %v10870 = vld [vmem:[%s10858 + $0x2c] sm:$0xf]
    %v10871 = vld [vmem:[%s10858 + $0x30] sm:$0xf]
    %v10872 = vld [vmem:[%s10858 + $0x34] sm:$0xf]
    %v10873 = vld [vmem:[%s10858 + $0x38] sm:$0xf]
    %v10874 = vld [vmem:[%s10858 + $0x3c] sm:$0xf]
    %v10875 = vld [vmem:[%s10858 + $0x40] sm:$0xf]
    %v10876 = vld [vmem:[%s10858 + $0x44] sm:$0xf]
    %v10877 = vld [vmem:[%s10858 + $0x48] sm:$0xf]
    %v10878 = vld [vmem:[%s10858 + $0x4c] sm:$0xf]
    %v10879 = vld [vmem:[%s10858 + $0x50] sm:$0xf]
    %v10880 = vld [vmem:[%s10858 + $0x54] sm:$0xf]
    %v10881 = vld [vmem:[%s10858 + $0x58] sm:$0xf]
    %v10882 = vld [vmem:[%s10858 + $0x5c] sm:$0xf]
    %v10883 = vld [vmem:[%s10858 + $0x60] sm:$0xf]
    %v10884 = vld [vmem:[%s10858 + $0x64] sm:$0xf]
    %v10885 = vld [vmem:[%s10858 + $0x68] sm:$0xf]
    %v10886 = vld [vmem:[%s10858 + $0x6c] sm:$0xf]
    %v10887 = vld [vmem:[%s10858 + $0x70] sm:$0xf]
    %v10888 = vld [vmem:[%s10858 + $0x74] sm:$0xf]
    %v10889 = vld [vmem:[%s10858 + $0x78] sm:$0xf]
    %v10890 = vld [vmem:[%s10858 + $0x7c] sm:$0xf]
    %v10892 = vshrl.u32 %v10715, 16
    %v10894 = vrot.slane %v10892, 1
    %v10895 = vshll.u32 %v10715, 16
    %v10897 = vrot.slane %v10895, 2
    %v10898 = vor.u32 %v10894, %v10897
    %v10900 = vshrl.u32 %v10716, 16
    %v10902 = vrot.slane %v10900, 1
    %v10903 = vshll.u32 %v10716, 16
    %v10905 = vrot.slane %v10903, 2
    %v10906 = vor.u32 %v10902, %v10905
    %v10941 = vunpack.c.l.b16 %v10859
    %v10942 = vunpack.c.l.b16 %v10860
    %v10943 = vunpack.c.l.b16 %v10861
    %v10944 = vunpack.c.l.b16 %v10862
    %v10945 = vunpack.c.l.b16 %v10863
    %v10946 = vunpack.c.l.b16 %v10864
    %v10947 = vunpack.c.l.b16 %v10865
    %v10948 = vunpack.c.l.b16 %v10866
    %v10949 = vunpack.c.l.b16 %v10867
    %v10950 = vunpack.c.l.b16 %v10868
    %v10951 = vunpack.c.l.b16 %v10869
    %v10952 = vunpack.c.l.b16 %v10870
    %v10953 = vunpack.c.l.b16 %v10871
    %v10954 = vunpack.c.l.b16 %v10872
    %v10955 = vunpack.c.l.b16 %v10873
    %v10956 = vunpack.c.l.b16 %v10874
    %v10957 = vunpack.c.l.b16 %v10875
    %v10958 = vunpack.c.l.b16 %v10876
    %v10959 = vunpack.c.l.b16 %v10877
    %v10960 = vunpack.c.l.b16 %v10878
    %v10961 = vunpack.c.l.b16 %v10879
    %v10962 = vunpack.c.l.b16 %v10880
    %v10963 = vunpack.c.l.b16 %v10881
    %v10964 = vunpack.c.l.b16 %v10882
    %v10965 = vunpack.c.l.b16 %v10883
    %v10966 = vunpack.c.l.b16 %v10884
    %v10967 = vunpack.c.l.b16 %v10885
    %v10968 = vunpack.c.l.b16 %v10886
    %v10969 = vunpack.c.l.b16 %v10887
    %v10970 = vunpack.c.l.b16 %v10888
    %v10971 = vunpack.c.l.b16 %v10889
    %v10972 = vunpack.c.l.b16 %v10890
    %v10973 = vpack.c.b16 %v10942, %v10941
    %v10974 = vpack.c.b16 %v10944, %v10943
    %v10975 = vpack.c.b16 %v10946, %v10945
    %v10976 = vpack.c.b16 %v10948, %v10947
    %v10977 = vpack.c.b16 %v10950, %v10949
    %v10978 = vpack.c.b16 %v10952, %v10951
    %v10979 = vpack.c.b16 %v10954, %v10953
    %v10980 = vpack.c.b16 %v10956, %v10955
    %v10981 = vpack.c.b16 %v10958, %v10957
    %v10982 = vpack.c.b16 %v10960, %v10959
    %v10983 = vpack.c.b16 %v10962, %v10961
    %v10984 = vpack.c.b16 %v10964, %v10963
    %v10985 = vpack.c.b16 %v10966, %v10965
    %v10986 = vpack.c.b16 %v10968, %v10967
    %v10987 = vpack.c.b16 %v10970, %v10969
    %v10988 = vpack.c.b16 %v10972, %v10971
    %11005 = vmatprep.subr.bf16.mxu0 0
    %11006 = vmatpush1.bf16.msra.mxu0 %v10973
    %11007 = vmatprep.subr.bf16.mxu0 0
    %11008 = vmatpush1.bf16.msra.mxu0 %v10974
    %11009 = vmatprep.subr.bf16.mxu0 0
    %11010 = vmatpush1.bf16.msra.mxu0 %v10975
    %11011 = vmatprep.subr.bf16.mxu0 0
    %11012 = vmatpush1.bf16.msra.mxu0 %v10976
    %11013 = vmatprep.subr.bf16.mxu0 0
    %11014 = vmatpush1.bf16.msra.mxu0 %v10977
    %11015 = vmatprep.subr.bf16.mxu0 0
    %11016 = vmatpush1.bf16.msra.mxu0 %v10978
    %11017 = vmatprep.subr.bf16.mxu0 0
    %11018 = vmatpush1.bf16.msra.mxu0 %v10979
    %11019 = vmatprep.subr.bf16.mxu0 0
    %11020 = vmatpush1.bf16.msra.mxu0 %v10980
    %11021 = vmatprep.subr.bf16.mxu0 0
    %11022 = vmatpush1.bf16.msra.mxu0 %v10981
    %11023 = vmatprep.subr.bf16.mxu0 0
    %11024 = vmatpush1.bf16.msra.mxu0 %v10982
    %11025 = vmatprep.subr.bf16.mxu0 0
    %11026 = vmatpush1.bf16.msra.mxu0 %v10983
    %11027 = vmatprep.subr.bf16.mxu0 0
    %11028 = vmatpush1.bf16.msra.mxu0 %v10984
    %11029 = vmatprep.subr.bf16.mxu0 0
    %11030 = vmatpush1.bf16.msra.mxu0 %v10985
    %11031 = vmatprep.subr.bf16.mxu0 0
    %11032 = vmatpush1.bf16.msra.mxu0 %v10986
    %11033 = vmatprep.subr.bf16.mxu0 0
    %11034 = vmatpush1.bf16.msra.mxu0 %v10987
    %11035 = vmatprep.subr.bf16.mxu0 0
    %11036 = vmatpush1.bf16.msra.mxu0 %v10988
    %11037 = vmatprep.mubr.bf16.mxu0 %v10906
    %11038 = vmatmul.mubr.bf16.gmra.mrb[0].mxu0 %v10898
    %v11039 = vpop.f32.mrb[0].mxu0
    %v11040 = vadd.f32 0.0, %v11039
    %v11041 = vpop.f32.mrb[0].mxu0
    %v11042 = vpop.f32.mrb[0].mxu0
    %v11043 = vpop.f32.mrb[0].mxu0
    %11044 = vdwg.mxu0
    %v11045 = vadd.f32 %v10857, %v11040
    %v11046 = vld [vmem:[#allocation10] sm:$0x3]
    %vm11047 = vcmask 39936
    %v11049 = vsel %vm11047, %v11046, 0
    %vm11051 = vcmask 1044480
    %v11053 = vsel %vm11051, %v11045, 0
    %11055 = vmatprep.subr.mxu0 0.0
    %11056 = vmatpush1.msra.mxu0 %v11053
    %11057 = vmatprep.subr.mxu0 0.0
    %11058 = vmatpush1.msra.mxu0 0.0
    %11059 = vmatprep.subr.mxu0 0.0
    %11060 = vmatpush1.msra.mxu0 0.0
    %11061 = vmatprep.subr.mxu0 0.0
    %11062 = vmatpush1.msra.mxu0 0.0
    %11063 = vmatprep.subr.mxu0 0.0
    %11064 = vmatpush1.msra.mxu0 0.0
    %11065 = vmatprep.subr.mxu0 0.0
    %11066 = vmatpush1.msra.mxu0 0.0
    %11067 = vmatprep.subr.mxu0 0.0
    %11068 = vmatpush1.msra.mxu0 0.0
    %11069 = vmatprep.subr.mxu0 0.0
    %11070 = vmatpush1.msra.mxu0 0.0
    %11071 = vmatprep.subr.mxu0 0.0
    %11072 = vmatpush1.msra.mxu0 0.0
    %11073 = vmatprep.subr.mxu0 0.0
    %11074 = vmatpush1.msra.mxu0 0.0
    %11075 = vmatprep.subr.mxu0 0.0
    %11076 = vmatpush1.msra.mxu0 0.0
    %11077 = vmatprep.subr.mxu0 0.0
    %11078 = vmatpush1.msra.mxu0 0.0
    %11079 = vmatprep.subr.mxu0 0.0
    %11080 = vmatpush1.msra.mxu0 0.0
    %11081 = vmatprep.subr.mxu0 0.0
    %11082 = vmatpush1.msra.mxu0 0.0
    %11083 = vmatprep.subr.mxu0 0.0
    %11084 = vmatpush1.msra.mxu0 0.0
    %11085 = vmatprep.subr.mxu0 0.0
    %11086 = vmatpush1.msra.mxu0 0.0
    %11087 = vmatprep.subr.mxu0 0.0
    %11088 = vmatpush1.msra.mxu0 0.0
    %11089 = vmatprep.subr.mxu0 0.0
    %11090 = vmatpush1.msra.mxu0 0.0
    %11091 = vmatprep.subr.mxu0 0.0
    %11092 = vmatpush1.msra.mxu0 0.0
    %11093 = vmatprep.subr.mxu0 0.0
    %11094 = vmatpush1.msra.mxu0 0.0
    %11095 = vmatprep.subr.mxu0 0.0
    %11096 = vmatpush1.msra.mxu0 0.0
    %11097 = vmatprep.subr.mxu0 0.0
    %11098 = vmatpush1.msra.mxu0 0.0
    %11099 = vmatprep.subr.mxu0 0.0
    %11100 = vmatpush1.msra.mxu0 0.0
    %11101 = vmatprep.subr.mxu0 0.0
    %11102 = vmatpush1.msra.mxu0 0.0
    %11103 = vmatprep.subr.mxu0 0.0
    %11104 = vmatpush1.msra.mxu0 0.0
    %11105 = vmatprep.subr.mxu0 0.0
    %11106 = vmatpush1.msra.mxu0 0.0
    %11107 = vmatprep.subr.mxu0 0.0
    %11108 = vmatpush1.msra.mxu0 0.0
    %11109 = vmatprep.subr.mxu0 0.0
    %11110 = vmatpush1.msra.mxu0 0.0
    %11111 = vmatprep.subr.mxu0 0.0
    %11112 = vmatpush1.msra.mxu0 0.0
    %11113 = vmatprep.subr.mxu0 0.0
    %11114 = vmatpush1.msra.mxu0 0.0
    %11115 = vmatprep.subr.mxu0 0.0
    %11116 = vmatpush1.msra.mxu0 0.0
    %11117 = vmatprep.subr.mxu0 0.0
    %11118 = vmatpush1.msra.mxu0 0.0
    %11119 = vmatprep.mubr.f32.mxu0 0.0
    %11120 = vmatmul.mubr.f32.gmra.mrb[0].mxu0 %v11049
    %v11121 = vpop.f32.mrb[0].mxu0
    %v11122 = vadd.f32 0.0, %v11121
    %v11123 = vpop.f32.mrb[0].mxu0
    %11124 = vdwg.mxu0
    %v11125 = vsub.f32 0.0, %v11122
    %v11126 = vmul.f32 %v11125, 1.442695
    %v11127 = vpow.pop %v11126
    %v11128 = vadd.f32 %v11127, 1.0
    %v11129 = vrcp.pop %v11128
    %v11130 = vmul.f32 1.0, %v11129
    %vm11131 = vcmask 1024
    %11132 = vst.msk [vmem:[%s19] sm:$0x3] %vm11131, %v11130
    // Predicated region
    $region106: #{forward.1} parent=1 // pred_check
      _
    $region107: #{forward.1} parent=1 // pred_check_branch
      %11134 = sbr.rel (0) target = $region109
    $region108: #{forward.1} parent=1 // pred_region
      _
    $region109: #{forward.1} parent=1 // pred_fallthru
      _
    // Predicated region
    $region110: #{forward.1} parent=1 // pred_check
      _
    $region111: #{forward.1} parent=1 // pred_check_branch
      %11136 = sbr.rel (0) target = $region113
    $region112: #{forward.1} parent=1 // pred_region
      _
    $region113: #{forward.1} parent=1 // pred_fallthru
      _
    %11137 = vsyncpa [#allocation7], 1
    %11138 = vsyncpa [#allocation9], 1
    %11139 = vsyncpa [#allocation12], 1
    %11140 = vsyncpa [#allocation15], 1

</llo_original>
